<compile_context>
chip_gen: v7x
topology: tpu7x:2x2x1
jax: 0.10.0
libtpu: 0.0.40
codegen_flags: <defaults>
</compile_context>

<pallas_src>
import functools

import jax
import jax.numpy as jnp
from jax.experimental import pallas as pl
from jax.experimental.pallas import tpu as pltpu

LANE = 128        # pad feature dims to multiples of the lane width (dense stores / MXU tiles)
NODE_TILE = 256   # adjacency row/col tile: 256-multiples feed the 2x256^2 MXU on v6e/v7x;
                  # still fine on v5e (4x128^2). Shrink toward 128 on v7x if VMEM gets tight.


def _round_up(x, m):
    return (x + m - 1) // m * m


def _pad2(a, rows, cols):
    r, c = a.shape
    return jnp.pad(a, ((0, rows - r), (0, cols - c)))


def _vmem_limit_bytes(pipeline_block_bytes, scratch_bytes=0):
    """Scoped-VMEM request: double-buffered pipeline blocks + scratch, with headroom."""
    need = 2 * pipeline_block_bytes + scratch_bytes
    return int(min(max(2 * need + (4 << 20), 16 << 20), 48 << 20))


# ------------------------------------------------------------------ kernels ---
def feat_transform_kernel(h_ref, w_cat_ref, o_ref):
    """cat = h @ [W_rel | W_root]  — one fused matmul, bf16 operands, f32 MXU accumulation."""
    o_ref[...] = jnp.dot(h_ref[...], w_cat_ref[...],
                         preferred_element_type=jnp.float32).astype(o_ref.dtype)


def aggregate_kernel(a_ref, rel_ref, root_ref, b_ref, o_ref, acc_ref, *, apply_relu):
    """out[i] = sum_k A[i,k] @ rel[k] + root[i] + b   (optional ReLU).

    A is streamed from HBM tile-by-tile (grid axis k = reduction, 'arbitrary');
    acc_ref is an f32 VMEM accumulator persisting across the k axis.
    """
    k = pl.program_id(1)

    @pl.when(k == 0)
    def _():
        acc_ref[...] = jnp.zeros_like(acc_ref)

    acc_ref[...] += jnp.dot(a_ref[...], rel_ref[...],
                            preferred_element_type=jnp.float32)

    @pl.when(k == pl.num_programs(1) - 1)
    def _():
        out = acc_ref[...] + root_ref[...].astype(jnp.float32) + b_ref[...]
        if apply_relu:
            out = jnp.maximum(out, 0.0)
        o_ref[...] = out.astype(o_ref.dtype)


# ---------------------------------------------------------------- one layer ---
def graphconv_layer(h, adj, w_cat, bias, *, relu, out_dtype, tile=NODE_TILE):
    """One GraphConv layer: out = A @ (h @ W_rel) + h @ W_root + b  (optional ReLU).

    h:     [N_pad, F_in_pad]        bf16 (row-tiled through VMEM)
    adj:   [N_pad, N_pad]           bf16 (streamed from HBM in (tile, tile) blocks)
    w_cat: [F_in_pad, 2*F_out_pad]  bf16 ([W_rel | W_root])
    bias:  [1, F_out_pad]           f32
    """
    n_pad, f_in_pad = h.shape
    two_f = w_cat.shape[1]
    f_out_pad = two_f // 2
    n_i = n_pad // tile
    n_k = n_pad // tile
    bpe = 2  # bf16 bytes

    # ---- 1) feature transform: cat = h @ [W_rel | W_root] --------------------
    feat_blocks = (tile * f_in_pad * bpe + f_in_pad * two_f * bpe + tile * two_f * bpe)
    cat = pl.pallas_call(
        feat_transform_kernel,
        out_shape=jax.ShapeDtypeStruct((n_pad, two_f), jnp.bfloat16),
        grid_spec=pltpu.PrefetchScalarGridSpec(
            num_scalar_prefetch=0,
            grid=(n_i,),
            in_specs=[pl.BlockSpec((tile, f_in_pad), lambda i: (i, 0)),
                      pl.BlockSpec((f_in_pad, two_f), lambda i: (0, 0))],
            out_specs=pl.BlockSpec((tile, two_f), lambda i: (i, 0))),
        compiler_params=pltpu.CompilerParams(
            dimension_semantics=("parallel",),
            vmem_limit_bytes=_vmem_limit_bytes(feat_blocks)),
        cost_estimate=pl.CostEstimate(
            flops=2 * n_pad * f_in_pad * two_f,
            transcendentals=0,
            bytes_accessed=(n_pad * f_in_pad + f_in_pad * two_f + n_pad * two_f) * bpe),
    )(h, w_cat)

    # ---- 2) aggregation: out = A @ rel + root + b  (A streamed from HBM) -----
    out_bpe = jnp.dtype(out_dtype).itemsize
    agg_blocks = (tile * tile * bpe            # A tile
                  + tile * f_out_pad * bpe     # rel tile
                  + tile * f_out_pad * bpe     # root tile
                  + 8 * f_out_pad * 4          # bias (sublane-padded)
                  + tile * f_out_pad * out_bpe)
    acc_bytes = tile * f_out_pad * 4

    out = pl.pallas_call(
        functools.partial(aggregate_kernel, apply_relu=relu),
        out_shape=jax.ShapeDtypeStruct((n_pad, f_out_pad), out_dtype),
        grid_spec=pltpu.PrefetchScalarGridSpec(
            num_scalar_prefetch=0,
            grid=(n_i, n_k),
            in_specs=[
                pl.BlockSpec((tile, tile), lambda i, k: (i, k)),        # A[i, k] tile
                pl.BlockSpec((tile, f_out_pad), lambda i, k: (k, 0)),   # rel  = cat[:, :F] rows k
                pl.BlockSpec((tile, f_out_pad), lambda i, k: (i, 1)),   # root = cat[:, F:] rows i
                pl.BlockSpec((1, f_out_pad), lambda i, k: (0, 0)),      # bias
            ],
            out_specs=pl.BlockSpec((tile, f_out_pad), lambda i, k: (i, 0)),
            scratch_shapes=[pltpu.VMEM((tile, f_out_pad), jnp.float32)]),
        compiler_params=pltpu.CompilerParams(
            dimension_semantics=("parallel", "arbitrary"),
            vmem_limit_bytes=_vmem_limit_bytes(agg_blocks, acc_bytes)),
        cost_estimate=pl.CostEstimate(
            flops=2 * n_pad * n_pad * f_out_pad,
            transcendentals=0,
            bytes_accessed=(n_pad * n_pad * bpe + 2 * n_pad * f_out_pad * bpe
                            + n_pad * f_out_pad * out_bpe)),
    )(adj, cat, cat, bias)
    return out


# ----------------------------------------------------------------- wrappers ---
def dense_weighted_adjacency(edge_index, edge_weight, num_nodes_pad):
    """A[i, j] = sum of weights over edges j -> i (edge_index = [src; dst]).

    Built in f32 (scatter-add precision) then stored as bf16 for the MXU.
    For a static graph this runs once, outside the jitted forward.
    """
    src, dst = edge_index[0], edge_index[1]
    adj = jnp.zeros((num_nodes_pad, num_nodes_pad), jnp.float32)
    adj = adj.at[dst, src].add(edge_weight.astype(jnp.float32))
    return adj.astype(jnp.bfloat16)


def prepare_params(params):
    """Pad each layer's (W_rel, W_root, b), fuse W_cat = [W_rel | W_root], cast to bf16."""
    prepped = []
    for (w_rel, w_root, b) in params:
        f_in, f_out = w_rel.shape
        f_in_p, f_out_p = _round_up(f_in, LANE), _round_up(f_out, LANE)
        w_cat = jnp.concatenate(
            [_pad2(w_rel, f_in_p, f_out_p), _pad2(w_root, f_in_p, f_out_p)],
            axis=1).astype(jnp.bfloat16)
        prepped.append((w_cat, _pad2(b, 1, f_out_p).astype(jnp.float32)))
    return tuple(prepped)


@jax.jit
def encoder_forward_padded(x_pad, adj, prepped):
    (w1, b1), (w2, b2), (w3, b3) = prepped
    # conv1 + ReLU (+ dropout = identity in inference mode)
    h = graphconv_layer(x_pad, adj, w1, b1, relu=True, out_dtype=jnp.bfloat16)
    # conv2 + ReLU (+ dropout = identity in inference mode)
    h = graphconv_layer(h, adj, w2, b2, relu=True, out_dtype=jnp.bfloat16)
    # conv3
    h = graphconv_layer(h, adj, w3, b3, relu=False, out_dtype=jnp.float32)
    return h


def encoder_forward(x, edge_index, edge_weight, params):
    """Host-level wrapper: pad/pack graph + params (cacheable for static graphs),
    run the fused Pallas layers, slice back to logical shape."""
    n, f_in = x.shape
    f_out = params[-1][0].shape[1]
    n_pad = _round_up(n, NODE_TILE)
    f_in_p = _round_up(f_in, LANE)

    adj = dense_weighted_adjacency(edge_index, edge_weight, n_pad)     # cache if graph static
    x_pad = jnp.zeros((n_pad, f_in_p), jnp.bfloat16).at[:n, :f_in].set(
        x.astype(jnp.bfloat16))
    prepped = prepare_params(params)                                    # cache if params static

    out_pad = encoder_forward_padded(x_pad, adj, prepped)
    return out_pad[:n, :f_out]


def init_graphconv_params(key, f_in, f_out):
    """Deterministic Glorot-uniform-ish init matching GraphConv's two Linears + bias."""
    k_rel, k_root = jax.random.split(key)
    limit = jnp.sqrt(6.0 / (f_in + f_out))
    w_rel = jax.random.uniform(k_rel, (f_in, f_out), jnp.float32, -limit, limit)
    w_root = jax.random.uniform(k_root, (f_in, f_out), jnp.float32, -limit, limit)
    b = jnp.zeros((1, f_out), jnp.float32)
    return w_rel, w_root, b


if __name__ == "__main__":
    # small, deterministic problem (pads to N_pad=512 -> a 2x2 grid of 256-wide A tiles,
    # exercising both the accumulation axis and the parallel row axis)
    NUM_NODES = 300
    IN_CHANNELS = 8
    HIDDEN_CHANNELS = 32
    OUT_CHANNELS = 16
    NUM_EDGES = 900

    root = jax.random.PRNGKey(0)
    k_x, k_src, k_dst, k_w, k_p1, k_p2, k_p3 = jax.random.split(root, 7)

    x = jax.random.normal(k_x, (NUM_NODES, IN_CHANNELS), jnp.float32)
    src = jax.random.randint(k_src, (NUM_EDGES,), 0, NUM_NODES, jnp.int32)
    dst = jax.random.randint(k_dst, (NUM_EDGES,), 0, NUM_NODES, jnp.int32)
    edge_index = jnp.stack([src, dst], axis=0)                         # [2, E]
    edge_weight = jax.random.uniform(k_w, (NUM_EDGES,), jnp.float32)   # [E]

    params = (
        init_graphconv_params(k_p1, IN_CHANNELS, HIDDEN_CHANNELS),     # conv1 (-1 -> hidden)
        init_graphconv_params(k_p2, HIDDEN_CHANNELS, HIDDEN_CHANNELS), # conv2
        init_graphconv_params(k_p3, HIDDEN_CHANNELS, OUT_CHANNELS),    # conv3
    )

    out = encoder_forward(x, edge_index, edge_weight, params)
    jax.block_until_ready(out)

    assert out.shape == (NUM_NODES, OUT_CHANNELS), out.shape
    assert out.dtype == jnp.float32, out.dtype
    assert bool(jnp.all(jnp.isfinite(out))), "non-finite output"
    print("KERNEL_OK")
</pallas_src>

<mosaic_0001>
module attributes {stable_mosaic.version = 11 : i64} {
  func.func @aggregate_kernel(%arg0: i32, %arg1: i32, %arg2: memref<256x256xbf16, #tpu.memory_space<vmem>>, %arg3: memref<256x128xbf16, #tpu.memory_space<vmem>>, %arg4: memref<256x128xbf16, #tpu.memory_space<vmem>>, %arg5: memref<1x128xf32, #tpu.memory_space<vmem>>, %arg6: memref<256x128xbf16, #tpu.memory_space<vmem>>, %arg7: memref<256x128xf32, #tpu.memory_space<vmem>>) attributes {dimension_semantics = [#tpu.dimension_semantics<parallel>, #tpu.dimension_semantics<arbitrary>], iteration_bounds = array<i64: 2, 2>, scalar_prefetch = 0 : i64, scratch_operands = 1 : i64, tpu.core_type = #tpu.core_type<tc>, window_params = [{transform_indices = @transform_0, window_bounds = array<i64: 256, 256>}, {transform_indices = @transform_1, window_bounds = array<i64: 256, 128>}, {transform_indices = @transform_2, window_bounds = array<i64: 256, 128>}, {pipeline_mode = #tpu.pipeline_mode<synchronous>, transform_indices = @transform_3, window_bounds = array<i64: 1, 128>}, {transform_indices = @transform_4, window_bounds = array<i64: 256, 128>}]} {
    %c0_i32 = arith.constant 0 : i32
    %0 = arith.cmpi eq, %arg1, %c0_i32 : i32
    %1 = arith.extui %0 : i1 to i32
    %c0_i32_0 = arith.constant 0 : i32
    %2 = arith.cmpi ne, %1, %c0_i32_0 : i32
    scf.if %2 {
      %cst_9 = arith.constant 0.000000e+00 : f32
      %12 = vector.broadcast %cst_9 : f32 to vector<256x128xf32>
      %c0_10 = arith.constant 0 : index
      %c0_11 = arith.constant 0 : index
      %13 = vector.load %arg7[%c0_10, %c0_11] : memref<256x128xf32, #tpu.memory_space<vmem>>, vector<256x128xf32>
      tpu.vector_store %arg7[%c0_10, %c0_11], %12 {strides = array<i32>} : memref<256x128xf32, #tpu.memory_space<vmem>>, vector<256x128xf32>,
    } else {
    }
    %c0 = arith.constant 0 : index
    %c0_1 = arith.constant 0 : index
    %3 = vector.load %arg7[%c0, %c0_1] : memref<256x128xf32, #tpu.memory_space<vmem>>, vector<256x128xf32>
    %c0_2 = arith.constant 0 : index
    %c0_3 = arith.constant 0 : index
    %4 = vector.load %arg2[%c0_2, %c0_3] : memref<256x256xbf16, #tpu.memory_space<vmem>>, vector<256x256xbf16>
    %c0_4 = arith.constant 0 : index
    %c0_5 = arith.constant 0 : index
    %5 = vector.load %arg3[%c0_4, %c0_5] : memref<256x128xbf16, #tpu.memory_space<vmem>>, vector<256x128xbf16>
    %cst = arith.constant dense<0.000000e+00> : vector<256x128xf32>
    %6 = tpu.matmul %4, %5, %cst {dimension_numbers = #tpu.dot_dimension_numbers<[1], [0], [0], [1], [0, 0, 1, 1], [], []>} : vector<256x256xbf16>, vector<256x128xbf16>, vector<256x128xf32> -> vector<256x128xf32>
    %7 = arith.addf %3, %6 : vector<256x128xf32>
    %c0_6 = arith.constant 0 : index
    %c0_7 = arith.constant 0 : index
    %8 = vector.load %arg7[%c0_6, %c0_7] : memref<256x128xf32, #tpu.memory_space<vmem>>, vector<256x128xf32>
    tpu.vector_store %arg7[%c0_6, %c0_7], %7 {strides = array<i32>} : memref<256x128xf32, #tpu.memory_space<vmem>>, vector<256x128xf32>,
    %c1_i32 = arith.constant 1 : i32
    %9 = arith.cmpi eq, %arg1, %c1_i32 : i32
    %10 = arith.extui %9 : i1 to i32
    %c0_i32_8 = arith.constant 0 : i32
    %11 = arith.cmpi ne, %10, %c0_i32_8 : i32
    scf.if %11 {
      %c0_9 = arith.constant 0 : index
      %c0_10 = arith.constant 0 : index
      %12 = vector.load %arg7[%c0_9, %c0_10] : memref<256x128xf32, #tpu.memory_space<vmem>>, vector<256x128xf32>
      %c0_11 = arith.constant 0 : index
      %c0_12 = arith.constant 0 : index
      %13 = vector.load %arg4[%c0_11, %c0_12] : memref<256x128xbf16, #tpu.memory_space<vmem>>, vector<256x128xbf16>
      %14 = arith.extf %13 : vector<256x128xbf16> to vector<256x128xf32>
      %15 = arith.addf %12, %14 : vector<256x128xf32>
      %c0_13 = arith.constant 0 : index
      %c0_14 = arith.constant 0 : index
      %16 = vector.load %arg5[%c0_13, %c0_14] : memref<1x128xf32, #tpu.memory_space<vmem>>, vector<1x128xf32>
      %17 = vector.broadcast %16 : vector<1x128xf32> to vector<256x128xf32>
      %18 = arith.addf %15, %17 : vector<256x128xf32>
      %cst_15 = arith.constant 0.000000e+00 : f32
      %19 = vector.broadcast %cst_15 : f32 to vector<256x128xf32>
      %20 = arith.maximumf %18, %19 : vector<256x128xf32>
      %21 = arith.truncf %20 : vector<256x128xf32> to vector<256x128xbf16>
      %c0_16 = arith.constant 0 : index
      %c0_17 = arith.constant 0 : index
      %22 = vector.load %arg6[%c0_16, %c0_17] : memref<256x128xbf16, #tpu.memory_space<vmem>>, vector<256x128xbf16>
      tpu.vector_store %arg6[%c0_16, %c0_17], %21 {strides = array<i32>} : memref<256x128xbf16, #tpu.memory_space<vmem>>, vector<256x128xbf16>,
    } else {
    }
    return
  }
  func.func @transform_0(%arg0: i32, %arg1: i32) -> (i32, i32) {
    %c0_i32 = arith.constant 0 : i32
    return %arg0, %arg1 : i32, i32
  }
  func.func @transform_1(%arg0: i32, %arg1: i32) -> (i32, i32) {
    %c0_i32 = arith.constant 0 : i32
    %c0_i32_0 = arith.constant 0 : i32
    return %arg1, %c0_i32 : i32, i32
  }
  func.func @transform_2(%arg0: i32, %arg1: i32) -> (i32, i32) {
    %c1_i32 = arith.constant 1 : i32
    %c0_i32 = arith.constant 0 : i32
    return %arg0, %c1_i32 : i32, i32
  }
  func.func @transform_3(%arg0: i32, %arg1: i32) -> (i32, i32) {
    %c0_i32 = arith.constant 0 : i32
    %c0_i32_0 = arith.constant 0 : i32
    %c0_i32_1 = arith.constant 0 : i32
    return %c0_i32, %c0_i32_0 : i32, i32
  }
  func.func @transform_4(%arg0: i32, %arg1: i32) -> (i32, i32) {
    %c0_i32 = arith.constant 0 : i32
    %c0_i32_0 = arith.constant 0 : i32
    return %arg0, %c0_i32 : i32, i32
  }
}

module attributes {stable_mosaic.version = 11 : i64} {
  func.func @aggregate_kernel(%arg0: i32, %arg1: i32, %arg2: memref<256x256xbf16, #tpu.memory_space<vmem>>, %arg3: memref<256x128xbf16, #tpu.memory_space<vmem>>, %arg4: memref<256x128xbf16, #tpu.memory_space<vmem>>, %arg5: memref<1x128xf32, #tpu.memory_space<vmem>>, %arg6: memref<256x128xbf16, #tpu.memory_space<vmem>>, %arg7: memref<256x128xf32, #tpu.memory_space<vmem>>) attributes {dimension_semantics = [#tpu.dimension_semantics<parallel>, #tpu.dimension_semantics<arbitrary>], iteration_bounds = array<i64: 2, 2>, scalar_prefetch = 0 : i64, scratch_operands = 1 : i64, tpu.core_type = #tpu.core_type<tc>, window_params = [{transform_indices = @transform_0, window_bounds = array<i64: 256, 256>}, {transform_indices = @transform_1, window_bounds = array<i64: 256, 128>}, {transform_indices = @transform_2, window_bounds = array<i64: 256, 128>}, {pipeline_mode = #tpu.pipeline_mode<synchronous>, transform_indices = @transform_3, window_bounds = array<i64: 1, 128>}, {transform_indices = @transform_4, window_bounds = array<i64: 256, 128>}]} {
    %c0_i32 = arith.constant 0 : i32
    %0 = arith.cmpi eq, %arg1, %c0_i32 : i32
    %1 = arith.extui %0 : i1 to i32
    %c0_i32_0 = arith.constant 0 : i32
    %2 = arith.cmpi ne, %1, %c0_i32_0 : i32
    scf.if %2 {
      %cst_9 = arith.constant 0.000000e+00 : f32
      %12 = vector.broadcast %cst_9 : f32 to vector<256x128xf32>
      %c0_10 = arith.constant 0 : index
      %c0_11 = arith.constant 0 : index
      %13 = vector.load %arg7[%c0_10, %c0_11] : memref<256x128xf32, #tpu.memory_space<vmem>>, vector<256x128xf32>
      tpu.vector_store %arg7[%c0_10, %c0_11], %12 {strides = array<i32>} : memref<256x128xf32, #tpu.memory_space<vmem>>, vector<256x128xf32>,
    } else {
    }
    %c0 = arith.constant 0 : index
    %c0_1 = arith.constant 0 : index
    %3 = vector.load %arg7[%c0, %c0_1] : memref<256x128xf32, #tpu.memory_space<vmem>>, vector<256x128xf32>
    %c0_2 = arith.constant 0 : index
    %c0_3 = arith.constant 0 : index
    %4 = vector.load %arg2[%c0_2, %c0_3] : memref<256x256xbf16, #tpu.memory_space<vmem>>, vector<256x256xbf16>
    %c0_4 = arith.constant 0 : index
    %c0_5 = arith.constant 0 : index
    %5 = vector.load %arg3[%c0_4, %c0_5] : memref<256x128xbf16, #tpu.memory_space<vmem>>, vector<256x128xbf16>
    %cst = arith.constant dense<0.000000e+00> : vector<256x128xf32>
    %6 = tpu.matmul %4, %5, %cst {dimension_numbers = #tpu.dot_dimension_numbers<[1], [0], [0], [1], [0, 0, 1, 1], [], []>} : vector<256x256xbf16>, vector<256x128xbf16>, vector<256x128xf32> -> vector<256x128xf32>
    %7 = arith.addf %3, %6 : vector<256x128xf32>
    %c0_6 = arith.constant 0 : index
    %c0_7 = arith.constant 0 : index
    %8 = vector.load %arg7[%c0_6, %c0_7] : memref<256x128xf32, #tpu.memory_space<vmem>>, vector<256x128xf32>
    tpu.vector_store %arg7[%c0_6, %c0_7], %7 {strides = array<i32>} : memref<256x128xf32, #tpu.memory_space<vmem>>, vector<256x128xf32>,
    %c1_i32 = arith.constant 1 : i32
    %9 = arith.cmpi eq, %arg1, %c1_i32 : i32
    %10 = arith.extui %9 : i1 to i32
    %c0_i32_8 = arith.constant 0 : i32
    %11 = arith.cmpi ne, %10, %c0_i32_8 : i32
    scf.if %11 {
      %c0_9 = arith.constant 0 : index
      %c0_10 = arith.constant 0 : index
      %12 = vector.load %arg7[%c0_9, %c0_10] : memref<256x128xf32, #tpu.memory_space<vmem>>, vector<256x128xf32>
      %c0_11 = arith.constant 0 : index
      %c0_12 = arith.constant 0 : index
      %13 = vector.load %arg4[%c0_11, %c0_12] : memref<256x128xbf16, #tpu.memory_space<vmem>>, vector<256x128xbf16>
      %14 = arith.extf %13 : vector<256x128xbf16> to vector<256x128xf32>
      %15 = arith.addf %12, %14 : vector<256x128xf32>
      %c0_13 = arith.constant 0 : index
      %c0_14 = arith.constant 0 : index
      %16 = vector.load %arg5[%c0_13, %c0_14] : memref<1x128xf32, #tpu.memory_space<vmem>>, vector<1x128xf32>
      %17 = vector.broadcast %16 : vector<1x128xf32> to vector<256x128xf32>
      %18 = arith.addf %15, %17 : vector<256x128xf32>
      %cst_15 = arith.constant 0.000000e+00 : f32
      %19 = vector.broadcast %cst_15 : f32 to vector<256x128xf32>
      %20 = arith.maximumf %18, %19 : vector<256x128xf32>
      %21 = arith.truncf %20 : vector<256x128xf32> to vector<256x128xbf16>
      %c0_16 = arith.constant 0 : index
      %c0_17 = arith.constant 0 : index
      %22 = vector.load %arg6[%c0_16, %c0_17] : memref<256x128xbf16, #tpu.memory_space<vmem>>, vector<256x128xbf16>
      tpu.vector_store %arg6[%c0_16, %c0_17], %21 {strides = array<i32>} : memref<256x128xbf16, #tpu.memory_space<vmem>>, vector<256x128xbf16>,
    } else {
    }
    return
  }
  func.func @transform_0(%arg0: i32, %arg1: i32) -> (i32, i32) {
    %c0_i32 = arith.constant 0 : i32
    return %arg0, %arg1 : i32, i32
  }
  func.func @transform_1(%arg0: i32, %arg1: i32) -> (i32, i32) {
    %c0_i32 = arith.constant 0 : i32
    %c0_i32_0 = arith.constant 0 : i32
    return %arg1, %c0_i32 : i32, i32
  }
  func.func @transform_2(%arg0: i32, %arg1: i32) -> (i32, i32) {
    %c1_i32 = arith.constant 1 : i32
    %c0_i32 = arith.constant 0 : i32
    return %arg0, %c1_i32 : i32, i32
  }
  func.func @transform_3(%arg0: i32, %arg1: i32) -> (i32, i32) {
    %c0_i32 = arith.constant 0 : i32
    %c0_i32_0 = arith.constant 0 : i32
    %c0_i32_1 = arith.constant 0 : i32
    return %c0_i32, %c0_i32_0 : i32, i32
  }
  func.func @transform_4(%arg0: i32, %arg1: i32) -> (i32, i32) {
    %c0_i32 = arith.constant 0 : i32
    %c0_i32_0 = arith.constant 0 : i32
    return %arg0, %c0_i32 : i32, i32
  }
}

module attributes {stable_mosaic.version = 11 : i64} {
  func.func @feat_transform_kernel(%arg0: i32, %arg1: memref<256x128xbf16, #tpu.memory_space<vmem>>, %arg2: memref<128x256xbf16, #tpu.memory_space<vmem>>, %arg3: memref<256x256xbf16, #tpu.memory_space<vmem>>) attributes {dimension_semantics = [#tpu.dimension_semantics<parallel>], iteration_bounds = array<i64: 2>, scalar_prefetch = 0 : i64, scratch_operands = 0 : i64, tpu.core_type = #tpu.core_type<tc>, window_params = [{transform_indices = @transform_0, window_bounds = array<i64: 256, 128>}, {pipeline_mode = #tpu.pipeline_mode<synchronous>, transform_indices = @transform_1, window_bounds = array<i64: 128, 256>}, {transform_indices = @transform_2, window_bounds = array<i64: 256, 256>}]} {
    %c0 = arith.constant 0 : index
    %c0_0 = arith.constant 0 : index
    %0 = vector.load %arg1[%c0, %c0_0] : memref<256x128xbf16, #tpu.memory_space<vmem>>, vector<256x128xbf16>
    %c0_1 = arith.constant 0 : index
    %c0_2 = arith.constant 0 : index
    %1 = vector.load %arg2[%c0_1, %c0_2] : memref<128x256xbf16, #tpu.memory_space<vmem>>, vector<128x256xbf16>
    %cst = arith.constant dense<0.000000e+00> : vector<256x256xf32>
    %2 = tpu.matmul %0, %1, %cst {dimension_numbers = #tpu.dot_dimension_numbers<[1], [0], [0], [1], [0, 0, 1, 1], [], []>} : vector<256x128xbf16>, vector<128x256xbf16>, vector<256x256xf32> -> vector<256x256xf32>
    %3 = arith.truncf %2 : vector<256x256xf32> to vector<256x256xbf16>
    %c0_3 = arith.constant 0 : index
    %c0_4 = arith.constant 0 : index
    %4 = vector.load %arg3[%c0_3, %c0_4] : memref<256x256xbf16, #tpu.memory_space<vmem>>, vector<256x256xbf16>
    tpu.vector_store %arg3[%c0_3, %c0_4], %3 {strides = array<i32>} : memref<256x256xbf16, #tpu.memory_space<vmem>>, vector<256x256xbf16>,
    return
  }
  func.func @transform_0(%arg0: i32) -> (i32, i32) {
    %c0_i32 = arith.constant 0 : i32
    %c0_i32_0 = arith.constant 0 : i32
    return %arg0, %c0_i32 : i32, i32
  }
  func.func @transform_1(%arg0: i32) -> (i32, i32) {
    %c0_i32 = arith.constant 0 : i32
    %c0_i32_0 = arith.constant 0 : i32
    %c0_i32_1 = arith.constant 0 : i32
    return %c0_i32, %c0_i32_0 : i32, i32
  }
  func.func @transform_2(%arg0: i32) -> (i32, i32) {
    %c0_i32 = arith.constant 0 : i32
    %c0_i32_0 = arith.constant 0 : i32
    return %arg0, %c0_i32 : i32, i32
  }
}

module attributes {stable_mosaic.version = 11 : i64} {
  func.func @feat_transform_kernel(%arg0: i32, %arg1: memref<256x128xbf16, #tpu.memory_space<vmem>>, %arg2: memref<128x256xbf16, #tpu.memory_space<vmem>>, %arg3: memref<256x256xbf16, #tpu.memory_space<vmem>>) attributes {dimension_semantics = [#tpu.dimension_semantics<parallel>], iteration_bounds = array<i64: 2>, scalar_prefetch = 0 : i64, scratch_operands = 0 : i64, tpu.core_type = #tpu.core_type<tc>, window_params = [{transform_indices = @transform_0, window_bounds = array<i64: 256, 128>}, {pipeline_mode = #tpu.pipeline_mode<synchronous>, transform_indices = @transform_1, window_bounds = array<i64: 128, 256>}, {transform_indices = @transform_2, window_bounds = array<i64: 256, 256>}]} {
    %c0 = arith.constant 0 : index
    %c0_0 = arith.constant 0 : index
    %0 = vector.load %arg1[%c0, %c0_0] : memref<256x128xbf16, #tpu.memory_space<vmem>>, vector<256x128xbf16>
    %c0_1 = arith.constant 0 : index
    %c0_2 = arith.constant 0 : index
    %1 = vector.load %arg2[%c0_1, %c0_2] : memref<128x256xbf16, #tpu.memory_space<vmem>>, vector<128x256xbf16>
    %cst = arith.constant dense<0.000000e+00> : vector<256x256xf32>
    %2 = tpu.matmul %0, %1, %cst {dimension_numbers = #tpu.dot_dimension_numbers<[1], [0], [0], [1], [0, 0, 1, 1], [], []>} : vector<256x128xbf16>, vector<128x256xbf16>, vector<256x256xf32> -> vector<256x256xf32>
    %3 = arith.truncf %2 : vector<256x256xf32> to vector<256x256xbf16>
    %c0_3 = arith.constant 0 : index
    %c0_4 = arith.constant 0 : index
    %4 = vector.load %arg3[%c0_3, %c0_4] : memref<256x256xbf16, #tpu.memory_space<vmem>>, vector<256x256xbf16>
    tpu.vector_store %arg3[%c0_3, %c0_4], %3 {strides = array<i32>} : memref<256x256xbf16, #tpu.memory_space<vmem>>, vector<256x256xbf16>,
    return
  }
  func.func @transform_0(%arg0: i32) -> (i32, i32) {
    %c0_i32 = arith.constant 0 : i32
    %c0_i32_0 = arith.constant 0 : i32
    return %arg0, %c0_i32 : i32, i32
  }
  func.func @transform_1(%arg0: i32) -> (i32, i32) {
    %c0_i32 = arith.constant 0 : i32
    %c0_i32_0 = arith.constant 0 : i32
    %c0_i32_1 = arith.constant 0 : i32
    return %c0_i32, %c0_i32_0 : i32, i32
  }
  func.func @transform_2(%arg0: i32) -> (i32, i32) {
    %c0_i32 = arith.constant 0 : i32
    %c0_i32_0 = arith.constant 0 : i32
    return %arg0, %c0_i32 : i32, i32
  }
}

module attributes {stable_mosaic.version = 11 : i64} {
  func.func @aggregate_kernel(%arg0: i32, %arg1: i32, %arg2: memref<256x256xbf16, #tpu.memory_space<vmem>>, %arg3: memref<256x128xbf16, #tpu.memory_space<vmem>>, %arg4: memref<256x128xbf16, #tpu.memory_space<vmem>>, %arg5: memref<1x128xf32, #tpu.memory_space<vmem>>, %arg6: memref<256x128xf32, #tpu.memory_space<vmem>>, %arg7: memref<256x128xf32, #tpu.memory_space<vmem>>) attributes {dimension_semantics = [#tpu.dimension_semantics<parallel>, #tpu.dimension_semantics<arbitrary>], iteration_bounds = array<i64: 2, 2>, scalar_prefetch = 0 : i64, scratch_operands = 1 : i64, tpu.core_type = #tpu.core_type<tc>, window_params = [{transform_indices = @transform_0, window_bounds = array<i64: 256, 256>}, {transform_indices = @transform_1, window_bounds = array<i64: 256, 128>}, {transform_indices = @transform_2, window_bounds = array<i64: 256, 128>}, {pipeline_mode = #tpu.pipeline_mode<synchronous>, transform_indices = @transform_3, window_bounds = array<i64: 1, 128>}, {transform_indices = @transform_4, window_bounds = array<i64: 256, 128>}]} {
    %c0_i32 = arith.constant 0 : i32
    %0 = arith.cmpi eq, %arg1, %c0_i32 : i32
    %1 = arith.extui %0 : i1 to i32
    %c0_i32_0 = arith.constant 0 : i32
    %2 = arith.cmpi ne, %1, %c0_i32_0 : i32
    scf.if %2 {
      %cst_9 = arith.constant 0.000000e+00 : f32
      %12 = vector.broadcast %cst_9 : f32 to vector<256x128xf32>
      %c0_10 = arith.constant 0 : index
      %c0_11 = arith.constant 0 : index
      %13 = vector.load %arg7[%c0_10, %c0_11] : memref<256x128xf32, #tpu.memory_space<vmem>>, vector<256x128xf32>
      tpu.vector_store %arg7[%c0_10, %c0_11], %12 {strides = array<i32>} : memref<256x128xf32, #tpu.memory_space<vmem>>, vector<256x128xf32>,
    } else {
    }
    %c0 = arith.constant 0 : index
    %c0_1 = arith.constant 0 : index
    %3 = vector.load %arg7[%c0, %c0_1] : memref<256x128xf32, #tpu.memory_space<vmem>>, vector<256x128xf32>
    %c0_2 = arith.constant 0 : index
    %c0_3 = arith.constant 0 : index
    %4 = vector.load %arg2[%c0_2, %c0_3] : memref<256x256xbf16, #tpu.memory_space<vmem>>, vector<256x256xbf16>
    %c0_4 = arith.constant 0 : index
    %c0_5 = arith.constant 0 : index
    %5 = vector.load %arg3[%c0_4, %c0_5] : memref<256x128xbf16, #tpu.memory_space<vmem>>, vector<256x128xbf16>
    %cst = arith.constant dense<0.000000e+00> : vector<256x128xf32>
    %6 = tpu.matmul %4, %5, %cst {dimension_numbers = #tpu.dot_dimension_numbers<[1], [0], [0], [1], [0, 0, 1, 1], [], []>} : vector<256x256xbf16>, vector<256x128xbf16>, vector<256x128xf32> -> vector<256x128xf32>
    %7 = arith.addf %3, %6 : vector<256x128xf32>
    %c0_6 = arith.constant 0 : index
    %c0_7 = arith.constant 0 : index
    %8 = vector.load %arg7[%c0_6, %c0_7] : memref<256x128xf32, #tpu.memory_space<vmem>>, vector<256x128xf32>
    tpu.vector_store %arg7[%c0_6, %c0_7], %7 {strides = array<i32>} : memref<256x128xf32, #tpu.memory_space<vmem>>, vector<256x128xf32>,
    %c1_i32 = arith.constant 1 : i32
    %9 = arith.cmpi eq, %arg1, %c1_i32 : i32
    %10 = arith.extui %9 : i1 to i32
    %c0_i32_8 = arith.constant 0 : i32
    %11 = arith.cmpi ne, %10, %c0_i32_8 : i32
    scf.if %11 {
      %c0_9 = arith.constant 0 : index
      %c0_10 = arith.constant 0 : index
      %12 = vector.load %arg7[%c0_9, %c0_10] : memref<256x128xf32, #tpu.memory_space<vmem>>, vector<256x128xf32>
      %c0_11 = arith.constant 0 : index
      %c0_12 = arith.constant 0 : index
      %13 = vector.load %arg4[%c0_11, %c0_12] : memref<256x128xbf16, #tpu.memory_space<vmem>>, vector<256x128xbf16>
      %14 = arith.extf %13 : vector<256x128xbf16> to vector<256x128xf32>
      %15 = arith.addf %12, %14 : vector<256x128xf32>
      %c0_13 = arith.constant 0 : index
      %c0_14 = arith.constant 0 : index
      %16 = vector.load %arg5[%c0_13, %c0_14] : memref<1x128xf32, #tpu.memory_space<vmem>>, vector<1x128xf32>
      %17 = vector.broadcast %16 : vector<1x128xf32> to vector<256x128xf32>
      %18 = arith.addf %15, %17 : vector<256x128xf32>
      %c0_15 = arith.constant 0 : index
      %c0_16 = arith.constant 0 : index
      %19 = vector.load %arg6[%c0_15, %c0_16] : memref<256x128xf32, #tpu.memory_space<vmem>>, vector<256x128xf32>
      tpu.vector_store %arg6[%c0_15, %c0_16], %18 {strides = array<i32>} : memref<256x128xf32, #tpu.memory_space<vmem>>, vector<256x128xf32>,
    } else {
    }
    return
  }
  func.func @transform_0(%arg0: i32, %arg1: i32) -> (i32, i32) {
    %c0_i32 = arith.constant 0 : i32
    return %arg0, %arg1 : i32, i32
  }
  func.func @transform_1(%arg0: i32, %arg1: i32) -> (i32, i32) {
    %c0_i32 = arith.constant 0 : i32
    %c0_i32_0 = arith.constant 0 : i32
    return %arg1, %c0_i32 : i32, i32
  }
  func.func @transform_2(%arg0: i32, %arg1: i32) -> (i32, i32) {
    %c1_i32 = arith.constant 1 : i32
    %c0_i32 = arith.constant 0 : i32
    return %arg0, %c1_i32 : i32, i32
  }
  func.func @transform_3(%arg0: i32, %arg1: i32) -> (i32, i32) {
    %c0_i32 = arith.constant 0 : i32
    %c0_i32_0 = arith.constant 0 : i32
    %c0_i32_1 = arith.constant 0 : i32
    return %c0_i32, %c0_i32_0 : i32, i32
  }
  func.func @transform_4(%arg0: i32, %arg1: i32) -> (i32, i32) {
    %c0_i32 = arith.constant 0 : i32
    %c0_i32_0 = arith.constant 0 : i32
    return %arg0, %c0_i32 : i32, i32
  }
}

</mosaic_0001>

<llo_original>
// kernel: encoder_forward_padded.8
$region0: #{encoder_forward_padded.8}
  #allocation0 [shape = 'u32[]', space=smem, size = 0x4, offset = 0x4, fixed_abs, tag = 'smem constant byte address 0x4 - core index']
  #allocation1 [shape = 'u32[144,128]{1,0:T(1,128)}', space=vmem, size = 0x12000, scoped, tag = 'internal scratch']
  %s0 = inlined_call_operand.vmem [shape: bf16[512,128], index: 0, kind: input, shape index: {}]
  %s1 = inlined_call_operand.vmem [shape: bf16[128,256], index: 1, kind: input, shape index: {}]
  %s2 = inlined_call_operand.vmem [shape: bf16[512,256], index: 2, kind: output, shape index: {}]
  %s3 = sld [smem:[#allocation0]]
  $region41: #{encoder_forward_padded.8} parent=0
    _
  %s5 = ssub.s32 1, %s3
  %s6 = scalar_select 0, %s5, %s3
  loop: start=0, step=1, limit=4
  $region2: #{encoder_forward_padded.8} parent=0 // loop_pre_header
    _
  $region3: #{encoder_forward_padded.8} parent=0 // loop_header
    %s8 = sphi 0, %s12
    %p9 = scmp.ge.s32.totalorder %s8, 4
    %s18 = sphi 0, %s20
    %s21 = sphi 0, %s18
    %s22 = sphi 0, %s21
    %s38 = sphi 0, %s22
    %s42 = sphi 0, %s42
    %s44 = sphi 0, %s42
    %s45 = sphi 0, %s44
    %s59 = sphi 0, %s45
    %s65 = sphi 0, %s67
    %s68 = sphi 0, %s65
    %s69 = sphi 0, %s68
    %s85 = sphi 0, %s69
  $region4: #{encoder_forward_padded.8} parent=0 // loop_header_branch
    %11 = sbr.rel (%p9) target = $region8
  $region5: #{encoder_forward_padded.8} parent=0 // loop_body
    %s13 = ssub.s32 %s8, 1
    %s14 = ssub.s32 %s8, 2
    %s15 = sadd.s32 %s8, 1
    %s16 = ssub.s32 %s8, %s15
    %p17 = scmp.eq.s32.totalorder %s16, 0
    %s19 = sadd.s32 %s18, 1
    %s20 = scalar_select %p17, %s18, %s19
    %p23 = pneg %p17
    %p24 = scmp.eq.s32.totalorder %s8, 1
    %p25 = por %p23, %p24
    %p26 = scmp.ne.s32.totalorder %s18, %s21
    %p27 = scmp.eq.s32.totalorder %s8, 0
    %p28 = por %p26, %p27
    %p29 = scmp.ne.s32.totalorder %s18, %s21
    %p30 = scmp.eq.s32.totalorder %s13, 1
    %p31 = por %p29, %p30
    %p32 = scmp.ne.s32.totalorder %s21, %s22
    %p33 = scmp.eq.s32.totalorder %s13, 0
    %p34 = por %p32, %p33
    %p35 = scmp.ne.s32.totalorder %s21, %s22
    %p36 = scmp.eq.s32.totalorder %s14, 1
    %p37 = por %p35, %p36
    %p39 = scmp.ne.s32.totalorder %s22, %s38
    %p40 = scmp.eq.s32.totalorder %s14, 0
    %p41 = por %p39, %p40
    %s43 = sadd.s32 %s42, 1
    %p46 = scmp.eq.s32.totalorder %s8, 1
    %p47 = scmp.ne.s32.totalorder %s42, %s44
    %p48 = scmp.eq.s32.totalorder %s8, 0
    %p49 = por %p47, %p48
    %p50 = scmp.ne.s32.totalorder %s42, %s44
    %p51 = scmp.eq.s32.totalorder %s13, 1
    %p52 = por %p50, %p51
    %p53 = scmp.ne.s32.totalorder %s44, %s45
    %p54 = scmp.eq.s32.totalorder %s13, 0
    %p55 = por %p53, %p54
    %p56 = scmp.ne.s32.totalorder %s44, %s45
    %p57 = scmp.eq.s32.totalorder %s14, 1
    %p58 = por %p56, %p57
    %p60 = scmp.ne.s32.totalorder %s45, %s59
    %p61 = scmp.eq.s32.totalorder %s14, 0
    %p62 = por %p60, %p61
    %s63 = ssub.s32 %s8, %s15
    %p64 = scmp.eq.s32.totalorder %s63, 0
    %s66 = sadd.s32 %s65, 1
    %s67 = scalar_select %p64, %s65, %s66
    %p70 = pneg %p64
    %p71 = scmp.eq.s32.totalorder %s8, 1
    %p72 = por %p70, %p71
    %p73 = scmp.ne.s32.totalorder %s65, %s68
    %p74 = scmp.eq.s32.totalorder %s8, 0
    %p75 = por %p73, %p74
    %p76 = scmp.ne.s32.totalorder %s65, %s68
    %p77 = scmp.eq.s32.totalorder %s13, 1
    %p78 = por %p76, %p77
    %p79 = scmp.ne.s32.totalorder %s68, %s69
    %p80 = scmp.eq.s32.totalorder %s13, 0
    %p81 = por %p79, %p80
    %p82 = scmp.ne.s32.totalorder %s68, %s69
    %p83 = scmp.eq.s32.totalorder %s14, 1
    %p84 = por %p82, %p83
    %p86 = scmp.ne.s32.totalorder %s69, %s85
    %p87 = scmp.eq.s32.totalorder %s14, 0
    %p88 = por %p86, %p87
    %p89 = scmp.le.s32.totalorder 1, %s8
    %p90 = scmp.lt.s32.totalorder %s8, 3
    %p91 = pnand %p89, %p90
    %p92 = pneg %p91
    // Predicated region
    $region9: #{encoder_forward_padded.8} parent=5 // pred_check
      _
    $region10: #{encoder_forward_padded.8} parent=5 // pred_check_branch
      %94 = sbr.rel (%p91) target = $region12
    $region11: #{encoder_forward_padded.8} parent=5 // pred_region
      %s95 = ssub.s32 %s8, 1
      // Predicated region
      $region13: #{encoder_forward_padded.8} parent=11 // pred_check
        %p96 = pneg %p55
      $region14: #{encoder_forward_padded.8} parent=11 // pred_check_branch
        %98 = sbr.rel (%p96) target = $region16
      $region15: #{encoder_forward_padded.8} parent=11 // pred_region
        _
      $region16: #{encoder_forward_padded.8} parent=11 // pred_fallthru
        _
    $region12: #{encoder_forward_padded.8} parent=5 // pred_fallthru
      _
    %p99 = scmp.lt.s32.totalorder %s8, 2
    // Predicated region
    $region17: #{encoder_forward_padded.8} parent=5 // pred_check
      %p100 = pneg %p99
    $region18: #{encoder_forward_padded.8} parent=5 // pred_check_branch
      %102 = sbr.rel (%p100) target = $region20
    $region19: #{encoder_forward_padded.8} parent=5 // pred_region
      // Predicated region
      $region21: #{encoder_forward_padded.8} parent=19 // pred_check
        %p103 = pneg %p28
      $region22: #{encoder_forward_padded.8} parent=19 // pred_check_branch
        %105 = sbr.rel (%p103) target = $region24
      $region23: #{encoder_forward_padded.8} parent=19 // pred_region
        %s106 = smul.u32 32, %s8
        %p107 = scmp.lt.s32.totalorder %s106, 63
        %s108 = scalar_select %p107, %s106, 63
        %s109 = smul.addr %s108, 4
        %s110 = scalar_lea.vmem %s0, %s109
        %s111 = smul.u32 32, %s8
      $region24: #{encoder_forward_padded.8} parent=19 // pred_fallthru
        _
    $region20: #{encoder_forward_padded.8} parent=5 // pred_fallthru
      _
    %p112 = scmp.le.s32.totalorder 1, %s8
    %p113 = scmp.lt.s32.totalorder %s8, 3
    %p114 = pnand %p112, %p113
    %p115 = pneg %p114
    // Predicated region
    $region25: #{encoder_forward_padded.8} parent=5 // pred_check
      _
    $region26: #{encoder_forward_padded.8} parent=5 // pred_check_branch
      %117 = sbr.rel (%p114) target = $region28
    $region27: #{encoder_forward_padded.8} parent=5 // pred_region
      %s118 = ssub.s32 %s8, 1
      %s119 = smul.u32 32, %s13
      %p120 = scmp.lt.s32.totalorder %s119, 63
      %s121 = scalar_select %p120, %s119, 63
      %s122 = smul.addr %s121, 4
      %s123 = scalar_lea.vmem %s0, %s122
      %p124 = pneg %p34
      %p125 = pneg %p31
      %p126 = pneg %p55
      %p127 = pneg %p52
      %p128 = pneg %p81
      %p129 = pneg %p78
      %s130 = smul.u32 32, %s13
      %p131 = scmp.lt.s32.totalorder %s130, 63
      %s132 = scalar_select %p131, %s130, 63
      %s133 = smul.addr %s132, 2
      %s134 = smul.addr %s133, 4
      %s135 = scalar_lea.vmem %s2, %s134
      %s136 = smul.u32 32, %s13
      %p137 = scmp.lt.s32.totalorder %s136, 63
      %s138 = scalar_select %p137, %s136, 63
      %s139 = smul.addr %s138, 4
      %s140 = scalar_lea.vmem %s0, %s139
      %s141 = smul.u32 32, %s13
      %s142 = smul.u32 32, %s13
      %p143 = scmp.lt.s32.totalorder %s142, 63
      %s144 = scalar_select %p143, %s142, 63
      %s145 = smul.addr %s144, 2
      %s146 = smul.addr %s145, 4
      %s147 = scalar_lea.vmem %s2, %s146
      %s148 = smul.u32 32, %s13
      %v150 = vld [vmem:[%s140] sm:$0xf]
      %v151 = vld [vmem:[%s140 + $0x4] sm:$0xf]
      %v152 = vld [vmem:[%s140 + $0x8] sm:$0xf]
      %v153 = vld [vmem:[%s140 + $0xc] sm:$0xf]
      %v154 = vld [vmem:[%s140 + $0x10] sm:$0xf]
      %v155 = vld [vmem:[%s140 + $0x14] sm:$0xf]
      %v156 = vld [vmem:[%s140 + $0x18] sm:$0xf]
      %v157 = vld [vmem:[%s140 + $0x1c] sm:$0xf]
      %v158 = vld [vmem:[%s140 + $0x20] sm:$0xf]
      %v159 = vld [vmem:[%s140 + $0x24] sm:$0xf]
      %v160 = vld [vmem:[%s140 + $0x28] sm:$0xf]
      %v161 = vld [vmem:[%s140 + $0x2c] sm:$0xf]
      %v162 = vld [vmem:[%s140 + $0x30] sm:$0xf]
      %v163 = vld [vmem:[%s140 + $0x34] sm:$0xf]
      %v164 = vld [vmem:[%s140 + $0x38] sm:$0xf]
      %v165 = vld [vmem:[%s140 + $0x3c] sm:$0xf]
      %v166 = vld [vmem:[%s140 + $0x40] sm:$0xf]
      %v167 = vld [vmem:[%s140 + $0x44] sm:$0xf]
      %v168 = vld [vmem:[%s140 + $0x48] sm:$0xf]
      %v169 = vld [vmem:[%s140 + $0x4c] sm:$0xf]
      %v170 = vld [vmem:[%s140 + $0x50] sm:$0xf]
      %v171 = vld [vmem:[%s140 + $0x54] sm:$0xf]
      %v172 = vld [vmem:[%s140 + $0x58] sm:$0xf]
      %v173 = vld [vmem:[%s140 + $0x5c] sm:$0xf]
      %v174 = vld [vmem:[%s140 + $0x60] sm:$0xf]
      %v175 = vld [vmem:[%s140 + $0x64] sm:$0xf]
      %v176 = vld [vmem:[%s140 + $0x68] sm:$0xf]
      %v177 = vld [vmem:[%s140 + $0x6c] sm:$0xf]
      %v178 = vld [vmem:[%s140 + $0x70] sm:$0xf]
      %v179 = vld [vmem:[%s140 + $0x74] sm:$0xf]
      %v180 = vld [vmem:[%s140 + $0x78] sm:$0xf]
      %v181 = vld [vmem:[%s140 + $0x7c] sm:$0xf]
      %v182 = vld [vmem:[%s1] sm:$0xff]
      %v183 = vld [vmem:[%s1 + $0x8] sm:$0xff]
      %v184 = vld [vmem:[%s1 + $0x10] sm:$0xff]
      %v185 = vld [vmem:[%s1 + $0x18] sm:$0xff]
      %v186 = vld [vmem:[%s1 + $0x20] sm:$0xff]
      %v187 = vld [vmem:[%s1 + $0x28] sm:$0xff]
      %v188 = vld [vmem:[%s1 + $0x30] sm:$0xff]
      %v189 = vld [vmem:[%s1 + $0x38] sm:$0xff]
      %v190 = vld [vmem:[%s1 + $0x40] sm:$0xff]
      %v191 = vld [vmem:[%s1 + $0x48] sm:$0xff]
      %v192 = vld [vmem:[%s1 + $0x50] sm:$0xff]
      %v193 = vld [vmem:[%s1 + $0x58] sm:$0xff]
      %v194 = vld [vmem:[%s1 + $0x60] sm:$0xff]
      %v195 = vld [vmem:[%s1 + $0x68] sm:$0xff]
      %v196 = vld [vmem:[%s1 + $0x70] sm:$0xff]
      %v197 = vld [vmem:[%s1 + $0x78] sm:$0xff]
      %v230 = vunpack.c.l.b16 %v150
      %v231 = vunpack.c.l.b16 %v151
      %v232 = vunpack.c.l.b16 %v152
      %v233 = vunpack.c.l.b16 %v153
      %v234 = vunpack.c.l.b16 %v154
      %v235 = vunpack.c.l.b16 %v155
      %v236 = vunpack.c.l.b16 %v156
      %v237 = vunpack.c.l.b16 %v157
      %v238 = vunpack.c.l.b16 %v158
      %v239 = vunpack.c.l.b16 %v159
      %v240 = vunpack.c.l.b16 %v160
      %v241 = vunpack.c.l.b16 %v161
      %v242 = vunpack.c.l.b16 %v162
      %v243 = vunpack.c.l.b16 %v163
      %v244 = vunpack.c.l.b16 %v164
      %v245 = vunpack.c.l.b16 %v165
      %v246 = vunpack.c.l.b16 %v166
      %v247 = vunpack.c.l.b16 %v167
      %v248 = vunpack.c.l.b16 %v168
      %v249 = vunpack.c.l.b16 %v169
      %v250 = vunpack.c.l.b16 %v170
      %v251 = vunpack.c.l.b16 %v171
      %v252 = vunpack.c.l.b16 %v172
      %v253 = vunpack.c.l.b16 %v173
      %v254 = vunpack.c.l.b16 %v174
      %v255 = vunpack.c.l.b16 %v175
      %v256 = vunpack.c.l.b16 %v176
      %v257 = vunpack.c.l.b16 %v177
      %v258 = vunpack.c.l.b16 %v178
      %v259 = vunpack.c.l.b16 %v179
      %v260 = vunpack.c.l.b16 %v180
      %v261 = vunpack.c.l.b16 %v181
      %v262 = vpack.c.b16 %v231, %v230
      %v263 = vpack.c.b16 %v233, %v232
      %v264 = vpack.c.b16 %v235, %v234
      %v265 = vpack.c.b16 %v237, %v236
      %v266 = vpack.c.b16 %v239, %v238
      %v267 = vpack.c.b16 %v241, %v240
      %v268 = vpack.c.b16 %v243, %v242
      %v269 = vpack.c.b16 %v245, %v244
      %v270 = vpack.c.b16 %v247, %v246
      %v271 = vpack.c.b16 %v249, %v248
      %v272 = vpack.c.b16 %v251, %v250
      %v273 = vpack.c.b16 %v253, %v252
      %v274 = vpack.c.b16 %v255, %v254
      %v275 = vpack.c.b16 %v257, %v256
      %v276 = vpack.c.b16 %v259, %v258
      %v277 = vpack.c.b16 %v261, %v260
      %v310 = vunpack.c.l.b16 %v182
      %v311 = vunpack.c.h.b16 %v182
      %v312 = vunpack.c.l.b16 %v183
      %v313 = vunpack.c.h.b16 %v183
      %v314 = vunpack.c.l.b16 %v184
      %v315 = vunpack.c.h.b16 %v184
      %v316 = vunpack.c.l.b16 %v185
      %v317 = vunpack.c.h.b16 %v185
      %v318 = vunpack.c.l.b16 %v186
      %v319 = vunpack.c.h.b16 %v186
      %v320 = vunpack.c.l.b16 %v187
      %v321 = vunpack.c.h.b16 %v187
      %v322 = vunpack.c.l.b16 %v188
      %v323 = vunpack.c.h.b16 %v188
      %v324 = vunpack.c.l.b16 %v189
      %v325 = vunpack.c.h.b16 %v189
      %v326 = vunpack.c.l.b16 %v190
      %v327 = vunpack.c.h.b16 %v190
      %v328 = vunpack.c.l.b16 %v191
      %v329 = vunpack.c.h.b16 %v191
      %v330 = vunpack.c.l.b16 %v192
      %v331 = vunpack.c.h.b16 %v192
      %v332 = vunpack.c.l.b16 %v193
      %v333 = vunpack.c.h.b16 %v193
      %v334 = vunpack.c.l.b16 %v194
      %v335 = vunpack.c.h.b16 %v194
      %v336 = vunpack.c.l.b16 %v195
      %v337 = vunpack.c.h.b16 %v195
      %v338 = vunpack.c.l.b16 %v196
      %v339 = vunpack.c.h.b16 %v196
      %v340 = vunpack.c.l.b16 %v197
      %v341 = vunpack.c.h.b16 %v197
      %v342 = vpack.c.b16 %v312, %v310
      %v343 = vpack.c.b16 %v313, %v311
      %v344 = vpack.c.b16 %v316, %v314
      %v345 = vpack.c.b16 %v317, %v315
      %v346 = vpack.c.b16 %v320, %v318
      %v347 = vpack.c.b16 %v321, %v319
      %v348 = vpack.c.b16 %v324, %v322
      %v349 = vpack.c.b16 %v325, %v323
      %v350 = vpack.c.b16 %v328, %v326
      %v351 = vpack.c.b16 %v329, %v327
      %v352 = vpack.c.b16 %v332, %v330
      %v353 = vpack.c.b16 %v333, %v331
      %v354 = vpack.c.b16 %v336, %v334
      %v355 = vpack.c.b16 %v337, %v335
      %v356 = vpack.c.b16 %v340, %v338
      %v357 = vpack.c.b16 %v341, %v339
      %374 = vmatprep.subr.bf16.mxu0 %v343
      %375 = vmatpush1.bf16.msra.mxu0 %v342
      %376 = vmatprep.subr.bf16.mxu0 %v345
      %377 = vmatpush1.bf16.msra.mxu0 %v344
      %378 = vmatprep.subr.bf16.mxu0 %v347
      %379 = vmatpush1.bf16.msra.mxu0 %v346
      %380 = vmatprep.subr.bf16.mxu0 %v349
      %381 = vmatpush1.bf16.msra.mxu0 %v348
      %382 = vmatprep.subr.bf16.mxu0 %v351
      %383 = vmatpush1.bf16.msra.mxu0 %v350
      %384 = vmatprep.subr.bf16.mxu0 %v353
      %385 = vmatpush1.bf16.msra.mxu0 %v352
      %386 = vmatprep.subr.bf16.mxu0 %v355
      %387 = vmatpush1.bf16.msra.mxu0 %v354
      %388 = vmatprep.subr.bf16.mxu0 %v357
      %389 = vmatpush1.bf16.msra.mxu0 %v356
      %390 = vmatprep.subr.bf16.mxu0 0
      %391 = vmatpush1.bf16.msra.mxu0 0
      %392 = vmatprep.subr.bf16.mxu0 0
      %393 = vmatpush1.bf16.msra.mxu0 0
      %394 = vmatprep.subr.bf16.mxu0 0
      %395 = vmatpush1.bf16.msra.mxu0 0
      %396 = vmatprep.subr.bf16.mxu0 0
      %397 = vmatpush1.bf16.msra.mxu0 0
      %398 = vmatprep.subr.bf16.mxu0 0
      %399 = vmatpush1.bf16.msra.mxu0 0
      %400 = vmatprep.subr.bf16.mxu0 0
      %401 = vmatpush1.bf16.msra.mxu0 0
      %402 = vmatprep.subr.bf16.mxu0 0
      %403 = vmatpush1.bf16.msra.mxu0 0
      %404 = vmatprep.subr.bf16.mxu0 0
      %405 = vmatpush1.bf16.msra.mxu0 0
      %406 = vmatprep.mubr.bf16.mxu0 0
      %407 = vmatmul.mubr.bf16.gmra.mrb[0].mxu0 %v262
      %v408 = vpop.f32.mrb[0].mxu0
      %v409 = vadd.f32 0.0, %v408
      %v410 = vpop.f32.mrb[0].mxu0
      %v411 = vadd.f32 0.0, %v410
      %v412 = vpop.f32.mrb[0].mxu0
      %v413 = vadd.f32 0.0, %v412
      %v414 = vpop.f32.mrb[0].mxu0
      %v415 = vadd.f32 0.0, %v414
      %416 = vmatprep.mubr.bf16.mxu0 0
      %417 = vmatmul.mubr.bf16.gmra.mrb[0].mxu0 %v263
      %v418 = vpop.f32.mrb[0].mxu0
      %v419 = vadd.f32 0.0, %v418
      %v420 = vpop.f32.mrb[0].mxu0
      %v421 = vadd.f32 0.0, %v420
      %v422 = vpop.f32.mrb[0].mxu0
      %v423 = vadd.f32 0.0, %v422
      %v424 = vpop.f32.mrb[0].mxu0
      %v425 = vadd.f32 0.0, %v424
      %426 = vmatprep.mubr.bf16.mxu0 0
      %427 = vmatmul.mubr.bf16.gmra.mrb[0].mxu0 %v264
      %v428 = vpop.f32.mrb[0].mxu0
      %v429 = vadd.f32 0.0, %v428
      %v430 = vpop.f32.mrb[0].mxu0
      %v431 = vadd.f32 0.0, %v430
      %v432 = vpop.f32.mrb[0].mxu0
      %v433 = vadd.f32 0.0, %v432
      %v434 = vpop.f32.mrb[0].mxu0
      %v435 = vadd.f32 0.0, %v434
      %436 = vmatprep.mubr.bf16.mxu0 0
      %437 = vmatmul.mubr.bf16.gmra.mrb[0].mxu0 %v265
      %v438 = vpop.f32.mrb[0].mxu0
      %v439 = vadd.f32 0.0, %v438
      %v440 = vpop.f32.mrb[0].mxu0
      %v441 = vadd.f32 0.0, %v440
      %v442 = vpop.f32.mrb[0].mxu0
      %v443 = vadd.f32 0.0, %v442
      %v444 = vpop.f32.mrb[0].mxu0
      %v445 = vadd.f32 0.0, %v444
      %446 = vmatprep.mubr.bf16.mxu0 0
      %447 = vmatmul.mubr.bf16.gmra.mrb[0].mxu0 %v266
      %v448 = vpop.f32.mrb[0].mxu0
      %v449 = vadd.f32 0.0, %v448
      %v450 = vpop.f32.mrb[0].mxu0
      %v451 = vadd.f32 0.0, %v450
      %v452 = vpop.f32.mrb[0].mxu0
      %v453 = vadd.f32 0.0, %v452
      %v454 = vpop.f32.mrb[0].mxu0
      %v455 = vadd.f32 0.0, %v454
      %456 = vmatprep.mubr.bf16.mxu0 0
      %457 = vmatmul.mubr.bf16.gmra.mrb[0].mxu0 %v267
      %v458 = vpop.f32.mrb[0].mxu0
      %v459 = vadd.f32 0.0, %v458
      %v460 = vpop.f32.mrb[0].mxu0
      %v461 = vadd.f32 0.0, %v460
      %v462 = vpop.f32.mrb[0].mxu0
      %v463 = vadd.f32 0.0, %v462
      %v464 = vpop.f32.mrb[0].mxu0
      %v465 = vadd.f32 0.0, %v464
      %466 = vmatprep.mubr.bf16.mxu0 0
      %467 = vmatmul.mubr.bf16.gmra.mrb[0].mxu0 %v268
      %v468 = vpop.f32.mrb[0].mxu0
      %v469 = vadd.f32 0.0, %v468
      %v470 = vpop.f32.mrb[0].mxu0
      %v471 = vadd.f32 0.0, %v470
      %v472 = vpop.f32.mrb[0].mxu0
      %v473 = vadd.f32 0.0, %v472
      %v474 = vpop.f32.mrb[0].mxu0
      %v475 = vadd.f32 0.0, %v474
      %476 = vmatprep.mubr.bf16.mxu0 0
      %477 = vmatmul.mubr.bf16.gmra.mrb[0].mxu0 %v269
      %v478 = vpop.f32.mrb[0].mxu0
      %v479 = vadd.f32 0.0, %v478
      %v480 = vpop.f32.mrb[0].mxu0
      %v481 = vadd.f32 0.0, %v480
      %v482 = vpop.f32.mrb[0].mxu0
      %v483 = vadd.f32 0.0, %v482
      %v484 = vpop.f32.mrb[0].mxu0
      %v485 = vadd.f32 0.0, %v484
      %486 = vmatprep.mubr.bf16.mxu0 0
      %487 = vmatmul.mubr.bf16.gmra.mrb[0].mxu0 %v270
      %v488 = vpop.f32.mrb[0].mxu0
      %v489 = vadd.f32 0.0, %v488
      %v490 = vpop.f32.mrb[0].mxu0
      %v491 = vadd.f32 0.0, %v490
      %v492 = vpop.f32.mrb[0].mxu0
      %v493 = vadd.f32 0.0, %v492
      %v494 = vpop.f32.mrb[0].mxu0
      %v495 = vadd.f32 0.0, %v494
      %496 = vmatprep.mubr.bf16.mxu0 0
      %497 = vmatmul.mubr.bf16.gmra.mrb[0].mxu0 %v271
      %v498 = vpop.f32.mrb[0].mxu0
      %v499 = vadd.f32 0.0, %v498
      %v500 = vpop.f32.mrb[0].mxu0
      %v501 = vadd.f32 0.0, %v500
      %v502 = vpop.f32.mrb[0].mxu0
      %v503 = vadd.f32 0.0, %v502
      %v504 = vpop.f32.mrb[0].mxu0
      %v505 = vadd.f32 0.0, %v504
      %506 = vmatprep.mubr.bf16.mxu0 0
      %507 = vmatmul.mubr.bf16.gmra.mrb[0].mxu0 %v272
      %v508 = vpop.f32.mrb[0].mxu0
      %v509 = vadd.f32 0.0, %v508
      %v510 = vpop.f32.mrb[0].mxu0
      %v511 = vadd.f32 0.0, %v510
      %v512 = vpop.f32.mrb[0].mxu0
      %v513 = vadd.f32 0.0, %v512
      %v514 = vpop.f32.mrb[0].mxu0
      %v515 = vadd.f32 0.0, %v514
      %516 = vmatprep.mubr.bf16.mxu0 0
      %517 = vmatmul.mubr.bf16.gmra.mrb[0].mxu0 %v273
      %v518 = vpop.f32.mrb[0].mxu0
      %v519 = vadd.f32 0.0, %v518
      %v520 = vpop.f32.mrb[0].mxu0
      %v521 = vadd.f32 0.0, %v520
      %v522 = vpop.f32.mrb[0].mxu0
      %v523 = vadd.f32 0.0, %v522
      %v524 = vpop.f32.mrb[0].mxu0
      %v525 = vadd.f32 0.0, %v524
      %526 = vmatprep.mubr.bf16.mxu0 0
      %527 = vmatmul.mubr.bf16.gmra.mrb[0].mxu0 %v274
      %v528 = vpop.f32.mrb[0].mxu0
      %v529 = vadd.f32 0.0, %v528
      %v530 = vpop.f32.mrb[0].mxu0
      %v531 = vadd.f32 0.0, %v530
      %v532 = vpop.f32.mrb[0].mxu0
      %v533 = vadd.f32 0.0, %v532
      %v534 = vpop.f32.mrb[0].mxu0
      %v535 = vadd.f32 0.0, %v534
      %536 = vmatprep.mubr.bf16.mxu0 0
      %537 = vmatmul.mubr.bf16.gmra.mrb[0].mxu0 %v275
      %v538 = vpop.f32.mrb[0].mxu0
      %v539 = vadd.f32 0.0, %v538
      %v540 = vpop.f32.mrb[0].mxu0
      %v541 = vadd.f32 0.0, %v540
      %v542 = vpop.f32.mrb[0].mxu0
      %v543 = vadd.f32 0.0, %v542
      %v544 = vpop.f32.mrb[0].mxu0
      %v545 = vadd.f32 0.0, %v544
      %546 = vmatprep.mubr.bf16.mxu0 0
      %547 = vmatmul.mubr.bf16.gmra.mrb[0].mxu0 %v276
      %v548 = vpop.f32.mrb[0].mxu0
      %v549 = vadd.f32 0.0, %v548
      %v550 = vpop.f32.mrb[0].mxu0
      %v551 = vadd.f32 0.0, %v550
      %v552 = vpop.f32.mrb[0].mxu0
      %v553 = vadd.f32 0.0, %v552
      %v554 = vpop.f32.mrb[0].mxu0
      %v555 = vadd.f32 0.0, %v554
      %556 = vmatprep.mubr.bf16.mxu0 0
      %557 = vmatmul.mubr.bf16.gmra.mrb[0].mxu0 %v277
      %v558 = vpop.f32.mrb[0].mxu0
      %v559 = vadd.f32 0.0, %v558
      %v560 = vpop.f32.mrb[0].mxu0
      %v561 = vadd.f32 0.0, %v560
      %v562 = vpop.f32.mrb[0].mxu0
      %v563 = vadd.f32 0.0, %v562
      %v564 = vpop.f32.mrb[0].mxu0
      %v565 = vadd.f32 0.0, %v564
      %566 = vdwg.mxu0
      %v567 = vpack.c.bf16 %v413, %v409
      %v568 = vpack.c.bf16 %v415, %v411
      %v569 = vpack.c.bf16 %v423, %v419
      %v570 = vpack.c.bf16 %v425, %v421
      %v571 = vpack.c.bf16 %v433, %v429
      %v572 = vpack.c.bf16 %v435, %v431
      %v573 = vpack.c.bf16 %v443, %v439
      %v574 = vpack.c.bf16 %v445, %v441
      %v575 = vpack.c.bf16 %v453, %v449
      %v576 = vpack.c.bf16 %v455, %v451
      %v577 = vpack.c.bf16 %v463, %v459
      %v578 = vpack.c.bf16 %v465, %v461
      %v579 = vpack.c.bf16 %v473, %v469
      %v580 = vpack.c.bf16 %v475, %v471
      %v581 = vpack.c.bf16 %v483, %v479
      %v582 = vpack.c.bf16 %v485, %v481
      %v583 = vpack.c.bf16 %v493, %v489
      %v584 = vpack.c.bf16 %v495, %v491
      %v585 = vpack.c.bf16 %v503, %v499
      %v586 = vpack.c.bf16 %v505, %v501
      %v587 = vpack.c.bf16 %v513, %v509
      %v588 = vpack.c.bf16 %v515, %v511
      %v589 = vpack.c.bf16 %v523, %v519
      %v590 = vpack.c.bf16 %v525, %v521
      %v591 = vpack.c.bf16 %v533, %v529
      %v592 = vpack.c.bf16 %v535, %v531
      %v593 = vpack.c.bf16 %v543, %v539
      %v594 = vpack.c.bf16 %v545, %v541
      %v595 = vpack.c.bf16 %v553, %v549
      %v596 = vpack.c.bf16 %v555, %v551
      %v597 = vpack.c.bf16 %v563, %v559
      %v598 = vpack.c.bf16 %v565, %v561
      %v631 = vunpack.c.l.b16 %v567
      %v632 = vunpack.c.l.b16 %v568
      %v633 = vunpack.c.h.b16 %v567
      %v634 = vunpack.c.h.b16 %v568
      %v635 = vunpack.c.l.b16 %v569
      %v636 = vunpack.c.l.b16 %v570
      %v637 = vunpack.c.h.b16 %v569
      %v638 = vunpack.c.h.b16 %v570
      %v639 = vunpack.c.l.b16 %v571
      %v640 = vunpack.c.l.b16 %v572
      %v641 = vunpack.c.h.b16 %v571
      %v642 = vunpack.c.h.b16 %v572
      %v643 = vunpack.c.l.b16 %v573
      %v644 = vunpack.c.l.b16 %v574
      %v645 = vunpack.c.h.b16 %v573
      %v646 = vunpack.c.h.b16 %v574
      %v647 = vunpack.c.l.b16 %v575
      %v648 = vunpack.c.l.b16 %v576
      %v649 = vunpack.c.h.b16 %v575
      %v650 = vunpack.c.h.b16 %v576
      %v651 = vunpack.c.l.b16 %v577
      %v652 = vunpack.c.l.b16 %v578
      %v653 = vunpack.c.h.b16 %v577
      %v654 = vunpack.c.h.b16 %v578
      %v655 = vunpack.c.l.b16 %v579
      %v656 = vunpack.c.l.b16 %v580
      %v657 = vunpack.c.h.b16 %v579
      %v658 = vunpack.c.h.b16 %v580
      %v659 = vunpack.c.l.b16 %v581
      %v660 = vunpack.c.l.b16 %v582
      %v661 = vunpack.c.h.b16 %v581
      %v662 = vunpack.c.h.b16 %v582
      %v663 = vunpack.c.l.b16 %v583
      %v664 = vunpack.c.l.b16 %v584
      %v665 = vunpack.c.h.b16 %v583
      %v666 = vunpack.c.h.b16 %v584
      %v667 = vunpack.c.l.b16 %v585
      %v668 = vunpack.c.l.b16 %v586
      %v669 = vunpack.c.h.b16 %v585
      %v670 = vunpack.c.h.b16 %v586
      %v671 = vunpack.c.l.b16 %v587
      %v672 = vunpack.c.l.b16 %v588
      %v673 = vunpack.c.h.b16 %v587
      %v674 = vunpack.c.h.b16 %v588
      %v675 = vunpack.c.l.b16 %v589
      %v676 = vunpack.c.l.b16 %v590
      %v677 = vunpack.c.h.b16 %v589
      %v678 = vunpack.c.h.b16 %v590
      %v679 = vunpack.c.l.b16 %v591
      %v680 = vunpack.c.l.b16 %v592
      %v681 = vunpack.c.h.b16 %v591
      %v682 = vunpack.c.h.b16 %v592
      %v683 = vunpack.c.l.b16 %v593
      %v684 = vunpack.c.l.b16 %v594
      %v685 = vunpack.c.h.b16 %v593
      %v686 = vunpack.c.h.b16 %v594
      %v687 = vunpack.c.l.b16 %v595
      %v688 = vunpack.c.l.b16 %v596
      %v689 = vunpack.c.h.b16 %v595
      %v690 = vunpack.c.h.b16 %v596
      %v691 = vunpack.c.l.b16 %v597
      %v692 = vunpack.c.l.b16 %v598
      %v693 = vunpack.c.h.b16 %v597
      %v694 = vunpack.c.h.b16 %v598
      %v695 = vpack.c.b16 %v632, %v631
      %v696 = vpack.c.b16 %v634, %v633
      %v697 = vpack.c.b16 %v636, %v635
      %v698 = vpack.c.b16 %v638, %v637
      %v699 = vpack.c.b16 %v640, %v639
      %v700 = vpack.c.b16 %v642, %v641
      %v701 = vpack.c.b16 %v644, %v643
      %v702 = vpack.c.b16 %v646, %v645
      %v703 = vpack.c.b16 %v648, %v647
      %v704 = vpack.c.b16 %v650, %v649
      %v705 = vpack.c.b16 %v652, %v651
      %v706 = vpack.c.b16 %v654, %v653
      %v707 = vpack.c.b16 %v656, %v655
      %v708 = vpack.c.b16 %v658, %v657
      %v709 = vpack.c.b16 %v660, %v659
      %v710 = vpack.c.b16 %v662, %v661
      %v711 = vpack.c.b16 %v664, %v663
      %v712 = vpack.c.b16 %v666, %v665
      %v713 = vpack.c.b16 %v668, %v667
      %v714 = vpack.c.b16 %v670, %v669
      %v715 = vpack.c.b16 %v672, %v671
      %v716 = vpack.c.b16 %v674, %v673
      %v717 = vpack.c.b16 %v676, %v675
      %v718 = vpack.c.b16 %v678, %v677
      %v719 = vpack.c.b16 %v680, %v679
      %v720 = vpack.c.b16 %v682, %v681
      %v721 = vpack.c.b16 %v684, %v683
      %v722 = vpack.c.b16 %v686, %v685
      %v723 = vpack.c.b16 %v688, %v687
      %v724 = vpack.c.b16 %v690, %v689
      %v725 = vpack.c.b16 %v692, %v691
      %v726 = vpack.c.b16 %v694, %v693
      %759 = vst [vmem:[%s147] sm:$0xff] %v695
      %760 = vst [vmem:[%s147 + $0x8] sm:$0xff] %v696
      %761 = vst [vmem:[%s147 + $0x10] sm:$0xff] %v697
      %762 = vst [vmem:[%s147 + $0x18] sm:$0xff] %v698
      %763 = vst [vmem:[%s147 + $0x20] sm:$0xff] %v699
      %764 = vst [vmem:[%s147 + $0x28] sm:$0xff] %v700
      %765 = vst [vmem:[%s147 + $0x30] sm:$0xff] %v701
      %766 = vst [vmem:[%s147 + $0x38] sm:$0xff] %v702
      %767 = vst [vmem:[%s147 + $0x40] sm:$0xff] %v703
      %768 = vst [vmem:[%s147 + $0x48] sm:$0xff] %v704
      %769 = vst [vmem:[%s147 + $0x50] sm:$0xff] %v705
      %770 = vst [vmem:[%s147 + $0x58] sm:$0xff] %v706
      %771 = vst [vmem:[%s147 + $0x60] sm:$0xff] %v707
      %772 = vst [vmem:[%s147 + $0x68] sm:$0xff] %v708
      %773 = vst [vmem:[%s147 + $0x70] sm:$0xff] %v709
      %774 = vst [vmem:[%s147 + $0x78] sm:$0xff] %v710
      %775 = vst [vmem:[%s147 + $0x80] sm:$0xff] %v711
      %776 = vst [vmem:[%s147 + $0x88] sm:$0xff] %v712
      %777 = vst [vmem:[%s147 + $0x90] sm:$0xff] %v713
      %778 = vst [vmem:[%s147 + $0x98] sm:$0xff] %v714
      %779 = vst [vmem:[%s147 + $0xa0] sm:$0xff] %v715
      %780 = vst [vmem:[%s147 + $0xa8] sm:$0xff] %v716
      %781 = vst [vmem:[%s147 + $0xb0] sm:$0xff] %v717
      %782 = vst [vmem:[%s147 + $0xb8] sm:$0xff] %v718
      %783 = vst [vmem:[%s147 + $0xc0] sm:$0xff] %v719
      %784 = vst [vmem:[%s147 + $0xc8] sm:$0xff] %v720
      %785 = vst [vmem:[%s147 + $0xd0] sm:$0xff] %v721
      %786 = vst [vmem:[%s147 + $0xd8] sm:$0xff] %v722
      %787 = vst [vmem:[%s147 + $0xe0] sm:$0xff] %v723
      %788 = vst [vmem:[%s147 + $0xe8] sm:$0xff] %v724
      %789 = vst [vmem:[%s147 + $0xf0] sm:$0xff] %v725
      %790 = vst [vmem:[%s147 + $0xf8] sm:$0xff] %v726
      %s791 = smul.u32 32, %s13
      %p792 = scmp.lt.s32.totalorder %s791, 63
      %s793 = scalar_select %p792, %s791, 63
      %s794 = smul.addr %s793, 2
      %s795 = smul.addr %s794, 4
      %s796 = scalar_lea.vmem %s2, %s795
      // Predicated region
      $region29: #{encoder_forward_padded.8} parent=27 // pred_check
        %p797 = pneg %p78
      $region30: #{encoder_forward_padded.8} parent=27 // pred_check_branch
        %799 = sbr.rel (%p797) target = $region32
      $region31: #{encoder_forward_padded.8} parent=27 // pred_region
        %s800 = smul.u32 32, %s13
      $region32: #{encoder_forward_padded.8} parent=27 // pred_fallthru
        _
    $region28: #{encoder_forward_padded.8} parent=5 // pred_fallthru
      _
    %p801 = scmp.le.s32.totalorder 2, %s8
    // Predicated region
    $region33: #{encoder_forward_padded.8} parent=5 // pred_check
      %p802 = pneg %p801
    $region34: #{encoder_forward_padded.8} parent=5 // pred_check_branch
      %804 = sbr.rel (%p802) target = $region36
    $region35: #{encoder_forward_padded.8} parent=5 // pred_region
      %s805 = ssub.s32 %s8, 2
      // Predicated region
      $region37: #{encoder_forward_padded.8} parent=35 // pred_check
        %p806 = pneg %p84
      $region38: #{encoder_forward_padded.8} parent=35 // pred_check_branch
        %808 = sbr.rel (%p806) target = $region40
      $region39: #{encoder_forward_padded.8} parent=35 // pred_region
        %s809 = smul.u32 32, %s14
        %p810 = scmp.lt.s32.totalorder %s809, 63
        %s811 = scalar_select %p810, %s809, 63
        %s812 = smul.addr %s811, 2
        %s813 = smul.addr %s812, 4
        %s814 = scalar_lea.vmem %s2, %s813
      $region40: #{encoder_forward_padded.8} parent=35 // pred_fallthru
        _
    $region36: #{encoder_forward_padded.8} parent=5 // pred_fallthru
      _
  $region6: #{encoder_forward_padded.8} parent=0 // loop_footer
    %s12 = sadd.s32 1, %s8
  $region7: #{encoder_forward_padded.8} parent=0 // loop_footer_branch
    %7 = sbr.rel target = $region3
  $region8: #{encoder_forward_padded.8} parent=0 // loop_exit
    _

// kernel: encoder_forward_padded.6
$region0: #{encoder_forward_padded.6}
  #allocation0 [shape = 'u32[]', space=smem, size = 0x4, offset = 0x4, fixed_abs, tag = 'smem constant byte address 0x4 - core index']
  #allocation1 [shape = 'u32[144,128]{1,0:T(1,128)}', space=vmem, size = 0x12000, scoped, tag = 'internal scratch']
  %s0 = inlined_call_operand.hbm [shape: bf16[512,128], index: 0, kind: input, shape index: {}]
  %s1 = inlined_call_operand.hbm [shape: bf16[128,256], index: 1, kind: input, shape index: {}]
  %s2 = inlined_call_operand.vmem [shape: bf16[512,256], index: 2, kind: output, shape index: {}]
  %s3 = sld [smem:[#allocation0]]
  $region49: #{encoder_forward_padded.6} parent=0
    _
  %s5 = ssub.s32 1, %s3
  %s6 = scalar_select 0, %s5, %s3
  $region1: #{encoder_forward_padded.6} parent=0
    #allocation2 [shape = 'u8[131072]{0}', space=vmem, size = 0x20000, scoped, tag = 'input window, operand 0']
    #allocation3 [shape = 's32[2]{0}', space=sflag, size = 0x8, scoped, tag = 'scoped memory for encoder_forward_padded.6']
    #allocation4 [shape = 'u8[65536]{0}', space=vmem, size = 0x10000, scoped, tag = 'input window, operand 1, single buffered']
    #allocation5 [shape = 's32[1]{0}', space=sflag, size = 0x4, scoped, tag = 'scoped memory for encoder_forward_padded.6']
    %7 = vsyncpa [#allocation3], 0
    %s8 = scalar_lea.sflag [#allocation3], 1
    %9 = vsyncpa %s8, 0
    %10 = vsyncpa [#allocation5], 0
    loop: start=0, step=1, limit=4
    $region2: #{encoder_forward_padded.6} parent=1 // loop_pre_header
      _
    $region3: #{encoder_forward_padded.6} parent=1 // loop_header
      %s12 = sphi 0, %s16
      %p13 = scmp.ge.s32.totalorder %s12, 4
      %s22 = sphi 0, %s24
      %s25 = sphi 0, %s22
      %s26 = sphi 0, %s25
      %s42 = sphi 0, %s26
      %s46 = sphi 0, %s46
      %s48 = sphi 0, %s46
      %s49 = sphi 0, %s48
      %s63 = sphi 0, %s49
      %s69 = sphi 0, %s71
      %s72 = sphi 0, %s69
      %s73 = sphi 0, %s72
      %s89 = sphi 0, %s73
    $region4: #{encoder_forward_padded.6} parent=1 // loop_header_branch
      %15 = sbr.rel (%p13) target = $region8
    $region5: #{encoder_forward_padded.6} parent=1 // loop_body
      %s17 = ssub.s32 %s12, 1
      %s18 = ssub.s32 %s12, 2
      %s19 = sadd.s32 %s12, 1
      %s20 = ssub.s32 %s12, %s19
      %p21 = scmp.eq.s32.totalorder %s20, 0
      %s23 = sadd.s32 %s22, 1
      %s24 = scalar_select %p21, %s22, %s23
      %p27 = pneg %p21
      %p28 = scmp.eq.s32.totalorder %s12, 1
      %p29 = por %p27, %p28
      %p30 = scmp.ne.s32.totalorder %s22, %s25
      %p31 = scmp.eq.s32.totalorder %s12, 0
      %p32 = por %p30, %p31
      %p33 = scmp.ne.s32.totalorder %s22, %s25
      %p34 = scmp.eq.s32.totalorder %s17, 1
      %p35 = por %p33, %p34
      %p36 = scmp.ne.s32.totalorder %s25, %s26
      %p37 = scmp.eq.s32.totalorder %s17, 0
      %p38 = por %p36, %p37
      %p39 = scmp.ne.s32.totalorder %s25, %s26
      %p40 = scmp.eq.s32.totalorder %s18, 1
      %p41 = por %p39, %p40
      %p43 = scmp.ne.s32.totalorder %s26, %s42
      %p44 = scmp.eq.s32.totalorder %s18, 0
      %p45 = por %p43, %p44
      %s47 = sadd.s32 %s46, 1
      %p50 = scmp.eq.s32.totalorder %s12, 1
      %p51 = scmp.ne.s32.totalorder %s46, %s48
      %p52 = scmp.eq.s32.totalorder %s12, 0
      %p53 = por %p51, %p52
      %p54 = scmp.ne.s32.totalorder %s46, %s48
      %p55 = scmp.eq.s32.totalorder %s17, 1
      %p56 = por %p54, %p55
      %p57 = scmp.ne.s32.totalorder %s48, %s49
      %p58 = scmp.eq.s32.totalorder %s17, 0
      %p59 = por %p57, %p58
      %p60 = scmp.ne.s32.totalorder %s48, %s49
      %p61 = scmp.eq.s32.totalorder %s18, 1
      %p62 = por %p60, %p61
      %p64 = scmp.ne.s32.totalorder %s49, %s63
      %p65 = scmp.eq.s32.totalorder %s18, 0
      %p66 = por %p64, %p65
      %s67 = ssub.s32 %s12, %s19
      %p68 = scmp.eq.s32.totalorder %s67, 0
      %s70 = sadd.s32 %s69, 1
      %s71 = scalar_select %p68, %s69, %s70
      %p74 = pneg %p68
      %p75 = scmp.eq.s32.totalorder %s12, 1
      %p76 = por %p74, %p75
      %p77 = scmp.ne.s32.totalorder %s69, %s72
      %p78 = scmp.eq.s32.totalorder %s12, 0
      %p79 = por %p77, %p78
      %p80 = scmp.ne.s32.totalorder %s69, %s72
      %p81 = scmp.eq.s32.totalorder %s17, 1
      %p82 = por %p80, %p81
      %p83 = scmp.ne.s32.totalorder %s72, %s73
      %p84 = scmp.eq.s32.totalorder %s17, 0
      %p85 = por %p83, %p84
      %p86 = scmp.ne.s32.totalorder %s72, %s73
      %p87 = scmp.eq.s32.totalorder %s18, 1
      %p88 = por %p86, %p87
      %p90 = scmp.ne.s32.totalorder %s73, %s89
      %p91 = scmp.eq.s32.totalorder %s18, 0
      %p92 = por %p90, %p91
      %p93 = scmp.le.s32.totalorder 1, %s12
      %p94 = scmp.lt.s32.totalorder %s12, 3
      %p95 = pnand %p93, %p94
      %p96 = pneg %p95
      // Predicated region
      $region9: #{encoder_forward_padded.6} parent=5 // pred_check
        _
      $region10: #{encoder_forward_padded.6} parent=5 // pred_check_branch
        %98 = sbr.rel (%p95) target = $region12
      $region11: #{encoder_forward_padded.6} parent=5 // pred_region
        %s99 = ssub.s32 %s12, 1
        // Predicated region
        $region13: #{encoder_forward_padded.6} parent=11 // pred_check
          %p100 = pneg %p59
        $region14: #{encoder_forward_padded.6} parent=11 // pred_check_branch
          %102 = sbr.rel (%p100) target = $region16
        $region15: #{encoder_forward_padded.6} parent=11 // pred_region
          %s104 = ssub.s32 2048, 2048
          %105 = vsyncadd [#allocation5], %s104
          %s106 = sshll.u32 [#allocation4], 4
          %s107 = int_to_ptr.vmem [resolvable:$true] %s106
          %112 = dma.hbm_to_vmem [thread:$0]  %s1, 2048, %s107, [#allocation5], 128, 128, 8
        $region16: #{encoder_forward_padded.6} parent=11 // pred_fallthru
          _
      $region12: #{encoder_forward_padded.6} parent=5 // pred_fallthru
        _
      %p113 = scmp.lt.s32.totalorder %s12, 2
      // Predicated region
      $region17: #{encoder_forward_padded.6} parent=5 // pred_check
        %p114 = pneg %p113
      $region18: #{encoder_forward_padded.6} parent=5 // pred_check_branch
        %116 = sbr.rel (%p114) target = $region20
      $region19: #{encoder_forward_padded.6} parent=5 // pred_region
        // Predicated region
        $region21: #{encoder_forward_padded.6} parent=19 // pred_check
          %p117 = pneg %p32
        $region22: #{encoder_forward_padded.6} parent=19 // pred_check_branch
          %119 = sbr.rel (%p117) target = $region24
        $region23: #{encoder_forward_padded.6} parent=19 // pred_region
          %s120 = sand.u32 %s22, 1
          %s121 = scalar_lea.sflag [#allocation3], %s120
          %s122 = sand.u32 %s22, 1
          %s123 = smul.addr %s122, 128
          %s124 = scalar_lea.vmem [#allocation2], %s123
          %s125 = smul.u32 32, %s12
          %s127 = ssub.s32 2048, 2048
          %128 = vsyncadd %s121, %s127
          %s129 = smul.addr %s125, 64
          %s130 = scalar_lea.hbm %s0, %s129
          %s131 = sshll.u32 %s124, 4
          %s132 = int_to_ptr.vmem [resolvable:$true] %s131
          %137 = dma.hbm_to_vmem [thread:$0]  %s130, 2048, %s132, %s121, 64, 64, 4
        $region24: #{encoder_forward_padded.6} parent=19 // pred_fallthru
          _
      $region20: #{encoder_forward_padded.6} parent=5 // pred_fallthru
        _
      %p138 = scmp.le.s32.totalorder 1, %s12
      %p139 = scmp.lt.s32.totalorder %s12, 3
      %p140 = pnand %p138, %p139
      %p141 = pneg %p140
      // Predicated region
      $region25: #{encoder_forward_padded.6} parent=5 // pred_check
        _
      $region26: #{encoder_forward_padded.6} parent=5 // pred_check_branch
        %143 = sbr.rel (%p140) target = $region28
      $region27: #{encoder_forward_padded.6} parent=5 // pred_region
        %s144 = ssub.s32 %s12, 1
        %s145 = sand.u32 %s25, 1
        %s146 = scalar_lea.sflag [#allocation3], %s145
        %s147 = sand.u32 %s25, 1
        %s148 = smul.addr %s147, 128
        %s149 = scalar_lea.vmem [#allocation2], %s148
        // Predicated region
        $region29: #{encoder_forward_padded.6} parent=27 // pred_check
          %p150 = pneg %p38
        $region30: #{encoder_forward_padded.6} parent=27 // pred_check_branch
          %152 = sbr.rel (%p150) target = $region32
        $region31: #{encoder_forward_padded.6} parent=27 // pred_region
          %153 = dma.done %s146, 2048
        $region32: #{encoder_forward_padded.6} parent=27 // pred_fallthru
          _
        // Predicated region
        $region33: #{encoder_forward_padded.6} parent=27 // pred_check
          %p154 = pneg %p59
        $region34: #{encoder_forward_padded.6} parent=27 // pred_check_branch
          %156 = sbr.rel (%p154) target = $region36
        $region35: #{encoder_forward_padded.6} parent=27 // pred_region
          %157 = dma.done [#allocation5], 2048
        $region36: #{encoder_forward_padded.6} parent=27 // pred_fallthru
          _
        %s158 = sand.u32 %s25, 1
        %s159 = scalar_lea.sflag [#allocation3], %s158
        %s160 = sand.u32 %s25, 1
        %s161 = smul.addr %s160, 128
        %s162 = scalar_lea.vmem [#allocation2], %s161
        %p163 = pneg %p38
        %p164 = pneg %p35
        %p165 = pneg %p59
        %p166 = pneg %p56
        %p167 = pneg %p85
        %p168 = pneg %p82
        %s169 = smul.u32 32, %s17
        %p170 = scmp.lt.s32.totalorder %s169, 63
        %s171 = scalar_select %p170, %s169, 63
        %s172 = smul.addr %s171, 2
        %s173 = smul.addr %s172, 4
        %s174 = scalar_lea.vmem %s2, %s173
        %s175 = smul.u32 32, %s17
        %s176 = smul.u32 32, %s17
        %p177 = scmp.lt.s32.totalorder %s176, 63
        %s178 = scalar_select %p177, %s176, 63
        %s179 = smul.addr %s178, 2
        %s180 = smul.addr %s179, 4
        %s181 = scalar_lea.vmem %s2, %s180
        %s182 = smul.u32 32, %s17
        %v184 = vld [vmem:[%s149] sm:$0xf]
        %v185 = vld [vmem:[%s149 + $0x4] sm:$0xf]
        %v186 = vld [vmem:[%s149 + $0x8] sm:$0xf]
        %v187 = vld [vmem:[%s149 + $0xc] sm:$0xf]
        %v188 = vld [vmem:[%s149 + $0x10] sm:$0xf]
        %v189 = vld [vmem:[%s149 + $0x14] sm:$0xf]
        %v190 = vld [vmem:[%s149 + $0x18] sm:$0xf]
        %v191 = vld [vmem:[%s149 + $0x1c] sm:$0xf]
        %v192 = vld [vmem:[%s149 + $0x20] sm:$0xf]
        %v193 = vld [vmem:[%s149 + $0x24] sm:$0xf]
        %v194 = vld [vmem:[%s149 + $0x28] sm:$0xf]
        %v195 = vld [vmem:[%s149 + $0x2c] sm:$0xf]
        %v196 = vld [vmem:[%s149 + $0x30] sm:$0xf]
        %v197 = vld [vmem:[%s149 + $0x34] sm:$0xf]
        %v198 = vld [vmem:[%s149 + $0x38] sm:$0xf]
        %v199 = vld [vmem:[%s149 + $0x3c] sm:$0xf]
        %v200 = vld [vmem:[%s149 + $0x40] sm:$0xf]
        %v201 = vld [vmem:[%s149 + $0x44] sm:$0xf]
        %v202 = vld [vmem:[%s149 + $0x48] sm:$0xf]
        %v203 = vld [vmem:[%s149 + $0x4c] sm:$0xf]
        %v204 = vld [vmem:[%s149 + $0x50] sm:$0xf]
        %v205 = vld [vmem:[%s149 + $0x54] sm:$0xf]
        %v206 = vld [vmem:[%s149 + $0x58] sm:$0xf]
        %v207 = vld [vmem:[%s149 + $0x5c] sm:$0xf]
        %v208 = vld [vmem:[%s149 + $0x60] sm:$0xf]
        %v209 = vld [vmem:[%s149 + $0x64] sm:$0xf]
        %v210 = vld [vmem:[%s149 + $0x68] sm:$0xf]
        %v211 = vld [vmem:[%s149 + $0x6c] sm:$0xf]
        %v212 = vld [vmem:[%s149 + $0x70] sm:$0xf]
        %v213 = vld [vmem:[%s149 + $0x74] sm:$0xf]
        %v214 = vld [vmem:[%s149 + $0x78] sm:$0xf]
        %v215 = vld [vmem:[%s149 + $0x7c] sm:$0xf]
        %v216 = vld [vmem:[#allocation4] sm:$0xff]
        %v217 = vld [vmem:[#allocation4 + $0x8] sm:$0xff]
        %v218 = vld [vmem:[#allocation4 + $0x10] sm:$0xff]
        %v219 = vld [vmem:[#allocation4 + $0x18] sm:$0xff]
        %v220 = vld [vmem:[#allocation4 + $0x20] sm:$0xff]
        %v221 = vld [vmem:[#allocation4 + $0x28] sm:$0xff]
        %v222 = vld [vmem:[#allocation4 + $0x30] sm:$0xff]
        %v223 = vld [vmem:[#allocation4 + $0x38] sm:$0xff]
        %v224 = vld [vmem:[#allocation4 + $0x40] sm:$0xff]
        %v225 = vld [vmem:[#allocation4 + $0x48] sm:$0xff]
        %v226 = vld [vmem:[#allocation4 + $0x50] sm:$0xff]
        %v227 = vld [vmem:[#allocation4 + $0x58] sm:$0xff]
        %v228 = vld [vmem:[#allocation4 + $0x60] sm:$0xff]
        %v229 = vld [vmem:[#allocation4 + $0x68] sm:$0xff]
        %v230 = vld [vmem:[#allocation4 + $0x70] sm:$0xff]
        %v231 = vld [vmem:[#allocation4 + $0x78] sm:$0xff]
        %v264 = vunpack.c.l.b16 %v184
        %v265 = vunpack.c.l.b16 %v185
        %v266 = vunpack.c.l.b16 %v186
        %v267 = vunpack.c.l.b16 %v187
        %v268 = vunpack.c.l.b16 %v188
        %v269 = vunpack.c.l.b16 %v189
        %v270 = vunpack.c.l.b16 %v190
        %v271 = vunpack.c.l.b16 %v191
        %v272 = vunpack.c.l.b16 %v192
        %v273 = vunpack.c.l.b16 %v193
        %v274 = vunpack.c.l.b16 %v194
        %v275 = vunpack.c.l.b16 %v195
        %v276 = vunpack.c.l.b16 %v196
        %v277 = vunpack.c.l.b16 %v197
        %v278 = vunpack.c.l.b16 %v198
        %v279 = vunpack.c.l.b16 %v199
        %v280 = vunpack.c.l.b16 %v200
        %v281 = vunpack.c.l.b16 %v201
        %v282 = vunpack.c.l.b16 %v202
        %v283 = vunpack.c.l.b16 %v203
        %v284 = vunpack.c.l.b16 %v204
        %v285 = vunpack.c.l.b16 %v205
        %v286 = vunpack.c.l.b16 %v206
        %v287 = vunpack.c.l.b16 %v207
        %v288 = vunpack.c.l.b16 %v208
        %v289 = vunpack.c.l.b16 %v209
        %v290 = vunpack.c.l.b16 %v210
        %v291 = vunpack.c.l.b16 %v211
        %v292 = vunpack.c.l.b16 %v212
        %v293 = vunpack.c.l.b16 %v213
        %v294 = vunpack.c.l.b16 %v214
        %v295 = vunpack.c.l.b16 %v215
        %v296 = vpack.c.b16 %v265, %v264
        %v297 = vpack.c.b16 %v267, %v266
        %v298 = vpack.c.b16 %v269, %v268
        %v299 = vpack.c.b16 %v271, %v270
        %v300 = vpack.c.b16 %v273, %v272
        %v301 = vpack.c.b16 %v275, %v274
        %v302 = vpack.c.b16 %v277, %v276
        %v303 = vpack.c.b16 %v279, %v278
        %v304 = vpack.c.b16 %v281, %v280
        %v305 = vpack.c.b16 %v283, %v282
        %v306 = vpack.c.b16 %v285, %v284
        %v307 = vpack.c.b16 %v287, %v286
        %v308 = vpack.c.b16 %v289, %v288
        %v309 = vpack.c.b16 %v291, %v290
        %v310 = vpack.c.b16 %v293, %v292
        %v311 = vpack.c.b16 %v295, %v294
        %v344 = vunpack.c.l.b16 %v216
        %v345 = vunpack.c.h.b16 %v216
        %v346 = vunpack.c.l.b16 %v217
        %v347 = vunpack.c.h.b16 %v217
        %v348 = vunpack.c.l.b16 %v218
        %v349 = vunpack.c.h.b16 %v218
        %v350 = vunpack.c.l.b16 %v219
        %v351 = vunpack.c.h.b16 %v219
        %v352 = vunpack.c.l.b16 %v220
        %v353 = vunpack.c.h.b16 %v220
        %v354 = vunpack.c.l.b16 %v221
        %v355 = vunpack.c.h.b16 %v221
        %v356 = vunpack.c.l.b16 %v222
        %v357 = vunpack.c.h.b16 %v222
        %v358 = vunpack.c.l.b16 %v223
        %v359 = vunpack.c.h.b16 %v223
        %v360 = vunpack.c.l.b16 %v224
        %v361 = vunpack.c.h.b16 %v224
        %v362 = vunpack.c.l.b16 %v225
        %v363 = vunpack.c.h.b16 %v225
        %v364 = vunpack.c.l.b16 %v226
        %v365 = vunpack.c.h.b16 %v226
        %v366 = vunpack.c.l.b16 %v227
        %v367 = vunpack.c.h.b16 %v227
        %v368 = vunpack.c.l.b16 %v228
        %v369 = vunpack.c.h.b16 %v228
        %v370 = vunpack.c.l.b16 %v229
        %v371 = vunpack.c.h.b16 %v229
        %v372 = vunpack.c.l.b16 %v230
        %v373 = vunpack.c.h.b16 %v230
        %v374 = vunpack.c.l.b16 %v231
        %v375 = vunpack.c.h.b16 %v231
        %v376 = vpack.c.b16 %v346, %v344
        %v377 = vpack.c.b16 %v347, %v345
        %v378 = vpack.c.b16 %v350, %v348
        %v379 = vpack.c.b16 %v351, %v349
        %v380 = vpack.c.b16 %v354, %v352
        %v381 = vpack.c.b16 %v355, %v353
        %v382 = vpack.c.b16 %v358, %v356
        %v383 = vpack.c.b16 %v359, %v357
        %v384 = vpack.c.b16 %v362, %v360
        %v385 = vpack.c.b16 %v363, %v361
        %v386 = vpack.c.b16 %v366, %v364
        %v387 = vpack.c.b16 %v367, %v365
        %v388 = vpack.c.b16 %v370, %v368
        %v389 = vpack.c.b16 %v371, %v369
        %v390 = vpack.c.b16 %v374, %v372
        %v391 = vpack.c.b16 %v375, %v373
        %408 = vmatprep.subr.bf16.mxu0 %v377
        %409 = vmatpush1.bf16.msra.mxu0 %v376
        %410 = vmatprep.subr.bf16.mxu0 %v379
        %411 = vmatpush1.bf16.msra.mxu0 %v378
        %412 = vmatprep.subr.bf16.mxu0 %v381
        %413 = vmatpush1.bf16.msra.mxu0 %v380
        %414 = vmatprep.subr.bf16.mxu0 %v383
        %415 = vmatpush1.bf16.msra.mxu0 %v382
        %416 = vmatprep.subr.bf16.mxu0 %v385
        %417 = vmatpush1.bf16.msra.mxu0 %v384
        %418 = vmatprep.subr.bf16.mxu0 %v387
        %419 = vmatpush1.bf16.msra.mxu0 %v386
        %420 = vmatprep.subr.bf16.mxu0 %v389
        %421 = vmatpush1.bf16.msra.mxu0 %v388
        %422 = vmatprep.subr.bf16.mxu0 %v391
        %423 = vmatpush1.bf16.msra.mxu0 %v390
        %424 = vmatprep.subr.bf16.mxu0 0
        %425 = vmatpush1.bf16.msra.mxu0 0
        %426 = vmatprep.subr.bf16.mxu0 0
        %427 = vmatpush1.bf16.msra.mxu0 0
        %428 = vmatprep.subr.bf16.mxu0 0
        %429 = vmatpush1.bf16.msra.mxu0 0
        %430 = vmatprep.subr.bf16.mxu0 0
        %431 = vmatpush1.bf16.msra.mxu0 0
        %432 = vmatprep.subr.bf16.mxu0 0
        %433 = vmatpush1.bf16.msra.mxu0 0
        %434 = vmatprep.subr.bf16.mxu0 0
        %435 = vmatpush1.bf16.msra.mxu0 0
        %436 = vmatprep.subr.bf16.mxu0 0
        %437 = vmatpush1.bf16.msra.mxu0 0
        %438 = vmatprep.subr.bf16.mxu0 0
        %439 = vmatpush1.bf16.msra.mxu0 0
        %440 = vmatprep.mubr.bf16.mxu0 0
        %441 = vmatmul.mubr.bf16.gmra.mrb[0].mxu0 %v296
        %v442 = vpop.f32.mrb[0].mxu0
        %v443 = vadd.f32 0.0, %v442
        %v444 = vpop.f32.mrb[0].mxu0
        %v445 = vadd.f32 0.0, %v444
        %v446 = vpop.f32.mrb[0].mxu0
        %v447 = vadd.f32 0.0, %v446
        %v448 = vpop.f32.mrb[0].mxu0
        %v449 = vadd.f32 0.0, %v448
        %450 = vmatprep.mubr.bf16.mxu0 0
        %451 = vmatmul.mubr.bf16.gmra.mrb[0].mxu0 %v297
        %v452 = vpop.f32.mrb[0].mxu0
        %v453 = vadd.f32 0.0, %v452
        %v454 = vpop.f32.mrb[0].mxu0
        %v455 = vadd.f32 0.0, %v454
        %v456 = vpop.f32.mrb[0].mxu0
        %v457 = vadd.f32 0.0, %v456
        %v458 = vpop.f32.mrb[0].mxu0
        %v459 = vadd.f32 0.0, %v458
        %460 = vmatprep.mubr.bf16.mxu0 0
        %461 = vmatmul.mubr.bf16.gmra.mrb[0].mxu0 %v298
        %v462 = vpop.f32.mrb[0].mxu0
        %v463 = vadd.f32 0.0, %v462
        %v464 = vpop.f32.mrb[0].mxu0
        %v465 = vadd.f32 0.0, %v464
        %v466 = vpop.f32.mrb[0].mxu0
        %v467 = vadd.f32 0.0, %v466
        %v468 = vpop.f32.mrb[0].mxu0
        %v469 = vadd.f32 0.0, %v468
        %470 = vmatprep.mubr.bf16.mxu0 0
        %471 = vmatmul.mubr.bf16.gmra.mrb[0].mxu0 %v299
        %v472 = vpop.f32.mrb[0].mxu0
        %v473 = vadd.f32 0.0, %v472
        %v474 = vpop.f32.mrb[0].mxu0
        %v475 = vadd.f32 0.0, %v474
        %v476 = vpop.f32.mrb[0].mxu0
        %v477 = vadd.f32 0.0, %v476
        %v478 = vpop.f32.mrb[0].mxu0
        %v479 = vadd.f32 0.0, %v478
        %480 = vmatprep.mubr.bf16.mxu0 0
        %481 = vmatmul.mubr.bf16.gmra.mrb[0].mxu0 %v300
        %v482 = vpop.f32.mrb[0].mxu0
        %v483 = vadd.f32 0.0, %v482
        %v484 = vpop.f32.mrb[0].mxu0
        %v485 = vadd.f32 0.0, %v484
        %v486 = vpop.f32.mrb[0].mxu0
        %v487 = vadd.f32 0.0, %v486
        %v488 = vpop.f32.mrb[0].mxu0
        %v489 = vadd.f32 0.0, %v488
        %490 = vmatprep.mubr.bf16.mxu0 0
        %491 = vmatmul.mubr.bf16.gmra.mrb[0].mxu0 %v301
        %v492 = vpop.f32.mrb[0].mxu0
        %v493 = vadd.f32 0.0, %v492
        %v494 = vpop.f32.mrb[0].mxu0
        %v495 = vadd.f32 0.0, %v494
        %v496 = vpop.f32.mrb[0].mxu0
        %v497 = vadd.f32 0.0, %v496
        %v498 = vpop.f32.mrb[0].mxu0
        %v499 = vadd.f32 0.0, %v498
        %500 = vmatprep.mubr.bf16.mxu0 0
        %501 = vmatmul.mubr.bf16.gmra.mrb[0].mxu0 %v302
        %v502 = vpop.f32.mrb[0].mxu0
        %v503 = vadd.f32 0.0, %v502
        %v504 = vpop.f32.mrb[0].mxu0
        %v505 = vadd.f32 0.0, %v504
        %v506 = vpop.f32.mrb[0].mxu0
        %v507 = vadd.f32 0.0, %v506
        %v508 = vpop.f32.mrb[0].mxu0
        %v509 = vadd.f32 0.0, %v508
        %510 = vmatprep.mubr.bf16.mxu0 0
        %511 = vmatmul.mubr.bf16.gmra.mrb[0].mxu0 %v303
        %v512 = vpop.f32.mrb[0].mxu0
        %v513 = vadd.f32 0.0, %v512
        %v514 = vpop.f32.mrb[0].mxu0
        %v515 = vadd.f32 0.0, %v514
        %v516 = vpop.f32.mrb[0].mxu0
        %v517 = vadd.f32 0.0, %v516
        %v518 = vpop.f32.mrb[0].mxu0
        %v519 = vadd.f32 0.0, %v518
        %520 = vmatprep.mubr.bf16.mxu0 0
        %521 = vmatmul.mubr.bf16.gmra.mrb[0].mxu0 %v304
        %v522 = vpop.f32.mrb[0].mxu0
        %v523 = vadd.f32 0.0, %v522
        %v524 = vpop.f32.mrb[0].mxu0
        %v525 = vadd.f32 0.0, %v524
        %v526 = vpop.f32.mrb[0].mxu0
        %v527 = vadd.f32 0.0, %v526
        %v528 = vpop.f32.mrb[0].mxu0
        %v529 = vadd.f32 0.0, %v528
        %530 = vmatprep.mubr.bf16.mxu0 0
        %531 = vmatmul.mubr.bf16.gmra.mrb[0].mxu0 %v305
        %v532 = vpop.f32.mrb[0].mxu0
        %v533 = vadd.f32 0.0, %v532
        %v534 = vpop.f32.mrb[0].mxu0
        %v535 = vadd.f32 0.0, %v534
        %v536 = vpop.f32.mrb[0].mxu0
        %v537 = vadd.f32 0.0, %v536
        %v538 = vpop.f32.mrb[0].mxu0
        %v539 = vadd.f32 0.0, %v538
        %540 = vmatprep.mubr.bf16.mxu0 0
        %541 = vmatmul.mubr.bf16.gmra.mrb[0].mxu0 %v306
        %v542 = vpop.f32.mrb[0].mxu0
        %v543 = vadd.f32 0.0, %v542
        %v544 = vpop.f32.mrb[0].mxu0
        %v545 = vadd.f32 0.0, %v544
        %v546 = vpop.f32.mrb[0].mxu0
        %v547 = vadd.f32 0.0, %v546
        %v548 = vpop.f32.mrb[0].mxu0
        %v549 = vadd.f32 0.0, %v548
        %550 = vmatprep.mubr.bf16.mxu0 0
        %551 = vmatmul.mubr.bf16.gmra.mrb[0].mxu0 %v307
        %v552 = vpop.f32.mrb[0].mxu0
        %v553 = vadd.f32 0.0, %v552
        %v554 = vpop.f32.mrb[0].mxu0
        %v555 = vadd.f32 0.0, %v554
        %v556 = vpop.f32.mrb[0].mxu0
        %v557 = vadd.f32 0.0, %v556
        %v558 = vpop.f32.mrb[0].mxu0
        %v559 = vadd.f32 0.0, %v558
        %560 = vmatprep.mubr.bf16.mxu0 0
        %561 = vmatmul.mubr.bf16.gmra.mrb[0].mxu0 %v308
        %v562 = vpop.f32.mrb[0].mxu0
        %v563 = vadd.f32 0.0, %v562
        %v564 = vpop.f32.mrb[0].mxu0
        %v565 = vadd.f32 0.0, %v564
        %v566 = vpop.f32.mrb[0].mxu0
        %v567 = vadd.f32 0.0, %v566
        %v568 = vpop.f32.mrb[0].mxu0
        %v569 = vadd.f32 0.0, %v568
        %570 = vmatprep.mubr.bf16.mxu0 0
        %571 = vmatmul.mubr.bf16.gmra.mrb[0].mxu0 %v309
        %v572 = vpop.f32.mrb[0].mxu0
        %v573 = vadd.f32 0.0, %v572
        %v574 = vpop.f32.mrb[0].mxu0
        %v575 = vadd.f32 0.0, %v574
        %v576 = vpop.f32.mrb[0].mxu0
        %v577 = vadd.f32 0.0, %v576
        %v578 = vpop.f32.mrb[0].mxu0
        %v579 = vadd.f32 0.0, %v578
        %580 = vmatprep.mubr.bf16.mxu0 0
        %581 = vmatmul.mubr.bf16.gmra.mrb[0].mxu0 %v310
        %v582 = vpop.f32.mrb[0].mxu0
        %v583 = vadd.f32 0.0, %v582
        %v584 = vpop.f32.mrb[0].mxu0
        %v585 = vadd.f32 0.0, %v584
        %v586 = vpop.f32.mrb[0].mxu0
        %v587 = vadd.f32 0.0, %v586
        %v588 = vpop.f32.mrb[0].mxu0
        %v589 = vadd.f32 0.0, %v588
        %590 = vmatprep.mubr.bf16.mxu0 0
        %591 = vmatmul.mubr.bf16.gmra.mrb[0].mxu0 %v311
        %v592 = vpop.f32.mrb[0].mxu0
        %v593 = vadd.f32 0.0, %v592
        %v594 = vpop.f32.mrb[0].mxu0
        %v595 = vadd.f32 0.0, %v594
        %v596 = vpop.f32.mrb[0].mxu0
        %v597 = vadd.f32 0.0, %v596
        %v598 = vpop.f32.mrb[0].mxu0
        %v599 = vadd.f32 0.0, %v598
        %600 = vdwg.mxu0
        %v601 = vpack.c.bf16 %v447, %v443
        %v602 = vpack.c.bf16 %v449, %v445
        %v603 = vpack.c.bf16 %v457, %v453
        %v604 = vpack.c.bf16 %v459, %v455
        %v605 = vpack.c.bf16 %v467, %v463
        %v606 = vpack.c.bf16 %v469, %v465
        %v607 = vpack.c.bf16 %v477, %v473
        %v608 = vpack.c.bf16 %v479, %v475
        %v609 = vpack.c.bf16 %v487, %v483
        %v610 = vpack.c.bf16 %v489, %v485
        %v611 = vpack.c.bf16 %v497, %v493
        %v612 = vpack.c.bf16 %v499, %v495
        %v613 = vpack.c.bf16 %v507, %v503
        %v614 = vpack.c.bf16 %v509, %v505
        %v615 = vpack.c.bf16 %v517, %v513
        %v616 = vpack.c.bf16 %v519, %v515
        %v617 = vpack.c.bf16 %v527, %v523
        %v618 = vpack.c.bf16 %v529, %v525
        %v619 = vpack.c.bf16 %v537, %v533
        %v620 = vpack.c.bf16 %v539, %v535
        %v621 = vpack.c.bf16 %v547, %v543
        %v622 = vpack.c.bf16 %v549, %v545
        %v623 = vpack.c.bf16 %v557, %v553
        %v624 = vpack.c.bf16 %v559, %v555
        %v625 = vpack.c.bf16 %v567, %v563
        %v626 = vpack.c.bf16 %v569, %v565
        %v627 = vpack.c.bf16 %v577, %v573
        %v628 = vpack.c.bf16 %v579, %v575
        %v629 = vpack.c.bf16 %v587, %v583
        %v630 = vpack.c.bf16 %v589, %v585
        %v631 = vpack.c.bf16 %v597, %v593
        %v632 = vpack.c.bf16 %v599, %v595
        %v665 = vunpack.c.l.b16 %v601
        %v666 = vunpack.c.l.b16 %v602
        %v667 = vunpack.c.h.b16 %v601
        %v668 = vunpack.c.h.b16 %v602
        %v669 = vunpack.c.l.b16 %v603
        %v670 = vunpack.c.l.b16 %v604
        %v671 = vunpack.c.h.b16 %v603
        %v672 = vunpack.c.h.b16 %v604
        %v673 = vunpack.c.l.b16 %v605
        %v674 = vunpack.c.l.b16 %v606
        %v675 = vunpack.c.h.b16 %v605
        %v676 = vunpack.c.h.b16 %v606
        %v677 = vunpack.c.l.b16 %v607
        %v678 = vunpack.c.l.b16 %v608
        %v679 = vunpack.c.h.b16 %v607
        %v680 = vunpack.c.h.b16 %v608
        %v681 = vunpack.c.l.b16 %v609
        %v682 = vunpack.c.l.b16 %v610
        %v683 = vunpack.c.h.b16 %v609
        %v684 = vunpack.c.h.b16 %v610
        %v685 = vunpack.c.l.b16 %v611
        %v686 = vunpack.c.l.b16 %v612
        %v687 = vunpack.c.h.b16 %v611
        %v688 = vunpack.c.h.b16 %v612
        %v689 = vunpack.c.l.b16 %v613
        %v690 = vunpack.c.l.b16 %v614
        %v691 = vunpack.c.h.b16 %v613
        %v692 = vunpack.c.h.b16 %v614
        %v693 = vunpack.c.l.b16 %v615
        %v694 = vunpack.c.l.b16 %v616
        %v695 = vunpack.c.h.b16 %v615
        %v696 = vunpack.c.h.b16 %v616
        %v697 = vunpack.c.l.b16 %v617
        %v698 = vunpack.c.l.b16 %v618
        %v699 = vunpack.c.h.b16 %v617
        %v700 = vunpack.c.h.b16 %v618
        %v701 = vunpack.c.l.b16 %v619
        %v702 = vunpack.c.l.b16 %v620
        %v703 = vunpack.c.h.b16 %v619
        %v704 = vunpack.c.h.b16 %v620
        %v705 = vunpack.c.l.b16 %v621
        %v706 = vunpack.c.l.b16 %v622
        %v707 = vunpack.c.h.b16 %v621
        %v708 = vunpack.c.h.b16 %v622
        %v709 = vunpack.c.l.b16 %v623
        %v710 = vunpack.c.l.b16 %v624
        %v711 = vunpack.c.h.b16 %v623
        %v712 = vunpack.c.h.b16 %v624
        %v713 = vunpack.c.l.b16 %v625
        %v714 = vunpack.c.l.b16 %v626
        %v715 = vunpack.c.h.b16 %v625
        %v716 = vunpack.c.h.b16 %v626
        %v717 = vunpack.c.l.b16 %v627
        %v718 = vunpack.c.l.b16 %v628
        %v719 = vunpack.c.h.b16 %v627
        %v720 = vunpack.c.h.b16 %v628
        %v721 = vunpack.c.l.b16 %v629
        %v722 = vunpack.c.l.b16 %v630
        %v723 = vunpack.c.h.b16 %v629
        %v724 = vunpack.c.h.b16 %v630
        %v725 = vunpack.c.l.b16 %v631
        %v726 = vunpack.c.l.b16 %v632
        %v727 = vunpack.c.h.b16 %v631
        %v728 = vunpack.c.h.b16 %v632
        %v729 = vpack.c.b16 %v666, %v665
        %v730 = vpack.c.b16 %v668, %v667
        %v731 = vpack.c.b16 %v670, %v669
        %v732 = vpack.c.b16 %v672, %v671
        %v733 = vpack.c.b16 %v674, %v673
        %v734 = vpack.c.b16 %v676, %v675
        %v735 = vpack.c.b16 %v678, %v677
        %v736 = vpack.c.b16 %v680, %v679
        %v737 = vpack.c.b16 %v682, %v681
        %v738 = vpack.c.b16 %v684, %v683
        %v739 = vpack.c.b16 %v686, %v685
        %v740 = vpack.c.b16 %v688, %v687
        %v741 = vpack.c.b16 %v690, %v689
        %v742 = vpack.c.b16 %v692, %v691
        %v743 = vpack.c.b16 %v694, %v693
        %v744 = vpack.c.b16 %v696, %v695
        %v745 = vpack.c.b16 %v698, %v697
        %v746 = vpack.c.b16 %v700, %v699
        %v747 = vpack.c.b16 %v702, %v701
        %v748 = vpack.c.b16 %v704, %v703
        %v749 = vpack.c.b16 %v706, %v705
        %v750 = vpack.c.b16 %v708, %v707
        %v751 = vpack.c.b16 %v710, %v709
        %v752 = vpack.c.b16 %v712, %v711
        %v753 = vpack.c.b16 %v714, %v713
        %v754 = vpack.c.b16 %v716, %v715
        %v755 = vpack.c.b16 %v718, %v717
        %v756 = vpack.c.b16 %v720, %v719
        %v757 = vpack.c.b16 %v722, %v721
        %v758 = vpack.c.b16 %v724, %v723
        %v759 = vpack.c.b16 %v726, %v725
        %v760 = vpack.c.b16 %v728, %v727
        %793 = vst [vmem:[%s181] sm:$0xff] %v729
        %794 = vst [vmem:[%s181 + $0x8] sm:$0xff] %v730
        %795 = vst [vmem:[%s181 + $0x10] sm:$0xff] %v731
        %796 = vst [vmem:[%s181 + $0x18] sm:$0xff] %v732
        %797 = vst [vmem:[%s181 + $0x20] sm:$0xff] %v733
        %798 = vst [vmem:[%s181 + $0x28] sm:$0xff] %v734
        %799 = vst [vmem:[%s181 + $0x30] sm:$0xff] %v735
        %800 = vst [vmem:[%s181 + $0x38] sm:$0xff] %v736
        %801 = vst [vmem:[%s181 + $0x40] sm:$0xff] %v737
        %802 = vst [vmem:[%s181 + $0x48] sm:$0xff] %v738
        %803 = vst [vmem:[%s181 + $0x50] sm:$0xff] %v739
        %804 = vst [vmem:[%s181 + $0x58] sm:$0xff] %v740
        %805 = vst [vmem:[%s181 + $0x60] sm:$0xff] %v741
        %806 = vst [vmem:[%s181 + $0x68] sm:$0xff] %v742
        %807 = vst [vmem:[%s181 + $0x70] sm:$0xff] %v743
        %808 = vst [vmem:[%s181 + $0x78] sm:$0xff] %v744
        %809 = vst [vmem:[%s181 + $0x80] sm:$0xff] %v745
        %810 = vst [vmem:[%s181 + $0x88] sm:$0xff] %v746
        %811 = vst [vmem:[%s181 + $0x90] sm:$0xff] %v747
        %812 = vst [vmem:[%s181 + $0x98] sm:$0xff] %v748
        %813 = vst [vmem:[%s181 + $0xa0] sm:$0xff] %v749
        %814 = vst [vmem:[%s181 + $0xa8] sm:$0xff] %v750
        %815 = vst [vmem:[%s181 + $0xb0] sm:$0xff] %v751
        %816 = vst [vmem:[%s181 + $0xb8] sm:$0xff] %v752
        %817 = vst [vmem:[%s181 + $0xc0] sm:$0xff] %v753
        %818 = vst [vmem:[%s181 + $0xc8] sm:$0xff] %v754
        %819 = vst [vmem:[%s181 + $0xd0] sm:$0xff] %v755
        %820 = vst [vmem:[%s181 + $0xd8] sm:$0xff] %v756
        %821 = vst [vmem:[%s181 + $0xe0] sm:$0xff] %v757
        %822 = vst [vmem:[%s181 + $0xe8] sm:$0xff] %v758
        %823 = vst [vmem:[%s181 + $0xf0] sm:$0xff] %v759
        %824 = vst [vmem:[%s181 + $0xf8] sm:$0xff] %v760
        %s825 = smul.u32 32, %s17
        %p826 = scmp.lt.s32.totalorder %s825, 63
        %s827 = scalar_select %p826, %s825, 63
        %s828 = smul.addr %s827, 2
        %s829 = smul.addr %s828, 4
        %s830 = scalar_lea.vmem %s2, %s829
        // Predicated region
        $region37: #{encoder_forward_padded.6} parent=27 // pred_check
          %p831 = pneg %p82
        $region38: #{encoder_forward_padded.6} parent=27 // pred_check_branch
          %833 = sbr.rel (%p831) target = $region40
        $region39: #{encoder_forward_padded.6} parent=27 // pred_region
          %s834 = smul.u32 32, %s17
        $region40: #{encoder_forward_padded.6} parent=27 // pred_fallthru
          _
      $region28: #{encoder_forward_padded.6} parent=5 // pred_fallthru
        _
      %p835 = scmp.le.s32.totalorder 2, %s12
      // Predicated region
      $region41: #{encoder_forward_padded.6} parent=5 // pred_check
        %p836 = pneg %p835
      $region42: #{encoder_forward_padded.6} parent=5 // pred_check_branch
        %838 = sbr.rel (%p836) target = $region44
      $region43: #{encoder_forward_padded.6} parent=5 // pred_region
        %s839 = ssub.s32 %s12, 2
        // Predicated region
        $region45: #{encoder_forward_padded.6} parent=43 // pred_check
          %p840 = pneg %p88
        $region46: #{encoder_forward_padded.6} parent=43 // pred_check_branch
          %842 = sbr.rel (%p840) target = $region48
        $region47: #{encoder_forward_padded.6} parent=43 // pred_region
          %s843 = smul.u32 32, %s18
          %p844 = scmp.lt.s32.totalorder %s843, 63
          %s845 = scalar_select %p844, %s843, 63
          %s846 = smul.addr %s845, 2
          %s847 = smul.addr %s846, 4
          %s848 = scalar_lea.vmem %s2, %s847
        $region48: #{encoder_forward_padded.6} parent=43 // pred_fallthru
          _
      $region44: #{encoder_forward_padded.6} parent=5 // pred_fallthru
        _
    $region6: #{encoder_forward_padded.6} parent=1 // loop_footer
      %s16 = sadd.s32 1, %s12
    $region7: #{encoder_forward_padded.6} parent=1 // loop_footer_branch
      %11 = sbr.rel target = $region3
    $region8: #{encoder_forward_padded.6} parent=1 // loop_exit
      _
    %849 = vsyncpa [#allocation3], 1
    %s850 = scalar_lea.sflag [#allocation3], 1
    %851 = vsyncpa %s850, 1
    %852 = vsyncpa [#allocation5], 1

// kernel: encoder_forward_padded.9
$region0: #{encoder_forward_padded.9}
  #allocation0 [shape = 'u32[]', space=smem, size = 0x4, offset = 0x4, fixed_abs, tag = 'smem constant byte address 0x4 - core index']
  #allocation1 [shape = 'u32[144,128]{1,0:T(1,128)}', space=vmem, size = 0x12000, scoped, tag = 'internal scratch']
  #allocation2 [shape = 'f32[256,128]{1,0:T(8,128)}', space=vmem, size = 0x20000, scoped, tag = 'scratch operand']
  %s0 = inlined_call_operand.vmem [shape: bf16[512,512], index: 0, kind: input, shape index: {}]
  %s1 = inlined_call_operand.vmem [shape: bf16[512,256], index: 1, kind: input, shape index: {}, may-alias: {1,2}]
  %s2 = inlined_call_operand.vmem [shape: bf16[512,256], index: 2, kind: input, shape index: {}, may-alias: {1,2}]
  %s3 = inlined_call_operand.vmem [shape: f32[1,128], index: 3, kind: input, shape index: {}]
  %s4 = inlined_call_operand.vmem [shape: bf16[512,128], index: 4, kind: output, shape index: {}]
  %s5 = sld [smem:[#allocation0]]
  $region177: #{encoder_forward_padded.9} parent=0
    _
  %s7 = ssub.s32 1, %s5
  %s8 = scalar_select 0, %s7, %s5
  $region1: #{encoder_forward_padded.9} parent=0
    #allocation3 [shape = 'u8[262144]{0}', space=vmem, size = 0x40000, scoped, tag = 'input window, operand 0']
    #allocation4 [shape = 'u8[131072]{0}', space=vmem, size = 0x20000, scoped, tag = 'input window, operand 1']
    #allocation5 [shape = 'u8[131072]{0}', space=vmem, size = 0x20000, scoped, tag = 'input window, operand 2']
    loop: start=0, step=1, limit=6
    $region2: #{encoder_forward_padded.9} parent=1 // loop_pre_header
      _
    $region3: #{encoder_forward_padded.9} parent=1 // loop_header
      %s10 = sphi 0, %s14
      %p11 = scmp.ge.s32.totalorder %s10, 6
      %s17 = sphi 0, %s29
      %s18 = sphi 0, %s25
      %s19 = sphi 0, %s17
      %s20 = sphi 0, %s18
      %s21 = sphi 0, %s19
      %s22 = sphi 0, %s20
      %s34 = sphi 0, %s36
      %s37 = sphi 0, %s34
      %s38 = sphi 0, %s37
      %s54 = sphi 0, %s38
      %s60 = sphi 0, %s62
      %s63 = sphi 0, %s60
      %s64 = sphi 0, %s63
      %s80 = sphi 0, %s64
      %s86 = sphi 0, %s88
      %s89 = sphi 0, %s86
      %s90 = sphi 0, %s89
      %s106 = sphi 0, %s90
      %s110 = sphi 0, %s110
      %s112 = sphi 0, %s110
      %s113 = sphi 0, %s112
      %s127 = sphi 0, %s113
      %s133 = sphi 0, %s135
      %s136 = sphi 0, %s133
      %s137 = sphi 0, %s136
      %s153 = sphi 0, %s137
    $region4: #{encoder_forward_padded.9} parent=1 // loop_header_branch
      %13 = sbr.rel (%p11) target = $region8
    $region5: #{encoder_forward_padded.9} parent=1 // loop_body
      %s15 = ssub.s32 %s10, 1
      %s16 = ssub.s32 %s10, 2
      %s23 = sadd.s32 1, %s18
      %p24 = scmp.ge.s32.totalorder %s23, 2
      %s25 = scalar_select %p24, 0, %s23
      %s26 = sadd.s32 1, %s17
      %s27 = scalar_select %p24, %s26, %s17
      %p28 = scmp.ge.s32.totalorder %s27, 2
      %s29 = scalar_select %p28, 0, %s27
      %s30 = ssub.s32 %s17, %s29
      %s31 = ssub.s32 %s18, %s25
      %s32 = sor.u32 %s30, %s31
      %p33 = scmp.eq.s32.totalorder %s32, 0
      %s35 = sadd.s32 %s34, 1
      %s36 = scalar_select %p33, %s34, %s35
      %p39 = pneg %p33
      %p40 = scmp.eq.s32.totalorder %s10, 3
      %p41 = por %p39, %p40
      %p42 = scmp.ne.s32.totalorder %s34, %s37
      %p43 = scmp.eq.s32.totalorder %s10, 0
      %p44 = por %p42, %p43
      %p45 = scmp.ne.s32.totalorder %s34, %s37
      %p46 = scmp.eq.s32.totalorder %s15, 3
      %p47 = por %p45, %p46
      %p48 = scmp.ne.s32.totalorder %s37, %s38
      %p49 = scmp.eq.s32.totalorder %s15, 0
      %p50 = por %p48, %p49
      %p51 = scmp.ne.s32.totalorder %s37, %s38
      %p52 = scmp.eq.s32.totalorder %s16, 3
      %p53 = por %p51, %p52
      %p55 = scmp.ne.s32.totalorder %s38, %s54
      %p56 = scmp.eq.s32.totalorder %s16, 0
      %p57 = por %p55, %p56
      %s58 = ssub.s32 %s18, %s25
      %p59 = scmp.eq.s32.totalorder %s58, 0
      %s61 = sadd.s32 %s60, 1
      %s62 = scalar_select %p59, %s60, %s61
      %p65 = pneg %p59
      %p66 = scmp.eq.s32.totalorder %s10, 3
      %p67 = por %p65, %p66
      %p68 = scmp.ne.s32.totalorder %s60, %s63
      %p69 = scmp.eq.s32.totalorder %s10, 0
      %p70 = por %p68, %p69
      %p71 = scmp.ne.s32.totalorder %s60, %s63
      %p72 = scmp.eq.s32.totalorder %s15, 3
      %p73 = por %p71, %p72
      %p74 = scmp.ne.s32.totalorder %s63, %s64
      %p75 = scmp.eq.s32.totalorder %s15, 0
      %p76 = por %p74, %p75
      %p77 = scmp.ne.s32.totalorder %s63, %s64
      %p78 = scmp.eq.s32.totalorder %s16, 3
      %p79 = por %p77, %p78
      %p81 = scmp.ne.s32.totalorder %s64, %s80
      %p82 = scmp.eq.s32.totalorder %s16, 0
      %p83 = por %p81, %p82
      %s84 = ssub.s32 %s17, %s29
      %p85 = scmp.eq.s32.totalorder %s84, 0
      %s87 = sadd.s32 %s86, 1
      %s88 = scalar_select %p85, %s86, %s87
      %p91 = pneg %p85
      %p92 = scmp.eq.s32.totalorder %s10, 3
      %p93 = por %p91, %p92
      %p94 = scmp.ne.s32.totalorder %s86, %s89
      %p95 = scmp.eq.s32.totalorder %s10, 0
      %p96 = por %p94, %p95
      %p97 = scmp.ne.s32.totalorder %s86, %s89
      %p98 = scmp.eq.s32.totalorder %s15, 3
      %p99 = por %p97, %p98
      %p100 = scmp.ne.s32.totalorder %s89, %s90
      %p101 = scmp.eq.s32.totalorder %s15, 0
      %p102 = por %p100, %p101
      %p103 = scmp.ne.s32.totalorder %s89, %s90
      %p104 = scmp.eq.s32.totalorder %s16, 3
      %p105 = por %p103, %p104
      %p107 = scmp.ne.s32.totalorder %s90, %s106
      %p108 = scmp.eq.s32.totalorder %s16, 0
      %p109 = por %p107, %p108
      %s111 = sadd.s32 %s110, 1
      %p114 = scmp.eq.s32.totalorder %s10, 3
      %p115 = scmp.ne.s32.totalorder %s110, %s112
      %p116 = scmp.eq.s32.totalorder %s10, 0
      %p117 = por %p115, %p116
      %p118 = scmp.ne.s32.totalorder %s110, %s112
      %p119 = scmp.eq.s32.totalorder %s15, 3
      %p120 = por %p118, %p119
      %p121 = scmp.ne.s32.totalorder %s112, %s113
      %p122 = scmp.eq.s32.totalorder %s15, 0
      %p123 = por %p121, %p122
      %p124 = scmp.ne.s32.totalorder %s112, %s113
      %p125 = scmp.eq.s32.totalorder %s16, 3
      %p126 = por %p124, %p125
      %p128 = scmp.ne.s32.totalorder %s113, %s127
      %p129 = scmp.eq.s32.totalorder %s16, 0
      %p130 = por %p128, %p129
      %s131 = ssub.s32 %s17, %s29
      %p132 = scmp.eq.s32.totalorder %s131, 0
      %s134 = sadd.s32 %s133, 1
      %s135 = scalar_select %p132, %s133, %s134
      %p138 = pneg %p132
      %p139 = scmp.eq.s32.totalorder %s10, 3
      %p140 = por %p138, %p139
      %p141 = scmp.ne.s32.totalorder %s133, %s136
      %p142 = scmp.eq.s32.totalorder %s10, 0
      %p143 = por %p141, %p142
      %p144 = scmp.ne.s32.totalorder %s133, %s136
      %p145 = scmp.eq.s32.totalorder %s15, 3
      %p146 = por %p144, %p145
      %p147 = scmp.ne.s32.totalorder %s136, %s137
      %p148 = scmp.eq.s32.totalorder %s15, 0
      %p149 = por %p147, %p148
      %p150 = scmp.ne.s32.totalorder %s136, %s137
      %p151 = scmp.eq.s32.totalorder %s16, 3
      %p152 = por %p150, %p151
      %p154 = scmp.ne.s32.totalorder %s137, %s153
      %p155 = scmp.eq.s32.totalorder %s16, 0
      %p156 = por %p154, %p155
      %p157 = scmp.le.s32.totalorder 1, %s10
      %p158 = scmp.lt.s32.totalorder %s10, 5
      %p159 = pnand %p157, %p158
      %p160 = pneg %p159
      // Predicated region
      $region9: #{encoder_forward_padded.9} parent=5 // pred_check
        _
      $region10: #{encoder_forward_padded.9} parent=5 // pred_check_branch
        %162 = sbr.rel (%p159) target = $region12
      $region11: #{encoder_forward_padded.9} parent=5 // pred_region
        %s163 = ssub.s32 %s10, 1
        // Predicated region
        $region13: #{encoder_forward_padded.9} parent=11 // pred_check
          %p164 = pneg %p123
        $region14: #{encoder_forward_padded.9} parent=11 // pred_check_branch
          %166 = sbr.rel (%p164) target = $region16
        $region15: #{encoder_forward_padded.9} parent=11 // pred_region
          _
        $region16: #{encoder_forward_padded.9} parent=11 // pred_fallthru
          _
      $region12: #{encoder_forward_padded.9} parent=5 // pred_fallthru
        _
      %p167 = scmp.lt.s32.totalorder %s10, 4
      // Predicated region
      $region17: #{encoder_forward_padded.9} parent=5 // pred_check
        %p168 = pneg %p167
      $region18: #{encoder_forward_padded.9} parent=5 // pred_check_branch
        %170 = sbr.rel (%p168) target = $region20
      $region19: #{encoder_forward_padded.9} parent=5 // pred_region
        // Predicated region
        $region21: #{encoder_forward_padded.9} parent=19 // pred_check
          %p171 = pneg %p44
        $region22: #{encoder_forward_padded.9} parent=19 // pred_check_branch
          %173 = sbr.rel (%p171) target = $region24
        $region23: #{encoder_forward_padded.9} parent=19 // pred_region
          %s174 = sand.u32 %s34, 1
          %s175 = sand.u32 %s34, 1
          %s176 = smul.addr %s175, 256
          %s177 = scalar_lea.vmem [#allocation3], %s176
          %s178 = smul.u32 32, %s17
          %s179 = smul.u32 2, %s18
          %s180 = smul.addr %s178, 4
          %s181 = sadd.s32 %s179, %s180
          %s182 = smul.addr %s181, 4
          %s183 = scalar_lea.vmem %s0, %s182
          // Predicated region
          $region25: #{encoder_forward_padded.9} parent=23 // pred_check
            _
          $region26: #{encoder_forward_padded.9} parent=23 // pred_check_branch
            %185 = sbr.rel (0) target = $region28
          $region27: #{encoder_forward_padded.9} parent=23 // pred_region
            // Predicated region
            $region29: #{encoder_forward_padded.9} parent=27 // pred_check
              _
            $region30: #{encoder_forward_padded.9} parent=27 // pred_check_branch
              %187 = sbr.rel (0) target = $region32
            $region31: #{encoder_forward_padded.9} parent=27 // pred_region
              // Predicated region
              $region44: #{encoder_forward_padded.9} parent=31 // pred_check
                _
              $region45: #{encoder_forward_padded.9} parent=31 // pred_check_branch
                %264 = sbr.rel (0) target = $region47
              $region46: #{encoder_forward_padded.9} parent=31 // pred_region
                loop: start=0, step=1, limit=1
                $region48: #{encoder_forward_padded.9} parent=46 // loop_pre_header
                  _
                $region49: #{encoder_forward_padded.9} parent=46 // loop_header
                  %s266 = sphi 0, %s270
                  %p267 = scmp.ge.s32.totalorder %s266, 1
                  %s271 = sphi %s183, %s183
                  %s272 = sphi %s177, %s177
                $region50: #{encoder_forward_padded.9} parent=46 // loop_header_branch
                  %269 = sbr.rel (%p267) target = $region54
                $region51: #{encoder_forward_padded.9} parent=46 // loop_body
                  %v273 = vld [vmem:[%s271] sm:$0xff]
                  %274 = vst [vmem:[%s272] sm:$0xff] %v273
                  %v275 = vld [vmem:[%s271 + $0x10] sm:$0xff]
                  %276 = vst [vmem:[%s272 + $0x8] sm:$0xff] %v275
                  %v277 = vld [vmem:[%s271 + $0x20] sm:$0xff]
                  %278 = vst [vmem:[%s272 + $0x10] sm:$0xff] %v277
                  %v279 = vld [vmem:[%s271 + $0x30] sm:$0xff]
                  %280 = vst [vmem:[%s272 + $0x18] sm:$0xff] %v279
                  %v281 = vld [vmem:[%s271 + $0x40] sm:$0xff]
                  %282 = vst [vmem:[%s272 + $0x20] sm:$0xff] %v281
                  %v283 = vld [vmem:[%s271 + $0x50] sm:$0xff]
                  %284 = vst [vmem:[%s272 + $0x28] sm:$0xff] %v283
                  %v285 = vld [vmem:[%s271 + $0x60] sm:$0xff]
                  %286 = vst [vmem:[%s272 + $0x30] sm:$0xff] %v285
                  %v287 = vld [vmem:[%s271 + $0x70] sm:$0xff]
                  %288 = vst [vmem:[%s272 + $0x38] sm:$0xff] %v287
                  %v289 = vld [vmem:[%s271 + $0x80] sm:$0xff]
                  %290 = vst [vmem:[%s272 + $0x40] sm:$0xff] %v289
                  %v291 = vld [vmem:[%s271 + $0x90] sm:$0xff]
                  %292 = vst [vmem:[%s272 + $0x48] sm:$0xff] %v291
                  %v293 = vld [vmem:[%s271 + $0xa0] sm:$0xff]
                  %294 = vst [vmem:[%s272 + $0x50] sm:$0xff] %v293
                  %v295 = vld [vmem:[%s271 + $0xb0] sm:$0xff]
                  %296 = vst [vmem:[%s272 + $0x58] sm:$0xff] %v295
                  %v297 = vld [vmem:[%s271 + $0xc0] sm:$0xff]
                  %298 = vst [vmem:[%s272 + $0x60] sm:$0xff] %v297
                  %v299 = vld [vmem:[%s271 + $0xd0] sm:$0xff]
                  %300 = vst [vmem:[%s272 + $0x68] sm:$0xff] %v299
                  %v301 = vld [vmem:[%s271 + $0xe0] sm:$0xff]
                  %302 = vst [vmem:[%s272 + $0x70] sm:$0xff] %v301
                  %v303 = vld [vmem:[%s271 + $0xf0] sm:$0xff]
                  %304 = vst [vmem:[%s272 + $0x78] sm:$0xff] %v303
                  %v305 = vld [vmem:[%s271 + $0x100] sm:$0xff]
                  %306 = vst [vmem:[%s272 + $0x80] sm:$0xff] %v305
                  %v307 = vld [vmem:[%s271 + $0x110] sm:$0xff]
                  %308 = vst [vmem:[%s272 + $0x88] sm:$0xff] %v307
                  %v309 = vld [vmem:[%s271 + $0x120] sm:$0xff]
                  %310 = vst [vmem:[%s272 + $0x90] sm:$0xff] %v309
                  %v311 = vld [vmem:[%s271 + $0x130] sm:$0xff]
                  %312 = vst [vmem:[%s272 + $0x98] sm:$0xff] %v311
                  %v313 = vld [vmem:[%s271 + $0x140] sm:$0xff]
                  %314 = vst [vmem:[%s272 + $0xa0] sm:$0xff] %v313
                  %v315 = vld [vmem:[%s271 + $0x150] sm:$0xff]
                  %316 = vst [vmem:[%s272 + $0xa8] sm:$0xff] %v315
                  %v317 = vld [vmem:[%s271 + $0x160] sm:$0xff]
                  %318 = vst [vmem:[%s272 + $0xb0] sm:$0xff] %v317
                  %v319 = vld [vmem:[%s271 + $0x170] sm:$0xff]
                  %320 = vst [vmem:[%s272 + $0xb8] sm:$0xff] %v319
                  %v321 = vld [vmem:[%s271 + $0x180] sm:$0xff]
                  %322 = vst [vmem:[%s272 + $0xc0] sm:$0xff] %v321
                  %v323 = vld [vmem:[%s271 + $0x190] sm:$0xff]
                  %324 = vst [vmem:[%s272 + $0xc8] sm:$0xff] %v323
                  %v325 = vld [vmem:[%s271 + $0x1a0] sm:$0xff]
                  %326 = vst [vmem:[%s272 + $0xd0] sm:$0xff] %v325
                  %v327 = vld [vmem:[%s271 + $0x1b0] sm:$0xff]
                  %328 = vst [vmem:[%s272 + $0xd8] sm:$0xff] %v327
                  %v329 = vld [vmem:[%s271 + $0x1c0] sm:$0xff]
                  %330 = vst [vmem:[%s272 + $0xe0] sm:$0xff] %v329
                  %v331 = vld [vmem:[%s271 + $0x1d0] sm:$0xff]
                  %332 = vst [vmem:[%s272 + $0xe8] sm:$0xff] %v331
                  %v333 = vld [vmem:[%s271 + $0x1e0] sm:$0xff]
                  %334 = vst [vmem:[%s272 + $0xf0] sm:$0xff] %v333
                  %v335 = vld [vmem:[%s271 + $0x1f0] sm:$0xff]
                  %336 = vst [vmem:[%s272 + $0xf8] sm:$0xff] %v335
                $region52: #{encoder_forward_padded.9} parent=46 // loop_footer
                  %s270 = sadd.s32 1, %s266
                $region53: #{encoder_forward_padded.9} parent=46 // loop_footer_branch
                  %265 = sbr.rel target = $region49
                $region54: #{encoder_forward_padded.9} parent=46 // loop_exit
                  _
              $region47: #{encoder_forward_padded.9} parent=31 // pred_fallthru
                _
              // Predicated region
              $region55: #{encoder_forward_padded.9} parent=31 // pred_check
                _
              $region56: #{encoder_forward_padded.9} parent=31 // pred_check_branch
                %338 = sbr.rel target = $region58
              $region57: #{encoder_forward_padded.9} parent=31 // pred_region
                _
              $region58: #{encoder_forward_padded.9} parent=31 // pred_fallthru
                _
            $region32: #{encoder_forward_padded.9} parent=27 // pred_fallthru
              _
            // Predicated region
            $region33: #{encoder_forward_padded.9} parent=27 // pred_check
              _
            $region34: #{encoder_forward_padded.9} parent=27 // pred_check_branch
              %189 = sbr.rel target = $region36
            $region35: #{encoder_forward_padded.9} parent=27 // pred_region
              loop: start=0, step=1, limit=1
              $region37: #{encoder_forward_padded.9} parent=35 // loop_pre_header
                _
              $region38: #{encoder_forward_padded.9} parent=35 // loop_header
                %s192 = sphi 0, %s196
                %p193 = scmp.ge.s32.totalorder %s192, 1
                %s197 = sphi %s183, %s183
                %s198 = sphi %s177, %s177
              $region39: #{encoder_forward_padded.9} parent=35 // loop_header_branch
                %195 = sbr.rel (%p193) target = $region43
              $region40: #{encoder_forward_padded.9} parent=35 // loop_body
                %v199 = vld [vmem:[%s197] sm:$0xff]
                %200 = vst [vmem:[%s198] sm:$0xff] %v199
                %v201 = vld [vmem:[%s197 + $0x10] sm:$0xff]
                %202 = vst [vmem:[%s198 + $0x8] sm:$0xff] %v201
                %v203 = vld [vmem:[%s197 + $0x20] sm:$0xff]
                %204 = vst [vmem:[%s198 + $0x10] sm:$0xff] %v203
                %v205 = vld [vmem:[%s197 + $0x30] sm:$0xff]
                %206 = vst [vmem:[%s198 + $0x18] sm:$0xff] %v205
                %v207 = vld [vmem:[%s197 + $0x40] sm:$0xff]
                %208 = vst [vmem:[%s198 + $0x20] sm:$0xff] %v207
                %v209 = vld [vmem:[%s197 + $0x50] sm:$0xff]
                %210 = vst [vmem:[%s198 + $0x28] sm:$0xff] %v209
                %v211 = vld [vmem:[%s197 + $0x60] sm:$0xff]
                %212 = vst [vmem:[%s198 + $0x30] sm:$0xff] %v211
                %v213 = vld [vmem:[%s197 + $0x70] sm:$0xff]
                %214 = vst [vmem:[%s198 + $0x38] sm:$0xff] %v213
                %v215 = vld [vmem:[%s197 + $0x80] sm:$0xff]
                %216 = vst [vmem:[%s198 + $0x40] sm:$0xff] %v215
                %v217 = vld [vmem:[%s197 + $0x90] sm:$0xff]
                %218 = vst [vmem:[%s198 + $0x48] sm:$0xff] %v217
                %v219 = vld [vmem:[%s197 + $0xa0] sm:$0xff]
                %220 = vst [vmem:[%s198 + $0x50] sm:$0xff] %v219
                %v221 = vld [vmem:[%s197 + $0xb0] sm:$0xff]
                %222 = vst [vmem:[%s198 + $0x58] sm:$0xff] %v221
                %v223 = vld [vmem:[%s197 + $0xc0] sm:$0xff]
                %224 = vst [vmem:[%s198 + $0x60] sm:$0xff] %v223
                %v225 = vld [vmem:[%s197 + $0xd0] sm:$0xff]
                %226 = vst [vmem:[%s198 + $0x68] sm:$0xff] %v225
                %v227 = vld [vmem:[%s197 + $0xe0] sm:$0xff]
                %228 = vst [vmem:[%s198 + $0x70] sm:$0xff] %v227
                %v229 = vld [vmem:[%s197 + $0xf0] sm:$0xff]
                %230 = vst [vmem:[%s198 + $0x78] sm:$0xff] %v229
                %v231 = vld [vmem:[%s197 + $0x100] sm:$0xff]
                %232 = vst [vmem:[%s198 + $0x80] sm:$0xff] %v231
                %v233 = vld [vmem:[%s197 + $0x110] sm:$0xff]
                %234 = vst [vmem:[%s198 + $0x88] sm:$0xff] %v233
                %v235 = vld [vmem:[%s197 + $0x120] sm:$0xff]
                %236 = vst [vmem:[%s198 + $0x90] sm:$0xff] %v235
                %v237 = vld [vmem:[%s197 + $0x130] sm:$0xff]
                %238 = vst [vmem:[%s198 + $0x98] sm:$0xff] %v237
                %v239 = vld [vmem:[%s197 + $0x140] sm:$0xff]
                %240 = vst [vmem:[%s198 + $0xa0] sm:$0xff] %v239
                %v241 = vld [vmem:[%s197 + $0x150] sm:$0xff]
                %242 = vst [vmem:[%s198 + $0xa8] sm:$0xff] %v241
                %v243 = vld [vmem:[%s197 + $0x160] sm:$0xff]
                %244 = vst [vmem:[%s198 + $0xb0] sm:$0xff] %v243
                %v245 = vld [vmem:[%s197 + $0x170] sm:$0xff]
                %246 = vst [vmem:[%s198 + $0xb8] sm:$0xff] %v245
                %v247 = vld [vmem:[%s197 + $0x180] sm:$0xff]
                %248 = vst [vmem:[%s198 + $0xc0] sm:$0xff] %v247
                %v249 = vld [vmem:[%s197 + $0x190] sm:$0xff]
                %250 = vst [vmem:[%s198 + $0xc8] sm:$0xff] %v249
                %v251 = vld [vmem:[%s197 + $0x1a0] sm:$0xff]
                %252 = vst [vmem:[%s198 + $0xd0] sm:$0xff] %v251
                %v253 = vld [vmem:[%s197 + $0x1b0] sm:$0xff]
                %254 = vst [vmem:[%s198 + $0xd8] sm:$0xff] %v253
                %v255 = vld [vmem:[%s197 + $0x1c0] sm:$0xff]
                %256 = vst [vmem:[%s198 + $0xe0] sm:$0xff] %v255
                %v257 = vld [vmem:[%s197 + $0x1d0] sm:$0xff]
                %258 = vst [vmem:[%s198 + $0xe8] sm:$0xff] %v257
                %v259 = vld [vmem:[%s197 + $0x1e0] sm:$0xff]
                %260 = vst [vmem:[%s198 + $0xf0] sm:$0xff] %v259
                %v261 = vld [vmem:[%s197 + $0x1f0] sm:$0xff]
                %262 = vst [vmem:[%s198 + $0xf8] sm:$0xff] %v261
              $region41: #{encoder_forward_padded.9} parent=35 // loop_footer
                %s196 = sadd.s32 1, %s192
              $region42: #{encoder_forward_padded.9} parent=35 // loop_footer_branch
                %191 = sbr.rel target = $region38
              $region43: #{encoder_forward_padded.9} parent=35 // loop_exit
                _
            $region36: #{encoder_forward_padded.9} parent=27 // pred_fallthru
              _
          $region28: #{encoder_forward_padded.9} parent=23 // pred_fallthru
            _
          %339 = vnop
        $region24: #{encoder_forward_padded.9} parent=19 // pred_fallthru
          _
        // Predicated region
        $region59: #{encoder_forward_padded.9} parent=19 // pred_check
          %p340 = pneg %p70
        $region60: #{encoder_forward_padded.9} parent=19 // pred_check_branch
          %342 = sbr.rel (%p340) target = $region62
        $region61: #{encoder_forward_padded.9} parent=19 // pred_region
          %s343 = sand.u32 %s60, 1
          %s344 = sand.u32 %s60, 1
          %s345 = smul.addr %s344, 128
          %s346 = scalar_lea.vmem [#allocation4], %s345
          %s347 = smul.u32 32, %s18
          %s348 = smul.addr %s347, 2
          %s349 = smul.addr %s348, 4
          %s350 = scalar_lea.vmem %s1, %s349
          // Predicated region
          $region63: #{encoder_forward_padded.9} parent=61 // pred_check
            _
          $region64: #{encoder_forward_padded.9} parent=61 // pred_check_branch
            %352 = sbr.rel (0) target = $region66
          $region65: #{encoder_forward_padded.9} parent=61 // pred_region
            // Predicated region
            $region67: #{encoder_forward_padded.9} parent=65 // pred_check
              _
            $region68: #{encoder_forward_padded.9} parent=65 // pred_check_branch
              %354 = sbr.rel target = $region70
            $region69: #{encoder_forward_padded.9} parent=65 // pred_region
              // Predicated region
              $region82: #{encoder_forward_padded.9} parent=69 // pred_check
                _
              $region83: #{encoder_forward_padded.9} parent=69 // pred_check_branch
                %431 = sbr.rel (0) target = $region85
              $region84: #{encoder_forward_padded.9} parent=69 // pred_region
                loop: start=0, step=1, limit=1
                $region86: #{encoder_forward_padded.9} parent=84 // loop_pre_header
                  _
                $region87: #{encoder_forward_padded.9} parent=84 // loop_header
                  %s433 = sphi 0, %s437
                  %p434 = scmp.ge.s32.totalorder %s433, 1
                  %s438 = sphi %s350, %s350
                  %s439 = sphi %s346, %s346
                $region88: #{encoder_forward_padded.9} parent=84 // loop_header_branch
                  %436 = sbr.rel (%p434) target = $region92
                $region89: #{encoder_forward_padded.9} parent=84 // loop_body
                  _
                $region90: #{encoder_forward_padded.9} parent=84 // loop_footer
                  %s437 = sadd.s32 1, %s433
                $region91: #{encoder_forward_padded.9} parent=84 // loop_footer_branch
                  %432 = sbr.rel target = $region87
                $region92: #{encoder_forward_padded.9} parent=84 // loop_exit
                  _
                loop: start=0, step=1, limit=1
                $region93: #{encoder_forward_padded.9} parent=84 // loop_pre_header
                  _
                $region94: #{encoder_forward_padded.9} parent=84 // loop_header
                  %s442 = sphi 0, %s446
                  %p443 = scmp.ge.s32.totalorder %s442, 1
                  %s447 = sphi %s350, %s350
                  %s448 = sphi %s346, %s346
                $region95: #{encoder_forward_padded.9} parent=84 // loop_header_branch
                  %445 = sbr.rel (%p443) target = $region99
                $region96: #{encoder_forward_padded.9} parent=84 // loop_body
                  %v449 = vld [vmem:[%s447] sm:$0xf]
                  %450 = vst [vmem:[%s448] sm:$0xf] %v449
                  %v451 = vld [vmem:[%s447 + $0x8] sm:$0xf]
                  %452 = vst [vmem:[%s448 + $0x4] sm:$0xf] %v451
                  %v453 = vld [vmem:[%s447 + $0x10] sm:$0xf]
                  %454 = vst [vmem:[%s448 + $0x8] sm:$0xf] %v453
                  %v455 = vld [vmem:[%s447 + $0x18] sm:$0xf]
                  %456 = vst [vmem:[%s448 + $0xc] sm:$0xf] %v455
                  %v457 = vld [vmem:[%s447 + $0x20] sm:$0xf]
                  %458 = vst [vmem:[%s448 + $0x10] sm:$0xf] %v457
                  %v459 = vld [vmem:[%s447 + $0x28] sm:$0xf]
                  %460 = vst [vmem:[%s448 + $0x14] sm:$0xf] %v459
                  %v461 = vld [vmem:[%s447 + $0x30] sm:$0xf]
                  %462 = vst [vmem:[%s448 + $0x18] sm:$0xf] %v461
                  %v463 = vld [vmem:[%s447 + $0x38] sm:$0xf]
                  %464 = vst [vmem:[%s448 + $0x1c] sm:$0xf] %v463
                  %v465 = vld [vmem:[%s447 + $0x40] sm:$0xf]
                  %466 = vst [vmem:[%s448 + $0x20] sm:$0xf] %v465
                  %v467 = vld [vmem:[%s447 + $0x48] sm:$0xf]
                  %468 = vst [vmem:[%s448 + $0x24] sm:$0xf] %v467
                  %v469 = vld [vmem:[%s447 + $0x50] sm:$0xf]
                  %470 = vst [vmem:[%s448 + $0x28] sm:$0xf] %v469
                  %v471 = vld [vmem:[%s447 + $0x58] sm:$0xf]
                  %472 = vst [vmem:[%s448 + $0x2c] sm:$0xf] %v471
                  %v473 = vld [vmem:[%s447 + $0x60] sm:$0xf]
                  %474 = vst [vmem:[%s448 + $0x30] sm:$0xf] %v473
                  %v475 = vld [vmem:[%s447 + $0x68] sm:$0xf]
                  %476 = vst [vmem:[%s448 + $0x34] sm:$0xf] %v475
                  %v477 = vld [vmem:[%s447 + $0x70] sm:$0xf]
                  %478 = vst [vmem:[%s448 + $0x38] sm:$0xf] %v477
                  %v479 = vld [vmem:[%s447 + $0x78] sm:$0xf]
                  %480 = vst [vmem:[%s448 + $0x3c] sm:$0xf] %v479
                  %v481 = vld [vmem:[%s447 + $0x80] sm:$0xf]
                  %482 = vst [vmem:[%s448 + $0x40] sm:$0xf] %v481
                  %v483 = vld [vmem:[%s447 + $0x88] sm:$0xf]
                  %484 = vst [vmem:[%s448 + $0x44] sm:$0xf] %v483
                  %v485 = vld [vmem:[%s447 + $0x90] sm:$0xf]
                  %486 = vst [vmem:[%s448 + $0x48] sm:$0xf] %v485
                  %v487 = vld [vmem:[%s447 + $0x98] sm:$0xf]
                  %488 = vst [vmem:[%s448 + $0x4c] sm:$0xf] %v487
                  %v489 = vld [vmem:[%s447 + $0xa0] sm:$0xf]
                  %490 = vst [vmem:[%s448 + $0x50] sm:$0xf] %v489
                  %v491 = vld [vmem:[%s447 + $0xa8] sm:$0xf]
                  %492 = vst [vmem:[%s448 + $0x54] sm:$0xf] %v491
                  %v493 = vld [vmem:[%s447 + $0xb0] sm:$0xf]
                  %494 = vst [vmem:[%s448 + $0x58] sm:$0xf] %v493
                  %v495 = vld [vmem:[%s447 + $0xb8] sm:$0xf]
                  %496 = vst [vmem:[%s448 + $0x5c] sm:$0xf] %v495
                  %v497 = vld [vmem:[%s447 + $0xc0] sm:$0xf]
                  %498 = vst [vmem:[%s448 + $0x60] sm:$0xf] %v497
                  %v499 = vld [vmem:[%s447 + $0xc8] sm:$0xf]
                  %500 = vst [vmem:[%s448 + $0x64] sm:$0xf] %v499
                  %v501 = vld [vmem:[%s447 + $0xd0] sm:$0xf]
                  %502 = vst [vmem:[%s448 + $0x68] sm:$0xf] %v501
                  %v503 = vld [vmem:[%s447 + $0xd8] sm:$0xf]
                  %504 = vst [vmem:[%s448 + $0x6c] sm:$0xf] %v503
                  %v505 = vld [vmem:[%s447 + $0xe0] sm:$0xf]
                  %506 = vst [vmem:[%s448 + $0x70] sm:$0xf] %v505
                  %v507 = vld [vmem:[%s447 + $0xe8] sm:$0xf]
                  %508 = vst [vmem:[%s448 + $0x74] sm:$0xf] %v507
                  %v509 = vld [vmem:[%s447 + $0xf0] sm:$0xf]
                  %510 = vst [vmem:[%s448 + $0x78] sm:$0xf] %v509
                  %v511 = vld [vmem:[%s447 + $0xf8] sm:$0xf]
                  %512 = vst [vmem:[%s448 + $0x7c] sm:$0xf] %v511
                $region97: #{encoder_forward_padded.9} parent=84 // loop_footer
                  %s446 = sadd.s32 1, %s442
                $region98: #{encoder_forward_padded.9} parent=84 // loop_footer_branch
                  %441 = sbr.rel target = $region94
                $region99: #{encoder_forward_padded.9} parent=84 // loop_exit
                  _
              $region85: #{encoder_forward_padded.9} parent=69 // pred_fallthru
                _
            $region70: #{encoder_forward_padded.9} parent=65 // pred_fallthru
              _
            // Predicated region
            $region71: #{encoder_forward_padded.9} parent=65 // pred_check
              _
            $region72: #{encoder_forward_padded.9} parent=65 // pred_check_branch
              %356 = sbr.rel (0) target = $region74
            $region73: #{encoder_forward_padded.9} parent=65 // pred_region
              loop: start=0, step=1, limit=1
              $region75: #{encoder_forward_padded.9} parent=73 // loop_pre_header
                _
              $region76: #{encoder_forward_padded.9} parent=73 // loop_header
                %s359 = sphi 0, %s363
                %p360 = scmp.ge.s32.totalorder %s359, 1
                %s364 = sphi %s350, %s350
                %s365 = sphi %s346, %s346
              $region77: #{encoder_forward_padded.9} parent=73 // loop_header_branch
                %362 = sbr.rel (%p360) target = $region81
              $region78: #{encoder_forward_padded.9} parent=73 // loop_body
                %v366 = vld [vmem:[%s364] sm:$0xf]
                %367 = vst [vmem:[%s365] sm:$0xf] %v366
                %v368 = vld [vmem:[%s364 + $0x8] sm:$0xf]
                %369 = vst [vmem:[%s365 + $0x4] sm:$0xf] %v368
                %v370 = vld [vmem:[%s364 + $0x10] sm:$0xf]
                %371 = vst [vmem:[%s365 + $0x8] sm:$0xf] %v370
                %v372 = vld [vmem:[%s364 + $0x18] sm:$0xf]
                %373 = vst [vmem:[%s365 + $0xc] sm:$0xf] %v372
                %v374 = vld [vmem:[%s364 + $0x20] sm:$0xf]
                %375 = vst [vmem:[%s365 + $0x10] sm:$0xf] %v374
                %v376 = vld [vmem:[%s364 + $0x28] sm:$0xf]
                %377 = vst [vmem:[%s365 + $0x14] sm:$0xf] %v376
                %v378 = vld [vmem:[%s364 + $0x30] sm:$0xf]
                %379 = vst [vmem:[%s365 + $0x18] sm:$0xf] %v378
                %v380 = vld [vmem:[%s364 + $0x38] sm:$0xf]
                %381 = vst [vmem:[%s365 + $0x1c] sm:$0xf] %v380
                %v382 = vld [vmem:[%s364 + $0x40] sm:$0xf]
                %383 = vst [vmem:[%s365 + $0x20] sm:$0xf] %v382
                %v384 = vld [vmem:[%s364 + $0x48] sm:$0xf]
                %385 = vst [vmem:[%s365 + $0x24] sm:$0xf] %v384
                %v386 = vld [vmem:[%s364 + $0x50] sm:$0xf]
                %387 = vst [vmem:[%s365 + $0x28] sm:$0xf] %v386
                %v388 = vld [vmem:[%s364 + $0x58] sm:$0xf]
                %389 = vst [vmem:[%s365 + $0x2c] sm:$0xf] %v388
                %v390 = vld [vmem:[%s364 + $0x60] sm:$0xf]
                %391 = vst [vmem:[%s365 + $0x30] sm:$0xf] %v390
                %v392 = vld [vmem:[%s364 + $0x68] sm:$0xf]
                %393 = vst [vmem:[%s365 + $0x34] sm:$0xf] %v392
                %v394 = vld [vmem:[%s364 + $0x70] sm:$0xf]
                %395 = vst [vmem:[%s365 + $0x38] sm:$0xf] %v394
                %v396 = vld [vmem:[%s364 + $0x78] sm:$0xf]
                %397 = vst [vmem:[%s365 + $0x3c] sm:$0xf] %v396
                %v398 = vld [vmem:[%s364 + $0x80] sm:$0xf]
                %399 = vst [vmem:[%s365 + $0x40] sm:$0xf] %v398
                %v400 = vld [vmem:[%s364 + $0x88] sm:$0xf]
                %401 = vst [vmem:[%s365 + $0x44] sm:$0xf] %v400
                %v402 = vld [vmem:[%s364 + $0x90] sm:$0xf]
                %403 = vst [vmem:[%s365 + $0x48] sm:$0xf] %v402
                %v404 = vld [vmem:[%s364 + $0x98] sm:$0xf]
                %405 = vst [vmem:[%s365 + $0x4c] sm:$0xf] %v404
                %v406 = vld [vmem:[%s364 + $0xa0] sm:$0xf]
                %407 = vst [vmem:[%s365 + $0x50] sm:$0xf] %v406
                %v408 = vld [vmem:[%s364 + $0xa8] sm:$0xf]
                %409 = vst [vmem:[%s365 + $0x54] sm:$0xf] %v408
                %v410 = vld [vmem:[%s364 + $0xb0] sm:$0xf]
                %411 = vst [vmem:[%s365 + $0x58] sm:$0xf] %v410
                %v412 = vld [vmem:[%s364 + $0xb8] sm:$0xf]
                %413 = vst [vmem:[%s365 + $0x5c] sm:$0xf] %v412
                %v414 = vld [vmem:[%s364 + $0xc0] sm:$0xf]
                %415 = vst [vmem:[%s365 + $0x60] sm:$0xf] %v414
                %v416 = vld [vmem:[%s364 + $0xc8] sm:$0xf]
                %417 = vst [vmem:[%s365 + $0x64] sm:$0xf] %v416
                %v418 = vld [vmem:[%s364 + $0xd0] sm:$0xf]
                %419 = vst [vmem:[%s365 + $0x68] sm:$0xf] %v418
                %v420 = vld [vmem:[%s364 + $0xd8] sm:$0xf]
                %421 = vst [vmem:[%s365 + $0x6c] sm:$0xf] %v420
                %v422 = vld [vmem:[%s364 + $0xe0] sm:$0xf]
                %423 = vst [vmem:[%s365 + $0x70] sm:$0xf] %v422
                %v424 = vld [vmem:[%s364 + $0xe8] sm:$0xf]
                %425 = vst [vmem:[%s365 + $0x74] sm:$0xf] %v424
                %v426 = vld [vmem:[%s364 + $0xf0] sm:$0xf]
                %427 = vst [vmem:[%s365 + $0x78] sm:$0xf] %v426
                %v428 = vld [vmem:[%s364 + $0xf8] sm:$0xf]
                %429 = vst [vmem:[%s365 + $0x7c] sm:$0xf] %v428
              $region79: #{encoder_forward_padded.9} parent=73 // loop_footer
                %s363 = sadd.s32 1, %s359
              $region80: #{encoder_forward_padded.9} parent=73 // loop_footer_branch
                %358 = sbr.rel target = $region76
              $region81: #{encoder_forward_padded.9} parent=73 // loop_exit
                _
            $region74: #{encoder_forward_padded.9} parent=65 // pred_fallthru
              _
          $region66: #{encoder_forward_padded.9} parent=61 // pred_fallthru
            _
          %513 = vnop
        $region62: #{encoder_forward_padded.9} parent=19 // pred_fallthru
          _
        // Predicated region
        $region100: #{encoder_forward_padded.9} parent=19 // pred_check
          %p514 = pneg %p96
        $region101: #{encoder_forward_padded.9} parent=19 // pred_check_branch
          %516 = sbr.rel (%p514) target = $region103
        $region102: #{encoder_forward_padded.9} parent=19 // pred_region
          %s517 = sand.u32 %s86, 1
          %s518 = sand.u32 %s86, 1
          %s519 = smul.addr %s518, 128
          %s520 = scalar_lea.vmem [#allocation5], %s519
          %s521 = smul.u32 32, %s17
          %s522 = smul.addr %s521, 2
          %s523 = sadd.s32 1, %s522
          %s524 = smul.addr %s523, 4
          %s525 = scalar_lea.vmem %s2, %s524
          // Predicated region
          $region104: #{encoder_forward_padded.9} parent=102 // pred_check
            _
          $region105: #{encoder_forward_padded.9} parent=102 // pred_check_branch
            %527 = sbr.rel (0) target = $region107
          $region106: #{encoder_forward_padded.9} parent=102 // pred_region
            // Predicated region
            $region108: #{encoder_forward_padded.9} parent=106 // pred_check
              _
            $region109: #{encoder_forward_padded.9} parent=106 // pred_check_branch
              %529 = sbr.rel target = $region111
            $region110: #{encoder_forward_padded.9} parent=106 // pred_region
              // Predicated region
              $region123: #{encoder_forward_padded.9} parent=110 // pred_check
                _
              $region124: #{encoder_forward_padded.9} parent=110 // pred_check_branch
                %606 = sbr.rel (0) target = $region126
              $region125: #{encoder_forward_padded.9} parent=110 // pred_region
                loop: start=0, step=1, limit=1
                $region127: #{encoder_forward_padded.9} parent=125 // loop_pre_header
                  _
                $region128: #{encoder_forward_padded.9} parent=125 // loop_header
                  %s608 = sphi 0, %s612
                  %p609 = scmp.ge.s32.totalorder %s608, 1
                  %s613 = sphi %s525, %s525
                  %s614 = sphi %s520, %s520
                $region129: #{encoder_forward_padded.9} parent=125 // loop_header_branch
                  %611 = sbr.rel (%p609) target = $region133
                $region130: #{encoder_forward_padded.9} parent=125 // loop_body
                  _
                $region131: #{encoder_forward_padded.9} parent=125 // loop_footer
                  %s612 = sadd.s32 1, %s608
                $region132: #{encoder_forward_padded.9} parent=125 // loop_footer_branch
                  %607 = sbr.rel target = $region128
                $region133: #{encoder_forward_padded.9} parent=125 // loop_exit
                  _
                loop: start=0, step=1, limit=1
                $region134: #{encoder_forward_padded.9} parent=125 // loop_pre_header
                  _
                $region135: #{encoder_forward_padded.9} parent=125 // loop_header
                  %s617 = sphi 0, %s621
                  %p618 = scmp.ge.s32.totalorder %s617, 1
                  %s622 = sphi %s525, %s525
                  %s623 = sphi %s520, %s520
                $region136: #{encoder_forward_padded.9} parent=125 // loop_header_branch
                  %620 = sbr.rel (%p618) target = $region140
                $region137: #{encoder_forward_padded.9} parent=125 // loop_body
                  %v624 = vld [vmem:[%s622] sm:$0xf]
                  %625 = vst [vmem:[%s623] sm:$0xf] %v624
                  %v626 = vld [vmem:[%s622 + $0x8] sm:$0xf]
                  %627 = vst [vmem:[%s623 + $0x4] sm:$0xf] %v626
                  %v628 = vld [vmem:[%s622 + $0x10] sm:$0xf]
                  %629 = vst [vmem:[%s623 + $0x8] sm:$0xf] %v628
                  %v630 = vld [vmem:[%s622 + $0x18] sm:$0xf]
                  %631 = vst [vmem:[%s623 + $0xc] sm:$0xf] %v630
                  %v632 = vld [vmem:[%s622 + $0x20] sm:$0xf]
                  %633 = vst [vmem:[%s623 + $0x10] sm:$0xf] %v632
                  %v634 = vld [vmem:[%s622 + $0x28] sm:$0xf]
                  %635 = vst [vmem:[%s623 + $0x14] sm:$0xf] %v634
                  %v636 = vld [vmem:[%s622 + $0x30] sm:$0xf]
                  %637 = vst [vmem:[%s623 + $0x18] sm:$0xf] %v636
                  %v638 = vld [vmem:[%s622 + $0x38] sm:$0xf]
                  %639 = vst [vmem:[%s623 + $0x1c] sm:$0xf] %v638
                  %v640 = vld [vmem:[%s622 + $0x40] sm:$0xf]
                  %641 = vst [vmem:[%s623 + $0x20] sm:$0xf] %v640
                  %v642 = vld [vmem:[%s622 + $0x48] sm:$0xf]
                  %643 = vst [vmem:[%s623 + $0x24] sm:$0xf] %v642
                  %v644 = vld [vmem:[%s622 + $0x50] sm:$0xf]
                  %645 = vst [vmem:[%s623 + $0x28] sm:$0xf] %v644
                  %v646 = vld [vmem:[%s622 + $0x58] sm:$0xf]
                  %647 = vst [vmem:[%s623 + $0x2c] sm:$0xf] %v646
                  %v648 = vld [vmem:[%s622 + $0x60] sm:$0xf]
                  %649 = vst [vmem:[%s623 + $0x30] sm:$0xf] %v648
                  %v650 = vld [vmem:[%s622 + $0x68] sm:$0xf]
                  %651 = vst [vmem:[%s623 + $0x34] sm:$0xf] %v650
                  %v652 = vld [vmem:[%s622 + $0x70] sm:$0xf]
                  %653 = vst [vmem:[%s623 + $0x38] sm:$0xf] %v652
                  %v654 = vld [vmem:[%s622 + $0x78] sm:$0xf]
                  %655 = vst [vmem:[%s623 + $0x3c] sm:$0xf] %v654
                  %v656 = vld [vmem:[%s622 + $0x80] sm:$0xf]
                  %657 = vst [vmem:[%s623 + $0x40] sm:$0xf] %v656
                  %v658 = vld [vmem:[%s622 + $0x88] sm:$0xf]
                  %659 = vst [vmem:[%s623 + $0x44] sm:$0xf] %v658
                  %v660 = vld [vmem:[%s622 + $0x90] sm:$0xf]
                  %661 = vst [vmem:[%s623 + $0x48] sm:$0xf] %v660
                  %v662 = vld [vmem:[%s622 + $0x98] sm:$0xf]
                  %663 = vst [vmem:[%s623 + $0x4c] sm:$0xf] %v662
                  %v664 = vld [vmem:[%s622 + $0xa0] sm:$0xf]
                  %665 = vst [vmem:[%s623 + $0x50] sm:$0xf] %v664
                  %v666 = vld [vmem:[%s622 + $0xa8] sm:$0xf]
                  %667 = vst [vmem:[%s623 + $0x54] sm:$0xf] %v666
                  %v668 = vld [vmem:[%s622 + $0xb0] sm:$0xf]
                  %669 = vst [vmem:[%s623 + $0x58] sm:$0xf] %v668
                  %v670 = vld [vmem:[%s622 + $0xb8] sm:$0xf]
                  %671 = vst [vmem:[%s623 + $0x5c] sm:$0xf] %v670
                  %v672 = vld [vmem:[%s622 + $0xc0] sm:$0xf]
                  %673 = vst [vmem:[%s623 + $0x60] sm:$0xf] %v672
                  %v674 = vld [vmem:[%s622 + $0xc8] sm:$0xf]
                  %675 = vst [vmem:[%s623 + $0x64] sm:$0xf] %v674
                  %v676 = vld [vmem:[%s622 + $0xd0] sm:$0xf]
                  %677 = vst [vmem:[%s623 + $0x68] sm:$0xf] %v676
                  %v678 = vld [vmem:[%s622 + $0xd8] sm:$0xf]
                  %679 = vst [vmem:[%s623 + $0x6c] sm:$0xf] %v678
                  %v680 = vld [vmem:[%s622 + $0xe0] sm:$0xf]
                  %681 = vst [vmem:[%s623 + $0x70] sm:$0xf] %v680
                  %v682 = vld [vmem:[%s622 + $0xe8] sm:$0xf]
                  %683 = vst [vmem:[%s623 + $0x74] sm:$0xf] %v682
                  %v684 = vld [vmem:[%s622 + $0xf0] sm:$0xf]
                  %685 = vst [vmem:[%s623 + $0x78] sm:$0xf] %v684
                  %v686 = vld [vmem:[%s622 + $0xf8] sm:$0xf]
                  %687 = vst [vmem:[%s623 + $0x7c] sm:$0xf] %v686
                $region138: #{encoder_forward_padded.9} parent=125 // loop_footer
                  %s621 = sadd.s32 1, %s617
                $region139: #{encoder_forward_padded.9} parent=125 // loop_footer_branch
                  %616 = sbr.rel target = $region135
                $region140: #{encoder_forward_padded.9} parent=125 // loop_exit
                  _
              $region126: #{encoder_forward_padded.9} parent=110 // pred_fallthru
                _
            $region111: #{encoder_forward_padded.9} parent=106 // pred_fallthru
              _
            // Predicated region
            $region112: #{encoder_forward_padded.9} parent=106 // pred_check
              _
            $region113: #{encoder_forward_padded.9} parent=106 // pred_check_branch
              %531 = sbr.rel (0) target = $region115
            $region114: #{encoder_forward_padded.9} parent=106 // pred_region
              loop: start=0, step=1, limit=1
              $region116: #{encoder_forward_padded.9} parent=114 // loop_pre_header
                _
              $region117: #{encoder_forward_padded.9} parent=114 // loop_header
                %s534 = sphi 0, %s538
                %p535 = scmp.ge.s32.totalorder %s534, 1
                %s539 = sphi %s525, %s525
                %s540 = sphi %s520, %s520
              $region118: #{encoder_forward_padded.9} parent=114 // loop_header_branch
                %537 = sbr.rel (%p535) target = $region122
              $region119: #{encoder_forward_padded.9} parent=114 // loop_body
                %v541 = vld [vmem:[%s539] sm:$0xf]
                %542 = vst [vmem:[%s540] sm:$0xf] %v541
                %v543 = vld [vmem:[%s539 + $0x8] sm:$0xf]
                %544 = vst [vmem:[%s540 + $0x4] sm:$0xf] %v543
                %v545 = vld [vmem:[%s539 + $0x10] sm:$0xf]
                %546 = vst [vmem:[%s540 + $0x8] sm:$0xf] %v545
                %v547 = vld [vmem:[%s539 + $0x18] sm:$0xf]
                %548 = vst [vmem:[%s540 + $0xc] sm:$0xf] %v547
                %v549 = vld [vmem:[%s539 + $0x20] sm:$0xf]
                %550 = vst [vmem:[%s540 + $0x10] sm:$0xf] %v549
                %v551 = vld [vmem:[%s539 + $0x28] sm:$0xf]
                %552 = vst [vmem:[%s540 + $0x14] sm:$0xf] %v551
                %v553 = vld [vmem:[%s539 + $0x30] sm:$0xf]
                %554 = vst [vmem:[%s540 + $0x18] sm:$0xf] %v553
                %v555 = vld [vmem:[%s539 + $0x38] sm:$0xf]
                %556 = vst [vmem:[%s540 + $0x1c] sm:$0xf] %v555
                %v557 = vld [vmem:[%s539 + $0x40] sm:$0xf]
                %558 = vst [vmem:[%s540 + $0x20] sm:$0xf] %v557
                %v559 = vld [vmem:[%s539 + $0x48] sm:$0xf]
                %560 = vst [vmem:[%s540 + $0x24] sm:$0xf] %v559
                %v561 = vld [vmem:[%s539 + $0x50] sm:$0xf]
                %562 = vst [vmem:[%s540 + $0x28] sm:$0xf] %v561
                %v563 = vld [vmem:[%s539 + $0x58] sm:$0xf]
                %564 = vst [vmem:[%s540 + $0x2c] sm:$0xf] %v563
                %v565 = vld [vmem:[%s539 + $0x60] sm:$0xf]
                %566 = vst [vmem:[%s540 + $0x30] sm:$0xf] %v565
                %v567 = vld [vmem:[%s539 + $0x68] sm:$0xf]
                %568 = vst [vmem:[%s540 + $0x34] sm:$0xf] %v567
                %v569 = vld [vmem:[%s539 + $0x70] sm:$0xf]
                %570 = vst [vmem:[%s540 + $0x38] sm:$0xf] %v569
                %v571 = vld [vmem:[%s539 + $0x78] sm:$0xf]
                %572 = vst [vmem:[%s540 + $0x3c] sm:$0xf] %v571
                %v573 = vld [vmem:[%s539 + $0x80] sm:$0xf]
                %574 = vst [vmem:[%s540 + $0x40] sm:$0xf] %v573
                %v575 = vld [vmem:[%s539 + $0x88] sm:$0xf]
                %576 = vst [vmem:[%s540 + $0x44] sm:$0xf] %v575
                %v577 = vld [vmem:[%s539 + $0x90] sm:$0xf]
                %578 = vst [vmem:[%s540 + $0x48] sm:$0xf] %v577
                %v579 = vld [vmem:[%s539 + $0x98] sm:$0xf]
                %580 = vst [vmem:[%s540 + $0x4c] sm:$0xf] %v579
                %v581 = vld [vmem:[%s539 + $0xa0] sm:$0xf]
                %582 = vst [vmem:[%s540 + $0x50] sm:$0xf] %v581
                %v583 = vld [vmem:[%s539 + $0xa8] sm:$0xf]
                %584 = vst [vmem:[%s540 + $0x54] sm:$0xf] %v583
                %v585 = vld [vmem:[%s539 + $0xb0] sm:$0xf]
                %586 = vst [vmem:[%s540 + $0x58] sm:$0xf] %v585
                %v587 = vld [vmem:[%s539 + $0xb8] sm:$0xf]
                %588 = vst [vmem:[%s540 + $0x5c] sm:$0xf] %v587
                %v589 = vld [vmem:[%s539 + $0xc0] sm:$0xf]
                %590 = vst [vmem:[%s540 + $0x60] sm:$0xf] %v589
                %v591 = vld [vmem:[%s539 + $0xc8] sm:$0xf]
                %592 = vst [vmem:[%s540 + $0x64] sm:$0xf] %v591
                %v593 = vld [vmem:[%s539 + $0xd0] sm:$0xf]
                %594 = vst [vmem:[%s540 + $0x68] sm:$0xf] %v593
                %v595 = vld [vmem:[%s539 + $0xd8] sm:$0xf]
                %596 = vst [vmem:[%s540 + $0x6c] sm:$0xf] %v595
                %v597 = vld [vmem:[%s539 + $0xe0] sm:$0xf]
                %598 = vst [vmem:[%s540 + $0x70] sm:$0xf] %v597
                %v599 = vld [vmem:[%s539 + $0xe8] sm:$0xf]
                %600 = vst [vmem:[%s540 + $0x74] sm:$0xf] %v599
                %v601 = vld [vmem:[%s539 + $0xf0] sm:$0xf]
                %602 = vst [vmem:[%s540 + $0x78] sm:$0xf] %v601
                %v603 = vld [vmem:[%s539 + $0xf8] sm:$0xf]
                %604 = vst [vmem:[%s540 + $0x7c] sm:$0xf] %v603
              $region120: #{encoder_forward_padded.9} parent=114 // loop_footer
                %s538 = sadd.s32 1, %s534
              $region121: #{encoder_forward_padded.9} parent=114 // loop_footer_branch
                %533 = sbr.rel target = $region117
              $region122: #{encoder_forward_padded.9} parent=114 // loop_exit
                _
            $region115: #{encoder_forward_padded.9} parent=106 // pred_fallthru
              _
          $region107: #{encoder_forward_padded.9} parent=102 // pred_fallthru
            _
          %688 = vnop
        $region103: #{encoder_forward_padded.9} parent=19 // pred_fallthru
          _
      $region20: #{encoder_forward_padded.9} parent=5 // pred_fallthru
        _
      %p689 = scmp.le.s32.totalorder 1, %s10
      %p690 = scmp.lt.s32.totalorder %s10, 5
      %p691 = pnand %p689, %p690
      %p692 = pneg %p691
      // Predicated region
      $region141: #{encoder_forward_padded.9} parent=5 // pred_check
        _
      $region142: #{encoder_forward_padded.9} parent=5 // pred_check_branch
        %694 = sbr.rel (%p691) target = $region144
      $region143: #{encoder_forward_padded.9} parent=5 // pred_region
        %s695 = ssub.s32 %s10, 1
        %s696 = sand.u32 %s37, 1
        %s697 = sand.u32 %s37, 1
        %s698 = smul.addr %s697, 256
        %s699 = scalar_lea.vmem [#allocation3], %s698
        // Predicated region
        $region145: #{encoder_forward_padded.9} parent=143 // pred_check
          %p700 = pneg %p50
        $region146: #{encoder_forward_padded.9} parent=143 // pred_check_branch
          %702 = sbr.rel (%p700) target = $region148
        $region147: #{encoder_forward_padded.9} parent=143 // pred_region
          _
        $region148: #{encoder_forward_padded.9} parent=143 // pred_fallthru
          _
        %s703 = sand.u32 %s63, 1
        %s704 = sand.u32 %s63, 1
        %s705 = smul.addr %s704, 128
        %s706 = scalar_lea.vmem [#allocation4], %s705
        // Predicated region
        $region149: #{encoder_forward_padded.9} parent=143 // pred_check
          %p707 = pneg %p76
        $region150: #{encoder_forward_padded.9} parent=143 // pred_check_branch
          %709 = sbr.rel (%p707) target = $region152
        $region151: #{encoder_forward_padded.9} parent=143 // pred_region
          _
        $region152: #{encoder_forward_padded.9} parent=143 // pred_fallthru
          _
        %s710 = sand.u32 %s89, 1
        %s711 = sand.u32 %s89, 1
        %s712 = smul.addr %s711, 128
        %s713 = scalar_lea.vmem [#allocation5], %s712
        // Predicated region
        $region153: #{encoder_forward_padded.9} parent=143 // pred_check
          %p714 = pneg %p102
        $region154: #{encoder_forward_padded.9} parent=143 // pred_check_branch
          %716 = sbr.rel (%p714) target = $region156
        $region155: #{encoder_forward_padded.9} parent=143 // pred_region
          _
        $region156: #{encoder_forward_padded.9} parent=143 // pred_fallthru
          _
        %s717 = sand.u32 %s37, 1
        %s718 = sand.u32 %s37, 1
        %s719 = smul.addr %s718, 256
        %s720 = scalar_lea.vmem [#allocation3], %s719
        %p721 = pneg %p50
        %p722 = pneg %p47
        %s723 = sand.u32 %s63, 1
        %s724 = sand.u32 %s63, 1
        %s725 = smul.addr %s724, 128
        %s726 = scalar_lea.vmem [#allocation4], %s725
        %p727 = pneg %p76
        %p728 = pneg %p73
        %s729 = sand.u32 %s89, 1
        %s730 = sand.u32 %s89, 1
        %s731 = smul.addr %s730, 128
        %s732 = scalar_lea.vmem [#allocation5], %s731
        %p733 = pneg %p102
        %p734 = pneg %p99
        %p735 = pneg %p123
        %p736 = pneg %p120
        %p737 = pneg %p149
        %p738 = pneg %p146
        %s739 = smul.u32 32, %s19
        %p740 = scmp.lt.s32.totalorder %s739, 63
        %s741 = scalar_select %p740, %s739, 63
        %s742 = smul.addr %s741, 4
        %s743 = scalar_lea.vmem %s4, %s742
        %s744 = smul.u32 32, %s19
        %s745 = smul.u32 2, %s20
        %s746 = smul.u32 32, %s20
        %s747 = smul.u32 32, %s19
        %s748 = smul.u32 32, %s19
        %p749 = scmp.lt.s32.totalorder %s748, 63
        %s750 = scalar_select %p749, %s748, 63
        %s751 = smul.addr %s750, 4
        %s752 = scalar_lea.vmem %s4, %s751
        %s753 = smul.u32 32, %s19
        %p755 = scmp.eq.s32.totalorder %s20, 0
        // Predicated region
        $region157: #{encoder_forward_padded.9} parent=143 // pred_check
          %p756 = pneg %p755
        $region158: #{encoder_forward_padded.9} parent=143 // pred_check_branch
          %758 = sbr.rel (%p756) target = $region160
        $region159: #{encoder_forward_padded.9} parent=143 // pred_region
          %759 = vst [vmem:[#allocation2] sm:$0xff] 0.0
          %760 = vst [vmem:[#allocation2 + $0x8] sm:$0xff] 0.0
          %761 = vst [vmem:[#allocation2 + $0x10] sm:$0xff] 0.0
          %762 = vst [vmem:[#allocation2 + $0x18] sm:$0xff] 0.0
          %763 = vst [vmem:[#allocation2 + $0x20] sm:$0xff] 0.0
          %764 = vst [vmem:[#allocation2 + $0x28] sm:$0xff] 0.0
          %765 = vst [vmem:[#allocation2 + $0x30] sm:$0xff] 0.0
          %766 = vst [vmem:[#allocation2 + $0x38] sm:$0xff] 0.0
          %767 = vst [vmem:[#allocation2 + $0x40] sm:$0xff] 0.0
          %768 = vst [vmem:[#allocation2 + $0x48] sm:$0xff] 0.0
          %769 = vst [vmem:[#allocation2 + $0x50] sm:$0xff] 0.0
          %770 = vst [vmem:[#allocation2 + $0x58] sm:$0xff] 0.0
          %771 = vst [vmem:[#allocation2 + $0x60] sm:$0xff] 0.0
          %772 = vst [vmem:[#allocation2 + $0x68] sm:$0xff] 0.0
          %773 = vst [vmem:[#allocation2 + $0x70] sm:$0xff] 0.0
          %774 = vst [vmem:[#allocation2 + $0x78] sm:$0xff] 0.0
          %775 = vst [vmem:[#allocation2 + $0x80] sm:$0xff] 0.0
          %776 = vst [vmem:[#allocation2 + $0x88] sm:$0xff] 0.0
          %777 = vst [vmem:[#allocation2 + $0x90] sm:$0xff] 0.0
          %778 = vst [vmem:[#allocation2 + $0x98] sm:$0xff] 0.0
          %779 = vst [vmem:[#allocation2 + $0xa0] sm:$0xff] 0.0
          %780 = vst [vmem:[#allocation2 + $0xa8] sm:$0xff] 0.0
          %781 = vst [vmem:[#allocation2 + $0xb0] sm:$0xff] 0.0
          %782 = vst [vmem:[#allocation2 + $0xb8] sm:$0xff] 0.0
          %783 = vst [vmem:[#allocation2 + $0xc0] sm:$0xff] 0.0
          %784 = vst [vmem:[#allocation2 + $0xc8] sm:$0xff] 0.0
          %785 = vst [vmem:[#allocation2 + $0xd0] sm:$0xff] 0.0
          %786 = vst [vmem:[#allocation2 + $0xd8] sm:$0xff] 0.0
          %787 = vst [vmem:[#allocation2 + $0xe0] sm:$0xff] 0.0
          %788 = vst [vmem:[#allocation2 + $0xe8] sm:$0xff] 0.0
          %789 = vst [vmem:[#allocation2 + $0xf0] sm:$0xff] 0.0
          %790 = vst [vmem:[#allocation2 + $0xf8] sm:$0xff] 0.0
        $region160: #{encoder_forward_padded.9} parent=143 // pred_fallthru
          _
        %v791 = vld [vmem:[#allocation2] sm:$0xff]
        %v792 = vld [vmem:[#allocation2 + $0x8] sm:$0xff]
        %v793 = vld [vmem:[#allocation2 + $0x10] sm:$0xff]
        %v794 = vld [vmem:[#allocation2 + $0x18] sm:$0xff]
        %v795 = vld [vmem:[#allocation2 + $0x20] sm:$0xff]
        %v796 = vld [vmem:[#allocation2 + $0x28] sm:$0xff]
        %v797 = vld [vmem:[#allocation2 + $0x30] sm:$0xff]
        %v798 = vld [vmem:[#allocation2 + $0x38] sm:$0xff]
        %v799 = vld [vmem:[#allocation2 + $0x40] sm:$0xff]
        %v800 = vld [vmem:[#allocation2 + $0x48] sm:$0xff]
        %v801 = vld [vmem:[#allocation2 + $0x50] sm:$0xff]
        %v802 = vld [vmem:[#allocation2 + $0x58] sm:$0xff]
        %v803 = vld [vmem:[#allocation2 + $0x60] sm:$0xff]
        %v804 = vld [vmem:[#allocation2 + $0x68] sm:$0xff]
        %v805 = vld [vmem:[#allocation2 + $0x70] sm:$0xff]
        %v806 = vld [vmem:[#allocation2 + $0x78] sm:$0xff]
        %v807 = vld [vmem:[#allocation2 + $0x80] sm:$0xff]
        %v808 = vld [vmem:[#allocation2 + $0x88] sm:$0xff]
        %v809 = vld [vmem:[#allocation2 + $0x90] sm:$0xff]
        %v810 = vld [vmem:[#allocation2 + $0x98] sm:$0xff]
        %v811 = vld [vmem:[#allocation2 + $0xa0] sm:$0xff]
        %v812 = vld [vmem:[#allocation2 + $0xa8] sm:$0xff]
        %v813 = vld [vmem:[#allocation2 + $0xb0] sm:$0xff]
        %v814 = vld [vmem:[#allocation2 + $0xb8] sm:$0xff]
        %v815 = vld [vmem:[#allocation2 + $0xc0] sm:$0xff]
        %v816 = vld [vmem:[#allocation2 + $0xc8] sm:$0xff]
        %v817 = vld [vmem:[#allocation2 + $0xd0] sm:$0xff]
        %v818 = vld [vmem:[#allocation2 + $0xd8] sm:$0xff]
        %v819 = vld [vmem:[#allocation2 + $0xe0] sm:$0xff]
        %v820 = vld [vmem:[#allocation2 + $0xe8] sm:$0xff]
        %v821 = vld [vmem:[#allocation2 + $0xf0] sm:$0xff]
        %v822 = vld [vmem:[#allocation2 + $0xf8] sm:$0xff]
        %v823 = vld [vmem:[%s699] sm:$0xff]
        %v824 = vld [vmem:[%s699 + $0x8] sm:$0xff]
        %v825 = vld [vmem:[%s699 + $0x10] sm:$0xff]
        %v826 = vld [vmem:[%s699 + $0x18] sm:$0xff]
        %v827 = vld [vmem:[%s699 + $0x20] sm:$0xff]
        %v828 = vld [vmem:[%s699 + $0x28] sm:$0xff]
        %v829 = vld [vmem:[%s699 + $0x30] sm:$0xff]
        %v830 = vld [vmem:[%s699 + $0x38] sm:$0xff]
        %v831 = vld [vmem:[%s699 + $0x40] sm:$0xff]
        %v832 = vld [vmem:[%s699 + $0x48] sm:$0xff]
        %v833 = vld [vmem:[%s699 + $0x50] sm:$0xff]
        %v834 = vld [vmem:[%s699 + $0x58] sm:$0xff]
        %v835 = vld [vmem:[%s699 + $0x60] sm:$0xff]
        %v836 = vld [vmem:[%s699 + $0x68] sm:$0xff]
        %v837 = vld [vmem:[%s699 + $0x70] sm:$0xff]
        %v838 = vld [vmem:[%s699 + $0x78] sm:$0xff]
        %v839 = vld [vmem:[%s699 + $0x80] sm:$0xff]
        %v840 = vld [vmem:[%s699 + $0x88] sm:$0xff]
        %v841 = vld [vmem:[%s699 + $0x90] sm:$0xff]
        %v842 = vld [vmem:[%s699 + $0x98] sm:$0xff]
        %v843 = vld [vmem:[%s699 + $0xa0] sm:$0xff]
        %v844 = vld [vmem:[%s699 + $0xa8] sm:$0xff]
        %v845 = vld [vmem:[%s699 + $0xb0] sm:$0xff]
        %v846 = vld [vmem:[%s699 + $0xb8] sm:$0xff]
        %v847 = vld [vmem:[%s699 + $0xc0] sm:$0xff]
        %v848 = vld [vmem:[%s699 + $0xc8] sm:$0xff]
        %v849 = vld [vmem:[%s699 + $0xd0] sm:$0xff]
        %v850 = vld [vmem:[%s699 + $0xd8] sm:$0xff]
        %v851 = vld [vmem:[%s699 + $0xe0] sm:$0xff]
        %v852 = vld [vmem:[%s699 + $0xe8] sm:$0xff]
        %v853 = vld [vmem:[%s699 + $0xf0] sm:$0xff]
        %v854 = vld [vmem:[%s699 + $0xf8] sm:$0xff]
        %v855 = vld [vmem:[%s706] sm:$0xf]
        %v856 = vld [vmem:[%s706 + $0x4] sm:$0xf]
        %v857 = vld [vmem:[%s706 + $0x8] sm:$0xf]
        %v858 = vld [vmem:[%s706 + $0xc] sm:$0xf]
        %v859 = vld [vmem:[%s706 + $0x10] sm:$0xf]
        %v860 = vld [vmem:[%s706 + $0x14] sm:$0xf]
        %v861 = vld [vmem:[%s706 + $0x18] sm:$0xf]
        %v862 = vld [vmem:[%s706 + $0x1c] sm:$0xf]
        %v863 = vld [vmem:[%s706 + $0x20] sm:$0xf]
        %v864 = vld [vmem:[%s706 + $0x24] sm:$0xf]
        %v865 = vld [vmem:[%s706 + $0x28] sm:$0xf]
        %v866 = vld [vmem:[%s706 + $0x2c] sm:$0xf]
        %v867 = vld [vmem:[%s706 + $0x30] sm:$0xf]
        %v868 = vld [vmem:[%s706 + $0x34] sm:$0xf]
        %v869 = vld [vmem:[%s706 + $0x38] sm:$0xf]
        %v870 = vld [vmem:[%s706 + $0x3c] sm:$0xf]
        %v871 = vld [vmem:[%s706 + $0x40] sm:$0xf]
        %v872 = vld [vmem:[%s706 + $0x44] sm:$0xf]
        %v873 = vld [vmem:[%s706 + $0x48] sm:$0xf]
        %v874 = vld [vmem:[%s706 + $0x4c] sm:$0xf]
        %v875 = vld [vmem:[%s706 + $0x50] sm:$0xf]
        %v876 = vld [vmem:[%s706 + $0x54] sm:$0xf]
        %v877 = vld [vmem:[%s706 + $0x58] sm:$0xf]
        %v878 = vld [vmem:[%s706 + $0x5c] sm:$0xf]
        %v879 = vld [vmem:[%s706 + $0x60] sm:$0xf]
        %v880 = vld [vmem:[%s706 + $0x64] sm:$0xf]
        %v881 = vld [vmem:[%s706 + $0x68] sm:$0xf]
        %v882 = vld [vmem:[%s706 + $0x6c] sm:$0xf]
        %v883 = vld [vmem:[%s706 + $0x70] sm:$0xf]
        %v884 = vld [vmem:[%s706 + $0x74] sm:$0xf]
        %v885 = vld [vmem:[%s706 + $0x78] sm:$0xf]
        %v886 = vld [vmem:[%s706 + $0x7c] sm:$0xf]
        %v919 = vunpack.c.l.b16 %v823
        %v920 = vunpack.c.h.b16 %v823
        %v921 = vunpack.c.l.b16 %v824
        %v922 = vunpack.c.h.b16 %v824
        %v923 = vunpack.c.l.b16 %v825
        %v924 = vunpack.c.h.b16 %v825
        %v925 = vunpack.c.l.b16 %v826
        %v926 = vunpack.c.h.b16 %v826
        %v927 = vunpack.c.l.b16 %v827
        %v928 = vunpack.c.h.b16 %v827
        %v929 = vunpack.c.l.b16 %v828
        %v930 = vunpack.c.h.b16 %v828
        %v931 = vunpack.c.l.b16 %v829
        %v932 = vunpack.c.h.b16 %v829
        %v933 = vunpack.c.l.b16 %v830
        %v934 = vunpack.c.h.b16 %v830
        %v935 = vunpack.c.l.b16 %v831
        %v936 = vunpack.c.h.b16 %v831
        %v937 = vunpack.c.l.b16 %v832
        %v938 = vunpack.c.h.b16 %v832
        %v939 = vunpack.c.l.b16 %v833
        %v940 = vunpack.c.h.b16 %v833
        %v941 = vunpack.c.l.b16 %v834
        %v942 = vunpack.c.h.b16 %v834
        %v943 = vunpack.c.l.b16 %v835
        %v944 = vunpack.c.h.b16 %v835
        %v945 = vunpack.c.l.b16 %v836
        %v946 = vunpack.c.h.b16 %v836
        %v947 = vunpack.c.l.b16 %v837
        %v948 = vunpack.c.h.b16 %v837
        %v949 = vunpack.c.l.b16 %v838
        %v950 = vunpack.c.h.b16 %v838
        %v951 = vunpack.c.l.b16 %v839
        %v952 = vunpack.c.h.b16 %v839
        %v953 = vunpack.c.l.b16 %v840
        %v954 = vunpack.c.h.b16 %v840
        %v955 = vunpack.c.l.b16 %v841
        %v956 = vunpack.c.h.b16 %v841
        %v957 = vunpack.c.l.b16 %v842
        %v958 = vunpack.c.h.b16 %v842
        %v959 = vunpack.c.l.b16 %v843
        %v960 = vunpack.c.h.b16 %v843
        %v961 = vunpack.c.l.b16 %v844
        %v962 = vunpack.c.h.b16 %v844
        %v963 = vunpack.c.l.b16 %v845
        %v964 = vunpack.c.h.b16 %v845
        %v965 = vunpack.c.l.b16 %v846
        %v966 = vunpack.c.h.b16 %v846
        %v967 = vunpack.c.l.b16 %v847
        %v968 = vunpack.c.h.b16 %v847
        %v969 = vunpack.c.l.b16 %v848
        %v970 = vunpack.c.h.b16 %v848
        %v971 = vunpack.c.l.b16 %v849
        %v972 = vunpack.c.h.b16 %v849
        %v973 = vunpack.c.l.b16 %v850
        %v974 = vunpack.c.h.b16 %v850
        %v975 = vunpack.c.l.b16 %v851
        %v976 = vunpack.c.h.b16 %v851
        %v977 = vunpack.c.l.b16 %v852
        %v978 = vunpack.c.h.b16 %v852
        %v979 = vunpack.c.l.b16 %v853
        %v980 = vunpack.c.h.b16 %v853
        %v981 = vunpack.c.l.b16 %v854
        %v982 = vunpack.c.h.b16 %v854
        %v983 = vpack.c.b16 %v921, %v919
        %v984 = vpack.c.b16 %v922, %v920
        %v985 = vpack.c.b16 %v925, %v923
        %v986 = vpack.c.b16 %v926, %v924
        %v987 = vpack.c.b16 %v929, %v927
        %v988 = vpack.c.b16 %v930, %v928
        %v989 = vpack.c.b16 %v933, %v931
        %v990 = vpack.c.b16 %v934, %v932
        %v991 = vpack.c.b16 %v937, %v935
        %v992 = vpack.c.b16 %v938, %v936
        %v993 = vpack.c.b16 %v941, %v939
        %v994 = vpack.c.b16 %v942, %v940
        %v995 = vpack.c.b16 %v945, %v943
        %v996 = vpack.c.b16 %v946, %v944
        %v997 = vpack.c.b16 %v949, %v947
        %v998 = vpack.c.b16 %v950, %v948
        %v999 = vpack.c.b16 %v953, %v951
        %v1000 = vpack.c.b16 %v954, %v952
        %v1001 = vpack.c.b16 %v957, %v955
        %v1002 = vpack.c.b16 %v958, %v956
        %v1003 = vpack.c.b16 %v961, %v959
        %v1004 = vpack.c.b16 %v962, %v960
        %v1005 = vpack.c.b16 %v965, %v963
        %v1006 = vpack.c.b16 %v966, %v964
        %v1007 = vpack.c.b16 %v969, %v967
        %v1008 = vpack.c.b16 %v970, %v968
        %v1009 = vpack.c.b16 %v973, %v971
        %v1010 = vpack.c.b16 %v974, %v972
        %v1011 = vpack.c.b16 %v977, %v975
        %v1012 = vpack.c.b16 %v978, %v976
        %v1013 = vpack.c.b16 %v981, %v979
        %v1014 = vpack.c.b16 %v982, %v980
        %v1079 = vunpack.c.l.b16 %v855
        %v1080 = vunpack.c.l.b16 %v856
        %v1081 = vunpack.c.l.b16 %v857
        %v1082 = vunpack.c.l.b16 %v858
        %v1083 = vunpack.c.l.b16 %v859
        %v1084 = vunpack.c.l.b16 %v860
        %v1085 = vunpack.c.l.b16 %v861
        %v1086 = vunpack.c.l.b16 %v862
        %v1087 = vunpack.c.l.b16 %v863
        %v1088 = vunpack.c.l.b16 %v864
        %v1089 = vunpack.c.l.b16 %v865
        %v1090 = vunpack.c.l.b16 %v866
        %v1091 = vunpack.c.l.b16 %v867
        %v1092 = vunpack.c.l.b16 %v868
        %v1093 = vunpack.c.l.b16 %v869
        %v1094 = vunpack.c.l.b16 %v870
        %v1095 = vunpack.c.l.b16 %v871
        %v1096 = vunpack.c.l.b16 %v872
        %v1097 = vunpack.c.l.b16 %v873
        %v1098 = vunpack.c.l.b16 %v874
        %v1099 = vunpack.c.l.b16 %v875
        %v1100 = vunpack.c.l.b16 %v876
        %v1101 = vunpack.c.l.b16 %v877
        %v1102 = vunpack.c.l.b16 %v878
        %v1103 = vunpack.c.l.b16 %v879
        %v1104 = vunpack.c.l.b16 %v880
        %v1105 = vunpack.c.l.b16 %v881
        %v1106 = vunpack.c.l.b16 %v882
        %v1107 = vunpack.c.l.b16 %v883
        %v1108 = vunpack.c.l.b16 %v884
        %v1109 = vunpack.c.l.b16 %v885
        %v1110 = vunpack.c.l.b16 %v886
        %v1111 = vpack.c.b16 %v1080, %v1079
        %v1112 = vpack.c.b16 %v1082, %v1081
        %v1113 = vpack.c.b16 %v1084, %v1083
        %v1114 = vpack.c.b16 %v1086, %v1085
        %v1115 = vpack.c.b16 %v1088, %v1087
        %v1116 = vpack.c.b16 %v1090, %v1089
        %v1117 = vpack.c.b16 %v1092, %v1091
        %v1118 = vpack.c.b16 %v1094, %v1093
        %v1119 = vpack.c.b16 %v1096, %v1095
        %v1120 = vpack.c.b16 %v1098, %v1097
        %v1121 = vpack.c.b16 %v1100, %v1099
        %v1122 = vpack.c.b16 %v1102, %v1101
        %v1123 = vpack.c.b16 %v1104, %v1103
        %v1124 = vpack.c.b16 %v1106, %v1105
        %v1125 = vpack.c.b16 %v1108, %v1107
        %v1126 = vpack.c.b16 %v1110, %v1109
        %1143 = vmatprep.subr.bf16.mxu0 0
        %1144 = vmatpush1.bf16.msra.mxu0 %v1111
        %1145 = vmatprep.subr.bf16.mxu0 0
        %1146 = vmatpush1.bf16.msra.mxu0 %v1112
        %1147 = vmatprep.subr.bf16.mxu0 0
        %1148 = vmatpush1.bf16.msra.mxu0 %v1113
        %1149 = vmatprep.subr.bf16.mxu0 0
        %1150 = vmatpush1.bf16.msra.mxu0 %v1114
        %1151 = vmatprep.subr.bf16.mxu0 0
        %1152 = vmatpush1.bf16.msra.mxu0 %v1115
        %1153 = vmatprep.subr.bf16.mxu0 0
        %1154 = vmatpush1.bf16.msra.mxu0 %v1116
        %1155 = vmatprep.subr.bf16.mxu0 0
        %1156 = vmatpush1.bf16.msra.mxu0 %v1117
        %1157 = vmatprep.subr.bf16.mxu0 0
        %1158 = vmatpush1.bf16.msra.mxu0 %v1118
        %1159 = vmatprep.subr.bf16.mxu0 0
        %1160 = vmatpush1.bf16.msra.mxu0 %v1119
        %1161 = vmatprep.subr.bf16.mxu0 0
        %1162 = vmatpush1.bf16.msra.mxu0 %v1120
        %1163 = vmatprep.subr.bf16.mxu0 0
        %1164 = vmatpush1.bf16.msra.mxu0 %v1121
        %1165 = vmatprep.subr.bf16.mxu0 0
        %1166 = vmatpush1.bf16.msra.mxu0 %v1122
        %1167 = vmatprep.subr.bf16.mxu0 0
        %1168 = vmatpush1.bf16.msra.mxu0 %v1123
        %1169 = vmatprep.subr.bf16.mxu0 0
        %1170 = vmatpush1.bf16.msra.mxu0 %v1124
        %1171 = vmatprep.subr.bf16.mxu0 0
        %1172 = vmatpush1.bf16.msra.mxu0 %v1125
        %1173 = vmatprep.subr.bf16.mxu0 0
        %1174 = vmatpush1.bf16.msra.mxu0 %v1126
        %1175 = vmatprep.mubr.bf16.mxu0 %v984
        %1176 = vmatmul.mubr.bf16.gmra.mrb[0].mxu0 %v983
        %v1177 = vpop.f32.mrb[0].mxu0
        %v1178 = vadd.f32 0.0, %v1177
        %v1179 = vpop.f32.mrb[0].mxu0
        %v1180 = vpop.f32.mrb[0].mxu0
        %v1181 = vadd.f32 0.0, %v1180
        %v1182 = vpop.f32.mrb[0].mxu0
        %1183 = vmatprep.mubr.bf16.mxu0 %v986
        %1184 = vmatmul.mubr.bf16.gmra.mrb[0].mxu0 %v985
        %v1185 = vpop.f32.mrb[0].mxu0
        %v1186 = vadd.f32 0.0, %v1185
        %v1187 = vpop.f32.mrb[0].mxu0
        %v1188 = vpop.f32.mrb[0].mxu0
        %v1189 = vadd.f32 0.0, %v1188
        %v1190 = vpop.f32.mrb[0].mxu0
        %1191 = vmatprep.mubr.bf16.mxu0 %v988
        %1192 = vmatmul.mubr.bf16.gmra.mrb[0].mxu0 %v987
        %v1193 = vpop.f32.mrb[0].mxu0
        %v1194 = vadd.f32 0.0, %v1193
        %v1195 = vpop.f32.mrb[0].mxu0
        %v1196 = vpop.f32.mrb[0].mxu0
        %v1197 = vadd.f32 0.0, %v1196
        %v1198 = vpop.f32.mrb[0].mxu0
        %1199 = vmatprep.mubr.bf16.mxu0 %v990
        %1200 = vmatmul.mubr.bf16.gmra.mrb[0].mxu0 %v989
        %v1201 = vpop.f32.mrb[0].mxu0
        %v1202 = vadd.f32 0.0, %v1201
        %v1203 = vpop.f32.mrb[0].mxu0
        %v1204 = vpop.f32.mrb[0].mxu0
        %v1205 = vadd.f32 0.0, %v1204
        %v1206 = vpop.f32.mrb[0].mxu0
        %1207 = vmatprep.mubr.bf16.mxu0 %v992
        %1208 = vmatmul.mubr.bf16.gmra.mrb[0].mxu0 %v991
        %v1209 = vpop.f32.mrb[0].mxu0
        %v1210 = vadd.f32 0.0, %v1209
        %v1211 = vpop.f32.mrb[0].mxu0
        %v1212 = vpop.f32.mrb[0].mxu0
        %v1213 = vadd.f32 0.0, %v1212
        %v1214 = vpop.f32.mrb[0].mxu0
        %1215 = vmatprep.mubr.bf16.mxu0 %v994
        %1216 = vmatmul.mubr.bf16.gmra.mrb[0].mxu0 %v993
        %v1217 = vpop.f32.mrb[0].mxu0
        %v1218 = vadd.f32 0.0, %v1217
        %v1219 = vpop.f32.mrb[0].mxu0
        %v1220 = vpop.f32.mrb[0].mxu0
        %v1221 = vadd.f32 0.0, %v1220
        %v1222 = vpop.f32.mrb[0].mxu0
        %1223 = vmatprep.mubr.bf16.mxu0 %v996
        %1224 = vmatmul.mubr.bf16.gmra.mrb[0].mxu0 %v995
        %v1225 = vpop.f32.mrb[0].mxu0
        %v1226 = vadd.f32 0.0, %v1225
        %v1227 = vpop.f32.mrb[0].mxu0
        %v1228 = vpop.f32.mrb[0].mxu0
        %v1229 = vadd.f32 0.0, %v1228
        %v1230 = vpop.f32.mrb[0].mxu0
        %1231 = vmatprep.mubr.bf16.mxu0 %v998
        %1232 = vmatmul.mubr.bf16.gmra.mrb[0].mxu0 %v997
        %v1233 = vpop.f32.mrb[0].mxu0
        %v1234 = vadd.f32 0.0, %v1233
        %v1235 = vpop.f32.mrb[0].mxu0
        %v1236 = vpop.f32.mrb[0].mxu0
        %v1237 = vadd.f32 0.0, %v1236
        %v1238 = vpop.f32.mrb[0].mxu0
        %1239 = vmatprep.mubr.bf16.mxu0 %v1000
        %1240 = vmatmul.mubr.bf16.gmra.mrb[0].mxu0 %v999
        %v1241 = vpop.f32.mrb[0].mxu0
        %v1242 = vadd.f32 0.0, %v1241
        %v1243 = vpop.f32.mrb[0].mxu0
        %v1244 = vpop.f32.mrb[0].mxu0
        %v1245 = vadd.f32 0.0, %v1244
        %v1246 = vpop.f32.mrb[0].mxu0
        %1247 = vmatprep.mubr.bf16.mxu0 %v1002
        %1248 = vmatmul.mubr.bf16.gmra.mrb[0].mxu0 %v1001
        %v1249 = vpop.f32.mrb[0].mxu0
        %v1250 = vadd.f32 0.0, %v1249
        %v1251 = vpop.f32.mrb[0].mxu0
        %v1252 = vpop.f32.mrb[0].mxu0
        %v1253 = vadd.f32 0.0, %v1252
        %v1254 = vpop.f32.mrb[0].mxu0
        %1255 = vmatprep.mubr.bf16.mxu0 %v1004
        %1256 = vmatmul.mubr.bf16.gmra.mrb[0].mxu0 %v1003
        %v1257 = vpop.f32.mrb[0].mxu0
        %v1258 = vadd.f32 0.0, %v1257
        %v1259 = vpop.f32.mrb[0].mxu0
        %v1260 = vpop.f32.mrb[0].mxu0
        %v1261 = vadd.f32 0.0, %v1260
        %v1262 = vpop.f32.mrb[0].mxu0
        %1263 = vmatprep.mubr.bf16.mxu0 %v1006
        %1264 = vmatmul.mubr.bf16.gmra.mrb[0].mxu0 %v1005
        %v1265 = vpop.f32.mrb[0].mxu0
        %v1266 = vadd.f32 0.0, %v1265
        %v1267 = vpop.f32.mrb[0].mxu0
        %v1268 = vpop.f32.mrb[0].mxu0
        %v1269 = vadd.f32 0.0, %v1268
        %v1270 = vpop.f32.mrb[0].mxu0
        %1271 = vmatprep.mubr.bf16.mxu0 %v1008
        %1272 = vmatmul.mubr.bf16.gmra.mrb[0].mxu0 %v1007
        %v1273 = vpop.f32.mrb[0].mxu0
        %v1274 = vadd.f32 0.0, %v1273
        %v1275 = vpop.f32.mrb[0].mxu0
        %v1276 = vpop.f32.mrb[0].mxu0
        %v1277 = vadd.f32 0.0, %v1276
        %v1278 = vpop.f32.mrb[0].mxu0
        %1279 = vmatprep.mubr.bf16.mxu0 %v1010
        %1280 = vmatmul.mubr.bf16.gmra.mrb[0].mxu0 %v1009
        %v1281 = vpop.f32.mrb[0].mxu0
        %v1282 = vadd.f32 0.0, %v1281
        %v1283 = vpop.f32.mrb[0].mxu0
        %v1284 = vpop.f32.mrb[0].mxu0
        %v1285 = vadd.f32 0.0, %v1284
        %v1286 = vpop.f32.mrb[0].mxu0
        %1287 = vmatprep.mubr.bf16.mxu0 %v1012
        %1288 = vmatmul.mubr.bf16.gmra.mrb[0].mxu0 %v1011
        %v1289 = vpop.f32.mrb[0].mxu0
        %v1290 = vadd.f32 0.0, %v1289
        %v1291 = vpop.f32.mrb[0].mxu0
        %v1292 = vpop.f32.mrb[0].mxu0
        %v1293 = vadd.f32 0.0, %v1292
        %v1294 = vpop.f32.mrb[0].mxu0
        %1295 = vmatprep.mubr.bf16.mxu0 %v1014
        %1296 = vmatmul.mubr.bf16.gmra.mrb[0].mxu0 %v1013
        %v1297 = vpop.f32.mrb[0].mxu0
        %v1298 = vadd.f32 0.0, %v1297
        %v1299 = vpop.f32.mrb[0].mxu0
        %v1300 = vpop.f32.mrb[0].mxu0
        %v1301 = vadd.f32 0.0, %v1300
        %v1302 = vpop.f32.mrb[0].mxu0
        %1303 = vdwg.mxu0
        %v1304 = vadd.f32 %v791, %v1178
        %v1305 = vadd.f32 %v792, %v1181
        %v1306 = vadd.f32 %v793, %v1186
        %v1307 = vadd.f32 %v794, %v1189
        %v1308 = vadd.f32 %v795, %v1194
        %v1309 = vadd.f32 %v796, %v1197
        %v1310 = vadd.f32 %v797, %v1202
        %v1311 = vadd.f32 %v798, %v1205
        %v1312 = vadd.f32 %v799, %v1210
        %v1313 = vadd.f32 %v800, %v1213
        %v1314 = vadd.f32 %v801, %v1218
        %v1315 = vadd.f32 %v802, %v1221
        %v1316 = vadd.f32 %v803, %v1226
        %v1317 = vadd.f32 %v804, %v1229
        %v1318 = vadd.f32 %v805, %v1234
        %v1319 = vadd.f32 %v806, %v1237
        %v1320 = vadd.f32 %v807, %v1242
        %v1321 = vadd.f32 %v808, %v1245
        %v1322 = vadd.f32 %v809, %v1250
        %v1323 = vadd.f32 %v810, %v1253
        %v1324 = vadd.f32 %v811, %v1258
        %v1325 = vadd.f32 %v812, %v1261
        %v1326 = vadd.f32 %v813, %v1266
        %v1327 = vadd.f32 %v814, %v1269
        %v1328 = vadd.f32 %v815, %v1274
        %v1329 = vadd.f32 %v816, %v1277
        %v1330 = vadd.f32 %v817, %v1282
        %v1331 = vadd.f32 %v818, %v1285
        %v1332 = vadd.f32 %v819, %v1290
        %v1333 = vadd.f32 %v820, %v1293
        %v1334 = vadd.f32 %v821, %v1298
        %v1335 = vadd.f32 %v822, %v1301
        %1336 = vst [vmem:[#allocation2] sm:$0xff] %v1304
        %1337 = vst [vmem:[#allocation2 + $0x8] sm:$0xff] %v1305
        %1338 = vst [vmem:[#allocation2 + $0x10] sm:$0xff] %v1306
        %1339 = vst [vmem:[#allocation2 + $0x18] sm:$0xff] %v1307
        %1340 = vst [vmem:[#allocation2 + $0x20] sm:$0xff] %v1308
        %1341 = vst [vmem:[#allocation2 + $0x28] sm:$0xff] %v1309
        %1342 = vst [vmem:[#allocation2 + $0x30] sm:$0xff] %v1310
        %1343 = vst [vmem:[#allocation2 + $0x38] sm:$0xff] %v1311
        %1344 = vst [vmem:[#allocation2 + $0x40] sm:$0xff] %v1312
        %1345 = vst [vmem:[#allocation2 + $0x48] sm:$0xff] %v1313
        %1346 = vst [vmem:[#allocation2 + $0x50] sm:$0xff] %v1314
        %1347 = vst [vmem:[#allocation2 + $0x58] sm:$0xff] %v1315
        %1348 = vst [vmem:[#allocation2 + $0x60] sm:$0xff] %v1316
        %1349 = vst [vmem:[#allocation2 + $0x68] sm:$0xff] %v1317
        %1350 = vst [vmem:[#allocation2 + $0x70] sm:$0xff] %v1318
        %1351 = vst [vmem:[#allocation2 + $0x78] sm:$0xff] %v1319
        %1352 = vst [vmem:[#allocation2 + $0x80] sm:$0xff] %v1320
        %1353 = vst [vmem:[#allocation2 + $0x88] sm:$0xff] %v1321
        %1354 = vst [vmem:[#allocation2 + $0x90] sm:$0xff] %v1322
        %1355 = vst [vmem:[#allocation2 + $0x98] sm:$0xff] %v1323
        %1356 = vst [vmem:[#allocation2 + $0xa0] sm:$0xff] %v1324
        %1357 = vst [vmem:[#allocation2 + $0xa8] sm:$0xff] %v1325
        %1358 = vst [vmem:[#allocation2 + $0xb0] sm:$0xff] %v1326
        %1359 = vst [vmem:[#allocation2 + $0xb8] sm:$0xff] %v1327
        %1360 = vst [vmem:[#allocation2 + $0xc0] sm:$0xff] %v1328
        %1361 = vst [vmem:[#allocation2 + $0xc8] sm:$0xff] %v1329
        %1362 = vst [vmem:[#allocation2 + $0xd0] sm:$0xff] %v1330
        %1363 = vst [vmem:[#allocation2 + $0xd8] sm:$0xff] %v1331
        %1364 = vst [vmem:[#allocation2 + $0xe0] sm:$0xff] %v1332
        %1365 = vst [vmem:[#allocation2 + $0xe8] sm:$0xff] %v1333
        %1366 = vst [vmem:[#allocation2 + $0xf0] sm:$0xff] %v1334
        %1367 = vst [vmem:[#allocation2 + $0xf8] sm:$0xff] %v1335
        %p1368 = scmp.eq.s32.totalorder %s20, 1
        // Predicated region
        $region161: #{encoder_forward_padded.9} parent=143 // pred_check
          %p1369 = pneg %p1368
        $region162: #{encoder_forward_padded.9} parent=143 // pred_check_branch
          %1371 = sbr.rel (%p1369) target = $region164
        $region163: #{encoder_forward_padded.9} parent=143 // pred_region
          %v1372 = vld [vmem:[#allocation2] sm:$0xff]
          %v1373 = vld [vmem:[#allocation2 + $0x8] sm:$0xff]
          %v1374 = vld [vmem:[#allocation2 + $0x10] sm:$0xff]
          %v1375 = vld [vmem:[#allocation2 + $0x18] sm:$0xff]
          %v1376 = vld [vmem:[#allocation2 + $0x20] sm:$0xff]
          %v1377 = vld [vmem:[#allocation2 + $0x28] sm:$0xff]
          %v1378 = vld [vmem:[#allocation2 + $0x30] sm:$0xff]
          %v1379 = vld [vmem:[#allocation2 + $0x38] sm:$0xff]
          %v1380 = vld [vmem:[#allocation2 + $0x40] sm:$0xff]
          %v1381 = vld [vmem:[#allocation2 + $0x48] sm:$0xff]
          %v1382 = vld [vmem:[#allocation2 + $0x50] sm:$0xff]
          %v1383 = vld [vmem:[#allocation2 + $0x58] sm:$0xff]
          %v1384 = vld [vmem:[#allocation2 + $0x60] sm:$0xff]
          %v1385 = vld [vmem:[#allocation2 + $0x68] sm:$0xff]
          %v1386 = vld [vmem:[#allocation2 + $0x70] sm:$0xff]
          %v1387 = vld [vmem:[#allocation2 + $0x78] sm:$0xff]
          %v1388 = vld [vmem:[#allocation2 + $0x80] sm:$0xff]
          %v1389 = vld [vmem:[#allocation2 + $0x88] sm:$0xff]
          %v1390 = vld [vmem:[#allocation2 + $0x90] sm:$0xff]
          %v1391 = vld [vmem:[#allocation2 + $0x98] sm:$0xff]
          %v1392 = vld [vmem:[#allocation2 + $0xa0] sm:$0xff]
          %v1393 = vld [vmem:[#allocation2 + $0xa8] sm:$0xff]
          %v1394 = vld [vmem:[#allocation2 + $0xb0] sm:$0xff]
          %v1395 = vld [vmem:[#allocation2 + $0xb8] sm:$0xff]
          %v1396 = vld [vmem:[#allocation2 + $0xc0] sm:$0xff]
          %v1397 = vld [vmem:[#allocation2 + $0xc8] sm:$0xff]
          %v1398 = vld [vmem:[#allocation2 + $0xd0] sm:$0xff]
          %v1399 = vld [vmem:[#allocation2 + $0xd8] sm:$0xff]
          %v1400 = vld [vmem:[#allocation2 + $0xe0] sm:$0xff]
          %v1401 = vld [vmem:[#allocation2 + $0xe8] sm:$0xff]
          %v1402 = vld [vmem:[#allocation2 + $0xf0] sm:$0xff]
          %v1403 = vld [vmem:[#allocation2 + $0xf8] sm:$0xff]
          %v1404 = vld [vmem:[%s713] sm:$0xf]
          %v1405 = vld [vmem:[%s713 + $0x4] sm:$0xf]
          %v1406 = vld [vmem:[%s713 + $0x8] sm:$0xf]
          %v1407 = vld [vmem:[%s713 + $0xc] sm:$0xf]
          %v1408 = vld [vmem:[%s713 + $0x10] sm:$0xf]
          %v1409 = vld [vmem:[%s713 + $0x14] sm:$0xf]
          %v1410 = vld [vmem:[%s713 + $0x18] sm:$0xf]
          %v1411 = vld [vmem:[%s713 + $0x1c] sm:$0xf]
          %v1412 = vld [vmem:[%s713 + $0x20] sm:$0xf]
          %v1413 = vld [vmem:[%s713 + $0x24] sm:$0xf]
          %v1414 = vld [vmem:[%s713 + $0x28] sm:$0xf]
          %v1415 = vld [vmem:[%s713 + $0x2c] sm:$0xf]
          %v1416 = vld [vmem:[%s713 + $0x30] sm:$0xf]
          %v1417 = vld [vmem:[%s713 + $0x34] sm:$0xf]
          %v1418 = vld [vmem:[%s713 + $0x38] sm:$0xf]
          %v1419 = vld [vmem:[%s713 + $0x3c] sm:$0xf]
          %v1420 = vld [vmem:[%s713 + $0x40] sm:$0xf]
          %v1421 = vld [vmem:[%s713 + $0x44] sm:$0xf]
          %v1422 = vld [vmem:[%s713 + $0x48] sm:$0xf]
          %v1423 = vld [vmem:[%s713 + $0x4c] sm:$0xf]
          %v1424 = vld [vmem:[%s713 + $0x50] sm:$0xf]
          %v1425 = vld [vmem:[%s713 + $0x54] sm:$0xf]
          %v1426 = vld [vmem:[%s713 + $0x58] sm:$0xf]
          %v1427 = vld [vmem:[%s713 + $0x5c] sm:$0xf]
          %v1428 = vld [vmem:[%s713 + $0x60] sm:$0xf]
          %v1429 = vld [vmem:[%s713 + $0x64] sm:$0xf]
          %v1430 = vld [vmem:[%s713 + $0x68] sm:$0xf]
          %v1431 = vld [vmem:[%s713 + $0x6c] sm:$0xf]
          %v1432 = vld [vmem:[%s713 + $0x70] sm:$0xf]
          %v1433 = vld [vmem:[%s713 + $0x74] sm:$0xf]
          %v1434 = vld [vmem:[%s713 + $0x78] sm:$0xf]
          %v1435 = vld [vmem:[%s713 + $0x7c] sm:$0xf]
          %v1436 = vunpack.c.l.bf16 %v1404
          %v1437 = vunpack.c.l.bf16 %v1405
          %v1438 = vunpack.c.l.bf16 %v1406
          %v1439 = vunpack.c.l.bf16 %v1407
          %v1440 = vunpack.c.l.bf16 %v1408
          %v1441 = vunpack.c.l.bf16 %v1409
          %v1442 = vunpack.c.l.bf16 %v1410
          %v1443 = vunpack.c.l.bf16 %v1411
          %v1444 = vunpack.c.l.bf16 %v1412
          %v1445 = vunpack.c.l.bf16 %v1413
          %v1446 = vunpack.c.l.bf16 %v1414
          %v1447 = vunpack.c.l.bf16 %v1415
          %v1448 = vunpack.c.l.bf16 %v1416
          %v1449 = vunpack.c.l.bf16 %v1417
          %v1450 = vunpack.c.l.bf16 %v1418
          %v1451 = vunpack.c.l.bf16 %v1419
          %v1452 = vunpack.c.l.bf16 %v1420
          %v1453 = vunpack.c.l.bf16 %v1421
          %v1454 = vunpack.c.l.bf16 %v1422
          %v1455 = vunpack.c.l.bf16 %v1423
          %v1456 = vunpack.c.l.bf16 %v1424
          %v1457 = vunpack.c.l.bf16 %v1425
          %v1458 = vunpack.c.l.bf16 %v1426
          %v1459 = vunpack.c.l.bf16 %v1427
          %v1460 = vunpack.c.l.bf16 %v1428
          %v1461 = vunpack.c.l.bf16 %v1429
          %v1462 = vunpack.c.l.bf16 %v1430
          %v1463 = vunpack.c.l.bf16 %v1431
          %v1464 = vunpack.c.l.bf16 %v1432
          %v1465 = vunpack.c.l.bf16 %v1433
          %v1466 = vunpack.c.l.bf16 %v1434
          %v1467 = vunpack.c.l.bf16 %v1435
          %v1468 = vadd.f32 %v1372, %v1436
          %v1469 = vadd.f32 %v1373, %v1437
          %v1470 = vadd.f32 %v1374, %v1438
          %v1471 = vadd.f32 %v1375, %v1439
          %v1472 = vadd.f32 %v1376, %v1440
          %v1473 = vadd.f32 %v1377, %v1441
          %v1474 = vadd.f32 %v1378, %v1442
          %v1475 = vadd.f32 %v1379, %v1443
          %v1476 = vadd.f32 %v1380, %v1444
          %v1477 = vadd.f32 %v1381, %v1445
          %v1478 = vadd.f32 %v1382, %v1446
          %v1479 = vadd.f32 %v1383, %v1447
          %v1480 = vadd.f32 %v1384, %v1448
          %v1481 = vadd.f32 %v1385, %v1449
          %v1482 = vadd.f32 %v1386, %v1450
          %v1483 = vadd.f32 %v1387, %v1451
          %v1484 = vadd.f32 %v1388, %v1452
          %v1485 = vadd.f32 %v1389, %v1453
          %v1486 = vadd.f32 %v1390, %v1454
          %v1487 = vadd.f32 %v1391, %v1455
          %v1488 = vadd.f32 %v1392, %v1456
          %v1489 = vadd.f32 %v1393, %v1457
          %v1490 = vadd.f32 %v1394, %v1458
          %v1491 = vadd.f32 %v1395, %v1459
          %v1492 = vadd.f32 %v1396, %v1460
          %v1493 = vadd.f32 %v1397, %v1461
          %v1494 = vadd.f32 %v1398, %v1462
          %v1495 = vadd.f32 %v1399, %v1463
          %v1496 = vadd.f32 %v1400, %v1464
          %v1497 = vadd.f32 %v1401, %v1465
          %v1498 = vadd.f32 %v1402, %v1466
          %v1499 = vadd.f32 %v1403, %v1467
          %v1500 = vld [vmem:[%s3] sm:$0x1]
          %v1502 = vlaneseq
          %v1503 = vshrl.u32 %v1502, 7
          %v1504 = vsub.s32 0, %v1503
          %v1505 = vrot.slane %v1500, %v1504
          %v1507 = vadd.f32 %v1468, %v1505
          %v1508 = vadd.f32 %v1469, %v1505
          %v1509 = vadd.f32 %v1470, %v1505
          %v1510 = vadd.f32 %v1471, %v1505
          %v1511 = vadd.f32 %v1472, %v1505
          %v1512 = vadd.f32 %v1473, %v1505
          %v1513 = vadd.f32 %v1474, %v1505
          %v1514 = vadd.f32 %v1475, %v1505
          %v1515 = vadd.f32 %v1476, %v1505
          %v1516 = vadd.f32 %v1477, %v1505
          %v1517 = vadd.f32 %v1478, %v1505
          %v1518 = vadd.f32 %v1479, %v1505
          %v1519 = vadd.f32 %v1480, %v1505
          %v1520 = vadd.f32 %v1481, %v1505
          %v1521 = vadd.f32 %v1482, %v1505
          %v1522 = vadd.f32 %v1483, %v1505
          %v1523 = vadd.f32 %v1484, %v1505
          %v1524 = vadd.f32 %v1485, %v1505
          %v1525 = vadd.f32 %v1486, %v1505
          %v1526 = vadd.f32 %v1487, %v1505
          %v1527 = vadd.f32 %v1488, %v1505
          %v1528 = vadd.f32 %v1489, %v1505
          %v1529 = vadd.f32 %v1490, %v1505
          %v1530 = vadd.f32 %v1491, %v1505
          %v1531 = vadd.f32 %v1492, %v1505
          %v1532 = vadd.f32 %v1493, %v1505
          %v1533 = vadd.f32 %v1494, %v1505
          %v1534 = vadd.f32 %v1495, %v1505
          %v1535 = vadd.f32 %v1496, %v1505
          %v1536 = vadd.f32 %v1497, %v1505
          %v1537 = vadd.f32 %v1498, %v1505
          %v1538 = vadd.f32 %v1499, %v1505
          %v1539 = vmax.f32 %v1507, 0.0
          %v1540 = vmax.f32 %v1508, 0.0
          %v1541 = vmax.f32 %v1509, 0.0
          %v1542 = vmax.f32 %v1510, 0.0
          %v1543 = vmax.f32 %v1511, 0.0
          %v1544 = vmax.f32 %v1512, 0.0
          %v1545 = vmax.f32 %v1513, 0.0
          %v1546 = vmax.f32 %v1514, 0.0
          %v1547 = vmax.f32 %v1515, 0.0
          %v1548 = vmax.f32 %v1516, 0.0
          %v1549 = vmax.f32 %v1517, 0.0
          %v1550 = vmax.f32 %v1518, 0.0
          %v1551 = vmax.f32 %v1519, 0.0
          %v1552 = vmax.f32 %v1520, 0.0
          %v1553 = vmax.f32 %v1521, 0.0
          %v1554 = vmax.f32 %v1522, 0.0
          %v1555 = vmax.f32 %v1523, 0.0
          %v1556 = vmax.f32 %v1524, 0.0
          %v1557 = vmax.f32 %v1525, 0.0
          %v1558 = vmax.f32 %v1526, 0.0
          %v1559 = vmax.f32 %v1527, 0.0
          %v1560 = vmax.f32 %v1528, 0.0
          %v1561 = vmax.f32 %v1529, 0.0
          %v1562 = vmax.f32 %v1530, 0.0
          %v1563 = vmax.f32 %v1531, 0.0
          %v1564 = vmax.f32 %v1532, 0.0
          %v1565 = vmax.f32 %v1533, 0.0
          %v1566 = vmax.f32 %v1534, 0.0
          %v1567 = vmax.f32 %v1535, 0.0
          %v1568 = vmax.f32 %v1536, 0.0
          %v1569 = vmax.f32 %v1537, 0.0
          %v1570 = vmax.f32 %v1538, 0.0
          %v1571 = vpack.c.bf16 %v1540, %v1539
          %v1572 = vpack.c.bf16 %v1542, %v1541
          %v1573 = vpack.c.bf16 %v1544, %v1543
          %v1574 = vpack.c.bf16 %v1546, %v1545
          %v1575 = vpack.c.bf16 %v1548, %v1547
          %v1576 = vpack.c.bf16 %v1550, %v1549
          %v1577 = vpack.c.bf16 %v1552, %v1551
          %v1578 = vpack.c.bf16 %v1554, %v1553
          %v1579 = vpack.c.bf16 %v1556, %v1555
          %v1580 = vpack.c.bf16 %v1558, %v1557
          %v1581 = vpack.c.bf16 %v1560, %v1559
          %v1582 = vpack.c.bf16 %v1562, %v1561
          %v1583 = vpack.c.bf16 %v1564, %v1563
          %v1584 = vpack.c.bf16 %v1566, %v1565
          %v1585 = vpack.c.bf16 %v1568, %v1567
          %v1586 = vpack.c.bf16 %v1570, %v1569
          %v1603 = vunpack.c.l.b16 %v1571
          %v1604 = vunpack.c.h.b16 %v1571
          %v1605 = vunpack.c.l.b16 %v1572
          %v1606 = vunpack.c.h.b16 %v1572
          %v1607 = vunpack.c.l.b16 %v1573
          %v1608 = vunpack.c.h.b16 %v1573
          %v1609 = vunpack.c.l.b16 %v1574
          %v1610 = vunpack.c.h.b16 %v1574
          %v1611 = vunpack.c.l.b16 %v1575
          %v1612 = vunpack.c.h.b16 %v1575
          %v1613 = vunpack.c.l.b16 %v1576
          %v1614 = vunpack.c.h.b16 %v1576
          %v1615 = vunpack.c.l.b16 %v1577
          %v1616 = vunpack.c.h.b16 %v1577
          %v1617 = vunpack.c.l.b16 %v1578
          %v1618 = vunpack.c.h.b16 %v1578
          %v1619 = vunpack.c.l.b16 %v1579
          %v1620 = vunpack.c.h.b16 %v1579
          %v1621 = vunpack.c.l.b16 %v1580
          %v1622 = vunpack.c.h.b16 %v1580
          %v1623 = vunpack.c.l.b16 %v1581
          %v1624 = vunpack.c.h.b16 %v1581
          %v1625 = vunpack.c.l.b16 %v1582
          %v1626 = vunpack.c.h.b16 %v1582
          %v1627 = vunpack.c.l.b16 %v1583
          %v1628 = vunpack.c.h.b16 %v1583
          %v1629 = vunpack.c.l.b16 %v1584
          %v1630 = vunpack.c.h.b16 %v1584
          %v1631 = vunpack.c.l.b16 %v1585
          %v1632 = vunpack.c.h.b16 %v1585
          %v1633 = vunpack.c.l.b16 %v1586
          %v1634 = vunpack.c.h.b16 %v1586
          %v1635 = vpack.c.b16 %v1603, %v1603
          %v1636 = vpack.c.b16 %v1604, %v1604
          %v1637 = vpack.c.b16 %v1605, %v1605
          %v1638 = vpack.c.b16 %v1606, %v1606
          %v1639 = vpack.c.b16 %v1607, %v1607
          %v1640 = vpack.c.b16 %v1608, %v1608
          %v1641 = vpack.c.b16 %v1609, %v1609
          %v1642 = vpack.c.b16 %v1610, %v1610
          %v1643 = vpack.c.b16 %v1611, %v1611
          %v1644 = vpack.c.b16 %v1612, %v1612
          %v1645 = vpack.c.b16 %v1613, %v1613
          %v1646 = vpack.c.b16 %v1614, %v1614
          %v1647 = vpack.c.b16 %v1615, %v1615
          %v1648 = vpack.c.b16 %v1616, %v1616
          %v1649 = vpack.c.b16 %v1617, %v1617
          %v1650 = vpack.c.b16 %v1618, %v1618
          %v1651 = vpack.c.b16 %v1619, %v1619
          %v1652 = vpack.c.b16 %v1620, %v1620
          %v1653 = vpack.c.b16 %v1621, %v1621
          %v1654 = vpack.c.b16 %v1622, %v1622
          %v1655 = vpack.c.b16 %v1623, %v1623
          %v1656 = vpack.c.b16 %v1624, %v1624
          %v1657 = vpack.c.b16 %v1625, %v1625
          %v1658 = vpack.c.b16 %v1626, %v1626
          %v1659 = vpack.c.b16 %v1627, %v1627
          %v1660 = vpack.c.b16 %v1628, %v1628
          %v1661 = vpack.c.b16 %v1629, %v1629
          %v1662 = vpack.c.b16 %v1630, %v1630
          %v1663 = vpack.c.b16 %v1631, %v1631
          %v1664 = vpack.c.b16 %v1632, %v1632
          %v1665 = vpack.c.b16 %v1633, %v1633
          %v1666 = vpack.c.b16 %v1634, %v1634
          %1699 = vst [vmem:[%s752] sm:$0xf] %v1635
          %1700 = vst [vmem:[%s752 + $0x4] sm:$0xf] %v1636
          %1701 = vst [vmem:[%s752 + $0x8] sm:$0xf] %v1637
          %1702 = vst [vmem:[%s752 + $0xc] sm:$0xf] %v1638
          %1703 = vst [vmem:[%s752 + $0x10] sm:$0xf] %v1639
          %1704 = vst [vmem:[%s752 + $0x14] sm:$0xf] %v1640
          %1705 = vst [vmem:[%s752 + $0x18] sm:$0xf] %v1641
          %1706 = vst [vmem:[%s752 + $0x1c] sm:$0xf] %v1642
          %1707 = vst [vmem:[%s752 + $0x20] sm:$0xf] %v1643
          %1708 = vst [vmem:[%s752 + $0x24] sm:$0xf] %v1644
          %1709 = vst [vmem:[%s752 + $0x28] sm:$0xf] %v1645
          %1710 = vst [vmem:[%s752 + $0x2c] sm:$0xf] %v1646
          %1711 = vst [vmem:[%s752 + $0x30] sm:$0xf] %v1647
          %1712 = vst [vmem:[%s752 + $0x34] sm:$0xf] %v1648
          %1713 = vst [vmem:[%s752 + $0x38] sm:$0xf] %v1649
          %1714 = vst [vmem:[%s752 + $0x3c] sm:$0xf] %v1650
          %1715 = vst [vmem:[%s752 + $0x40] sm:$0xf] %v1651
          %1716 = vst [vmem:[%s752 + $0x44] sm:$0xf] %v1652
          %1717 = vst [vmem:[%s752 + $0x48] sm:$0xf] %v1653
          %1718 = vst [vmem:[%s752 + $0x4c] sm:$0xf] %v1654
          %1719 = vst [vmem:[%s752 + $0x50] sm:$0xf] %v1655
          %1720 = vst [vmem:[%s752 + $0x54] sm:$0xf] %v1656
          %1721 = vst [vmem:[%s752 + $0x58] sm:$0xf] %v1657
          %1722 = vst [vmem:[%s752 + $0x5c] sm:$0xf] %v1658
          %1723 = vst [vmem:[%s752 + $0x60] sm:$0xf] %v1659
          %1724 = vst [vmem:[%s752 + $0x64] sm:$0xf] %v1660
          %1725 = vst [vmem:[%s752 + $0x68] sm:$0xf] %v1661
          %1726 = vst [vmem:[%s752 + $0x6c] sm:$0xf] %v1662
          %1727 = vst [vmem:[%s752 + $0x70] sm:$0xf] %v1663
          %1728 = vst [vmem:[%s752 + $0x74] sm:$0xf] %v1664
          %1729 = vst [vmem:[%s752 + $0x78] sm:$0xf] %v1665
          %1730 = vst [vmem:[%s752 + $0x7c] sm:$0xf] %v1666
        $region164: #{encoder_forward_padded.9} parent=143 // pred_fallthru
          _
        %s1731 = smul.u32 32, %s19
        %p1732 = scmp.lt.s32.totalorder %s1731, 63
        %s1733 = scalar_select %p1732, %s1731, 63
        %s1734 = smul.addr %s1733, 4
        %s1735 = scalar_lea.vmem %s4, %s1734
        // Predicated region
        $region165: #{encoder_forward_padded.9} parent=143 // pred_check
          %p1736 = pneg %p146
        $region166: #{encoder_forward_padded.9} parent=143 // pred_check_branch
          %1738 = sbr.rel (%p1736) target = $region168
        $region167: #{encoder_forward_padded.9} parent=143 // pred_region
          %s1739 = smul.u32 32, %s19
        $region168: #{encoder_forward_padded.9} parent=143 // pred_fallthru
          _
      $region144: #{encoder_forward_padded.9} parent=5 // pred_fallthru
        _
      %p1740 = scmp.le.s32.totalorder 2, %s10
      // Predicated region
      $region169: #{encoder_forward_padded.9} parent=5 // pred_check
        %p1741 = pneg %p1740
      $region170: #{encoder_forward_padded.9} parent=5 // pred_check_branch
        %1743 = sbr.rel (%p1741) target = $region172
      $region171: #{encoder_forward_padded.9} parent=5 // pred_region
        %s1744 = ssub.s32 %s10, 2
        // Predicated region
        $region173: #{encoder_forward_padded.9} parent=171 // pred_check
          %p1745 = pneg %p152
        $region174: #{encoder_forward_padded.9} parent=171 // pred_check_branch
          %1747 = sbr.rel (%p1745) target = $region176
        $region175: #{encoder_forward_padded.9} parent=171 // pred_region
          %s1748 = smul.u32 32, %s21
          %p1749 = scmp.lt.s32.totalorder %s1748, 63
          %s1750 = scalar_select %p1749, %s1748, 63
          %s1751 = smul.addr %s1750, 4
          %s1752 = scalar_lea.vmem %s4, %s1751
        $region176: #{encoder_forward_padded.9} parent=171 // pred_fallthru
          _
      $region172: #{encoder_forward_padded.9} parent=5 // pred_fallthru
        _
    $region6: #{encoder_forward_padded.9} parent=1 // loop_footer
      %s14 = sadd.s32 1, %s10
    $region7: #{encoder_forward_padded.9} parent=1 // loop_footer_branch
      %9 = sbr.rel target = $region3
    $region8: #{encoder_forward_padded.9} parent=1 // loop_exit
      _

// kernel: encoder_forward_padded.7
$region0: #{encoder_forward_padded.7}
  #allocation0 [shape = 'u32[]', space=smem, size = 0x4, offset = 0x4, fixed_abs, tag = 'smem constant byte address 0x4 - core index']
  #allocation1 [shape = 'u32[144,128]{1,0:T(1,128)}', space=vmem, size = 0x12000, scoped, tag = 'internal scratch']
  #allocation2 [shape = 'f32[256,128]{1,0:T(8,128)}', space=vmem, size = 0x20000, scoped, tag = 'scratch operand']
  %s0 = inlined_call_operand.hbm [shape: bf16[512,512], index: 0, kind: input, shape index: {}]
  %s1 = inlined_call_operand.vmem [shape: bf16[512,256], index: 1, kind: input, shape index: {}, may-alias: {1,2}]
  %s2 = inlined_call_operand.vmem [shape: bf16[512,256], index: 2, kind: input, shape index: {}, may-alias: {1,2}]
  %s3 = inlined_call_operand.vmem [shape: f32[1,128], index: 3, kind: input, shape index: {}]
  %s4 = inlined_call_operand.vmem [shape: bf16[512,128], index: 4, kind: output, shape index: {}]
  %s5 = sld [smem:[#allocation0]]
  $region143: #{encoder_forward_padded.7} parent=0
    _
  %s7 = ssub.s32 1, %s5
  %s8 = scalar_select 0, %s7, %s5
  $region1: #{encoder_forward_padded.7} parent=0
    #allocation3 [shape = 'u8[262144]{0}', space=vmem, size = 0x40000, scoped, tag = 'input window, operand 0']
    #allocation4 [shape = 's32[2]{0}', space=sflag, size = 0x8, scoped, tag = 'scoped memory for encoder_forward_padded.7']
    #allocation5 [shape = 'u8[131072]{0}', space=vmem, size = 0x20000, scoped, tag = 'input window, operand 1']
    #allocation6 [shape = 'u8[131072]{0}', space=vmem, size = 0x20000, scoped, tag = 'input window, operand 2']
    %9 = vsyncpa [#allocation4], 0
    %s10 = scalar_lea.sflag [#allocation4], 1
    %11 = vsyncpa %s10, 0
    loop: start=0, step=1, limit=6
    $region2: #{encoder_forward_padded.7} parent=1 // loop_pre_header
      _
    $region3: #{encoder_forward_padded.7} parent=1 // loop_header
      %s13 = sphi 0, %s17
      %p14 = scmp.ge.s32.totalorder %s13, 6
      %s20 = sphi 0, %s32
      %s21 = sphi 0, %s28
      %s22 = sphi 0, %s20
      %s23 = sphi 0, %s21
      %s24 = sphi 0, %s22
      %s25 = sphi 0, %s23
      %s37 = sphi 0, %s39
      %s40 = sphi 0, %s37
      %s41 = sphi 0, %s40
      %s57 = sphi 0, %s41
      %s63 = sphi 0, %s65
      %s66 = sphi 0, %s63
      %s67 = sphi 0, %s66
      %s83 = sphi 0, %s67
      %s89 = sphi 0, %s91
      %s92 = sphi 0, %s89
      %s93 = sphi 0, %s92
      %s109 = sphi 0, %s93
      %s113 = sphi 0, %s113
      %s115 = sphi 0, %s113
      %s116 = sphi 0, %s115
      %s130 = sphi 0, %s116
      %s136 = sphi 0, %s138
      %s139 = sphi 0, %s136
      %s140 = sphi 0, %s139
      %s156 = sphi 0, %s140
    $region4: #{encoder_forward_padded.7} parent=1 // loop_header_branch
      %16 = sbr.rel (%p14) target = $region8
    $region5: #{encoder_forward_padded.7} parent=1 // loop_body
      %s18 = ssub.s32 %s13, 1
      %s19 = ssub.s32 %s13, 2
      %s26 = sadd.s32 1, %s21
      %p27 = scmp.ge.s32.totalorder %s26, 2
      %s28 = scalar_select %p27, 0, %s26
      %s29 = sadd.s32 1, %s20
      %s30 = scalar_select %p27, %s29, %s20
      %p31 = scmp.ge.s32.totalorder %s30, 2
      %s32 = scalar_select %p31, 0, %s30
      %s33 = ssub.s32 %s20, %s32
      %s34 = ssub.s32 %s21, %s28
      %s35 = sor.u32 %s33, %s34
      %p36 = scmp.eq.s32.totalorder %s35, 0
      %s38 = sadd.s32 %s37, 1
      %s39 = scalar_select %p36, %s37, %s38
      %p42 = pneg %p36
      %p43 = scmp.eq.s32.totalorder %s13, 3
      %p44 = por %p42, %p43
      %p45 = scmp.ne.s32.totalorder %s37, %s40
      %p46 = scmp.eq.s32.totalorder %s13, 0
      %p47 = por %p45, %p46
      %p48 = scmp.ne.s32.totalorder %s37, %s40
      %p49 = scmp.eq.s32.totalorder %s18, 3
      %p50 = por %p48, %p49
      %p51 = scmp.ne.s32.totalorder %s40, %s41
      %p52 = scmp.eq.s32.totalorder %s18, 0
      %p53 = por %p51, %p52
      %p54 = scmp.ne.s32.totalorder %s40, %s41
      %p55 = scmp.eq.s32.totalorder %s19, 3
      %p56 = por %p54, %p55
      %p58 = scmp.ne.s32.totalorder %s41, %s57
      %p59 = scmp.eq.s32.totalorder %s19, 0
      %p60 = por %p58, %p59
      %s61 = ssub.s32 %s21, %s28
      %p62 = scmp.eq.s32.totalorder %s61, 0
      %s64 = sadd.s32 %s63, 1
      %s65 = scalar_select %p62, %s63, %s64
      %p68 = pneg %p62
      %p69 = scmp.eq.s32.totalorder %s13, 3
      %p70 = por %p68, %p69
      %p71 = scmp.ne.s32.totalorder %s63, %s66
      %p72 = scmp.eq.s32.totalorder %s13, 0
      %p73 = por %p71, %p72
      %p74 = scmp.ne.s32.totalorder %s63, %s66
      %p75 = scmp.eq.s32.totalorder %s18, 3
      %p76 = por %p74, %p75
      %p77 = scmp.ne.s32.totalorder %s66, %s67
      %p78 = scmp.eq.s32.totalorder %s18, 0
      %p79 = por %p77, %p78
      %p80 = scmp.ne.s32.totalorder %s66, %s67
      %p81 = scmp.eq.s32.totalorder %s19, 3
      %p82 = por %p80, %p81
      %p84 = scmp.ne.s32.totalorder %s67, %s83
      %p85 = scmp.eq.s32.totalorder %s19, 0
      %p86 = por %p84, %p85
      %s87 = ssub.s32 %s20, %s32
      %p88 = scmp.eq.s32.totalorder %s87, 0
      %s90 = sadd.s32 %s89, 1
      %s91 = scalar_select %p88, %s89, %s90
      %p94 = pneg %p88
      %p95 = scmp.eq.s32.totalorder %s13, 3
      %p96 = por %p94, %p95
      %p97 = scmp.ne.s32.totalorder %s89, %s92
      %p98 = scmp.eq.s32.totalorder %s13, 0
      %p99 = por %p97, %p98
      %p100 = scmp.ne.s32.totalorder %s89, %s92
      %p101 = scmp.eq.s32.totalorder %s18, 3
      %p102 = por %p100, %p101
      %p103 = scmp.ne.s32.totalorder %s92, %s93
      %p104 = scmp.eq.s32.totalorder %s18, 0
      %p105 = por %p103, %p104
      %p106 = scmp.ne.s32.totalorder %s92, %s93
      %p107 = scmp.eq.s32.totalorder %s19, 3
      %p108 = por %p106, %p107
      %p110 = scmp.ne.s32.totalorder %s93, %s109
      %p111 = scmp.eq.s32.totalorder %s19, 0
      %p112 = por %p110, %p111
      %s114 = sadd.s32 %s113, 1
      %p117 = scmp.eq.s32.totalorder %s13, 3
      %p118 = scmp.ne.s32.totalorder %s113, %s115
      %p119 = scmp.eq.s32.totalorder %s13, 0
      %p120 = por %p118, %p119
      %p121 = scmp.ne.s32.totalorder %s113, %s115
      %p122 = scmp.eq.s32.totalorder %s18, 3
      %p123 = por %p121, %p122
      %p124 = scmp.ne.s32.totalorder %s115, %s116
      %p125 = scmp.eq.s32.totalorder %s18, 0
      %p126 = por %p124, %p125
      %p127 = scmp.ne.s32.totalorder %s115, %s116
      %p128 = scmp.eq.s32.totalorder %s19, 3
      %p129 = por %p127, %p128
      %p131 = scmp.ne.s32.totalorder %s116, %s130
      %p132 = scmp.eq.s32.totalorder %s19, 0
      %p133 = por %p131, %p132
      %s134 = ssub.s32 %s20, %s32
      %p135 = scmp.eq.s32.totalorder %s134, 0
      %s137 = sadd.s32 %s136, 1
      %s138 = scalar_select %p135, %s136, %s137
      %p141 = pneg %p135
      %p142 = scmp.eq.s32.totalorder %s13, 3
      %p143 = por %p141, %p142
      %p144 = scmp.ne.s32.totalorder %s136, %s139
      %p145 = scmp.eq.s32.totalorder %s13, 0
      %p146 = por %p144, %p145
      %p147 = scmp.ne.s32.totalorder %s136, %s139
      %p148 = scmp.eq.s32.totalorder %s18, 3
      %p149 = por %p147, %p148
      %p150 = scmp.ne.s32.totalorder %s139, %s140
      %p151 = scmp.eq.s32.totalorder %s18, 0
      %p152 = por %p150, %p151
      %p153 = scmp.ne.s32.totalorder %s139, %s140
      %p154 = scmp.eq.s32.totalorder %s19, 3
      %p155 = por %p153, %p154
      %p157 = scmp.ne.s32.totalorder %s140, %s156
      %p158 = scmp.eq.s32.totalorder %s19, 0
      %p159 = por %p157, %p158
      %p160 = scmp.le.s32.totalorder 1, %s13
      %p161 = scmp.lt.s32.totalorder %s13, 5
      %p162 = pnand %p160, %p161
      %p163 = pneg %p162
      // Predicated region
      $region9: #{encoder_forward_padded.7} parent=5 // pred_check
        _
      $region10: #{encoder_forward_padded.7} parent=5 // pred_check_branch
        %165 = sbr.rel (%p162) target = $region12
      $region11: #{encoder_forward_padded.7} parent=5 // pred_region
        %s166 = ssub.s32 %s13, 1
        // Predicated region
        $region13: #{encoder_forward_padded.7} parent=11 // pred_check
          %p167 = pneg %p126
        $region14: #{encoder_forward_padded.7} parent=11 // pred_check_branch
          %169 = sbr.rel (%p167) target = $region16
        $region15: #{encoder_forward_padded.7} parent=11 // pred_region
          _
        $region16: #{encoder_forward_padded.7} parent=11 // pred_fallthru
          _
      $region12: #{encoder_forward_padded.7} parent=5 // pred_fallthru
        _
      %p170 = scmp.lt.s32.totalorder %s13, 4
      // Predicated region
      $region17: #{encoder_forward_padded.7} parent=5 // pred_check
        %p171 = pneg %p170
      $region18: #{encoder_forward_padded.7} parent=5 // pred_check_branch
        %173 = sbr.rel (%p171) target = $region20
      $region19: #{encoder_forward_padded.7} parent=5 // pred_region
        // Predicated region
        $region21: #{encoder_forward_padded.7} parent=19 // pred_check
          %p174 = pneg %p47
        $region22: #{encoder_forward_padded.7} parent=19 // pred_check_branch
          %176 = sbr.rel (%p174) target = $region24
        $region23: #{encoder_forward_padded.7} parent=19 // pred_region
          %s177 = sand.u32 %s37, 1
          %s178 = scalar_lea.sflag [#allocation4], %s177
          %s179 = sand.u32 %s37, 1
          %s180 = smul.addr %s179, 256
          %s181 = scalar_lea.vmem [#allocation3], %s180
          %s182 = smul.u32 32, %s20
          %s183 = smul.u32 2, %s21
          %s185 = ssub.s32 4096, 4096
          %186 = vsyncadd %s178, %s185
          %s187 = smul.addr %s182, 4
          %s188 = sadd.s32 %s183, %s187
          %s189 = smul.addr %s188, 64
          %s190 = scalar_lea.hbm %s0, %s189
          %s191 = sshll.u32 %s181, 4
          %s192 = int_to_ptr.vmem [resolvable:$true] %s191
          %197 = dma.hbm_to_vmem [thread:$0]  %s190, 4096, %s192, %s178, 256, 128, 8
        $region24: #{encoder_forward_padded.7} parent=19 // pred_fallthru
          _
        // Predicated region
        $region25: #{encoder_forward_padded.7} parent=19 // pred_check
          %p198 = pneg %p73
        $region26: #{encoder_forward_padded.7} parent=19 // pred_check_branch
          %200 = sbr.rel (%p198) target = $region28
        $region27: #{encoder_forward_padded.7} parent=19 // pred_region
          %s201 = sand.u32 %s63, 1
          %s202 = sand.u32 %s63, 1
          %s203 = smul.addr %s202, 128
          %s204 = scalar_lea.vmem [#allocation5], %s203
          %s205 = smul.u32 32, %s21
          %s206 = smul.addr %s205, 2
          %s207 = smul.addr %s206, 4
          %s208 = scalar_lea.vmem %s1, %s207
          // Predicated region
          $region29: #{encoder_forward_padded.7} parent=27 // pred_check
            _
          $region30: #{encoder_forward_padded.7} parent=27 // pred_check_branch
            %210 = sbr.rel (0) target = $region32
          $region31: #{encoder_forward_padded.7} parent=27 // pred_region
            // Predicated region
            $region33: #{encoder_forward_padded.7} parent=31 // pred_check
              _
            $region34: #{encoder_forward_padded.7} parent=31 // pred_check_branch
              %212 = sbr.rel target = $region36
            $region35: #{encoder_forward_padded.7} parent=31 // pred_region
              // Predicated region
              $region48: #{encoder_forward_padded.7} parent=35 // pred_check
                _
              $region49: #{encoder_forward_padded.7} parent=35 // pred_check_branch
                %289 = sbr.rel (0) target = $region51
              $region50: #{encoder_forward_padded.7} parent=35 // pred_region
                loop: start=0, step=1, limit=1
                $region52: #{encoder_forward_padded.7} parent=50 // loop_pre_header
                  _
                $region53: #{encoder_forward_padded.7} parent=50 // loop_header
                  %s291 = sphi 0, %s295
                  %p292 = scmp.ge.s32.totalorder %s291, 1
                  %s296 = sphi %s208, %s208
                  %s297 = sphi %s204, %s204
                $region54: #{encoder_forward_padded.7} parent=50 // loop_header_branch
                  %294 = sbr.rel (%p292) target = $region58
                $region55: #{encoder_forward_padded.7} parent=50 // loop_body
                  _
                $region56: #{encoder_forward_padded.7} parent=50 // loop_footer
                  %s295 = sadd.s32 1, %s291
                $region57: #{encoder_forward_padded.7} parent=50 // loop_footer_branch
                  %290 = sbr.rel target = $region53
                $region58: #{encoder_forward_padded.7} parent=50 // loop_exit
                  _
                loop: start=0, step=1, limit=1
                $region59: #{encoder_forward_padded.7} parent=50 // loop_pre_header
                  _
                $region60: #{encoder_forward_padded.7} parent=50 // loop_header
                  %s300 = sphi 0, %s304
                  %p301 = scmp.ge.s32.totalorder %s300, 1
                  %s305 = sphi %s208, %s208
                  %s306 = sphi %s204, %s204
                $region61: #{encoder_forward_padded.7} parent=50 // loop_header_branch
                  %303 = sbr.rel (%p301) target = $region65
                $region62: #{encoder_forward_padded.7} parent=50 // loop_body
                  %v307 = vld [vmem:[%s305] sm:$0xf]
                  %308 = vst [vmem:[%s306] sm:$0xf] %v307
                  %v309 = vld [vmem:[%s305 + $0x8] sm:$0xf]
                  %310 = vst [vmem:[%s306 + $0x4] sm:$0xf] %v309
                  %v311 = vld [vmem:[%s305 + $0x10] sm:$0xf]
                  %312 = vst [vmem:[%s306 + $0x8] sm:$0xf] %v311
                  %v313 = vld [vmem:[%s305 + $0x18] sm:$0xf]
                  %314 = vst [vmem:[%s306 + $0xc] sm:$0xf] %v313
                  %v315 = vld [vmem:[%s305 + $0x20] sm:$0xf]
                  %316 = vst [vmem:[%s306 + $0x10] sm:$0xf] %v315
                  %v317 = vld [vmem:[%s305 + $0x28] sm:$0xf]
                  %318 = vst [vmem:[%s306 + $0x14] sm:$0xf] %v317
                  %v319 = vld [vmem:[%s305 + $0x30] sm:$0xf]
                  %320 = vst [vmem:[%s306 + $0x18] sm:$0xf] %v319
                  %v321 = vld [vmem:[%s305 + $0x38] sm:$0xf]
                  %322 = vst [vmem:[%s306 + $0x1c] sm:$0xf] %v321
                  %v323 = vld [vmem:[%s305 + $0x40] sm:$0xf]
                  %324 = vst [vmem:[%s306 + $0x20] sm:$0xf] %v323
                  %v325 = vld [vmem:[%s305 + $0x48] sm:$0xf]
                  %326 = vst [vmem:[%s306 + $0x24] sm:$0xf] %v325
                  %v327 = vld [vmem:[%s305 + $0x50] sm:$0xf]
                  %328 = vst [vmem:[%s306 + $0x28] sm:$0xf] %v327
                  %v329 = vld [vmem:[%s305 + $0x58] sm:$0xf]
                  %330 = vst [vmem:[%s306 + $0x2c] sm:$0xf] %v329
                  %v331 = vld [vmem:[%s305 + $0x60] sm:$0xf]
                  %332 = vst [vmem:[%s306 + $0x30] sm:$0xf] %v331
                  %v333 = vld [vmem:[%s305 + $0x68] sm:$0xf]
                  %334 = vst [vmem:[%s306 + $0x34] sm:$0xf] %v333
                  %v335 = vld [vmem:[%s305 + $0x70] sm:$0xf]
                  %336 = vst [vmem:[%s306 + $0x38] sm:$0xf] %v335
                  %v337 = vld [vmem:[%s305 + $0x78] sm:$0xf]
                  %338 = vst [vmem:[%s306 + $0x3c] sm:$0xf] %v337
                  %v339 = vld [vmem:[%s305 + $0x80] sm:$0xf]
                  %340 = vst [vmem:[%s306 + $0x40] sm:$0xf] %v339
                  %v341 = vld [vmem:[%s305 + $0x88] sm:$0xf]
                  %342 = vst [vmem:[%s306 + $0x44] sm:$0xf] %v341
                  %v343 = vld [vmem:[%s305 + $0x90] sm:$0xf]
                  %344 = vst [vmem:[%s306 + $0x48] sm:$0xf] %v343
                  %v345 = vld [vmem:[%s305 + $0x98] sm:$0xf]
                  %346 = vst [vmem:[%s306 + $0x4c] sm:$0xf] %v345
                  %v347 = vld [vmem:[%s305 + $0xa0] sm:$0xf]
                  %348 = vst [vmem:[%s306 + $0x50] sm:$0xf] %v347
                  %v349 = vld [vmem:[%s305 + $0xa8] sm:$0xf]
                  %350 = vst [vmem:[%s306 + $0x54] sm:$0xf] %v349
                  %v351 = vld [vmem:[%s305 + $0xb0] sm:$0xf]
                  %352 = vst [vmem:[%s306 + $0x58] sm:$0xf] %v351
                  %v353 = vld [vmem:[%s305 + $0xb8] sm:$0xf]
                  %354 = vst [vmem:[%s306 + $0x5c] sm:$0xf] %v353
                  %v355 = vld [vmem:[%s305 + $0xc0] sm:$0xf]
                  %356 = vst [vmem:[%s306 + $0x60] sm:$0xf] %v355
                  %v357 = vld [vmem:[%s305 + $0xc8] sm:$0xf]
                  %358 = vst [vmem:[%s306 + $0x64] sm:$0xf] %v357
                  %v359 = vld [vmem:[%s305 + $0xd0] sm:$0xf]
                  %360 = vst [vmem:[%s306 + $0x68] sm:$0xf] %v359
                  %v361 = vld [vmem:[%s305 + $0xd8] sm:$0xf]
                  %362 = vst [vmem:[%s306 + $0x6c] sm:$0xf] %v361
                  %v363 = vld [vmem:[%s305 + $0xe0] sm:$0xf]
                  %364 = vst [vmem:[%s306 + $0x70] sm:$0xf] %v363
                  %v365 = vld [vmem:[%s305 + $0xe8] sm:$0xf]
                  %366 = vst [vmem:[%s306 + $0x74] sm:$0xf] %v365
                  %v367 = vld [vmem:[%s305 + $0xf0] sm:$0xf]
                  %368 = vst [vmem:[%s306 + $0x78] sm:$0xf] %v367
                  %v369 = vld [vmem:[%s305 + $0xf8] sm:$0xf]
                  %370 = vst [vmem:[%s306 + $0x7c] sm:$0xf] %v369
                $region63: #{encoder_forward_padded.7} parent=50 // loop_footer
                  %s304 = sadd.s32 1, %s300
                $region64: #{encoder_forward_padded.7} parent=50 // loop_footer_branch
                  %299 = sbr.rel target = $region60
                $region65: #{encoder_forward_padded.7} parent=50 // loop_exit
                  _
              $region51: #{encoder_forward_padded.7} parent=35 // pred_fallthru
                _
            $region36: #{encoder_forward_padded.7} parent=31 // pred_fallthru
              _
            // Predicated region
            $region37: #{encoder_forward_padded.7} parent=31 // pred_check
              _
            $region38: #{encoder_forward_padded.7} parent=31 // pred_check_branch
              %214 = sbr.rel (0) target = $region40
            $region39: #{encoder_forward_padded.7} parent=31 // pred_region
              loop: start=0, step=1, limit=1
              $region41: #{encoder_forward_padded.7} parent=39 // loop_pre_header
                _
              $region42: #{encoder_forward_padded.7} parent=39 // loop_header
                %s217 = sphi 0, %s221
                %p218 = scmp.ge.s32.totalorder %s217, 1
                %s222 = sphi %s208, %s208
                %s223 = sphi %s204, %s204
              $region43: #{encoder_forward_padded.7} parent=39 // loop_header_branch
                %220 = sbr.rel (%p218) target = $region47
              $region44: #{encoder_forward_padded.7} parent=39 // loop_body
                %v224 = vld [vmem:[%s222] sm:$0xf]
                %225 = vst [vmem:[%s223] sm:$0xf] %v224
                %v226 = vld [vmem:[%s222 + $0x8] sm:$0xf]
                %227 = vst [vmem:[%s223 + $0x4] sm:$0xf] %v226
                %v228 = vld [vmem:[%s222 + $0x10] sm:$0xf]
                %229 = vst [vmem:[%s223 + $0x8] sm:$0xf] %v228
                %v230 = vld [vmem:[%s222 + $0x18] sm:$0xf]
                %231 = vst [vmem:[%s223 + $0xc] sm:$0xf] %v230
                %v232 = vld [vmem:[%s222 + $0x20] sm:$0xf]
                %233 = vst [vmem:[%s223 + $0x10] sm:$0xf] %v232
                %v234 = vld [vmem:[%s222 + $0x28] sm:$0xf]
                %235 = vst [vmem:[%s223 + $0x14] sm:$0xf] %v234
                %v236 = vld [vmem:[%s222 + $0x30] sm:$0xf]
                %237 = vst [vmem:[%s223 + $0x18] sm:$0xf] %v236
                %v238 = vld [vmem:[%s222 + $0x38] sm:$0xf]
                %239 = vst [vmem:[%s223 + $0x1c] sm:$0xf] %v238
                %v240 = vld [vmem:[%s222 + $0x40] sm:$0xf]
                %241 = vst [vmem:[%s223 + $0x20] sm:$0xf] %v240
                %v242 = vld [vmem:[%s222 + $0x48] sm:$0xf]
                %243 = vst [vmem:[%s223 + $0x24] sm:$0xf] %v242
                %v244 = vld [vmem:[%s222 + $0x50] sm:$0xf]
                %245 = vst [vmem:[%s223 + $0x28] sm:$0xf] %v244
                %v246 = vld [vmem:[%s222 + $0x58] sm:$0xf]
                %247 = vst [vmem:[%s223 + $0x2c] sm:$0xf] %v246
                %v248 = vld [vmem:[%s222 + $0x60] sm:$0xf]
                %249 = vst [vmem:[%s223 + $0x30] sm:$0xf] %v248
                %v250 = vld [vmem:[%s222 + $0x68] sm:$0xf]
                %251 = vst [vmem:[%s223 + $0x34] sm:$0xf] %v250
                %v252 = vld [vmem:[%s222 + $0x70] sm:$0xf]
                %253 = vst [vmem:[%s223 + $0x38] sm:$0xf] %v252
                %v254 = vld [vmem:[%s222 + $0x78] sm:$0xf]
                %255 = vst [vmem:[%s223 + $0x3c] sm:$0xf] %v254
                %v256 = vld [vmem:[%s222 + $0x80] sm:$0xf]
                %257 = vst [vmem:[%s223 + $0x40] sm:$0xf] %v256
                %v258 = vld [vmem:[%s222 + $0x88] sm:$0xf]
                %259 = vst [vmem:[%s223 + $0x44] sm:$0xf] %v258
                %v260 = vld [vmem:[%s222 + $0x90] sm:$0xf]
                %261 = vst [vmem:[%s223 + $0x48] sm:$0xf] %v260
                %v262 = vld [vmem:[%s222 + $0x98] sm:$0xf]
                %263 = vst [vmem:[%s223 + $0x4c] sm:$0xf] %v262
                %v264 = vld [vmem:[%s222 + $0xa0] sm:$0xf]
                %265 = vst [vmem:[%s223 + $0x50] sm:$0xf] %v264
                %v266 = vld [vmem:[%s222 + $0xa8] sm:$0xf]
                %267 = vst [vmem:[%s223 + $0x54] sm:$0xf] %v266
                %v268 = vld [vmem:[%s222 + $0xb0] sm:$0xf]
                %269 = vst [vmem:[%s223 + $0x58] sm:$0xf] %v268
                %v270 = vld [vmem:[%s222 + $0xb8] sm:$0xf]
                %271 = vst [vmem:[%s223 + $0x5c] sm:$0xf] %v270
                %v272 = vld [vmem:[%s222 + $0xc0] sm:$0xf]
                %273 = vst [vmem:[%s223 + $0x60] sm:$0xf] %v272
                %v274 = vld [vmem:[%s222 + $0xc8] sm:$0xf]
                %275 = vst [vmem:[%s223 + $0x64] sm:$0xf] %v274
                %v276 = vld [vmem:[%s222 + $0xd0] sm:$0xf]
                %277 = vst [vmem:[%s223 + $0x68] sm:$0xf] %v276
                %v278 = vld [vmem:[%s222 + $0xd8] sm:$0xf]
                %279 = vst [vmem:[%s223 + $0x6c] sm:$0xf] %v278
                %v280 = vld [vmem:[%s222 + $0xe0] sm:$0xf]
                %281 = vst [vmem:[%s223 + $0x70] sm:$0xf] %v280
                %v282 = vld [vmem:[%s222 + $0xe8] sm:$0xf]
                %283 = vst [vmem:[%s223 + $0x74] sm:$0xf] %v282
                %v284 = vld [vmem:[%s222 + $0xf0] sm:$0xf]
                %285 = vst [vmem:[%s223 + $0x78] sm:$0xf] %v284
                %v286 = vld [vmem:[%s222 + $0xf8] sm:$0xf]
                %287 = vst [vmem:[%s223 + $0x7c] sm:$0xf] %v286
              $region45: #{encoder_forward_padded.7} parent=39 // loop_footer
                %s221 = sadd.s32 1, %s217
              $region46: #{encoder_forward_padded.7} parent=39 // loop_footer_branch
                %216 = sbr.rel target = $region42
              $region47: #{encoder_forward_padded.7} parent=39 // loop_exit
                _
            $region40: #{encoder_forward_padded.7} parent=31 // pred_fallthru
              _
          $region32: #{encoder_forward_padded.7} parent=27 // pred_fallthru
            _
          %371 = vnop
        $region28: #{encoder_forward_padded.7} parent=19 // pred_fallthru
          _
        // Predicated region
        $region66: #{encoder_forward_padded.7} parent=19 // pred_check
          %p372 = pneg %p99
        $region67: #{encoder_forward_padded.7} parent=19 // pred_check_branch
          %374 = sbr.rel (%p372) target = $region69
        $region68: #{encoder_forward_padded.7} parent=19 // pred_region
          %s375 = sand.u32 %s89, 1
          %s376 = sand.u32 %s89, 1
          %s377 = smul.addr %s376, 128
          %s378 = scalar_lea.vmem [#allocation6], %s377
          %s379 = smul.u32 32, %s20
          %s380 = smul.addr %s379, 2
          %s381 = sadd.s32 1, %s380
          %s382 = smul.addr %s381, 4
          %s383 = scalar_lea.vmem %s2, %s382
          // Predicated region
          $region70: #{encoder_forward_padded.7} parent=68 // pred_check
            _
          $region71: #{encoder_forward_padded.7} parent=68 // pred_check_branch
            %385 = sbr.rel (0) target = $region73
          $region72: #{encoder_forward_padded.7} parent=68 // pred_region
            // Predicated region
            $region74: #{encoder_forward_padded.7} parent=72 // pred_check
              _
            $region75: #{encoder_forward_padded.7} parent=72 // pred_check_branch
              %387 = sbr.rel target = $region77
            $region76: #{encoder_forward_padded.7} parent=72 // pred_region
              // Predicated region
              $region89: #{encoder_forward_padded.7} parent=76 // pred_check
                _
              $region90: #{encoder_forward_padded.7} parent=76 // pred_check_branch
                %464 = sbr.rel (0) target = $region92
              $region91: #{encoder_forward_padded.7} parent=76 // pred_region
                loop: start=0, step=1, limit=1
                $region93: #{encoder_forward_padded.7} parent=91 // loop_pre_header
                  _
                $region94: #{encoder_forward_padded.7} parent=91 // loop_header
                  %s466 = sphi 0, %s470
                  %p467 = scmp.ge.s32.totalorder %s466, 1
                  %s471 = sphi %s383, %s383
                  %s472 = sphi %s378, %s378
                $region95: #{encoder_forward_padded.7} parent=91 // loop_header_branch
                  %469 = sbr.rel (%p467) target = $region99
                $region96: #{encoder_forward_padded.7} parent=91 // loop_body
                  _
                $region97: #{encoder_forward_padded.7} parent=91 // loop_footer
                  %s470 = sadd.s32 1, %s466
                $region98: #{encoder_forward_padded.7} parent=91 // loop_footer_branch
                  %465 = sbr.rel target = $region94
                $region99: #{encoder_forward_padded.7} parent=91 // loop_exit
                  _
                loop: start=0, step=1, limit=1
                $region100: #{encoder_forward_padded.7} parent=91 // loop_pre_header
                  _
                $region101: #{encoder_forward_padded.7} parent=91 // loop_header
                  %s475 = sphi 0, %s479
                  %p476 = scmp.ge.s32.totalorder %s475, 1
                  %s480 = sphi %s383, %s383
                  %s481 = sphi %s378, %s378
                $region102: #{encoder_forward_padded.7} parent=91 // loop_header_branch
                  %478 = sbr.rel (%p476) target = $region106
                $region103: #{encoder_forward_padded.7} parent=91 // loop_body
                  %v482 = vld [vmem:[%s480] sm:$0xf]
                  %483 = vst [vmem:[%s481] sm:$0xf] %v482
                  %v484 = vld [vmem:[%s480 + $0x8] sm:$0xf]
                  %485 = vst [vmem:[%s481 + $0x4] sm:$0xf] %v484
                  %v486 = vld [vmem:[%s480 + $0x10] sm:$0xf]
                  %487 = vst [vmem:[%s481 + $0x8] sm:$0xf] %v486
                  %v488 = vld [vmem:[%s480 + $0x18] sm:$0xf]
                  %489 = vst [vmem:[%s481 + $0xc] sm:$0xf] %v488
                  %v490 = vld [vmem:[%s480 + $0x20] sm:$0xf]
                  %491 = vst [vmem:[%s481 + $0x10] sm:$0xf] %v490
                  %v492 = vld [vmem:[%s480 + $0x28] sm:$0xf]
                  %493 = vst [vmem:[%s481 + $0x14] sm:$0xf] %v492
                  %v494 = vld [vmem:[%s480 + $0x30] sm:$0xf]
                  %495 = vst [vmem:[%s481 + $0x18] sm:$0xf] %v494
                  %v496 = vld [vmem:[%s480 + $0x38] sm:$0xf]
                  %497 = vst [vmem:[%s481 + $0x1c] sm:$0xf] %v496
                  %v498 = vld [vmem:[%s480 + $0x40] sm:$0xf]
                  %499 = vst [vmem:[%s481 + $0x20] sm:$0xf] %v498
                  %v500 = vld [vmem:[%s480 + $0x48] sm:$0xf]
                  %501 = vst [vmem:[%s481 + $0x24] sm:$0xf] %v500
                  %v502 = vld [vmem:[%s480 + $0x50] sm:$0xf]
                  %503 = vst [vmem:[%s481 + $0x28] sm:$0xf] %v502
                  %v504 = vld [vmem:[%s480 + $0x58] sm:$0xf]
                  %505 = vst [vmem:[%s481 + $0x2c] sm:$0xf] %v504
                  %v506 = vld [vmem:[%s480 + $0x60] sm:$0xf]
                  %507 = vst [vmem:[%s481 + $0x30] sm:$0xf] %v506
                  %v508 = vld [vmem:[%s480 + $0x68] sm:$0xf]
                  %509 = vst [vmem:[%s481 + $0x34] sm:$0xf] %v508
                  %v510 = vld [vmem:[%s480 + $0x70] sm:$0xf]
                  %511 = vst [vmem:[%s481 + $0x38] sm:$0xf] %v510
                  %v512 = vld [vmem:[%s480 + $0x78] sm:$0xf]
                  %513 = vst [vmem:[%s481 + $0x3c] sm:$0xf] %v512
                  %v514 = vld [vmem:[%s480 + $0x80] sm:$0xf]
                  %515 = vst [vmem:[%s481 + $0x40] sm:$0xf] %v514
                  %v516 = vld [vmem:[%s480 + $0x88] sm:$0xf]
                  %517 = vst [vmem:[%s481 + $0x44] sm:$0xf] %v516
                  %v518 = vld [vmem:[%s480 + $0x90] sm:$0xf]
                  %519 = vst [vmem:[%s481 + $0x48] sm:$0xf] %v518
                  %v520 = vld [vmem:[%s480 + $0x98] sm:$0xf]
                  %521 = vst [vmem:[%s481 + $0x4c] sm:$0xf] %v520
                  %v522 = vld [vmem:[%s480 + $0xa0] sm:$0xf]
                  %523 = vst [vmem:[%s481 + $0x50] sm:$0xf] %v522
                  %v524 = vld [vmem:[%s480 + $0xa8] sm:$0xf]
                  %525 = vst [vmem:[%s481 + $0x54] sm:$0xf] %v524
                  %v526 = vld [vmem:[%s480 + $0xb0] sm:$0xf]
                  %527 = vst [vmem:[%s481 + $0x58] sm:$0xf] %v526
                  %v528 = vld [vmem:[%s480 + $0xb8] sm:$0xf]
                  %529 = vst [vmem:[%s481 + $0x5c] sm:$0xf] %v528
                  %v530 = vld [vmem:[%s480 + $0xc0] sm:$0xf]
                  %531 = vst [vmem:[%s481 + $0x60] sm:$0xf] %v530
                  %v532 = vld [vmem:[%s480 + $0xc8] sm:$0xf]
                  %533 = vst [vmem:[%s481 + $0x64] sm:$0xf] %v532
                  %v534 = vld [vmem:[%s480 + $0xd0] sm:$0xf]
                  %535 = vst [vmem:[%s481 + $0x68] sm:$0xf] %v534
                  %v536 = vld [vmem:[%s480 + $0xd8] sm:$0xf]
                  %537 = vst [vmem:[%s481 + $0x6c] sm:$0xf] %v536
                  %v538 = vld [vmem:[%s480 + $0xe0] sm:$0xf]
                  %539 = vst [vmem:[%s481 + $0x70] sm:$0xf] %v538
                  %v540 = vld [vmem:[%s480 + $0xe8] sm:$0xf]
                  %541 = vst [vmem:[%s481 + $0x74] sm:$0xf] %v540
                  %v542 = vld [vmem:[%s480 + $0xf0] sm:$0xf]
                  %543 = vst [vmem:[%s481 + $0x78] sm:$0xf] %v542
                  %v544 = vld [vmem:[%s480 + $0xf8] sm:$0xf]
                  %545 = vst [vmem:[%s481 + $0x7c] sm:$0xf] %v544
                $region104: #{encoder_forward_padded.7} parent=91 // loop_footer
                  %s479 = sadd.s32 1, %s475
                $region105: #{encoder_forward_padded.7} parent=91 // loop_footer_branch
                  %474 = sbr.rel target = $region101
                $region106: #{encoder_forward_padded.7} parent=91 // loop_exit
                  _
              $region92: #{encoder_forward_padded.7} parent=76 // pred_fallthru
                _
            $region77: #{encoder_forward_padded.7} parent=72 // pred_fallthru
              _
            // Predicated region
            $region78: #{encoder_forward_padded.7} parent=72 // pred_check
              _
            $region79: #{encoder_forward_padded.7} parent=72 // pred_check_branch
              %389 = sbr.rel (0) target = $region81
            $region80: #{encoder_forward_padded.7} parent=72 // pred_region
              loop: start=0, step=1, limit=1
              $region82: #{encoder_forward_padded.7} parent=80 // loop_pre_header
                _
              $region83: #{encoder_forward_padded.7} parent=80 // loop_header
                %s392 = sphi 0, %s396
                %p393 = scmp.ge.s32.totalorder %s392, 1
                %s397 = sphi %s383, %s383
                %s398 = sphi %s378, %s378
              $region84: #{encoder_forward_padded.7} parent=80 // loop_header_branch
                %395 = sbr.rel (%p393) target = $region88
              $region85: #{encoder_forward_padded.7} parent=80 // loop_body
                %v399 = vld [vmem:[%s397] sm:$0xf]
                %400 = vst [vmem:[%s398] sm:$0xf] %v399
                %v401 = vld [vmem:[%s397 + $0x8] sm:$0xf]
                %402 = vst [vmem:[%s398 + $0x4] sm:$0xf] %v401
                %v403 = vld [vmem:[%s397 + $0x10] sm:$0xf]
                %404 = vst [vmem:[%s398 + $0x8] sm:$0xf] %v403
                %v405 = vld [vmem:[%s397 + $0x18] sm:$0xf]
                %406 = vst [vmem:[%s398 + $0xc] sm:$0xf] %v405
                %v407 = vld [vmem:[%s397 + $0x20] sm:$0xf]
                %408 = vst [vmem:[%s398 + $0x10] sm:$0xf] %v407
                %v409 = vld [vmem:[%s397 + $0x28] sm:$0xf]
                %410 = vst [vmem:[%s398 + $0x14] sm:$0xf] %v409
                %v411 = vld [vmem:[%s397 + $0x30] sm:$0xf]
                %412 = vst [vmem:[%s398 + $0x18] sm:$0xf] %v411
                %v413 = vld [vmem:[%s397 + $0x38] sm:$0xf]
                %414 = vst [vmem:[%s398 + $0x1c] sm:$0xf] %v413
                %v415 = vld [vmem:[%s397 + $0x40] sm:$0xf]
                %416 = vst [vmem:[%s398 + $0x20] sm:$0xf] %v415
                %v417 = vld [vmem:[%s397 + $0x48] sm:$0xf]
                %418 = vst [vmem:[%s398 + $0x24] sm:$0xf] %v417
                %v419 = vld [vmem:[%s397 + $0x50] sm:$0xf]
                %420 = vst [vmem:[%s398 + $0x28] sm:$0xf] %v419
                %v421 = vld [vmem:[%s397 + $0x58] sm:$0xf]
                %422 = vst [vmem:[%s398 + $0x2c] sm:$0xf] %v421
                %v423 = vld [vmem:[%s397 + $0x60] sm:$0xf]
                %424 = vst [vmem:[%s398 + $0x30] sm:$0xf] %v423
                %v425 = vld [vmem:[%s397 + $0x68] sm:$0xf]
                %426 = vst [vmem:[%s398 + $0x34] sm:$0xf] %v425
                %v427 = vld [vmem:[%s397 + $0x70] sm:$0xf]
                %428 = vst [vmem:[%s398 + $0x38] sm:$0xf] %v427
                %v429 = vld [vmem:[%s397 + $0x78] sm:$0xf]
                %430 = vst [vmem:[%s398 + $0x3c] sm:$0xf] %v429
                %v431 = vld [vmem:[%s397 + $0x80] sm:$0xf]
                %432 = vst [vmem:[%s398 + $0x40] sm:$0xf] %v431
                %v433 = vld [vmem:[%s397 + $0x88] sm:$0xf]
                %434 = vst [vmem:[%s398 + $0x44] sm:$0xf] %v433
                %v435 = vld [vmem:[%s397 + $0x90] sm:$0xf]
                %436 = vst [vmem:[%s398 + $0x48] sm:$0xf] %v435
                %v437 = vld [vmem:[%s397 + $0x98] sm:$0xf]
                %438 = vst [vmem:[%s398 + $0x4c] sm:$0xf] %v437
                %v439 = vld [vmem:[%s397 + $0xa0] sm:$0xf]
                %440 = vst [vmem:[%s398 + $0x50] sm:$0xf] %v439
                %v441 = vld [vmem:[%s397 + $0xa8] sm:$0xf]
                %442 = vst [vmem:[%s398 + $0x54] sm:$0xf] %v441
                %v443 = vld [vmem:[%s397 + $0xb0] sm:$0xf]
                %444 = vst [vmem:[%s398 + $0x58] sm:$0xf] %v443
                %v445 = vld [vmem:[%s397 + $0xb8] sm:$0xf]
                %446 = vst [vmem:[%s398 + $0x5c] sm:$0xf] %v445
                %v447 = vld [vmem:[%s397 + $0xc0] sm:$0xf]
                %448 = vst [vmem:[%s398 + $0x60] sm:$0xf] %v447
                %v449 = vld [vmem:[%s397 + $0xc8] sm:$0xf]
                %450 = vst [vmem:[%s398 + $0x64] sm:$0xf] %v449
                %v451 = vld [vmem:[%s397 + $0xd0] sm:$0xf]
                %452 = vst [vmem:[%s398 + $0x68] sm:$0xf] %v451
                %v453 = vld [vmem:[%s397 + $0xd8] sm:$0xf]
                %454 = vst [vmem:[%s398 + $0x6c] sm:$0xf] %v453
                %v455 = vld [vmem:[%s397 + $0xe0] sm:$0xf]
                %456 = vst [vmem:[%s398 + $0x70] sm:$0xf] %v455
                %v457 = vld [vmem:[%s397 + $0xe8] sm:$0xf]
                %458 = vst [vmem:[%s398 + $0x74] sm:$0xf] %v457
                %v459 = vld [vmem:[%s397 + $0xf0] sm:$0xf]
                %460 = vst [vmem:[%s398 + $0x78] sm:$0xf] %v459
                %v461 = vld [vmem:[%s397 + $0xf8] sm:$0xf]
                %462 = vst [vmem:[%s398 + $0x7c] sm:$0xf] %v461
              $region86: #{encoder_forward_padded.7} parent=80 // loop_footer
                %s396 = sadd.s32 1, %s392
              $region87: #{encoder_forward_padded.7} parent=80 // loop_footer_branch
                %391 = sbr.rel target = $region83
              $region88: #{encoder_forward_padded.7} parent=80 // loop_exit
                _
            $region81: #{encoder_forward_padded.7} parent=72 // pred_fallthru
              _
          $region73: #{encoder_forward_padded.7} parent=68 // pred_fallthru
            _
          %546 = vnop
        $region69: #{encoder_forward_padded.7} parent=19 // pred_fallthru
          _
      $region20: #{encoder_forward_padded.7} parent=5 // pred_fallthru
        _
      %p547 = scmp.le.s32.totalorder 1, %s13
      %p548 = scmp.lt.s32.totalorder %s13, 5
      %p549 = pnand %p547, %p548
      %p550 = pneg %p549
      // Predicated region
      $region107: #{encoder_forward_padded.7} parent=5 // pred_check
        _
      $region108: #{encoder_forward_padded.7} parent=5 // pred_check_branch
        %552 = sbr.rel (%p549) target = $region110
      $region109: #{encoder_forward_padded.7} parent=5 // pred_region
        %s553 = ssub.s32 %s13, 1
        %s554 = sand.u32 %s40, 1
        %s555 = scalar_lea.sflag [#allocation4], %s554
        %s556 = sand.u32 %s40, 1
        %s557 = smul.addr %s556, 256
        %s558 = scalar_lea.vmem [#allocation3], %s557
        // Predicated region
        $region111: #{encoder_forward_padded.7} parent=109 // pred_check
          %p559 = pneg %p53
        $region112: #{encoder_forward_padded.7} parent=109 // pred_check_branch
          %561 = sbr.rel (%p559) target = $region114
        $region113: #{encoder_forward_padded.7} parent=109 // pred_region
          %562 = dma.done %s555, 4096
        $region114: #{encoder_forward_padded.7} parent=109 // pred_fallthru
          _
        %s563 = sand.u32 %s66, 1
        %s564 = sand.u32 %s66, 1
        %s565 = smul.addr %s564, 128
        %s566 = scalar_lea.vmem [#allocation5], %s565
        // Predicated region
        $region115: #{encoder_forward_padded.7} parent=109 // pred_check
          %p567 = pneg %p79
        $region116: #{encoder_forward_padded.7} parent=109 // pred_check_branch
          %569 = sbr.rel (%p567) target = $region118
        $region117: #{encoder_forward_padded.7} parent=109 // pred_region
          _
        $region118: #{encoder_forward_padded.7} parent=109 // pred_fallthru
          _
        %s570 = sand.u32 %s92, 1
        %s571 = sand.u32 %s92, 1
        %s572 = smul.addr %s571, 128
        %s573 = scalar_lea.vmem [#allocation6], %s572
        // Predicated region
        $region119: #{encoder_forward_padded.7} parent=109 // pred_check
          %p574 = pneg %p105
        $region120: #{encoder_forward_padded.7} parent=109 // pred_check_branch
          %576 = sbr.rel (%p574) target = $region122
        $region121: #{encoder_forward_padded.7} parent=109 // pred_region
          _
        $region122: #{encoder_forward_padded.7} parent=109 // pred_fallthru
          _
        %s577 = sand.u32 %s40, 1
        %s578 = scalar_lea.sflag [#allocation4], %s577
        %s579 = sand.u32 %s40, 1
        %s580 = smul.addr %s579, 256
        %s581 = scalar_lea.vmem [#allocation3], %s580
        %p582 = pneg %p53
        %p583 = pneg %p50
        %s584 = sand.u32 %s66, 1
        %s585 = sand.u32 %s66, 1
        %s586 = smul.addr %s585, 128
        %s587 = scalar_lea.vmem [#allocation5], %s586
        %p588 = pneg %p79
        %p589 = pneg %p76
        %s590 = sand.u32 %s92, 1
        %s591 = sand.u32 %s92, 1
        %s592 = smul.addr %s591, 128
        %s593 = scalar_lea.vmem [#allocation6], %s592
        %p594 = pneg %p105
        %p595 = pneg %p102
        %p596 = pneg %p126
        %p597 = pneg %p123
        %p598 = pneg %p152
        %p599 = pneg %p149
        %s600 = smul.u32 32, %s22
        %p601 = scmp.lt.s32.totalorder %s600, 63
        %s602 = scalar_select %p601, %s600, 63
        %s603 = smul.addr %s602, 4
        %s604 = scalar_lea.vmem %s4, %s603
        %s605 = smul.u32 32, %s22
        %s606 = smul.u32 2, %s23
        %s607 = smul.u32 32, %s23
        %s608 = smul.u32 32, %s22
        %s609 = smul.u32 32, %s22
        %p610 = scmp.lt.s32.totalorder %s609, 63
        %s611 = scalar_select %p610, %s609, 63
        %s612 = smul.addr %s611, 4
        %s613 = scalar_lea.vmem %s4, %s612
        %s614 = smul.u32 32, %s22
        %p616 = scmp.eq.s32.totalorder %s23, 0
        // Predicated region
        $region123: #{encoder_forward_padded.7} parent=109 // pred_check
          %p617 = pneg %p616
        $region124: #{encoder_forward_padded.7} parent=109 // pred_check_branch
          %619 = sbr.rel (%p617) target = $region126
        $region125: #{encoder_forward_padded.7} parent=109 // pred_region
          %620 = vst [vmem:[#allocation2] sm:$0xff] 0.0
          %621 = vst [vmem:[#allocation2 + $0x8] sm:$0xff] 0.0
          %622 = vst [vmem:[#allocation2 + $0x10] sm:$0xff] 0.0
          %623 = vst [vmem:[#allocation2 + $0x18] sm:$0xff] 0.0
          %624 = vst [vmem:[#allocation2 + $0x20] sm:$0xff] 0.0
          %625 = vst [vmem:[#allocation2 + $0x28] sm:$0xff] 0.0
          %626 = vst [vmem:[#allocation2 + $0x30] sm:$0xff] 0.0
          %627 = vst [vmem:[#allocation2 + $0x38] sm:$0xff] 0.0
          %628 = vst [vmem:[#allocation2 + $0x40] sm:$0xff] 0.0
          %629 = vst [vmem:[#allocation2 + $0x48] sm:$0xff] 0.0
          %630 = vst [vmem:[#allocation2 + $0x50] sm:$0xff] 0.0
          %631 = vst [vmem:[#allocation2 + $0x58] sm:$0xff] 0.0
          %632 = vst [vmem:[#allocation2 + $0x60] sm:$0xff] 0.0
          %633 = vst [vmem:[#allocation2 + $0x68] sm:$0xff] 0.0
          %634 = vst [vmem:[#allocation2 + $0x70] sm:$0xff] 0.0
          %635 = vst [vmem:[#allocation2 + $0x78] sm:$0xff] 0.0
          %636 = vst [vmem:[#allocation2 + $0x80] sm:$0xff] 0.0
          %637 = vst [vmem:[#allocation2 + $0x88] sm:$0xff] 0.0
          %638 = vst [vmem:[#allocation2 + $0x90] sm:$0xff] 0.0
          %639 = vst [vmem:[#allocation2 + $0x98] sm:$0xff] 0.0
          %640 = vst [vmem:[#allocation2 + $0xa0] sm:$0xff] 0.0
          %641 = vst [vmem:[#allocation2 + $0xa8] sm:$0xff] 0.0
          %642 = vst [vmem:[#allocation2 + $0xb0] sm:$0xff] 0.0
          %643 = vst [vmem:[#allocation2 + $0xb8] sm:$0xff] 0.0
          %644 = vst [vmem:[#allocation2 + $0xc0] sm:$0xff] 0.0
          %645 = vst [vmem:[#allocation2 + $0xc8] sm:$0xff] 0.0
          %646 = vst [vmem:[#allocation2 + $0xd0] sm:$0xff] 0.0
          %647 = vst [vmem:[#allocation2 + $0xd8] sm:$0xff] 0.0
          %648 = vst [vmem:[#allocation2 + $0xe0] sm:$0xff] 0.0
          %649 = vst [vmem:[#allocation2 + $0xe8] sm:$0xff] 0.0
          %650 = vst [vmem:[#allocation2 + $0xf0] sm:$0xff] 0.0
          %651 = vst [vmem:[#allocation2 + $0xf8] sm:$0xff] 0.0
        $region126: #{encoder_forward_padded.7} parent=109 // pred_fallthru
          _
        %v652 = vld [vmem:[#allocation2] sm:$0xff]
        %v653 = vld [vmem:[#allocation2 + $0x8] sm:$0xff]
        %v654 = vld [vmem:[#allocation2 + $0x10] sm:$0xff]
        %v655 = vld [vmem:[#allocation2 + $0x18] sm:$0xff]
        %v656 = vld [vmem:[#allocation2 + $0x20] sm:$0xff]
        %v657 = vld [vmem:[#allocation2 + $0x28] sm:$0xff]
        %v658 = vld [vmem:[#allocation2 + $0x30] sm:$0xff]
        %v659 = vld [vmem:[#allocation2 + $0x38] sm:$0xff]
        %v660 = vld [vmem:[#allocation2 + $0x40] sm:$0xff]
        %v661 = vld [vmem:[#allocation2 + $0x48] sm:$0xff]
        %v662 = vld [vmem:[#allocation2 + $0x50] sm:$0xff]
        %v663 = vld [vmem:[#allocation2 + $0x58] sm:$0xff]
        %v664 = vld [vmem:[#allocation2 + $0x60] sm:$0xff]
        %v665 = vld [vmem:[#allocation2 + $0x68] sm:$0xff]
        %v666 = vld [vmem:[#allocation2 + $0x70] sm:$0xff]
        %v667 = vld [vmem:[#allocation2 + $0x78] sm:$0xff]
        %v668 = vld [vmem:[#allocation2 + $0x80] sm:$0xff]
        %v669 = vld [vmem:[#allocation2 + $0x88] sm:$0xff]
        %v670 = vld [vmem:[#allocation2 + $0x90] sm:$0xff]
        %v671 = vld [vmem:[#allocation2 + $0x98] sm:$0xff]
        %v672 = vld [vmem:[#allocation2 + $0xa0] sm:$0xff]
        %v673 = vld [vmem:[#allocation2 + $0xa8] sm:$0xff]
        %v674 = vld [vmem:[#allocation2 + $0xb0] sm:$0xff]
        %v675 = vld [vmem:[#allocation2 + $0xb8] sm:$0xff]
        %v676 = vld [vmem:[#allocation2 + $0xc0] sm:$0xff]
        %v677 = vld [vmem:[#allocation2 + $0xc8] sm:$0xff]
        %v678 = vld [vmem:[#allocation2 + $0xd0] sm:$0xff]
        %v679 = vld [vmem:[#allocation2 + $0xd8] sm:$0xff]
        %v680 = vld [vmem:[#allocation2 + $0xe0] sm:$0xff]
        %v681 = vld [vmem:[#allocation2 + $0xe8] sm:$0xff]
        %v682 = vld [vmem:[#allocation2 + $0xf0] sm:$0xff]
        %v683 = vld [vmem:[#allocation2 + $0xf8] sm:$0xff]
        %v684 = vld [vmem:[%s558] sm:$0xff]
        %v685 = vld [vmem:[%s558 + $0x8] sm:$0xff]
        %v686 = vld [vmem:[%s558 + $0x10] sm:$0xff]
        %v687 = vld [vmem:[%s558 + $0x18] sm:$0xff]
        %v688 = vld [vmem:[%s558 + $0x20] sm:$0xff]
        %v689 = vld [vmem:[%s558 + $0x28] sm:$0xff]
        %v690 = vld [vmem:[%s558 + $0x30] sm:$0xff]
        %v691 = vld [vmem:[%s558 + $0x38] sm:$0xff]
        %v692 = vld [vmem:[%s558 + $0x40] sm:$0xff]
        %v693 = vld [vmem:[%s558 + $0x48] sm:$0xff]
        %v694 = vld [vmem:[%s558 + $0x50] sm:$0xff]
        %v695 = vld [vmem:[%s558 + $0x58] sm:$0xff]
        %v696 = vld [vmem:[%s558 + $0x60] sm:$0xff]
        %v697 = vld [vmem:[%s558 + $0x68] sm:$0xff]
        %v698 = vld [vmem:[%s558 + $0x70] sm:$0xff]
        %v699 = vld [vmem:[%s558 + $0x78] sm:$0xff]
        %v700 = vld [vmem:[%s558 + $0x80] sm:$0xff]
        %v701 = vld [vmem:[%s558 + $0x88] sm:$0xff]
        %v702 = vld [vmem:[%s558 + $0x90] sm:$0xff]
        %v703 = vld [vmem:[%s558 + $0x98] sm:$0xff]
        %v704 = vld [vmem:[%s558 + $0xa0] sm:$0xff]
        %v705 = vld [vmem:[%s558 + $0xa8] sm:$0xff]
        %v706 = vld [vmem:[%s558 + $0xb0] sm:$0xff]
        %v707 = vld [vmem:[%s558 + $0xb8] sm:$0xff]
        %v708 = vld [vmem:[%s558 + $0xc0] sm:$0xff]
        %v709 = vld [vmem:[%s558 + $0xc8] sm:$0xff]
        %v710 = vld [vmem:[%s558 + $0xd0] sm:$0xff]
        %v711 = vld [vmem:[%s558 + $0xd8] sm:$0xff]
        %v712 = vld [vmem:[%s558 + $0xe0] sm:$0xff]
        %v713 = vld [vmem:[%s558 + $0xe8] sm:$0xff]
        %v714 = vld [vmem:[%s558 + $0xf0] sm:$0xff]
        %v715 = vld [vmem:[%s558 + $0xf8] sm:$0xff]
        %v716 = vld [vmem:[%s566] sm:$0xf]
        %v717 = vld [vmem:[%s566 + $0x4] sm:$0xf]
        %v718 = vld [vmem:[%s566 + $0x8] sm:$0xf]
        %v719 = vld [vmem:[%s566 + $0xc] sm:$0xf]
        %v720 = vld [vmem:[%s566 + $0x10] sm:$0xf]
        %v721 = vld [vmem:[%s566 + $0x14] sm:$0xf]
        %v722 = vld [vmem:[%s566 + $0x18] sm:$0xf]
        %v723 = vld [vmem:[%s566 + $0x1c] sm:$0xf]
        %v724 = vld [vmem:[%s566 + $0x20] sm:$0xf]
        %v725 = vld [vmem:[%s566 + $0x24] sm:$0xf]
        %v726 = vld [vmem:[%s566 + $0x28] sm:$0xf]
        %v727 = vld [vmem:[%s566 + $0x2c] sm:$0xf]
        %v728 = vld [vmem:[%s566 + $0x30] sm:$0xf]
        %v729 = vld [vmem:[%s566 + $0x34] sm:$0xf]
        %v730 = vld [vmem:[%s566 + $0x38] sm:$0xf]
        %v731 = vld [vmem:[%s566 + $0x3c] sm:$0xf]
        %v732 = vld [vmem:[%s566 + $0x40] sm:$0xf]
        %v733 = vld [vmem:[%s566 + $0x44] sm:$0xf]
        %v734 = vld [vmem:[%s566 + $0x48] sm:$0xf]
        %v735 = vld [vmem:[%s566 + $0x4c] sm:$0xf]
        %v736 = vld [vmem:[%s566 + $0x50] sm:$0xf]
        %v737 = vld [vmem:[%s566 + $0x54] sm:$0xf]
        %v738 = vld [vmem:[%s566 + $0x58] sm:$0xf]
        %v739 = vld [vmem:[%s566 + $0x5c] sm:$0xf]
        %v740 = vld [vmem:[%s566 + $0x60] sm:$0xf]
        %v741 = vld [vmem:[%s566 + $0x64] sm:$0xf]
        %v742 = vld [vmem:[%s566 + $0x68] sm:$0xf]
        %v743 = vld [vmem:[%s566 + $0x6c] sm:$0xf]
        %v744 = vld [vmem:[%s566 + $0x70] sm:$0xf]
        %v745 = vld [vmem:[%s566 + $0x74] sm:$0xf]
        %v746 = vld [vmem:[%s566 + $0x78] sm:$0xf]
        %v747 = vld [vmem:[%s566 + $0x7c] sm:$0xf]
        %v780 = vunpack.c.l.b16 %v684
        %v781 = vunpack.c.h.b16 %v684
        %v782 = vunpack.c.l.b16 %v685
        %v783 = vunpack.c.h.b16 %v685
        %v784 = vunpack.c.l.b16 %v686
        %v785 = vunpack.c.h.b16 %v686
        %v786 = vunpack.c.l.b16 %v687
        %v787 = vunpack.c.h.b16 %v687
        %v788 = vunpack.c.l.b16 %v688
        %v789 = vunpack.c.h.b16 %v688
        %v790 = vunpack.c.l.b16 %v689
        %v791 = vunpack.c.h.b16 %v689
        %v792 = vunpack.c.l.b16 %v690
        %v793 = vunpack.c.h.b16 %v690
        %v794 = vunpack.c.l.b16 %v691
        %v795 = vunpack.c.h.b16 %v691
        %v796 = vunpack.c.l.b16 %v692
        %v797 = vunpack.c.h.b16 %v692
        %v798 = vunpack.c.l.b16 %v693
        %v799 = vunpack.c.h.b16 %v693
        %v800 = vunpack.c.l.b16 %v694
        %v801 = vunpack.c.h.b16 %v694
        %v802 = vunpack.c.l.b16 %v695
        %v803 = vunpack.c.h.b16 %v695
        %v804 = vunpack.c.l.b16 %v696
        %v805 = vunpack.c.h.b16 %v696
        %v806 = vunpack.c.l.b16 %v697
        %v807 = vunpack.c.h.b16 %v697
        %v808 = vunpack.c.l.b16 %v698
        %v809 = vunpack.c.h.b16 %v698
        %v810 = vunpack.c.l.b16 %v699
        %v811 = vunpack.c.h.b16 %v699
        %v812 = vunpack.c.l.b16 %v700
        %v813 = vunpack.c.h.b16 %v700
        %v814 = vunpack.c.l.b16 %v701
        %v815 = vunpack.c.h.b16 %v701
        %v816 = vunpack.c.l.b16 %v702
        %v817 = vunpack.c.h.b16 %v702
        %v818 = vunpack.c.l.b16 %v703
        %v819 = vunpack.c.h.b16 %v703
        %v820 = vunpack.c.l.b16 %v704
        %v821 = vunpack.c.h.b16 %v704
        %v822 = vunpack.c.l.b16 %v705
        %v823 = vunpack.c.h.b16 %v705
        %v824 = vunpack.c.l.b16 %v706
        %v825 = vunpack.c.h.b16 %v706
        %v826 = vunpack.c.l.b16 %v707
        %v827 = vunpack.c.h.b16 %v707
        %v828 = vunpack.c.l.b16 %v708
        %v829 = vunpack.c.h.b16 %v708
        %v830 = vunpack.c.l.b16 %v709
        %v831 = vunpack.c.h.b16 %v709
        %v832 = vunpack.c.l.b16 %v710
        %v833 = vunpack.c.h.b16 %v710
        %v834 = vunpack.c.l.b16 %v711
        %v835 = vunpack.c.h.b16 %v711
        %v836 = vunpack.c.l.b16 %v712
        %v837 = vunpack.c.h.b16 %v712
        %v838 = vunpack.c.l.b16 %v713
        %v839 = vunpack.c.h.b16 %v713
        %v840 = vunpack.c.l.b16 %v714
        %v841 = vunpack.c.h.b16 %v714
        %v842 = vunpack.c.l.b16 %v715
        %v843 = vunpack.c.h.b16 %v715
        %v844 = vpack.c.b16 %v782, %v780
        %v845 = vpack.c.b16 %v783, %v781
        %v846 = vpack.c.b16 %v786, %v784
        %v847 = vpack.c.b16 %v787, %v785
        %v848 = vpack.c.b16 %v790, %v788
        %v849 = vpack.c.b16 %v791, %v789
        %v850 = vpack.c.b16 %v794, %v792
        %v851 = vpack.c.b16 %v795, %v793
        %v852 = vpack.c.b16 %v798, %v796
        %v853 = vpack.c.b16 %v799, %v797
        %v854 = vpack.c.b16 %v802, %v800
        %v855 = vpack.c.b16 %v803, %v801
        %v856 = vpack.c.b16 %v806, %v804
        %v857 = vpack.c.b16 %v807, %v805
        %v858 = vpack.c.b16 %v810, %v808
        %v859 = vpack.c.b16 %v811, %v809
        %v860 = vpack.c.b16 %v814, %v812
        %v861 = vpack.c.b16 %v815, %v813
        %v862 = vpack.c.b16 %v818, %v816
        %v863 = vpack.c.b16 %v819, %v817
        %v864 = vpack.c.b16 %v822, %v820
        %v865 = vpack.c.b16 %v823, %v821
        %v866 = vpack.c.b16 %v826, %v824
        %v867 = vpack.c.b16 %v827, %v825
        %v868 = vpack.c.b16 %v830, %v828
        %v869 = vpack.c.b16 %v831, %v829
        %v870 = vpack.c.b16 %v834, %v832
        %v871 = vpack.c.b16 %v835, %v833
        %v872 = vpack.c.b16 %v838, %v836
        %v873 = vpack.c.b16 %v839, %v837
        %v874 = vpack.c.b16 %v842, %v840
        %v875 = vpack.c.b16 %v843, %v841
        %v940 = vunpack.c.l.b16 %v716
        %v941 = vunpack.c.l.b16 %v717
        %v942 = vunpack.c.l.b16 %v718
        %v943 = vunpack.c.l.b16 %v719
        %v944 = vunpack.c.l.b16 %v720
        %v945 = vunpack.c.l.b16 %v721
        %v946 = vunpack.c.l.b16 %v722
        %v947 = vunpack.c.l.b16 %v723
        %v948 = vunpack.c.l.b16 %v724
        %v949 = vunpack.c.l.b16 %v725
        %v950 = vunpack.c.l.b16 %v726
        %v951 = vunpack.c.l.b16 %v727
        %v952 = vunpack.c.l.b16 %v728
        %v953 = vunpack.c.l.b16 %v729
        %v954 = vunpack.c.l.b16 %v730
        %v955 = vunpack.c.l.b16 %v731
        %v956 = vunpack.c.l.b16 %v732
        %v957 = vunpack.c.l.b16 %v733
        %v958 = vunpack.c.l.b16 %v734
        %v959 = vunpack.c.l.b16 %v735
        %v960 = vunpack.c.l.b16 %v736
        %v961 = vunpack.c.l.b16 %v737
        %v962 = vunpack.c.l.b16 %v738
        %v963 = vunpack.c.l.b16 %v739
        %v964 = vunpack.c.l.b16 %v740
        %v965 = vunpack.c.l.b16 %v741
        %v966 = vunpack.c.l.b16 %v742
        %v967 = vunpack.c.l.b16 %v743
        %v968 = vunpack.c.l.b16 %v744
        %v969 = vunpack.c.l.b16 %v745
        %v970 = vunpack.c.l.b16 %v746
        %v971 = vunpack.c.l.b16 %v747
        %v972 = vpack.c.b16 %v941, %v940
        %v973 = vpack.c.b16 %v943, %v942
        %v974 = vpack.c.b16 %v945, %v944
        %v975 = vpack.c.b16 %v947, %v946
        %v976 = vpack.c.b16 %v949, %v948
        %v977 = vpack.c.b16 %v951, %v950
        %v978 = vpack.c.b16 %v953, %v952
        %v979 = vpack.c.b16 %v955, %v954
        %v980 = vpack.c.b16 %v957, %v956
        %v981 = vpack.c.b16 %v959, %v958
        %v982 = vpack.c.b16 %v961, %v960
        %v983 = vpack.c.b16 %v963, %v962
        %v984 = vpack.c.b16 %v965, %v964
        %v985 = vpack.c.b16 %v967, %v966
        %v986 = vpack.c.b16 %v969, %v968
        %v987 = vpack.c.b16 %v971, %v970
        %1004 = vmatprep.subr.bf16.mxu0 0
        %1005 = vmatpush1.bf16.msra.mxu0 %v972
        %1006 = vmatprep.subr.bf16.mxu0 0
        %1007 = vmatpush1.bf16.msra.mxu0 %v973
        %1008 = vmatprep.subr.bf16.mxu0 0
        %1009 = vmatpush1.bf16.msra.mxu0 %v974
        %1010 = vmatprep.subr.bf16.mxu0 0
        %1011 = vmatpush1.bf16.msra.mxu0 %v975
        %1012 = vmatprep.subr.bf16.mxu0 0
        %1013 = vmatpush1.bf16.msra.mxu0 %v976
        %1014 = vmatprep.subr.bf16.mxu0 0
        %1015 = vmatpush1.bf16.msra.mxu0 %v977
        %1016 = vmatprep.subr.bf16.mxu0 0
        %1017 = vmatpush1.bf16.msra.mxu0 %v978
        %1018 = vmatprep.subr.bf16.mxu0 0
        %1019 = vmatpush1.bf16.msra.mxu0 %v979
        %1020 = vmatprep.subr.bf16.mxu0 0
        %1021 = vmatpush1.bf16.msra.mxu0 %v980
        %1022 = vmatprep.subr.bf16.mxu0 0
        %1023 = vmatpush1.bf16.msra.mxu0 %v981
        %1024 = vmatprep.subr.bf16.mxu0 0
        %1025 = vmatpush1.bf16.msra.mxu0 %v982
        %1026 = vmatprep.subr.bf16.mxu0 0
        %1027 = vmatpush1.bf16.msra.mxu0 %v983
        %1028 = vmatprep.subr.bf16.mxu0 0
        %1029 = vmatpush1.bf16.msra.mxu0 %v984
        %1030 = vmatprep.subr.bf16.mxu0 0
        %1031 = vmatpush1.bf16.msra.mxu0 %v985
        %1032 = vmatprep.subr.bf16.mxu0 0
        %1033 = vmatpush1.bf16.msra.mxu0 %v986
        %1034 = vmatprep.subr.bf16.mxu0 0
        %1035 = vmatpush1.bf16.msra.mxu0 %v987
        %1036 = vmatprep.mubr.bf16.mxu0 %v845
        %1037 = vmatmul.mubr.bf16.gmra.mrb[0].mxu0 %v844
        %v1038 = vpop.f32.mrb[0].mxu0
        %v1039 = vadd.f32 0.0, %v1038
        %v1040 = vpop.f32.mrb[0].mxu0
        %v1041 = vpop.f32.mrb[0].mxu0
        %v1042 = vadd.f32 0.0, %v1041
        %v1043 = vpop.f32.mrb[0].mxu0
        %1044 = vmatprep.mubr.bf16.mxu0 %v847
        %1045 = vmatmul.mubr.bf16.gmra.mrb[0].mxu0 %v846
        %v1046 = vpop.f32.mrb[0].mxu0
        %v1047 = vadd.f32 0.0, %v1046
        %v1048 = vpop.f32.mrb[0].mxu0
        %v1049 = vpop.f32.mrb[0].mxu0
        %v1050 = vadd.f32 0.0, %v1049
        %v1051 = vpop.f32.mrb[0].mxu0
        %1052 = vmatprep.mubr.bf16.mxu0 %v849
        %1053 = vmatmul.mubr.bf16.gmra.mrb[0].mxu0 %v848
        %v1054 = vpop.f32.mrb[0].mxu0
        %v1055 = vadd.f32 0.0, %v1054
        %v1056 = vpop.f32.mrb[0].mxu0
        %v1057 = vpop.f32.mrb[0].mxu0
        %v1058 = vadd.f32 0.0, %v1057
        %v1059 = vpop.f32.mrb[0].mxu0
        %1060 = vmatprep.mubr.bf16.mxu0 %v851
        %1061 = vmatmul.mubr.bf16.gmra.mrb[0].mxu0 %v850
        %v1062 = vpop.f32.mrb[0].mxu0
        %v1063 = vadd.f32 0.0, %v1062
        %v1064 = vpop.f32.mrb[0].mxu0
        %v1065 = vpop.f32.mrb[0].mxu0
        %v1066 = vadd.f32 0.0, %v1065
        %v1067 = vpop.f32.mrb[0].mxu0
        %1068 = vmatprep.mubr.bf16.mxu0 %v853
        %1069 = vmatmul.mubr.bf16.gmra.mrb[0].mxu0 %v852
        %v1070 = vpop.f32.mrb[0].mxu0
        %v1071 = vadd.f32 0.0, %v1070
        %v1072 = vpop.f32.mrb[0].mxu0
        %v1073 = vpop.f32.mrb[0].mxu0
        %v1074 = vadd.f32 0.0, %v1073
        %v1075 = vpop.f32.mrb[0].mxu0
        %1076 = vmatprep.mubr.bf16.mxu0 %v855
        %1077 = vmatmul.mubr.bf16.gmra.mrb[0].mxu0 %v854
        %v1078 = vpop.f32.mrb[0].mxu0
        %v1079 = vadd.f32 0.0, %v1078
        %v1080 = vpop.f32.mrb[0].mxu0
        %v1081 = vpop.f32.mrb[0].mxu0
        %v1082 = vadd.f32 0.0, %v1081
        %v1083 = vpop.f32.mrb[0].mxu0
        %1084 = vmatprep.mubr.bf16.mxu0 %v857
        %1085 = vmatmul.mubr.bf16.gmra.mrb[0].mxu0 %v856
        %v1086 = vpop.f32.mrb[0].mxu0
        %v1087 = vadd.f32 0.0, %v1086
        %v1088 = vpop.f32.mrb[0].mxu0
        %v1089 = vpop.f32.mrb[0].mxu0
        %v1090 = vadd.f32 0.0, %v1089
        %v1091 = vpop.f32.mrb[0].mxu0
        %1092 = vmatprep.mubr.bf16.mxu0 %v859
        %1093 = vmatmul.mubr.bf16.gmra.mrb[0].mxu0 %v858
        %v1094 = vpop.f32.mrb[0].mxu0
        %v1095 = vadd.f32 0.0, %v1094
        %v1096 = vpop.f32.mrb[0].mxu0
        %v1097 = vpop.f32.mrb[0].mxu0
        %v1098 = vadd.f32 0.0, %v1097
        %v1099 = vpop.f32.mrb[0].mxu0
        %1100 = vmatprep.mubr.bf16.mxu0 %v861
        %1101 = vmatmul.mubr.bf16.gmra.mrb[0].mxu0 %v860
        %v1102 = vpop.f32.mrb[0].mxu0
        %v1103 = vadd.f32 0.0, %v1102
        %v1104 = vpop.f32.mrb[0].mxu0
        %v1105 = vpop.f32.mrb[0].mxu0
        %v1106 = vadd.f32 0.0, %v1105
        %v1107 = vpop.f32.mrb[0].mxu0
        %1108 = vmatprep.mubr.bf16.mxu0 %v863
        %1109 = vmatmul.mubr.bf16.gmra.mrb[0].mxu0 %v862
        %v1110 = vpop.f32.mrb[0].mxu0
        %v1111 = vadd.f32 0.0, %v1110
        %v1112 = vpop.f32.mrb[0].mxu0
        %v1113 = vpop.f32.mrb[0].mxu0
        %v1114 = vadd.f32 0.0, %v1113
        %v1115 = vpop.f32.mrb[0].mxu0
        %1116 = vmatprep.mubr.bf16.mxu0 %v865
        %1117 = vmatmul.mubr.bf16.gmra.mrb[0].mxu0 %v864
        %v1118 = vpop.f32.mrb[0].mxu0
        %v1119 = vadd.f32 0.0, %v1118
        %v1120 = vpop.f32.mrb[0].mxu0
        %v1121 = vpop.f32.mrb[0].mxu0
        %v1122 = vadd.f32 0.0, %v1121
        %v1123 = vpop.f32.mrb[0].mxu0
        %1124 = vmatprep.mubr.bf16.mxu0 %v867
        %1125 = vmatmul.mubr.bf16.gmra.mrb[0].mxu0 %v866
        %v1126 = vpop.f32.mrb[0].mxu0
        %v1127 = vadd.f32 0.0, %v1126
        %v1128 = vpop.f32.mrb[0].mxu0
        %v1129 = vpop.f32.mrb[0].mxu0
        %v1130 = vadd.f32 0.0, %v1129
        %v1131 = vpop.f32.mrb[0].mxu0
        %1132 = vmatprep.mubr.bf16.mxu0 %v869
        %1133 = vmatmul.mubr.bf16.gmra.mrb[0].mxu0 %v868
        %v1134 = vpop.f32.mrb[0].mxu0
        %v1135 = vadd.f32 0.0, %v1134
        %v1136 = vpop.f32.mrb[0].mxu0
        %v1137 = vpop.f32.mrb[0].mxu0
        %v1138 = vadd.f32 0.0, %v1137
        %v1139 = vpop.f32.mrb[0].mxu0
        %1140 = vmatprep.mubr.bf16.mxu0 %v871
        %1141 = vmatmul.mubr.bf16.gmra.mrb[0].mxu0 %v870
        %v1142 = vpop.f32.mrb[0].mxu0
        %v1143 = vadd.f32 0.0, %v1142
        %v1144 = vpop.f32.mrb[0].mxu0
        %v1145 = vpop.f32.mrb[0].mxu0
        %v1146 = vadd.f32 0.0, %v1145
        %v1147 = vpop.f32.mrb[0].mxu0
        %1148 = vmatprep.mubr.bf16.mxu0 %v873
        %1149 = vmatmul.mubr.bf16.gmra.mrb[0].mxu0 %v872
        %v1150 = vpop.f32.mrb[0].mxu0
        %v1151 = vadd.f32 0.0, %v1150
        %v1152 = vpop.f32.mrb[0].mxu0
        %v1153 = vpop.f32.mrb[0].mxu0
        %v1154 = vadd.f32 0.0, %v1153
        %v1155 = vpop.f32.mrb[0].mxu0
        %1156 = vmatprep.mubr.bf16.mxu0 %v875
        %1157 = vmatmul.mubr.bf16.gmra.mrb[0].mxu0 %v874
        %v1158 = vpop.f32.mrb[0].mxu0
        %v1159 = vadd.f32 0.0, %v1158
        %v1160 = vpop.f32.mrb[0].mxu0
        %v1161 = vpop.f32.mrb[0].mxu0
        %v1162 = vadd.f32 0.0, %v1161
        %v1163 = vpop.f32.mrb[0].mxu0
        %1164 = vdwg.mxu0
        %v1165 = vadd.f32 %v652, %v1039
        %v1166 = vadd.f32 %v653, %v1042
        %v1167 = vadd.f32 %v654, %v1047
        %v1168 = vadd.f32 %v655, %v1050
        %v1169 = vadd.f32 %v656, %v1055
        %v1170 = vadd.f32 %v657, %v1058
        %v1171 = vadd.f32 %v658, %v1063
        %v1172 = vadd.f32 %v659, %v1066
        %v1173 = vadd.f32 %v660, %v1071
        %v1174 = vadd.f32 %v661, %v1074
        %v1175 = vadd.f32 %v662, %v1079
        %v1176 = vadd.f32 %v663, %v1082
        %v1177 = vadd.f32 %v664, %v1087
        %v1178 = vadd.f32 %v665, %v1090
        %v1179 = vadd.f32 %v666, %v1095
        %v1180 = vadd.f32 %v667, %v1098
        %v1181 = vadd.f32 %v668, %v1103
        %v1182 = vadd.f32 %v669, %v1106
        %v1183 = vadd.f32 %v670, %v1111
        %v1184 = vadd.f32 %v671, %v1114
        %v1185 = vadd.f32 %v672, %v1119
        %v1186 = vadd.f32 %v673, %v1122
        %v1187 = vadd.f32 %v674, %v1127
        %v1188 = vadd.f32 %v675, %v1130
        %v1189 = vadd.f32 %v676, %v1135
        %v1190 = vadd.f32 %v677, %v1138
        %v1191 = vadd.f32 %v678, %v1143
        %v1192 = vadd.f32 %v679, %v1146
        %v1193 = vadd.f32 %v680, %v1151
        %v1194 = vadd.f32 %v681, %v1154
        %v1195 = vadd.f32 %v682, %v1159
        %v1196 = vadd.f32 %v683, %v1162
        %1197 = vst [vmem:[#allocation2] sm:$0xff] %v1165
        %1198 = vst [vmem:[#allocation2 + $0x8] sm:$0xff] %v1166
        %1199 = vst [vmem:[#allocation2 + $0x10] sm:$0xff] %v1167
        %1200 = vst [vmem:[#allocation2 + $0x18] sm:$0xff] %v1168
        %1201 = vst [vmem:[#allocation2 + $0x20] sm:$0xff] %v1169
        %1202 = vst [vmem:[#allocation2 + $0x28] sm:$0xff] %v1170
        %1203 = vst [vmem:[#allocation2 + $0x30] sm:$0xff] %v1171
        %1204 = vst [vmem:[#allocation2 + $0x38] sm:$0xff] %v1172
        %1205 = vst [vmem:[#allocation2 + $0x40] sm:$0xff] %v1173
        %1206 = vst [vmem:[#allocation2 + $0x48] sm:$0xff] %v1174
        %1207 = vst [vmem:[#allocation2 + $0x50] sm:$0xff] %v1175
        %1208 = vst [vmem:[#allocation2 + $0x58] sm:$0xff] %v1176
        %1209 = vst [vmem:[#allocation2 + $0x60] sm:$0xff] %v1177
        %1210 = vst [vmem:[#allocation2 + $0x68] sm:$0xff] %v1178
        %1211 = vst [vmem:[#allocation2 + $0x70] sm:$0xff] %v1179
        %1212 = vst [vmem:[#allocation2 + $0x78] sm:$0xff] %v1180
        %1213 = vst [vmem:[#allocation2 + $0x80] sm:$0xff] %v1181
        %1214 = vst [vmem:[#allocation2 + $0x88] sm:$0xff] %v1182
        %1215 = vst [vmem:[#allocation2 + $0x90] sm:$0xff] %v1183
        %1216 = vst [vmem:[#allocation2 + $0x98] sm:$0xff] %v1184
        %1217 = vst [vmem:[#allocation2 + $0xa0] sm:$0xff] %v1185
        %1218 = vst [vmem:[#allocation2 + $0xa8] sm:$0xff] %v1186
        %1219 = vst [vmem:[#allocation2 + $0xb0] sm:$0xff] %v1187
        %1220 = vst [vmem:[#allocation2 + $0xb8] sm:$0xff] %v1188
        %1221 = vst [vmem:[#allocation2 + $0xc0] sm:$0xff] %v1189
        %1222 = vst [vmem:[#allocation2 + $0xc8] sm:$0xff] %v1190
        %1223 = vst [vmem:[#allocation2 + $0xd0] sm:$0xff] %v1191
        %1224 = vst [vmem:[#allocation2 + $0xd8] sm:$0xff] %v1192
        %1225 = vst [vmem:[#allocation2 + $0xe0] sm:$0xff] %v1193
        %1226 = vst [vmem:[#allocation2 + $0xe8] sm:$0xff] %v1194
        %1227 = vst [vmem:[#allocation2 + $0xf0] sm:$0xff] %v1195
        %1228 = vst [vmem:[#allocation2 + $0xf8] sm:$0xff] %v1196
        %p1229 = scmp.eq.s32.totalorder %s23, 1
        // Predicated region
        $region127: #{encoder_forward_padded.7} parent=109 // pred_check
          %p1230 = pneg %p1229
        $region128: #{encoder_forward_padded.7} parent=109 // pred_check_branch
          %1232 = sbr.rel (%p1230) target = $region130
        $region129: #{encoder_forward_padded.7} parent=109 // pred_region
          %v1233 = vld [vmem:[#allocation2] sm:$0xff]
          %v1234 = vld [vmem:[#allocation2 + $0x8] sm:$0xff]
          %v1235 = vld [vmem:[#allocation2 + $0x10] sm:$0xff]
          %v1236 = vld [vmem:[#allocation2 + $0x18] sm:$0xff]
          %v1237 = vld [vmem:[#allocation2 + $0x20] sm:$0xff]
          %v1238 = vld [vmem:[#allocation2 + $0x28] sm:$0xff]
          %v1239 = vld [vmem:[#allocation2 + $0x30] sm:$0xff]
          %v1240 = vld [vmem:[#allocation2 + $0x38] sm:$0xff]
          %v1241 = vld [vmem:[#allocation2 + $0x40] sm:$0xff]
          %v1242 = vld [vmem:[#allocation2 + $0x48] sm:$0xff]
          %v1243 = vld [vmem:[#allocation2 + $0x50] sm:$0xff]
          %v1244 = vld [vmem:[#allocation2 + $0x58] sm:$0xff]
          %v1245 = vld [vmem:[#allocation2 + $0x60] sm:$0xff]
          %v1246 = vld [vmem:[#allocation2 + $0x68] sm:$0xff]
          %v1247 = vld [vmem:[#allocation2 + $0x70] sm:$0xff]
          %v1248 = vld [vmem:[#allocation2 + $0x78] sm:$0xff]
          %v1249 = vld [vmem:[#allocation2 + $0x80] sm:$0xff]
          %v1250 = vld [vmem:[#allocation2 + $0x88] sm:$0xff]
          %v1251 = vld [vmem:[#allocation2 + $0x90] sm:$0xff]
          %v1252 = vld [vmem:[#allocation2 + $0x98] sm:$0xff]
          %v1253 = vld [vmem:[#allocation2 + $0xa0] sm:$0xff]
          %v1254 = vld [vmem:[#allocation2 + $0xa8] sm:$0xff]
          %v1255 = vld [vmem:[#allocation2 + $0xb0] sm:$0xff]
          %v1256 = vld [vmem:[#allocation2 + $0xb8] sm:$0xff]
          %v1257 = vld [vmem:[#allocation2 + $0xc0] sm:$0xff]
          %v1258 = vld [vmem:[#allocation2 + $0xc8] sm:$0xff]
          %v1259 = vld [vmem:[#allocation2 + $0xd0] sm:$0xff]
          %v1260 = vld [vmem:[#allocation2 + $0xd8] sm:$0xff]
          %v1261 = vld [vmem:[#allocation2 + $0xe0] sm:$0xff]
          %v1262 = vld [vmem:[#allocation2 + $0xe8] sm:$0xff]
          %v1263 = vld [vmem:[#allocation2 + $0xf0] sm:$0xff]
          %v1264 = vld [vmem:[#allocation2 + $0xf8] sm:$0xff]
          %v1265 = vld [vmem:[%s573] sm:$0xf]
          %v1266 = vld [vmem:[%s573 + $0x4] sm:$0xf]
          %v1267 = vld [vmem:[%s573 + $0x8] sm:$0xf]
          %v1268 = vld [vmem:[%s573 + $0xc] sm:$0xf]
          %v1269 = vld [vmem:[%s573 + $0x10] sm:$0xf]
          %v1270 = vld [vmem:[%s573 + $0x14] sm:$0xf]
          %v1271 = vld [vmem:[%s573 + $0x18] sm:$0xf]
          %v1272 = vld [vmem:[%s573 + $0x1c] sm:$0xf]
          %v1273 = vld [vmem:[%s573 + $0x20] sm:$0xf]
          %v1274 = vld [vmem:[%s573 + $0x24] sm:$0xf]
          %v1275 = vld [vmem:[%s573 + $0x28] sm:$0xf]
          %v1276 = vld [vmem:[%s573 + $0x2c] sm:$0xf]
          %v1277 = vld [vmem:[%s573 + $0x30] sm:$0xf]
          %v1278 = vld [vmem:[%s573 + $0x34] sm:$0xf]
          %v1279 = vld [vmem:[%s573 + $0x38] sm:$0xf]
          %v1280 = vld [vmem:[%s573 + $0x3c] sm:$0xf]
          %v1281 = vld [vmem:[%s573 + $0x40] sm:$0xf]
          %v1282 = vld [vmem:[%s573 + $0x44] sm:$0xf]
          %v1283 = vld [vmem:[%s573 + $0x48] sm:$0xf]
          %v1284 = vld [vmem:[%s573 + $0x4c] sm:$0xf]
          %v1285 = vld [vmem:[%s573 + $0x50] sm:$0xf]
          %v1286 = vld [vmem:[%s573 + $0x54] sm:$0xf]
          %v1287 = vld [vmem:[%s573 + $0x58] sm:$0xf]
          %v1288 = vld [vmem:[%s573 + $0x5c] sm:$0xf]
          %v1289 = vld [vmem:[%s573 + $0x60] sm:$0xf]
          %v1290 = vld [vmem:[%s573 + $0x64] sm:$0xf]
          %v1291 = vld [vmem:[%s573 + $0x68] sm:$0xf]
          %v1292 = vld [vmem:[%s573 + $0x6c] sm:$0xf]
          %v1293 = vld [vmem:[%s573 + $0x70] sm:$0xf]
          %v1294 = vld [vmem:[%s573 + $0x74] sm:$0xf]
          %v1295 = vld [vmem:[%s573 + $0x78] sm:$0xf]
          %v1296 = vld [vmem:[%s573 + $0x7c] sm:$0xf]
          %v1297 = vunpack.c.l.bf16 %v1265
          %v1298 = vunpack.c.l.bf16 %v1266
          %v1299 = vunpack.c.l.bf16 %v1267
          %v1300 = vunpack.c.l.bf16 %v1268
          %v1301 = vunpack.c.l.bf16 %v1269
          %v1302 = vunpack.c.l.bf16 %v1270
          %v1303 = vunpack.c.l.bf16 %v1271
          %v1304 = vunpack.c.l.bf16 %v1272
          %v1305 = vunpack.c.l.bf16 %v1273
          %v1306 = vunpack.c.l.bf16 %v1274
          %v1307 = vunpack.c.l.bf16 %v1275
          %v1308 = vunpack.c.l.bf16 %v1276
          %v1309 = vunpack.c.l.bf16 %v1277
          %v1310 = vunpack.c.l.bf16 %v1278
          %v1311 = vunpack.c.l.bf16 %v1279
          %v1312 = vunpack.c.l.bf16 %v1280
          %v1313 = vunpack.c.l.bf16 %v1281
          %v1314 = vunpack.c.l.bf16 %v1282
          %v1315 = vunpack.c.l.bf16 %v1283
          %v1316 = vunpack.c.l.bf16 %v1284
          %v1317 = vunpack.c.l.bf16 %v1285
          %v1318 = vunpack.c.l.bf16 %v1286
          %v1319 = vunpack.c.l.bf16 %v1287
          %v1320 = vunpack.c.l.bf16 %v1288
          %v1321 = vunpack.c.l.bf16 %v1289
          %v1322 = vunpack.c.l.bf16 %v1290
          %v1323 = vunpack.c.l.bf16 %v1291
          %v1324 = vunpack.c.l.bf16 %v1292
          %v1325 = vunpack.c.l.bf16 %v1293
          %v1326 = vunpack.c.l.bf16 %v1294
          %v1327 = vunpack.c.l.bf16 %v1295
          %v1328 = vunpack.c.l.bf16 %v1296
          %v1329 = vadd.f32 %v1233, %v1297
          %v1330 = vadd.f32 %v1234, %v1298
          %v1331 = vadd.f32 %v1235, %v1299
          %v1332 = vadd.f32 %v1236, %v1300
          %v1333 = vadd.f32 %v1237, %v1301
          %v1334 = vadd.f32 %v1238, %v1302
          %v1335 = vadd.f32 %v1239, %v1303
          %v1336 = vadd.f32 %v1240, %v1304
          %v1337 = vadd.f32 %v1241, %v1305
          %v1338 = vadd.f32 %v1242, %v1306
          %v1339 = vadd.f32 %v1243, %v1307
          %v1340 = vadd.f32 %v1244, %v1308
          %v1341 = vadd.f32 %v1245, %v1309
          %v1342 = vadd.f32 %v1246, %v1310
          %v1343 = vadd.f32 %v1247, %v1311
          %v1344 = vadd.f32 %v1248, %v1312
          %v1345 = vadd.f32 %v1249, %v1313
          %v1346 = vadd.f32 %v1250, %v1314
          %v1347 = vadd.f32 %v1251, %v1315
          %v1348 = vadd.f32 %v1252, %v1316
          %v1349 = vadd.f32 %v1253, %v1317
          %v1350 = vadd.f32 %v1254, %v1318
          %v1351 = vadd.f32 %v1255, %v1319
          %v1352 = vadd.f32 %v1256, %v1320
          %v1353 = vadd.f32 %v1257, %v1321
          %v1354 = vadd.f32 %v1258, %v1322
          %v1355 = vadd.f32 %v1259, %v1323
          %v1356 = vadd.f32 %v1260, %v1324
          %v1357 = vadd.f32 %v1261, %v1325
          %v1358 = vadd.f32 %v1262, %v1326
          %v1359 = vadd.f32 %v1263, %v1327
          %v1360 = vadd.f32 %v1264, %v1328
          %v1361 = vld [vmem:[%s3] sm:$0x1]
          %v1363 = vlaneseq
          %v1364 = vshrl.u32 %v1363, 7
          %v1365 = vsub.s32 0, %v1364
          %v1366 = vrot.slane %v1361, %v1365
          %v1368 = vadd.f32 %v1329, %v1366
          %v1369 = vadd.f32 %v1330, %v1366
          %v1370 = vadd.f32 %v1331, %v1366
          %v1371 = vadd.f32 %v1332, %v1366
          %v1372 = vadd.f32 %v1333, %v1366
          %v1373 = vadd.f32 %v1334, %v1366
          %v1374 = vadd.f32 %v1335, %v1366
          %v1375 = vadd.f32 %v1336, %v1366
          %v1376 = vadd.f32 %v1337, %v1366
          %v1377 = vadd.f32 %v1338, %v1366
          %v1378 = vadd.f32 %v1339, %v1366
          %v1379 = vadd.f32 %v1340, %v1366
          %v1380 = vadd.f32 %v1341, %v1366
          %v1381 = vadd.f32 %v1342, %v1366
          %v1382 = vadd.f32 %v1343, %v1366
          %v1383 = vadd.f32 %v1344, %v1366
          %v1384 = vadd.f32 %v1345, %v1366
          %v1385 = vadd.f32 %v1346, %v1366
          %v1386 = vadd.f32 %v1347, %v1366
          %v1387 = vadd.f32 %v1348, %v1366
          %v1388 = vadd.f32 %v1349, %v1366
          %v1389 = vadd.f32 %v1350, %v1366
          %v1390 = vadd.f32 %v1351, %v1366
          %v1391 = vadd.f32 %v1352, %v1366
          %v1392 = vadd.f32 %v1353, %v1366
          %v1393 = vadd.f32 %v1354, %v1366
          %v1394 = vadd.f32 %v1355, %v1366
          %v1395 = vadd.f32 %v1356, %v1366
          %v1396 = vadd.f32 %v1357, %v1366
          %v1397 = vadd.f32 %v1358, %v1366
          %v1398 = vadd.f32 %v1359, %v1366
          %v1399 = vadd.f32 %v1360, %v1366
          %v1400 = vmax.f32 %v1368, 0.0
          %v1401 = vmax.f32 %v1369, 0.0
          %v1402 = vmax.f32 %v1370, 0.0
          %v1403 = vmax.f32 %v1371, 0.0
          %v1404 = vmax.f32 %v1372, 0.0
          %v1405 = vmax.f32 %v1373, 0.0
          %v1406 = vmax.f32 %v1374, 0.0
          %v1407 = vmax.f32 %v1375, 0.0
          %v1408 = vmax.f32 %v1376, 0.0
          %v1409 = vmax.f32 %v1377, 0.0
          %v1410 = vmax.f32 %v1378, 0.0
          %v1411 = vmax.f32 %v1379, 0.0
          %v1412 = vmax.f32 %v1380, 0.0
          %v1413 = vmax.f32 %v1381, 0.0
          %v1414 = vmax.f32 %v1382, 0.0
          %v1415 = vmax.f32 %v1383, 0.0
          %v1416 = vmax.f32 %v1384, 0.0
          %v1417 = vmax.f32 %v1385, 0.0
          %v1418 = vmax.f32 %v1386, 0.0
          %v1419 = vmax.f32 %v1387, 0.0
          %v1420 = vmax.f32 %v1388, 0.0
          %v1421 = vmax.f32 %v1389, 0.0
          %v1422 = vmax.f32 %v1390, 0.0
          %v1423 = vmax.f32 %v1391, 0.0
          %v1424 = vmax.f32 %v1392, 0.0
          %v1425 = vmax.f32 %v1393, 0.0
          %v1426 = vmax.f32 %v1394, 0.0
          %v1427 = vmax.f32 %v1395, 0.0
          %v1428 = vmax.f32 %v1396, 0.0
          %v1429 = vmax.f32 %v1397, 0.0
          %v1430 = vmax.f32 %v1398, 0.0
          %v1431 = vmax.f32 %v1399, 0.0
          %v1432 = vpack.c.bf16 %v1401, %v1400
          %v1433 = vpack.c.bf16 %v1403, %v1402
          %v1434 = vpack.c.bf16 %v1405, %v1404
          %v1435 = vpack.c.bf16 %v1407, %v1406
          %v1436 = vpack.c.bf16 %v1409, %v1408
          %v1437 = vpack.c.bf16 %v1411, %v1410
          %v1438 = vpack.c.bf16 %v1413, %v1412
          %v1439 = vpack.c.bf16 %v1415, %v1414
          %v1440 = vpack.c.bf16 %v1417, %v1416
          %v1441 = vpack.c.bf16 %v1419, %v1418
          %v1442 = vpack.c.bf16 %v1421, %v1420
          %v1443 = vpack.c.bf16 %v1423, %v1422
          %v1444 = vpack.c.bf16 %v1425, %v1424
          %v1445 = vpack.c.bf16 %v1427, %v1426
          %v1446 = vpack.c.bf16 %v1429, %v1428
          %v1447 = vpack.c.bf16 %v1431, %v1430
          %v1464 = vunpack.c.l.b16 %v1432
          %v1465 = vunpack.c.h.b16 %v1432
          %v1466 = vunpack.c.l.b16 %v1433
          %v1467 = vunpack.c.h.b16 %v1433
          %v1468 = vunpack.c.l.b16 %v1434
          %v1469 = vunpack.c.h.b16 %v1434
          %v1470 = vunpack.c.l.b16 %v1435
          %v1471 = vunpack.c.h.b16 %v1435
          %v1472 = vunpack.c.l.b16 %v1436
          %v1473 = vunpack.c.h.b16 %v1436
          %v1474 = vunpack.c.l.b16 %v1437
          %v1475 = vunpack.c.h.b16 %v1437
          %v1476 = vunpack.c.l.b16 %v1438
          %v1477 = vunpack.c.h.b16 %v1438
          %v1478 = vunpack.c.l.b16 %v1439
          %v1479 = vunpack.c.h.b16 %v1439
          %v1480 = vunpack.c.l.b16 %v1440
          %v1481 = vunpack.c.h.b16 %v1440
          %v1482 = vunpack.c.l.b16 %v1441
          %v1483 = vunpack.c.h.b16 %v1441
          %v1484 = vunpack.c.l.b16 %v1442
          %v1485 = vunpack.c.h.b16 %v1442
          %v1486 = vunpack.c.l.b16 %v1443
          %v1487 = vunpack.c.h.b16 %v1443
          %v1488 = vunpack.c.l.b16 %v1444
          %v1489 = vunpack.c.h.b16 %v1444
          %v1490 = vunpack.c.l.b16 %v1445
          %v1491 = vunpack.c.h.b16 %v1445
          %v1492 = vunpack.c.l.b16 %v1446
          %v1493 = vunpack.c.h.b16 %v1446
          %v1494 = vunpack.c.l.b16 %v1447
          %v1495 = vunpack.c.h.b16 %v1447
          %v1496 = vpack.c.b16 %v1464, %v1464
          %v1497 = vpack.c.b16 %v1465, %v1465
          %v1498 = vpack.c.b16 %v1466, %v1466
          %v1499 = vpack.c.b16 %v1467, %v1467
          %v1500 = vpack.c.b16 %v1468, %v1468
          %v1501 = vpack.c.b16 %v1469, %v1469
          %v1502 = vpack.c.b16 %v1470, %v1470
          %v1503 = vpack.c.b16 %v1471, %v1471
          %v1504 = vpack.c.b16 %v1472, %v1472
          %v1505 = vpack.c.b16 %v1473, %v1473
          %v1506 = vpack.c.b16 %v1474, %v1474
          %v1507 = vpack.c.b16 %v1475, %v1475
          %v1508 = vpack.c.b16 %v1476, %v1476
          %v1509 = vpack.c.b16 %v1477, %v1477
          %v1510 = vpack.c.b16 %v1478, %v1478
          %v1511 = vpack.c.b16 %v1479, %v1479
          %v1512 = vpack.c.b16 %v1480, %v1480
          %v1513 = vpack.c.b16 %v1481, %v1481
          %v1514 = vpack.c.b16 %v1482, %v1482
          %v1515 = vpack.c.b16 %v1483, %v1483
          %v1516 = vpack.c.b16 %v1484, %v1484
          %v1517 = vpack.c.b16 %v1485, %v1485
          %v1518 = vpack.c.b16 %v1486, %v1486
          %v1519 = vpack.c.b16 %v1487, %v1487
          %v1520 = vpack.c.b16 %v1488, %v1488
          %v1521 = vpack.c.b16 %v1489, %v1489
          %v1522 = vpack.c.b16 %v1490, %v1490
          %v1523 = vpack.c.b16 %v1491, %v1491
          %v1524 = vpack.c.b16 %v1492, %v1492
          %v1525 = vpack.c.b16 %v1493, %v1493
          %v1526 = vpack.c.b16 %v1494, %v1494
          %v1527 = vpack.c.b16 %v1495, %v1495
          %1560 = vst [vmem:[%s613] sm:$0xf] %v1496
          %1561 = vst [vmem:[%s613 + $0x4] sm:$0xf] %v1497
          %1562 = vst [vmem:[%s613 + $0x8] sm:$0xf] %v1498
          %1563 = vst [vmem:[%s613 + $0xc] sm:$0xf] %v1499
          %1564 = vst [vmem:[%s613 + $0x10] sm:$0xf] %v1500
          %1565 = vst [vmem:[%s613 + $0x14] sm:$0xf] %v1501
          %1566 = vst [vmem:[%s613 + $0x18] sm:$0xf] %v1502
          %1567 = vst [vmem:[%s613 + $0x1c] sm:$0xf] %v1503
          %1568 = vst [vmem:[%s613 + $0x20] sm:$0xf] %v1504
          %1569 = vst [vmem:[%s613 + $0x24] sm:$0xf] %v1505
          %1570 = vst [vmem:[%s613 + $0x28] sm:$0xf] %v1506
          %1571 = vst [vmem:[%s613 + $0x2c] sm:$0xf] %v1507
          %1572 = vst [vmem:[%s613 + $0x30] sm:$0xf] %v1508
          %1573 = vst [vmem:[%s613 + $0x34] sm:$0xf] %v1509
          %1574 = vst [vmem:[%s613 + $0x38] sm:$0xf] %v1510
          %1575 = vst [vmem:[%s613 + $0x3c] sm:$0xf] %v1511
          %1576 = vst [vmem:[%s613 + $0x40] sm:$0xf] %v1512
          %1577 = vst [vmem:[%s613 + $0x44] sm:$0xf] %v1513
          %1578 = vst [vmem:[%s613 + $0x48] sm:$0xf] %v1514
          %1579 = vst [vmem:[%s613 + $0x4c] sm:$0xf] %v1515
          %1580 = vst [vmem:[%s613 + $0x50] sm:$0xf] %v1516
          %1581 = vst [vmem:[%s613 + $0x54] sm:$0xf] %v1517
          %1582 = vst [vmem:[%s613 + $0x58] sm:$0xf] %v1518
          %1583 = vst [vmem:[%s613 + $0x5c] sm:$0xf] %v1519
          %1584 = vst [vmem:[%s613 + $0x60] sm:$0xf] %v1520
          %1585 = vst [vmem:[%s613 + $0x64] sm:$0xf] %v1521
          %1586 = vst [vmem:[%s613 + $0x68] sm:$0xf] %v1522
          %1587 = vst [vmem:[%s613 + $0x6c] sm:$0xf] %v1523
          %1588 = vst [vmem:[%s613 + $0x70] sm:$0xf] %v1524
          %1589 = vst [vmem:[%s613 + $0x74] sm:$0xf] %v1525
          %1590 = vst [vmem:[%s613 + $0x78] sm:$0xf] %v1526
          %1591 = vst [vmem:[%s613 + $0x7c] sm:$0xf] %v1527
        $region130: #{encoder_forward_padded.7} parent=109 // pred_fallthru
          _
        %s1592 = smul.u32 32, %s22
        %p1593 = scmp.lt.s32.totalorder %s1592, 63
        %s1594 = scalar_select %p1593, %s1592, 63
        %s1595 = smul.addr %s1594, 4
        %s1596 = scalar_lea.vmem %s4, %s1595
        // Predicated region
        $region131: #{encoder_forward_padded.7} parent=109 // pred_check
          %p1597 = pneg %p149
        $region132: #{encoder_forward_padded.7} parent=109 // pred_check_branch
          %1599 = sbr.rel (%p1597) target = $region134
        $region133: #{encoder_forward_padded.7} parent=109 // pred_region
          %s1600 = smul.u32 32, %s22
        $region134: #{encoder_forward_padded.7} parent=109 // pred_fallthru
          _
      $region110: #{encoder_forward_padded.7} parent=5 // pred_fallthru
        _
      %p1601 = scmp.le.s32.totalorder 2, %s13
      // Predicated region
      $region135: #{encoder_forward_padded.7} parent=5 // pred_check
        %p1602 = pneg %p1601
      $region136: #{encoder_forward_padded.7} parent=5 // pred_check_branch
        %1604 = sbr.rel (%p1602) target = $region138
      $region137: #{encoder_forward_padded.7} parent=5 // pred_region
        %s1605 = ssub.s32 %s13, 2
        // Predicated region
        $region139: #{encoder_forward_padded.7} parent=137 // pred_check
          %p1606 = pneg %p155
        $region140: #{encoder_forward_padded.7} parent=137 // pred_check_branch
          %1608 = sbr.rel (%p1606) target = $region142
        $region141: #{encoder_forward_padded.7} parent=137 // pred_region
          %s1609 = smul.u32 32, %s24
          %p1610 = scmp.lt.s32.totalorder %s1609, 63
          %s1611 = scalar_select %p1610, %s1609, 63
          %s1612 = smul.addr %s1611, 4
          %s1613 = scalar_lea.vmem %s4, %s1612
        $region142: #{encoder_forward_padded.7} parent=137 // pred_fallthru
          _
      $region138: #{encoder_forward_padded.7} parent=5 // pred_fallthru
        _
    $region6: #{encoder_forward_padded.7} parent=1 // loop_footer
      %s17 = sadd.s32 1, %s13
    $region7: #{encoder_forward_padded.7} parent=1 // loop_footer_branch
      %12 = sbr.rel target = $region3
    $region8: #{encoder_forward_padded.7} parent=1 // loop_exit
      _
    %1614 = vsyncpa [#allocation4], 1
    %s1615 = scalar_lea.sflag [#allocation4], 1
    %1616 = vsyncpa %s1615, 1

// kernel: encoder_forward_padded.11
$region0: #{encoder_forward_padded.11}
  #allocation0 [shape = 'u32[]', space=smem, size = 0x4, offset = 0x4, fixed_abs, tag = 'smem constant byte address 0x4 - core index']
  #allocation1 [shape = 'u32[144,128]{1,0:T(1,128)}', space=vmem, size = 0x12000, scoped, tag = 'internal scratch']
  #allocation2 [shape = 'f32[256,128]{1,0:T(8,128)}', space=vmem, size = 0x20000, scoped, tag = 'scratch operand']
  %s0 = inlined_call_operand.vmem [shape: bf16[512,512], index: 0, kind: input, shape index: {}]
  %s1 = inlined_call_operand.vmem [shape: bf16[512,256], index: 1, kind: input, shape index: {}, may-alias: {1,2}]
  %s2 = inlined_call_operand.vmem [shape: bf16[512,256], index: 2, kind: input, shape index: {}, may-alias: {1,2}]
  %s3 = inlined_call_operand.vmem [shape: f32[1,128], index: 3, kind: input, shape index: {}]
  %s4 = inlined_call_operand.hbm [shape: f32[512,128], index: 4, kind: output, shape index: {}]
  %s5 = sld [smem:[#allocation0]]
  $region177: #{encoder_forward_padded.11} parent=0
    _
  %s7 = ssub.s32 1, %s5
  %s8 = scalar_select 0, %s7, %s5
  $region1: #{encoder_forward_padded.11} parent=0
    #allocation3 [shape = 'u8[262144]{0}', space=vmem, size = 0x40000, scoped, tag = 'input window, operand 0']
    #allocation4 [shape = 'u8[131072]{0}', space=vmem, size = 0x20000, scoped, tag = 'input window, operand 1']
    #allocation5 [shape = 'u8[131072]{0}', space=vmem, size = 0x20000, scoped, tag = 'input window, operand 2']
    #allocation6 [shape = 'u8[262144]{0}', space=vmem, size = 0x40000, scoped, tag = 'output window, operand 0']
    #allocation7 [shape = 's32[2]{0}', space=sflag, size = 0x8, scoped, tag = 'scoped memory for encoder_forward_padded.11']
    %9 = vsyncpa [#allocation7], 0
    %s10 = scalar_lea.sflag [#allocation7], 1
    %11 = vsyncpa %s10, 0
    loop: start=0, step=1, limit=6
    $region2: #{encoder_forward_padded.11} parent=1 // loop_pre_header
      _
    $region3: #{encoder_forward_padded.11} parent=1 // loop_header
      %s13 = sphi 0, %s17
      %p14 = scmp.ge.s32.totalorder %s13, 6
      %s20 = sphi 0, %s32
      %s21 = sphi 0, %s28
      %s22 = sphi 0, %s20
      %s23 = sphi 0, %s21
      %s24 = sphi 0, %s22
      %s25 = sphi 0, %s23
      %s37 = sphi 0, %s39
      %s40 = sphi 0, %s37
      %s41 = sphi 0, %s40
      %s57 = sphi 0, %s41
      %s63 = sphi 0, %s65
      %s66 = sphi 0, %s63
      %s67 = sphi 0, %s66
      %s83 = sphi 0, %s67
      %s89 = sphi 0, %s91
      %s92 = sphi 0, %s89
      %s93 = sphi 0, %s92
      %s109 = sphi 0, %s93
      %s113 = sphi 0, %s113
      %s115 = sphi 0, %s113
      %s116 = sphi 0, %s115
      %s130 = sphi 0, %s116
      %s136 = sphi 0, %s138
      %s139 = sphi 0, %s136
      %s140 = sphi 0, %s139
      %s156 = sphi 0, %s140
    $region4: #{encoder_forward_padded.11} parent=1 // loop_header_branch
      %16 = sbr.rel (%p14) target = $region8
    $region5: #{encoder_forward_padded.11} parent=1 // loop_body
      %s18 = ssub.s32 %s13, 1
      %s19 = ssub.s32 %s13, 2
      %s26 = sadd.s32 1, %s21
      %p27 = scmp.ge.s32.totalorder %s26, 2
      %s28 = scalar_select %p27, 0, %s26
      %s29 = sadd.s32 1, %s20
      %s30 = scalar_select %p27, %s29, %s20
      %p31 = scmp.ge.s32.totalorder %s30, 2
      %s32 = scalar_select %p31, 0, %s30
      %s33 = ssub.s32 %s20, %s32
      %s34 = ssub.s32 %s21, %s28
      %s35 = sor.u32 %s33, %s34
      %p36 = scmp.eq.s32.totalorder %s35, 0
      %s38 = sadd.s32 %s37, 1
      %s39 = scalar_select %p36, %s37, %s38
      %p42 = pneg %p36
      %p43 = scmp.eq.s32.totalorder %s13, 3
      %p44 = por %p42, %p43
      %p45 = scmp.ne.s32.totalorder %s37, %s40
      %p46 = scmp.eq.s32.totalorder %s13, 0
      %p47 = por %p45, %p46
      %p48 = scmp.ne.s32.totalorder %s37, %s40
      %p49 = scmp.eq.s32.totalorder %s18, 3
      %p50 = por %p48, %p49
      %p51 = scmp.ne.s32.totalorder %s40, %s41
      %p52 = scmp.eq.s32.totalorder %s18, 0
      %p53 = por %p51, %p52
      %p54 = scmp.ne.s32.totalorder %s40, %s41
      %p55 = scmp.eq.s32.totalorder %s19, 3
      %p56 = por %p54, %p55
      %p58 = scmp.ne.s32.totalorder %s41, %s57
      %p59 = scmp.eq.s32.totalorder %s19, 0
      %p60 = por %p58, %p59
      %s61 = ssub.s32 %s21, %s28
      %p62 = scmp.eq.s32.totalorder %s61, 0
      %s64 = sadd.s32 %s63, 1
      %s65 = scalar_select %p62, %s63, %s64
      %p68 = pneg %p62
      %p69 = scmp.eq.s32.totalorder %s13, 3
      %p70 = por %p68, %p69
      %p71 = scmp.ne.s32.totalorder %s63, %s66
      %p72 = scmp.eq.s32.totalorder %s13, 0
      %p73 = por %p71, %p72
      %p74 = scmp.ne.s32.totalorder %s63, %s66
      %p75 = scmp.eq.s32.totalorder %s18, 3
      %p76 = por %p74, %p75
      %p77 = scmp.ne.s32.totalorder %s66, %s67
      %p78 = scmp.eq.s32.totalorder %s18, 0
      %p79 = por %p77, %p78
      %p80 = scmp.ne.s32.totalorder %s66, %s67
      %p81 = scmp.eq.s32.totalorder %s19, 3
      %p82 = por %p80, %p81
      %p84 = scmp.ne.s32.totalorder %s67, %s83
      %p85 = scmp.eq.s32.totalorder %s19, 0
      %p86 = por %p84, %p85
      %s87 = ssub.s32 %s20, %s32
      %p88 = scmp.eq.s32.totalorder %s87, 0
      %s90 = sadd.s32 %s89, 1
      %s91 = scalar_select %p88, %s89, %s90
      %p94 = pneg %p88
      %p95 = scmp.eq.s32.totalorder %s13, 3
      %p96 = por %p94, %p95
      %p97 = scmp.ne.s32.totalorder %s89, %s92
      %p98 = scmp.eq.s32.totalorder %s13, 0
      %p99 = por %p97, %p98
      %p100 = scmp.ne.s32.totalorder %s89, %s92
      %p101 = scmp.eq.s32.totalorder %s18, 3
      %p102 = por %p100, %p101
      %p103 = scmp.ne.s32.totalorder %s92, %s93
      %p104 = scmp.eq.s32.totalorder %s18, 0
      %p105 = por %p103, %p104
      %p106 = scmp.ne.s32.totalorder %s92, %s93
      %p107 = scmp.eq.s32.totalorder %s19, 3
      %p108 = por %p106, %p107
      %p110 = scmp.ne.s32.totalorder %s93, %s109
      %p111 = scmp.eq.s32.totalorder %s19, 0
      %p112 = por %p110, %p111
      %s114 = sadd.s32 %s113, 1
      %p117 = scmp.eq.s32.totalorder %s13, 3
      %p118 = scmp.ne.s32.totalorder %s113, %s115
      %p119 = scmp.eq.s32.totalorder %s13, 0
      %p120 = por %p118, %p119
      %p121 = scmp.ne.s32.totalorder %s113, %s115
      %p122 = scmp.eq.s32.totalorder %s18, 3
      %p123 = por %p121, %p122
      %p124 = scmp.ne.s32.totalorder %s115, %s116
      %p125 = scmp.eq.s32.totalorder %s18, 0
      %p126 = por %p124, %p125
      %p127 = scmp.ne.s32.totalorder %s115, %s116
      %p128 = scmp.eq.s32.totalorder %s19, 3
      %p129 = por %p127, %p128
      %p131 = scmp.ne.s32.totalorder %s116, %s130
      %p132 = scmp.eq.s32.totalorder %s19, 0
      %p133 = por %p131, %p132
      %s134 = ssub.s32 %s20, %s32
      %p135 = scmp.eq.s32.totalorder %s134, 0
      %s137 = sadd.s32 %s136, 1
      %s138 = scalar_select %p135, %s136, %s137
      %p141 = pneg %p135
      %p142 = scmp.eq.s32.totalorder %s13, 3
      %p143 = por %p141, %p142
      %p144 = scmp.ne.s32.totalorder %s136, %s139
      %p145 = scmp.eq.s32.totalorder %s13, 0
      %p146 = por %p144, %p145
      %p147 = scmp.ne.s32.totalorder %s136, %s139
      %p148 = scmp.eq.s32.totalorder %s18, 3
      %p149 = por %p147, %p148
      %p150 = scmp.ne.s32.totalorder %s139, %s140
      %p151 = scmp.eq.s32.totalorder %s18, 0
      %p152 = por %p150, %p151
      %p153 = scmp.ne.s32.totalorder %s139, %s140
      %p154 = scmp.eq.s32.totalorder %s19, 3
      %p155 = por %p153, %p154
      %p157 = scmp.ne.s32.totalorder %s140, %s156
      %p158 = scmp.eq.s32.totalorder %s19, 0
      %p159 = por %p157, %p158
      %p160 = scmp.le.s32.totalorder 1, %s13
      %p161 = scmp.lt.s32.totalorder %s13, 5
      %p162 = pnand %p160, %p161
      %p163 = pneg %p162
      // Predicated region
      $region9: #{encoder_forward_padded.11} parent=5 // pred_check
        _
      $region10: #{encoder_forward_padded.11} parent=5 // pred_check_branch
        %165 = sbr.rel (%p162) target = $region12
      $region11: #{encoder_forward_padded.11} parent=5 // pred_region
        %s166 = ssub.s32 %s13, 1
        // Predicated region
        $region13: #{encoder_forward_padded.11} parent=11 // pred_check
          %p167 = pneg %p126
        $region14: #{encoder_forward_padded.11} parent=11 // pred_check_branch
          %169 = sbr.rel (%p167) target = $region16
        $region15: #{encoder_forward_padded.11} parent=11 // pred_region
          _
        $region16: #{encoder_forward_padded.11} parent=11 // pred_fallthru
          _
      $region12: #{encoder_forward_padded.11} parent=5 // pred_fallthru
        _
      %p170 = scmp.lt.s32.totalorder %s13, 4
      // Predicated region
      $region17: #{encoder_forward_padded.11} parent=5 // pred_check
        %p171 = pneg %p170
      $region18: #{encoder_forward_padded.11} parent=5 // pred_check_branch
        %173 = sbr.rel (%p171) target = $region20
      $region19: #{encoder_forward_padded.11} parent=5 // pred_region
        // Predicated region
        $region21: #{encoder_forward_padded.11} parent=19 // pred_check
          %p174 = pneg %p47
        $region22: #{encoder_forward_padded.11} parent=19 // pred_check_branch
          %176 = sbr.rel (%p174) target = $region24
        $region23: #{encoder_forward_padded.11} parent=19 // pred_region
          %s177 = sand.u32 %s37, 1
          %s178 = sand.u32 %s37, 1
          %s179 = smul.addr %s178, 256
          %s180 = scalar_lea.vmem [#allocation3], %s179
          %s181 = smul.u32 32, %s20
          %s182 = smul.u32 2, %s21
          %s183 = smul.addr %s181, 4
          %s184 = sadd.s32 %s182, %s183
          %s185 = smul.addr %s184, 4
          %s186 = scalar_lea.vmem %s0, %s185
          // Predicated region
          $region25: #{encoder_forward_padded.11} parent=23 // pred_check
            _
          $region26: #{encoder_forward_padded.11} parent=23 // pred_check_branch
            %188 = sbr.rel (0) target = $region28
          $region27: #{encoder_forward_padded.11} parent=23 // pred_region
            // Predicated region
            $region29: #{encoder_forward_padded.11} parent=27 // pred_check
              _
            $region30: #{encoder_forward_padded.11} parent=27 // pred_check_branch
              %190 = sbr.rel (0) target = $region32
            $region31: #{encoder_forward_padded.11} parent=27 // pred_region
              // Predicated region
              $region44: #{encoder_forward_padded.11} parent=31 // pred_check
                _
              $region45: #{encoder_forward_padded.11} parent=31 // pred_check_branch
                %267 = sbr.rel (0) target = $region47
              $region46: #{encoder_forward_padded.11} parent=31 // pred_region
                loop: start=0, step=1, limit=1
                $region48: #{encoder_forward_padded.11} parent=46 // loop_pre_header
                  _
                $region49: #{encoder_forward_padded.11} parent=46 // loop_header
                  %s269 = sphi 0, %s273
                  %p270 = scmp.ge.s32.totalorder %s269, 1
                  %s274 = sphi %s186, %s186
                  %s275 = sphi %s180, %s180
                $region50: #{encoder_forward_padded.11} parent=46 // loop_header_branch
                  %272 = sbr.rel (%p270) target = $region54
                $region51: #{encoder_forward_padded.11} parent=46 // loop_body
                  %v276 = vld [vmem:[%s274] sm:$0xff]
                  %277 = vst [vmem:[%s275] sm:$0xff] %v276
                  %v278 = vld [vmem:[%s274 + $0x10] sm:$0xff]
                  %279 = vst [vmem:[%s275 + $0x8] sm:$0xff] %v278
                  %v280 = vld [vmem:[%s274 + $0x20] sm:$0xff]
                  %281 = vst [vmem:[%s275 + $0x10] sm:$0xff] %v280
                  %v282 = vld [vmem:[%s274 + $0x30] sm:$0xff]
                  %283 = vst [vmem:[%s275 + $0x18] sm:$0xff] %v282
                  %v284 = vld [vmem:[%s274 + $0x40] sm:$0xff]
                  %285 = vst [vmem:[%s275 + $0x20] sm:$0xff] %v284
                  %v286 = vld [vmem:[%s274 + $0x50] sm:$0xff]
                  %287 = vst [vmem:[%s275 + $0x28] sm:$0xff] %v286
                  %v288 = vld [vmem:[%s274 + $0x60] sm:$0xff]
                  %289 = vst [vmem:[%s275 + $0x30] sm:$0xff] %v288
                  %v290 = vld [vmem:[%s274 + $0x70] sm:$0xff]
                  %291 = vst [vmem:[%s275 + $0x38] sm:$0xff] %v290
                  %v292 = vld [vmem:[%s274 + $0x80] sm:$0xff]
                  %293 = vst [vmem:[%s275 + $0x40] sm:$0xff] %v292
                  %v294 = vld [vmem:[%s274 + $0x90] sm:$0xff]
                  %295 = vst [vmem:[%s275 + $0x48] sm:$0xff] %v294
                  %v296 = vld [vmem:[%s274 + $0xa0] sm:$0xff]
                  %297 = vst [vmem:[%s275 + $0x50] sm:$0xff] %v296
                  %v298 = vld [vmem:[%s274 + $0xb0] sm:$0xff]
                  %299 = vst [vmem:[%s275 + $0x58] sm:$0xff] %v298
                  %v300 = vld [vmem:[%s274 + $0xc0] sm:$0xff]
                  %301 = vst [vmem:[%s275 + $0x60] sm:$0xff] %v300
                  %v302 = vld [vmem:[%s274 + $0xd0] sm:$0xff]
                  %303 = vst [vmem:[%s275 + $0x68] sm:$0xff] %v302
                  %v304 = vld [vmem:[%s274 + $0xe0] sm:$0xff]
                  %305 = vst [vmem:[%s275 + $0x70] sm:$0xff] %v304
                  %v306 = vld [vmem:[%s274 + $0xf0] sm:$0xff]
                  %307 = vst [vmem:[%s275 + $0x78] sm:$0xff] %v306
                  %v308 = vld [vmem:[%s274 + $0x100] sm:$0xff]
                  %309 = vst [vmem:[%s275 + $0x80] sm:$0xff] %v308
                  %v310 = vld [vmem:[%s274 + $0x110] sm:$0xff]
                  %311 = vst [vmem:[%s275 + $0x88] sm:$0xff] %v310
                  %v312 = vld [vmem:[%s274 + $0x120] sm:$0xff]
                  %313 = vst [vmem:[%s275 + $0x90] sm:$0xff] %v312
                  %v314 = vld [vmem:[%s274 + $0x130] sm:$0xff]
                  %315 = vst [vmem:[%s275 + $0x98] sm:$0xff] %v314
                  %v316 = vld [vmem:[%s274 + $0x140] sm:$0xff]
                  %317 = vst [vmem:[%s275 + $0xa0] sm:$0xff] %v316
                  %v318 = vld [vmem:[%s274 + $0x150] sm:$0xff]
                  %319 = vst [vmem:[%s275 + $0xa8] sm:$0xff] %v318
                  %v320 = vld [vmem:[%s274 + $0x160] sm:$0xff]
                  %321 = vst [vmem:[%s275 + $0xb0] sm:$0xff] %v320
                  %v322 = vld [vmem:[%s274 + $0x170] sm:$0xff]
                  %323 = vst [vmem:[%s275 + $0xb8] sm:$0xff] %v322
                  %v324 = vld [vmem:[%s274 + $0x180] sm:$0xff]
                  %325 = vst [vmem:[%s275 + $0xc0] sm:$0xff] %v324
                  %v326 = vld [vmem:[%s274 + $0x190] sm:$0xff]
                  %327 = vst [vmem:[%s275 + $0xc8] sm:$0xff] %v326
                  %v328 = vld [vmem:[%s274 + $0x1a0] sm:$0xff]
                  %329 = vst [vmem:[%s275 + $0xd0] sm:$0xff] %v328
                  %v330 = vld [vmem:[%s274 + $0x1b0] sm:$0xff]
                  %331 = vst [vmem:[%s275 + $0xd8] sm:$0xff] %v330
                  %v332 = vld [vmem:[%s274 + $0x1c0] sm:$0xff]
                  %333 = vst [vmem:[%s275 + $0xe0] sm:$0xff] %v332
                  %v334 = vld [vmem:[%s274 + $0x1d0] sm:$0xff]
                  %335 = vst [vmem:[%s275 + $0xe8] sm:$0xff] %v334
                  %v336 = vld [vmem:[%s274 + $0x1e0] sm:$0xff]
                  %337 = vst [vmem:[%s275 + $0xf0] sm:$0xff] %v336
                  %v338 = vld [vmem:[%s274 + $0x1f0] sm:$0xff]
                  %339 = vst [vmem:[%s275 + $0xf8] sm:$0xff] %v338
                $region52: #{encoder_forward_padded.11} parent=46 // loop_footer
                  %s273 = sadd.s32 1, %s269
                $region53: #{encoder_forward_padded.11} parent=46 // loop_footer_branch
                  %268 = sbr.rel target = $region49
                $region54: #{encoder_forward_padded.11} parent=46 // loop_exit
                  _
              $region47: #{encoder_forward_padded.11} parent=31 // pred_fallthru
                _
              // Predicated region
              $region55: #{encoder_forward_padded.11} parent=31 // pred_check
                _
              $region56: #{encoder_forward_padded.11} parent=31 // pred_check_branch
                %341 = sbr.rel target = $region58
              $region57: #{encoder_forward_padded.11} parent=31 // pred_region
                _
              $region58: #{encoder_forward_padded.11} parent=31 // pred_fallthru
                _
            $region32: #{encoder_forward_padded.11} parent=27 // pred_fallthru
              _
            // Predicated region
            $region33: #{encoder_forward_padded.11} parent=27 // pred_check
              _
            $region34: #{encoder_forward_padded.11} parent=27 // pred_check_branch
              %192 = sbr.rel target = $region36
            $region35: #{encoder_forward_padded.11} parent=27 // pred_region
              loop: start=0, step=1, limit=1
              $region37: #{encoder_forward_padded.11} parent=35 // loop_pre_header
                _
              $region38: #{encoder_forward_padded.11} parent=35 // loop_header
                %s195 = sphi 0, %s199
                %p196 = scmp.ge.s32.totalorder %s195, 1
                %s200 = sphi %s186, %s186
                %s201 = sphi %s180, %s180
              $region39: #{encoder_forward_padded.11} parent=35 // loop_header_branch
                %198 = sbr.rel (%p196) target = $region43
              $region40: #{encoder_forward_padded.11} parent=35 // loop_body
                %v202 = vld [vmem:[%s200] sm:$0xff]
                %203 = vst [vmem:[%s201] sm:$0xff] %v202
                %v204 = vld [vmem:[%s200 + $0x10] sm:$0xff]
                %205 = vst [vmem:[%s201 + $0x8] sm:$0xff] %v204
                %v206 = vld [vmem:[%s200 + $0x20] sm:$0xff]
                %207 = vst [vmem:[%s201 + $0x10] sm:$0xff] %v206
                %v208 = vld [vmem:[%s200 + $0x30] sm:$0xff]
                %209 = vst [vmem:[%s201 + $0x18] sm:$0xff] %v208
                %v210 = vld [vmem:[%s200 + $0x40] sm:$0xff]
                %211 = vst [vmem:[%s201 + $0x20] sm:$0xff] %v210
                %v212 = vld [vmem:[%s200 + $0x50] sm:$0xff]
                %213 = vst [vmem:[%s201 + $0x28] sm:$0xff] %v212
                %v214 = vld [vmem:[%s200 + $0x60] sm:$0xff]
                %215 = vst [vmem:[%s201 + $0x30] sm:$0xff] %v214
                %v216 = vld [vmem:[%s200 + $0x70] sm:$0xff]
                %217 = vst [vmem:[%s201 + $0x38] sm:$0xff] %v216
                %v218 = vld [vmem:[%s200 + $0x80] sm:$0xff]
                %219 = vst [vmem:[%s201 + $0x40] sm:$0xff] %v218
                %v220 = vld [vmem:[%s200 + $0x90] sm:$0xff]
                %221 = vst [vmem:[%s201 + $0x48] sm:$0xff] %v220
                %v222 = vld [vmem:[%s200 + $0xa0] sm:$0xff]
                %223 = vst [vmem:[%s201 + $0x50] sm:$0xff] %v222
                %v224 = vld [vmem:[%s200 + $0xb0] sm:$0xff]
                %225 = vst [vmem:[%s201 + $0x58] sm:$0xff] %v224
                %v226 = vld [vmem:[%s200 + $0xc0] sm:$0xff]
                %227 = vst [vmem:[%s201 + $0x60] sm:$0xff] %v226
                %v228 = vld [vmem:[%s200 + $0xd0] sm:$0xff]
                %229 = vst [vmem:[%s201 + $0x68] sm:$0xff] %v228
                %v230 = vld [vmem:[%s200 + $0xe0] sm:$0xff]
                %231 = vst [vmem:[%s201 + $0x70] sm:$0xff] %v230
                %v232 = vld [vmem:[%s200 + $0xf0] sm:$0xff]
                %233 = vst [vmem:[%s201 + $0x78] sm:$0xff] %v232
                %v234 = vld [vmem:[%s200 + $0x100] sm:$0xff]
                %235 = vst [vmem:[%s201 + $0x80] sm:$0xff] %v234
                %v236 = vld [vmem:[%s200 + $0x110] sm:$0xff]
                %237 = vst [vmem:[%s201 + $0x88] sm:$0xff] %v236
                %v238 = vld [vmem:[%s200 + $0x120] sm:$0xff]
                %239 = vst [vmem:[%s201 + $0x90] sm:$0xff] %v238
                %v240 = vld [vmem:[%s200 + $0x130] sm:$0xff]
                %241 = vst [vmem:[%s201 + $0x98] sm:$0xff] %v240
                %v242 = vld [vmem:[%s200 + $0x140] sm:$0xff]
                %243 = vst [vmem:[%s201 + $0xa0] sm:$0xff] %v242
                %v244 = vld [vmem:[%s200 + $0x150] sm:$0xff]
                %245 = vst [vmem:[%s201 + $0xa8] sm:$0xff] %v244
                %v246 = vld [vmem:[%s200 + $0x160] sm:$0xff]
                %247 = vst [vmem:[%s201 + $0xb0] sm:$0xff] %v246
                %v248 = vld [vmem:[%s200 + $0x170] sm:$0xff]
                %249 = vst [vmem:[%s201 + $0xb8] sm:$0xff] %v248
                %v250 = vld [vmem:[%s200 + $0x180] sm:$0xff]
                %251 = vst [vmem:[%s201 + $0xc0] sm:$0xff] %v250
                %v252 = vld [vmem:[%s200 + $0x190] sm:$0xff]
                %253 = vst [vmem:[%s201 + $0xc8] sm:$0xff] %v252
                %v254 = vld [vmem:[%s200 + $0x1a0] sm:$0xff]
                %255 = vst [vmem:[%s201 + $0xd0] sm:$0xff] %v254
                %v256 = vld [vmem:[%s200 + $0x1b0] sm:$0xff]
                %257 = vst [vmem:[%s201 + $0xd8] sm:$0xff] %v256
                %v258 = vld [vmem:[%s200 + $0x1c0] sm:$0xff]
                %259 = vst [vmem:[%s201 + $0xe0] sm:$0xff] %v258
                %v260 = vld [vmem:[%s200 + $0x1d0] sm:$0xff]
                %261 = vst [vmem:[%s201 + $0xe8] sm:$0xff] %v260
                %v262 = vld [vmem:[%s200 + $0x1e0] sm:$0xff]
                %263 = vst [vmem:[%s201 + $0xf0] sm:$0xff] %v262
                %v264 = vld [vmem:[%s200 + $0x1f0] sm:$0xff]
                %265 = vst [vmem:[%s201 + $0xf8] sm:$0xff] %v264
              $region41: #{encoder_forward_padded.11} parent=35 // loop_footer
                %s199 = sadd.s32 1, %s195
              $region42: #{encoder_forward_padded.11} parent=35 // loop_footer_branch
                %194 = sbr.rel target = $region38
              $region43: #{encoder_forward_padded.11} parent=35 // loop_exit
                _
            $region36: #{encoder_forward_padded.11} parent=27 // pred_fallthru
              _
          $region28: #{encoder_forward_padded.11} parent=23 // pred_fallthru
            _
          %342 = vnop
        $region24: #{encoder_forward_padded.11} parent=19 // pred_fallthru
          _
        // Predicated region
        $region59: #{encoder_forward_padded.11} parent=19 // pred_check
          %p343 = pneg %p73
        $region60: #{encoder_forward_padded.11} parent=19 // pred_check_branch
          %345 = sbr.rel (%p343) target = $region62
        $region61: #{encoder_forward_padded.11} parent=19 // pred_region
          %s346 = sand.u32 %s63, 1
          %s347 = sand.u32 %s63, 1
          %s348 = smul.addr %s347, 128
          %s349 = scalar_lea.vmem [#allocation4], %s348
          %s350 = smul.u32 32, %s21
          %s351 = smul.addr %s350, 2
          %s352 = smul.addr %s351, 4
          %s353 = scalar_lea.vmem %s1, %s352
          // Predicated region
          $region63: #{encoder_forward_padded.11} parent=61 // pred_check
            _
          $region64: #{encoder_forward_padded.11} parent=61 // pred_check_branch
            %355 = sbr.rel (0) target = $region66
          $region65: #{encoder_forward_padded.11} parent=61 // pred_region
            // Predicated region
            $region67: #{encoder_forward_padded.11} parent=65 // pred_check
              _
            $region68: #{encoder_forward_padded.11} parent=65 // pred_check_branch
              %357 = sbr.rel target = $region70
            $region69: #{encoder_forward_padded.11} parent=65 // pred_region
              // Predicated region
              $region82: #{encoder_forward_padded.11} parent=69 // pred_check
                _
              $region83: #{encoder_forward_padded.11} parent=69 // pred_check_branch
                %434 = sbr.rel (0) target = $region85
              $region84: #{encoder_forward_padded.11} parent=69 // pred_region
                loop: start=0, step=1, limit=1
                $region86: #{encoder_forward_padded.11} parent=84 // loop_pre_header
                  _
                $region87: #{encoder_forward_padded.11} parent=84 // loop_header
                  %s436 = sphi 0, %s440
                  %p437 = scmp.ge.s32.totalorder %s436, 1
                  %s441 = sphi %s353, %s353
                  %s442 = sphi %s349, %s349
                $region88: #{encoder_forward_padded.11} parent=84 // loop_header_branch
                  %439 = sbr.rel (%p437) target = $region92
                $region89: #{encoder_forward_padded.11} parent=84 // loop_body
                  _
                $region90: #{encoder_forward_padded.11} parent=84 // loop_footer
                  %s440 = sadd.s32 1, %s436
                $region91: #{encoder_forward_padded.11} parent=84 // loop_footer_branch
                  %435 = sbr.rel target = $region87
                $region92: #{encoder_forward_padded.11} parent=84 // loop_exit
                  _
                loop: start=0, step=1, limit=1
                $region93: #{encoder_forward_padded.11} parent=84 // loop_pre_header
                  _
                $region94: #{encoder_forward_padded.11} parent=84 // loop_header
                  %s445 = sphi 0, %s449
                  %p446 = scmp.ge.s32.totalorder %s445, 1
                  %s450 = sphi %s353, %s353
                  %s451 = sphi %s349, %s349
                $region95: #{encoder_forward_padded.11} parent=84 // loop_header_branch
                  %448 = sbr.rel (%p446) target = $region99
                $region96: #{encoder_forward_padded.11} parent=84 // loop_body
                  %v452 = vld [vmem:[%s450] sm:$0xf]
                  %453 = vst [vmem:[%s451] sm:$0xf] %v452
                  %v454 = vld [vmem:[%s450 + $0x8] sm:$0xf]
                  %455 = vst [vmem:[%s451 + $0x4] sm:$0xf] %v454
                  %v456 = vld [vmem:[%s450 + $0x10] sm:$0xf]
                  %457 = vst [vmem:[%s451 + $0x8] sm:$0xf] %v456
                  %v458 = vld [vmem:[%s450 + $0x18] sm:$0xf]
                  %459 = vst [vmem:[%s451 + $0xc] sm:$0xf] %v458
                  %v460 = vld [vmem:[%s450 + $0x20] sm:$0xf]
                  %461 = vst [vmem:[%s451 + $0x10] sm:$0xf] %v460
                  %v462 = vld [vmem:[%s450 + $0x28] sm:$0xf]
                  %463 = vst [vmem:[%s451 + $0x14] sm:$0xf] %v462
                  %v464 = vld [vmem:[%s450 + $0x30] sm:$0xf]
                  %465 = vst [vmem:[%s451 + $0x18] sm:$0xf] %v464
                  %v466 = vld [vmem:[%s450 + $0x38] sm:$0xf]
                  %467 = vst [vmem:[%s451 + $0x1c] sm:$0xf] %v466
                  %v468 = vld [vmem:[%s450 + $0x40] sm:$0xf]
                  %469 = vst [vmem:[%s451 + $0x20] sm:$0xf] %v468
                  %v470 = vld [vmem:[%s450 + $0x48] sm:$0xf]
                  %471 = vst [vmem:[%s451 + $0x24] sm:$0xf] %v470
                  %v472 = vld [vmem:[%s450 + $0x50] sm:$0xf]
                  %473 = vst [vmem:[%s451 + $0x28] sm:$0xf] %v472
                  %v474 = vld [vmem:[%s450 + $0x58] sm:$0xf]
                  %475 = vst [vmem:[%s451 + $0x2c] sm:$0xf] %v474
                  %v476 = vld [vmem:[%s450 + $0x60] sm:$0xf]
                  %477 = vst [vmem:[%s451 + $0x30] sm:$0xf] %v476
                  %v478 = vld [vmem:[%s450 + $0x68] sm:$0xf]
                  %479 = vst [vmem:[%s451 + $0x34] sm:$0xf] %v478
                  %v480 = vld [vmem:[%s450 + $0x70] sm:$0xf]
                  %481 = vst [vmem:[%s451 + $0x38] sm:$0xf] %v480
                  %v482 = vld [vmem:[%s450 + $0x78] sm:$0xf]
                  %483 = vst [vmem:[%s451 + $0x3c] sm:$0xf] %v482
                  %v484 = vld [vmem:[%s450 + $0x80] sm:$0xf]
                  %485 = vst [vmem:[%s451 + $0x40] sm:$0xf] %v484
                  %v486 = vld [vmem:[%s450 + $0x88] sm:$0xf]
                  %487 = vst [vmem:[%s451 + $0x44] sm:$0xf] %v486
                  %v488 = vld [vmem:[%s450 + $0x90] sm:$0xf]
                  %489 = vst [vmem:[%s451 + $0x48] sm:$0xf] %v488
                  %v490 = vld [vmem:[%s450 + $0x98] sm:$0xf]
                  %491 = vst [vmem:[%s451 + $0x4c] sm:$0xf] %v490
                  %v492 = vld [vmem:[%s450 + $0xa0] sm:$0xf]
                  %493 = vst [vmem:[%s451 + $0x50] sm:$0xf] %v492
                  %v494 = vld [vmem:[%s450 + $0xa8] sm:$0xf]
                  %495 = vst [vmem:[%s451 + $0x54] sm:$0xf] %v494
                  %v496 = vld [vmem:[%s450 + $0xb0] sm:$0xf]
                  %497 = vst [vmem:[%s451 + $0x58] sm:$0xf] %v496
                  %v498 = vld [vmem:[%s450 + $0xb8] sm:$0xf]
                  %499 = vst [vmem:[%s451 + $0x5c] sm:$0xf] %v498
                  %v500 = vld [vmem:[%s450 + $0xc0] sm:$0xf]
                  %501 = vst [vmem:[%s451 + $0x60] sm:$0xf] %v500
                  %v502 = vld [vmem:[%s450 + $0xc8] sm:$0xf]
                  %503 = vst [vmem:[%s451 + $0x64] sm:$0xf] %v502
                  %v504 = vld [vmem:[%s450 + $0xd0] sm:$0xf]
                  %505 = vst [vmem:[%s451 + $0x68] sm:$0xf] %v504
                  %v506 = vld [vmem:[%s450 + $0xd8] sm:$0xf]
                  %507 = vst [vmem:[%s451 + $0x6c] sm:$0xf] %v506
                  %v508 = vld [vmem:[%s450 + $0xe0] sm:$0xf]
                  %509 = vst [vmem:[%s451 + $0x70] sm:$0xf] %v508
                  %v510 = vld [vmem:[%s450 + $0xe8] sm:$0xf]
                  %511 = vst [vmem:[%s451 + $0x74] sm:$0xf] %v510
                  %v512 = vld [vmem:[%s450 + $0xf0] sm:$0xf]
                  %513 = vst [vmem:[%s451 + $0x78] sm:$0xf] %v512
                  %v514 = vld [vmem:[%s450 + $0xf8] sm:$0xf]
                  %515 = vst [vmem:[%s451 + $0x7c] sm:$0xf] %v514
                $region97: #{encoder_forward_padded.11} parent=84 // loop_footer
                  %s449 = sadd.s32 1, %s445
                $region98: #{encoder_forward_padded.11} parent=84 // loop_footer_branch
                  %444 = sbr.rel target = $region94
                $region99: #{encoder_forward_padded.11} parent=84 // loop_exit
                  _
              $region85: #{encoder_forward_padded.11} parent=69 // pred_fallthru
                _
            $region70: #{encoder_forward_padded.11} parent=65 // pred_fallthru
              _
            // Predicated region
            $region71: #{encoder_forward_padded.11} parent=65 // pred_check
              _
            $region72: #{encoder_forward_padded.11} parent=65 // pred_check_branch
              %359 = sbr.rel (0) target = $region74
            $region73: #{encoder_forward_padded.11} parent=65 // pred_region
              loop: start=0, step=1, limit=1
              $region75: #{encoder_forward_padded.11} parent=73 // loop_pre_header
                _
              $region76: #{encoder_forward_padded.11} parent=73 // loop_header
                %s362 = sphi 0, %s366
                %p363 = scmp.ge.s32.totalorder %s362, 1
                %s367 = sphi %s353, %s353
                %s368 = sphi %s349, %s349
              $region77: #{encoder_forward_padded.11} parent=73 // loop_header_branch
                %365 = sbr.rel (%p363) target = $region81
              $region78: #{encoder_forward_padded.11} parent=73 // loop_body
                %v369 = vld [vmem:[%s367] sm:$0xf]
                %370 = vst [vmem:[%s368] sm:$0xf] %v369
                %v371 = vld [vmem:[%s367 + $0x8] sm:$0xf]
                %372 = vst [vmem:[%s368 + $0x4] sm:$0xf] %v371
                %v373 = vld [vmem:[%s367 + $0x10] sm:$0xf]
                %374 = vst [vmem:[%s368 + $0x8] sm:$0xf] %v373
                %v375 = vld [vmem:[%s367 + $0x18] sm:$0xf]
                %376 = vst [vmem:[%s368 + $0xc] sm:$0xf] %v375
                %v377 = vld [vmem:[%s367 + $0x20] sm:$0xf]
                %378 = vst [vmem:[%s368 + $0x10] sm:$0xf] %v377
                %v379 = vld [vmem:[%s367 + $0x28] sm:$0xf]
                %380 = vst [vmem:[%s368 + $0x14] sm:$0xf] %v379
                %v381 = vld [vmem:[%s367 + $0x30] sm:$0xf]
                %382 = vst [vmem:[%s368 + $0x18] sm:$0xf] %v381
                %v383 = vld [vmem:[%s367 + $0x38] sm:$0xf]
                %384 = vst [vmem:[%s368 + $0x1c] sm:$0xf] %v383
                %v385 = vld [vmem:[%s367 + $0x40] sm:$0xf]
                %386 = vst [vmem:[%s368 + $0x20] sm:$0xf] %v385
                %v387 = vld [vmem:[%s367 + $0x48] sm:$0xf]
                %388 = vst [vmem:[%s368 + $0x24] sm:$0xf] %v387
                %v389 = vld [vmem:[%s367 + $0x50] sm:$0xf]
                %390 = vst [vmem:[%s368 + $0x28] sm:$0xf] %v389
                %v391 = vld [vmem:[%s367 + $0x58] sm:$0xf]
                %392 = vst [vmem:[%s368 + $0x2c] sm:$0xf] %v391
                %v393 = vld [vmem:[%s367 + $0x60] sm:$0xf]
                %394 = vst [vmem:[%s368 + $0x30] sm:$0xf] %v393
                %v395 = vld [vmem:[%s367 + $0x68] sm:$0xf]
                %396 = vst [vmem:[%s368 + $0x34] sm:$0xf] %v395
                %v397 = vld [vmem:[%s367 + $0x70] sm:$0xf]
                %398 = vst [vmem:[%s368 + $0x38] sm:$0xf] %v397
                %v399 = vld [vmem:[%s367 + $0x78] sm:$0xf]
                %400 = vst [vmem:[%s368 + $0x3c] sm:$0xf] %v399
                %v401 = vld [vmem:[%s367 + $0x80] sm:$0xf]
                %402 = vst [vmem:[%s368 + $0x40] sm:$0xf] %v401
                %v403 = vld [vmem:[%s367 + $0x88] sm:$0xf]
                %404 = vst [vmem:[%s368 + $0x44] sm:$0xf] %v403
                %v405 = vld [vmem:[%s367 + $0x90] sm:$0xf]
                %406 = vst [vmem:[%s368 + $0x48] sm:$0xf] %v405
                %v407 = vld [vmem:[%s367 + $0x98] sm:$0xf]
                %408 = vst [vmem:[%s368 + $0x4c] sm:$0xf] %v407
                %v409 = vld [vmem:[%s367 + $0xa0] sm:$0xf]
                %410 = vst [vmem:[%s368 + $0x50] sm:$0xf] %v409
                %v411 = vld [vmem:[%s367 + $0xa8] sm:$0xf]
                %412 = vst [vmem:[%s368 + $0x54] sm:$0xf] %v411
                %v413 = vld [vmem:[%s367 + $0xb0] sm:$0xf]
                %414 = vst [vmem:[%s368 + $0x58] sm:$0xf] %v413
                %v415 = vld [vmem:[%s367 + $0xb8] sm:$0xf]
                %416 = vst [vmem:[%s368 + $0x5c] sm:$0xf] %v415
                %v417 = vld [vmem:[%s367 + $0xc0] sm:$0xf]
                %418 = vst [vmem:[%s368 + $0x60] sm:$0xf] %v417
                %v419 = vld [vmem:[%s367 + $0xc8] sm:$0xf]
                %420 = vst [vmem:[%s368 + $0x64] sm:$0xf] %v419
                %v421 = vld [vmem:[%s367 + $0xd0] sm:$0xf]
                %422 = vst [vmem:[%s368 + $0x68] sm:$0xf] %v421
                %v423 = vld [vmem:[%s367 + $0xd8] sm:$0xf]
                %424 = vst [vmem:[%s368 + $0x6c] sm:$0xf] %v423
                %v425 = vld [vmem:[%s367 + $0xe0] sm:$0xf]
                %426 = vst [vmem:[%s368 + $0x70] sm:$0xf] %v425
                %v427 = vld [vmem:[%s367 + $0xe8] sm:$0xf]
                %428 = vst [vmem:[%s368 + $0x74] sm:$0xf] %v427
                %v429 = vld [vmem:[%s367 + $0xf0] sm:$0xf]
                %430 = vst [vmem:[%s368 + $0x78] sm:$0xf] %v429
                %v431 = vld [vmem:[%s367 + $0xf8] sm:$0xf]
                %432 = vst [vmem:[%s368 + $0x7c] sm:$0xf] %v431
              $region79: #{encoder_forward_padded.11} parent=73 // loop_footer
                %s366 = sadd.s32 1, %s362
              $region80: #{encoder_forward_padded.11} parent=73 // loop_footer_branch
                %361 = sbr.rel target = $region76
              $region81: #{encoder_forward_padded.11} parent=73 // loop_exit
                _
            $region74: #{encoder_forward_padded.11} parent=65 // pred_fallthru
              _
          $region66: #{encoder_forward_padded.11} parent=61 // pred_fallthru
            _
          %516 = vnop
        $region62: #{encoder_forward_padded.11} parent=19 // pred_fallthru
          _
        // Predicated region
        $region100: #{encoder_forward_padded.11} parent=19 // pred_check
          %p517 = pneg %p99
        $region101: #{encoder_forward_padded.11} parent=19 // pred_check_branch
          %519 = sbr.rel (%p517) target = $region103
        $region102: #{encoder_forward_padded.11} parent=19 // pred_region
          %s520 = sand.u32 %s89, 1
          %s521 = sand.u32 %s89, 1
          %s522 = smul.addr %s521, 128
          %s523 = scalar_lea.vmem [#allocation5], %s522
          %s524 = smul.u32 32, %s20
          %s525 = smul.addr %s524, 2
          %s526 = sadd.s32 1, %s525
          %s527 = smul.addr %s526, 4
          %s528 = scalar_lea.vmem %s2, %s527
          // Predicated region
          $region104: #{encoder_forward_padded.11} parent=102 // pred_check
            _
          $region105: #{encoder_forward_padded.11} parent=102 // pred_check_branch
            %530 = sbr.rel (0) target = $region107
          $region106: #{encoder_forward_padded.11} parent=102 // pred_region
            // Predicated region
            $region108: #{encoder_forward_padded.11} parent=106 // pred_check
              _
            $region109: #{encoder_forward_padded.11} parent=106 // pred_check_branch
              %532 = sbr.rel target = $region111
            $region110: #{encoder_forward_padded.11} parent=106 // pred_region
              // Predicated region
              $region123: #{encoder_forward_padded.11} parent=110 // pred_check
                _
              $region124: #{encoder_forward_padded.11} parent=110 // pred_check_branch
                %609 = sbr.rel (0) target = $region126
              $region125: #{encoder_forward_padded.11} parent=110 // pred_region
                loop: start=0, step=1, limit=1
                $region127: #{encoder_forward_padded.11} parent=125 // loop_pre_header
                  _
                $region128: #{encoder_forward_padded.11} parent=125 // loop_header
                  %s611 = sphi 0, %s615
                  %p612 = scmp.ge.s32.totalorder %s611, 1
                  %s616 = sphi %s528, %s528
                  %s617 = sphi %s523, %s523
                $region129: #{encoder_forward_padded.11} parent=125 // loop_header_branch
                  %614 = sbr.rel (%p612) target = $region133
                $region130: #{encoder_forward_padded.11} parent=125 // loop_body
                  _
                $region131: #{encoder_forward_padded.11} parent=125 // loop_footer
                  %s615 = sadd.s32 1, %s611
                $region132: #{encoder_forward_padded.11} parent=125 // loop_footer_branch
                  %610 = sbr.rel target = $region128
                $region133: #{encoder_forward_padded.11} parent=125 // loop_exit
                  _
                loop: start=0, step=1, limit=1
                $region134: #{encoder_forward_padded.11} parent=125 // loop_pre_header
                  _
                $region135: #{encoder_forward_padded.11} parent=125 // loop_header
                  %s620 = sphi 0, %s624
                  %p621 = scmp.ge.s32.totalorder %s620, 1
                  %s625 = sphi %s528, %s528
                  %s626 = sphi %s523, %s523
                $region136: #{encoder_forward_padded.11} parent=125 // loop_header_branch
                  %623 = sbr.rel (%p621) target = $region140
                $region137: #{encoder_forward_padded.11} parent=125 // loop_body
                  %v627 = vld [vmem:[%s625] sm:$0xf]
                  %628 = vst [vmem:[%s626] sm:$0xf] %v627
                  %v629 = vld [vmem:[%s625 + $0x8] sm:$0xf]
                  %630 = vst [vmem:[%s626 + $0x4] sm:$0xf] %v629
                  %v631 = vld [vmem:[%s625 + $0x10] sm:$0xf]
                  %632 = vst [vmem:[%s626 + $0x8] sm:$0xf] %v631
                  %v633 = vld [vmem:[%s625 + $0x18] sm:$0xf]
                  %634 = vst [vmem:[%s626 + $0xc] sm:$0xf] %v633
                  %v635 = vld [vmem:[%s625 + $0x20] sm:$0xf]
                  %636 = vst [vmem:[%s626 + $0x10] sm:$0xf] %v635
                  %v637 = vld [vmem:[%s625 + $0x28] sm:$0xf]
                  %638 = vst [vmem:[%s626 + $0x14] sm:$0xf] %v637
                  %v639 = vld [vmem:[%s625 + $0x30] sm:$0xf]
                  %640 = vst [vmem:[%s626 + $0x18] sm:$0xf] %v639
                  %v641 = vld [vmem:[%s625 + $0x38] sm:$0xf]
                  %642 = vst [vmem:[%s626 + $0x1c] sm:$0xf] %v641
                  %v643 = vld [vmem:[%s625 + $0x40] sm:$0xf]
                  %644 = vst [vmem:[%s626 + $0x20] sm:$0xf] %v643
                  %v645 = vld [vmem:[%s625 + $0x48] sm:$0xf]
                  %646 = vst [vmem:[%s626 + $0x24] sm:$0xf] %v645
                  %v647 = vld [vmem:[%s625 + $0x50] sm:$0xf]
                  %648 = vst [vmem:[%s626 + $0x28] sm:$0xf] %v647
                  %v649 = vld [vmem:[%s625 + $0x58] sm:$0xf]
                  %650 = vst [vmem:[%s626 + $0x2c] sm:$0xf] %v649
                  %v651 = vld [vmem:[%s625 + $0x60] sm:$0xf]
                  %652 = vst [vmem:[%s626 + $0x30] sm:$0xf] %v651
                  %v653 = vld [vmem:[%s625 + $0x68] sm:$0xf]
                  %654 = vst [vmem:[%s626 + $0x34] sm:$0xf] %v653
                  %v655 = vld [vmem:[%s625 + $0x70] sm:$0xf]
                  %656 = vst [vmem:[%s626 + $0x38] sm:$0xf] %v655
                  %v657 = vld [vmem:[%s625 + $0x78] sm:$0xf]
                  %658 = vst [vmem:[%s626 + $0x3c] sm:$0xf] %v657
                  %v659 = vld [vmem:[%s625 + $0x80] sm:$0xf]
                  %660 = vst [vmem:[%s626 + $0x40] sm:$0xf] %v659
                  %v661 = vld [vmem:[%s625 + $0x88] sm:$0xf]
                  %662 = vst [vmem:[%s626 + $0x44] sm:$0xf] %v661
                  %v663 = vld [vmem:[%s625 + $0x90] sm:$0xf]
                  %664 = vst [vmem:[%s626 + $0x48] sm:$0xf] %v663
                  %v665 = vld [vmem:[%s625 + $0x98] sm:$0xf]
                  %666 = vst [vmem:[%s626 + $0x4c] sm:$0xf] %v665
                  %v667 = vld [vmem:[%s625 + $0xa0] sm:$0xf]
                  %668 = vst [vmem:[%s626 + $0x50] sm:$0xf] %v667
                  %v669 = vld [vmem:[%s625 + $0xa8] sm:$0xf]
                  %670 = vst [vmem:[%s626 + $0x54] sm:$0xf] %v669
                  %v671 = vld [vmem:[%s625 + $0xb0] sm:$0xf]
                  %672 = vst [vmem:[%s626 + $0x58] sm:$0xf] %v671
                  %v673 = vld [vmem:[%s625 + $0xb8] sm:$0xf]
                  %674 = vst [vmem:[%s626 + $0x5c] sm:$0xf] %v673
                  %v675 = vld [vmem:[%s625 + $0xc0] sm:$0xf]
                  %676 = vst [vmem:[%s626 + $0x60] sm:$0xf] %v675
                  %v677 = vld [vmem:[%s625 + $0xc8] sm:$0xf]
                  %678 = vst [vmem:[%s626 + $0x64] sm:$0xf] %v677
                  %v679 = vld [vmem:[%s625 + $0xd0] sm:$0xf]
                  %680 = vst [vmem:[%s626 + $0x68] sm:$0xf] %v679
                  %v681 = vld [vmem:[%s625 + $0xd8] sm:$0xf]
                  %682 = vst [vmem:[%s626 + $0x6c] sm:$0xf] %v681
                  %v683 = vld [vmem:[%s625 + $0xe0] sm:$0xf]
                  %684 = vst [vmem:[%s626 + $0x70] sm:$0xf] %v683
                  %v685 = vld [vmem:[%s625 + $0xe8] sm:$0xf]
                  %686 = vst [vmem:[%s626 + $0x74] sm:$0xf] %v685
                  %v687 = vld [vmem:[%s625 + $0xf0] sm:$0xf]
                  %688 = vst [vmem:[%s626 + $0x78] sm:$0xf] %v687
                  %v689 = vld [vmem:[%s625 + $0xf8] sm:$0xf]
                  %690 = vst [vmem:[%s626 + $0x7c] sm:$0xf] %v689
                $region138: #{encoder_forward_padded.11} parent=125 // loop_footer
                  %s624 = sadd.s32 1, %s620
                $region139: #{encoder_forward_padded.11} parent=125 // loop_footer_branch
                  %619 = sbr.rel target = $region135
                $region140: #{encoder_forward_padded.11} parent=125 // loop_exit
                  _
              $region126: #{encoder_forward_padded.11} parent=110 // pred_fallthru
                _
            $region111: #{encoder_forward_padded.11} parent=106 // pred_fallthru
              _
            // Predicated region
            $region112: #{encoder_forward_padded.11} parent=106 // pred_check
              _
            $region113: #{encoder_forward_padded.11} parent=106 // pred_check_branch
              %534 = sbr.rel (0) target = $region115
            $region114: #{encoder_forward_padded.11} parent=106 // pred_region
              loop: start=0, step=1, limit=1
              $region116: #{encoder_forward_padded.11} parent=114 // loop_pre_header
                _
              $region117: #{encoder_forward_padded.11} parent=114 // loop_header
                %s537 = sphi 0, %s541
                %p538 = scmp.ge.s32.totalorder %s537, 1
                %s542 = sphi %s528, %s528
                %s543 = sphi %s523, %s523
              $region118: #{encoder_forward_padded.11} parent=114 // loop_header_branch
                %540 = sbr.rel (%p538) target = $region122
              $region119: #{encoder_forward_padded.11} parent=114 // loop_body
                %v544 = vld [vmem:[%s542] sm:$0xf]
                %545 = vst [vmem:[%s543] sm:$0xf] %v544
                %v546 = vld [vmem:[%s542 + $0x8] sm:$0xf]
                %547 = vst [vmem:[%s543 + $0x4] sm:$0xf] %v546
                %v548 = vld [vmem:[%s542 + $0x10] sm:$0xf]
                %549 = vst [vmem:[%s543 + $0x8] sm:$0xf] %v548
                %v550 = vld [vmem:[%s542 + $0x18] sm:$0xf]
                %551 = vst [vmem:[%s543 + $0xc] sm:$0xf] %v550
                %v552 = vld [vmem:[%s542 + $0x20] sm:$0xf]
                %553 = vst [vmem:[%s543 + $0x10] sm:$0xf] %v552
                %v554 = vld [vmem:[%s542 + $0x28] sm:$0xf]
                %555 = vst [vmem:[%s543 + $0x14] sm:$0xf] %v554
                %v556 = vld [vmem:[%s542 + $0x30] sm:$0xf]
                %557 = vst [vmem:[%s543 + $0x18] sm:$0xf] %v556
                %v558 = vld [vmem:[%s542 + $0x38] sm:$0xf]
                %559 = vst [vmem:[%s543 + $0x1c] sm:$0xf] %v558
                %v560 = vld [vmem:[%s542 + $0x40] sm:$0xf]
                %561 = vst [vmem:[%s543 + $0x20] sm:$0xf] %v560
                %v562 = vld [vmem:[%s542 + $0x48] sm:$0xf]
                %563 = vst [vmem:[%s543 + $0x24] sm:$0xf] %v562
                %v564 = vld [vmem:[%s542 + $0x50] sm:$0xf]
                %565 = vst [vmem:[%s543 + $0x28] sm:$0xf] %v564
                %v566 = vld [vmem:[%s542 + $0x58] sm:$0xf]
                %567 = vst [vmem:[%s543 + $0x2c] sm:$0xf] %v566
                %v568 = vld [vmem:[%s542 + $0x60] sm:$0xf]
                %569 = vst [vmem:[%s543 + $0x30] sm:$0xf] %v568
                %v570 = vld [vmem:[%s542 + $0x68] sm:$0xf]
                %571 = vst [vmem:[%s543 + $0x34] sm:$0xf] %v570
                %v572 = vld [vmem:[%s542 + $0x70] sm:$0xf]
                %573 = vst [vmem:[%s543 + $0x38] sm:$0xf] %v572
                %v574 = vld [vmem:[%s542 + $0x78] sm:$0xf]
                %575 = vst [vmem:[%s543 + $0x3c] sm:$0xf] %v574
                %v576 = vld [vmem:[%s542 + $0x80] sm:$0xf]
                %577 = vst [vmem:[%s543 + $0x40] sm:$0xf] %v576
                %v578 = vld [vmem:[%s542 + $0x88] sm:$0xf]
                %579 = vst [vmem:[%s543 + $0x44] sm:$0xf] %v578
                %v580 = vld [vmem:[%s542 + $0x90] sm:$0xf]
                %581 = vst [vmem:[%s543 + $0x48] sm:$0xf] %v580
                %v582 = vld [vmem:[%s542 + $0x98] sm:$0xf]
                %583 = vst [vmem:[%s543 + $0x4c] sm:$0xf] %v582
                %v584 = vld [vmem:[%s542 + $0xa0] sm:$0xf]
                %585 = vst [vmem:[%s543 + $0x50] sm:$0xf] %v584
                %v586 = vld [vmem:[%s542 + $0xa8] sm:$0xf]
                %587 = vst [vmem:[%s543 + $0x54] sm:$0xf] %v586
                %v588 = vld [vmem:[%s542 + $0xb0] sm:$0xf]
                %589 = vst [vmem:[%s543 + $0x58] sm:$0xf] %v588
                %v590 = vld [vmem:[%s542 + $0xb8] sm:$0xf]
                %591 = vst [vmem:[%s543 + $0x5c] sm:$0xf] %v590
                %v592 = vld [vmem:[%s542 + $0xc0] sm:$0xf]
                %593 = vst [vmem:[%s543 + $0x60] sm:$0xf] %v592
                %v594 = vld [vmem:[%s542 + $0xc8] sm:$0xf]
                %595 = vst [vmem:[%s543 + $0x64] sm:$0xf] %v594
                %v596 = vld [vmem:[%s542 + $0xd0] sm:$0xf]
                %597 = vst [vmem:[%s543 + $0x68] sm:$0xf] %v596
                %v598 = vld [vmem:[%s542 + $0xd8] sm:$0xf]
                %599 = vst [vmem:[%s543 + $0x6c] sm:$0xf] %v598
                %v600 = vld [vmem:[%s542 + $0xe0] sm:$0xf]
                %601 = vst [vmem:[%s543 + $0x70] sm:$0xf] %v600
                %v602 = vld [vmem:[%s542 + $0xe8] sm:$0xf]
                %603 = vst [vmem:[%s543 + $0x74] sm:$0xf] %v602
                %v604 = vld [vmem:[%s542 + $0xf0] sm:$0xf]
                %605 = vst [vmem:[%s543 + $0x78] sm:$0xf] %v604
                %v606 = vld [vmem:[%s542 + $0xf8] sm:$0xf]
                %607 = vst [vmem:[%s543 + $0x7c] sm:$0xf] %v606
              $region120: #{encoder_forward_padded.11} parent=114 // loop_footer
                %s541 = sadd.s32 1, %s537
              $region121: #{encoder_forward_padded.11} parent=114 // loop_footer_branch
                %536 = sbr.rel target = $region117
              $region122: #{encoder_forward_padded.11} parent=114 // loop_exit
                _
            $region115: #{encoder_forward_padded.11} parent=106 // pred_fallthru
              _
          $region107: #{encoder_forward_padded.11} parent=102 // pred_fallthru
            _
          %691 = vnop
        $region103: #{encoder_forward_padded.11} parent=19 // pred_fallthru
          _
      $region20: #{encoder_forward_padded.11} parent=5 // pred_fallthru
        _
      %p692 = scmp.le.s32.totalorder 1, %s13
      %p693 = scmp.lt.s32.totalorder %s13, 5
      %p694 = pnand %p692, %p693
      %p695 = pneg %p694
      // Predicated region
      $region141: #{encoder_forward_padded.11} parent=5 // pred_check
        _
      $region142: #{encoder_forward_padded.11} parent=5 // pred_check_branch
        %697 = sbr.rel (%p694) target = $region144
      $region143: #{encoder_forward_padded.11} parent=5 // pred_region
        %s698 = ssub.s32 %s13, 1
        %s699 = sand.u32 %s40, 1
        %s700 = sand.u32 %s40, 1
        %s701 = smul.addr %s700, 256
        %s702 = scalar_lea.vmem [#allocation3], %s701
        // Predicated region
        $region145: #{encoder_forward_padded.11} parent=143 // pred_check
          %p703 = pneg %p53
        $region146: #{encoder_forward_padded.11} parent=143 // pred_check_branch
          %705 = sbr.rel (%p703) target = $region148
        $region147: #{encoder_forward_padded.11} parent=143 // pred_region
          _
        $region148: #{encoder_forward_padded.11} parent=143 // pred_fallthru
          _
        %s706 = sand.u32 %s66, 1
        %s707 = sand.u32 %s66, 1
        %s708 = smul.addr %s707, 128
        %s709 = scalar_lea.vmem [#allocation4], %s708
        // Predicated region
        $region149: #{encoder_forward_padded.11} parent=143 // pred_check
          %p710 = pneg %p79
        $region150: #{encoder_forward_padded.11} parent=143 // pred_check_branch
          %712 = sbr.rel (%p710) target = $region152
        $region151: #{encoder_forward_padded.11} parent=143 // pred_region
          _
        $region152: #{encoder_forward_padded.11} parent=143 // pred_fallthru
          _
        %s713 = sand.u32 %s92, 1
        %s714 = sand.u32 %s92, 1
        %s715 = smul.addr %s714, 128
        %s716 = scalar_lea.vmem [#allocation5], %s715
        // Predicated region
        $region153: #{encoder_forward_padded.11} parent=143 // pred_check
          %p717 = pneg %p105
        $region154: #{encoder_forward_padded.11} parent=143 // pred_check_branch
          %719 = sbr.rel (%p717) target = $region156
        $region155: #{encoder_forward_padded.11} parent=143 // pred_region
          _
        $region156: #{encoder_forward_padded.11} parent=143 // pred_fallthru
          _
        %s720 = sand.u32 %s40, 1
        %s721 = sand.u32 %s40, 1
        %s722 = smul.addr %s721, 256
        %s723 = scalar_lea.vmem [#allocation3], %s722
        %p724 = pneg %p53
        %p725 = pneg %p50
        %s726 = sand.u32 %s66, 1
        %s727 = sand.u32 %s66, 1
        %s728 = smul.addr %s727, 128
        %s729 = scalar_lea.vmem [#allocation4], %s728
        %p730 = pneg %p79
        %p731 = pneg %p76
        %s732 = sand.u32 %s92, 1
        %s733 = sand.u32 %s92, 1
        %s734 = smul.addr %s733, 128
        %s735 = scalar_lea.vmem [#allocation5], %s734
        %p736 = pneg %p105
        %p737 = pneg %p102
        %p738 = pneg %p126
        %p739 = pneg %p123
        %p740 = pneg %p152
        %p741 = pneg %p149
        %s742 = sand.u32 %s139, 1
        %s743 = scalar_lea.sflag [#allocation7], %s742
        %s744 = sand.u32 %s139, 1
        %s745 = smul.addr %s744, 256
        %s746 = scalar_lea.vmem [#allocation6], %s745
        %s747 = smul.u32 32, %s22
        %s748 = smul.u32 2, %s23
        %s749 = smul.u32 32, %s23
        %s750 = smul.u32 32, %s22
        %s751 = smul.u32 32, %s22
        %p753 = scmp.eq.s32.totalorder %s23, 0
        // Predicated region
        $region157: #{encoder_forward_padded.11} parent=143 // pred_check
          %p754 = pneg %p753
        $region158: #{encoder_forward_padded.11} parent=143 // pred_check_branch
          %756 = sbr.rel (%p754) target = $region160
        $region159: #{encoder_forward_padded.11} parent=143 // pred_region
          %757 = vst [vmem:[#allocation2] sm:$0xff] 0.0
          %758 = vst [vmem:[#allocation2 + $0x8] sm:$0xff] 0.0
          %759 = vst [vmem:[#allocation2 + $0x10] sm:$0xff] 0.0
          %760 = vst [vmem:[#allocation2 + $0x18] sm:$0xff] 0.0
          %761 = vst [vmem:[#allocation2 + $0x20] sm:$0xff] 0.0
          %762 = vst [vmem:[#allocation2 + $0x28] sm:$0xff] 0.0
          %763 = vst [vmem:[#allocation2 + $0x30] sm:$0xff] 0.0
          %764 = vst [vmem:[#allocation2 + $0x38] sm:$0xff] 0.0
          %765 = vst [vmem:[#allocation2 + $0x40] sm:$0xff] 0.0
          %766 = vst [vmem:[#allocation2 + $0x48] sm:$0xff] 0.0
          %767 = vst [vmem:[#allocation2 + $0x50] sm:$0xff] 0.0
          %768 = vst [vmem:[#allocation2 + $0x58] sm:$0xff] 0.0
          %769 = vst [vmem:[#allocation2 + $0x60] sm:$0xff] 0.0
          %770 = vst [vmem:[#allocation2 + $0x68] sm:$0xff] 0.0
          %771 = vst [vmem:[#allocation2 + $0x70] sm:$0xff] 0.0
          %772 = vst [vmem:[#allocation2 + $0x78] sm:$0xff] 0.0
          %773 = vst [vmem:[#allocation2 + $0x80] sm:$0xff] 0.0
          %774 = vst [vmem:[#allocation2 + $0x88] sm:$0xff] 0.0
          %775 = vst [vmem:[#allocation2 + $0x90] sm:$0xff] 0.0
          %776 = vst [vmem:[#allocation2 + $0x98] sm:$0xff] 0.0
          %777 = vst [vmem:[#allocation2 + $0xa0] sm:$0xff] 0.0
          %778 = vst [vmem:[#allocation2 + $0xa8] sm:$0xff] 0.0
          %779 = vst [vmem:[#allocation2 + $0xb0] sm:$0xff] 0.0
          %780 = vst [vmem:[#allocation2 + $0xb8] sm:$0xff] 0.0
          %781 = vst [vmem:[#allocation2 + $0xc0] sm:$0xff] 0.0
          %782 = vst [vmem:[#allocation2 + $0xc8] sm:$0xff] 0.0
          %783 = vst [vmem:[#allocation2 + $0xd0] sm:$0xff] 0.0
          %784 = vst [vmem:[#allocation2 + $0xd8] sm:$0xff] 0.0
          %785 = vst [vmem:[#allocation2 + $0xe0] sm:$0xff] 0.0
          %786 = vst [vmem:[#allocation2 + $0xe8] sm:$0xff] 0.0
          %787 = vst [vmem:[#allocation2 + $0xf0] sm:$0xff] 0.0
          %788 = vst [vmem:[#allocation2 + $0xf8] sm:$0xff] 0.0
        $region160: #{encoder_forward_padded.11} parent=143 // pred_fallthru
          _
        %v789 = vld [vmem:[#allocation2] sm:$0xff]
        %v790 = vld [vmem:[#allocation2 + $0x8] sm:$0xff]
        %v791 = vld [vmem:[#allocation2 + $0x10] sm:$0xff]
        %v792 = vld [vmem:[#allocation2 + $0x18] sm:$0xff]
        %v793 = vld [vmem:[#allocation2 + $0x20] sm:$0xff]
        %v794 = vld [vmem:[#allocation2 + $0x28] sm:$0xff]
        %v795 = vld [vmem:[#allocation2 + $0x30] sm:$0xff]
        %v796 = vld [vmem:[#allocation2 + $0x38] sm:$0xff]
        %v797 = vld [vmem:[#allocation2 + $0x40] sm:$0xff]
        %v798 = vld [vmem:[#allocation2 + $0x48] sm:$0xff]
        %v799 = vld [vmem:[#allocation2 + $0x50] sm:$0xff]
        %v800 = vld [vmem:[#allocation2 + $0x58] sm:$0xff]
        %v801 = vld [vmem:[#allocation2 + $0x60] sm:$0xff]
        %v802 = vld [vmem:[#allocation2 + $0x68] sm:$0xff]
        %v803 = vld [vmem:[#allocation2 + $0x70] sm:$0xff]
        %v804 = vld [vmem:[#allocation2 + $0x78] sm:$0xff]
        %v805 = vld [vmem:[#allocation2 + $0x80] sm:$0xff]
        %v806 = vld [vmem:[#allocation2 + $0x88] sm:$0xff]
        %v807 = vld [vmem:[#allocation2 + $0x90] sm:$0xff]
        %v808 = vld [vmem:[#allocation2 + $0x98] sm:$0xff]
        %v809 = vld [vmem:[#allocation2 + $0xa0] sm:$0xff]
        %v810 = vld [vmem:[#allocation2 + $0xa8] sm:$0xff]
        %v811 = vld [vmem:[#allocation2 + $0xb0] sm:$0xff]
        %v812 = vld [vmem:[#allocation2 + $0xb8] sm:$0xff]
        %v813 = vld [vmem:[#allocation2 + $0xc0] sm:$0xff]
        %v814 = vld [vmem:[#allocation2 + $0xc8] sm:$0xff]
        %v815 = vld [vmem:[#allocation2 + $0xd0] sm:$0xff]
        %v816 = vld [vmem:[#allocation2 + $0xd8] sm:$0xff]
        %v817 = vld [vmem:[#allocation2 + $0xe0] sm:$0xff]
        %v818 = vld [vmem:[#allocation2 + $0xe8] sm:$0xff]
        %v819 = vld [vmem:[#allocation2 + $0xf0] sm:$0xff]
        %v820 = vld [vmem:[#allocation2 + $0xf8] sm:$0xff]
        %v821 = vld [vmem:[%s702] sm:$0xff]
        %v822 = vld [vmem:[%s702 + $0x8] sm:$0xff]
        %v823 = vld [vmem:[%s702 + $0x10] sm:$0xff]
        %v824 = vld [vmem:[%s702 + $0x18] sm:$0xff]
        %v825 = vld [vmem:[%s702 + $0x20] sm:$0xff]
        %v826 = vld [vmem:[%s702 + $0x28] sm:$0xff]
        %v827 = vld [vmem:[%s702 + $0x30] sm:$0xff]
        %v828 = vld [vmem:[%s702 + $0x38] sm:$0xff]
        %v829 = vld [vmem:[%s702 + $0x40] sm:$0xff]
        %v830 = vld [vmem:[%s702 + $0x48] sm:$0xff]
        %v831 = vld [vmem:[%s702 + $0x50] sm:$0xff]
        %v832 = vld [vmem:[%s702 + $0x58] sm:$0xff]
        %v833 = vld [vmem:[%s702 + $0x60] sm:$0xff]
        %v834 = vld [vmem:[%s702 + $0x68] sm:$0xff]
        %v835 = vld [vmem:[%s702 + $0x70] sm:$0xff]
        %v836 = vld [vmem:[%s702 + $0x78] sm:$0xff]
        %v837 = vld [vmem:[%s702 + $0x80] sm:$0xff]
        %v838 = vld [vmem:[%s702 + $0x88] sm:$0xff]
        %v839 = vld [vmem:[%s702 + $0x90] sm:$0xff]
        %v840 = vld [vmem:[%s702 + $0x98] sm:$0xff]
        %v841 = vld [vmem:[%s702 + $0xa0] sm:$0xff]
        %v842 = vld [vmem:[%s702 + $0xa8] sm:$0xff]
        %v843 = vld [vmem:[%s702 + $0xb0] sm:$0xff]
        %v844 = vld [vmem:[%s702 + $0xb8] sm:$0xff]
        %v845 = vld [vmem:[%s702 + $0xc0] sm:$0xff]
        %v846 = vld [vmem:[%s702 + $0xc8] sm:$0xff]
        %v847 = vld [vmem:[%s702 + $0xd0] sm:$0xff]
        %v848 = vld [vmem:[%s702 + $0xd8] sm:$0xff]
        %v849 = vld [vmem:[%s702 + $0xe0] sm:$0xff]
        %v850 = vld [vmem:[%s702 + $0xe8] sm:$0xff]
        %v851 = vld [vmem:[%s702 + $0xf0] sm:$0xff]
        %v852 = vld [vmem:[%s702 + $0xf8] sm:$0xff]
        %v853 = vld [vmem:[%s709] sm:$0xf]
        %v854 = vld [vmem:[%s709 + $0x4] sm:$0xf]
        %v855 = vld [vmem:[%s709 + $0x8] sm:$0xf]
        %v856 = vld [vmem:[%s709 + $0xc] sm:$0xf]
        %v857 = vld [vmem:[%s709 + $0x10] sm:$0xf]
        %v858 = vld [vmem:[%s709 + $0x14] sm:$0xf]
        %v859 = vld [vmem:[%s709 + $0x18] sm:$0xf]
        %v860 = vld [vmem:[%s709 + $0x1c] sm:$0xf]
        %v861 = vld [vmem:[%s709 + $0x20] sm:$0xf]
        %v862 = vld [vmem:[%s709 + $0x24] sm:$0xf]
        %v863 = vld [vmem:[%s709 + $0x28] sm:$0xf]
        %v864 = vld [vmem:[%s709 + $0x2c] sm:$0xf]
        %v865 = vld [vmem:[%s709 + $0x30] sm:$0xf]
        %v866 = vld [vmem:[%s709 + $0x34] sm:$0xf]
        %v867 = vld [vmem:[%s709 + $0x38] sm:$0xf]
        %v868 = vld [vmem:[%s709 + $0x3c] sm:$0xf]
        %v869 = vld [vmem:[%s709 + $0x40] sm:$0xf]
        %v870 = vld [vmem:[%s709 + $0x44] sm:$0xf]
        %v871 = vld [vmem:[%s709 + $0x48] sm:$0xf]
        %v872 = vld [vmem:[%s709 + $0x4c] sm:$0xf]
        %v873 = vld [vmem:[%s709 + $0x50] sm:$0xf]
        %v874 = vld [vmem:[%s709 + $0x54] sm:$0xf]
        %v875 = vld [vmem:[%s709 + $0x58] sm:$0xf]
        %v876 = vld [vmem:[%s709 + $0x5c] sm:$0xf]
        %v877 = vld [vmem:[%s709 + $0x60] sm:$0xf]
        %v878 = vld [vmem:[%s709 + $0x64] sm:$0xf]
        %v879 = vld [vmem:[%s709 + $0x68] sm:$0xf]
        %v880 = vld [vmem:[%s709 + $0x6c] sm:$0xf]
        %v881 = vld [vmem:[%s709 + $0x70] sm:$0xf]
        %v882 = vld [vmem:[%s709 + $0x74] sm:$0xf]
        %v883 = vld [vmem:[%s709 + $0x78] sm:$0xf]
        %v884 = vld [vmem:[%s709 + $0x7c] sm:$0xf]
        %v917 = vunpack.c.l.b16 %v821
        %v918 = vunpack.c.h.b16 %v821
        %v919 = vunpack.c.l.b16 %v822
        %v920 = vunpack.c.h.b16 %v822
        %v921 = vunpack.c.l.b16 %v823
        %v922 = vunpack.c.h.b16 %v823
        %v923 = vunpack.c.l.b16 %v824
        %v924 = vunpack.c.h.b16 %v824
        %v925 = vunpack.c.l.b16 %v825
        %v926 = vunpack.c.h.b16 %v825
        %v927 = vunpack.c.l.b16 %v826
        %v928 = vunpack.c.h.b16 %v826
        %v929 = vunpack.c.l.b16 %v827
        %v930 = vunpack.c.h.b16 %v827
        %v931 = vunpack.c.l.b16 %v828
        %v932 = vunpack.c.h.b16 %v828
        %v933 = vunpack.c.l.b16 %v829
        %v934 = vunpack.c.h.b16 %v829
        %v935 = vunpack.c.l.b16 %v830
        %v936 = vunpack.c.h.b16 %v830
        %v937 = vunpack.c.l.b16 %v831
        %v938 = vunpack.c.h.b16 %v831
        %v939 = vunpack.c.l.b16 %v832
        %v940 = vunpack.c.h.b16 %v832
        %v941 = vunpack.c.l.b16 %v833
        %v942 = vunpack.c.h.b16 %v833
        %v943 = vunpack.c.l.b16 %v834
        %v944 = vunpack.c.h.b16 %v834
        %v945 = vunpack.c.l.b16 %v835
        %v946 = vunpack.c.h.b16 %v835
        %v947 = vunpack.c.l.b16 %v836
        %v948 = vunpack.c.h.b16 %v836
        %v949 = vunpack.c.l.b16 %v837
        %v950 = vunpack.c.h.b16 %v837
        %v951 = vunpack.c.l.b16 %v838
        %v952 = vunpack.c.h.b16 %v838
        %v953 = vunpack.c.l.b16 %v839
        %v954 = vunpack.c.h.b16 %v839
        %v955 = vunpack.c.l.b16 %v840
        %v956 = vunpack.c.h.b16 %v840
        %v957 = vunpack.c.l.b16 %v841
        %v958 = vunpack.c.h.b16 %v841
        %v959 = vunpack.c.l.b16 %v842
        %v960 = vunpack.c.h.b16 %v842
        %v961 = vunpack.c.l.b16 %v843
        %v962 = vunpack.c.h.b16 %v843
        %v963 = vunpack.c.l.b16 %v844
        %v964 = vunpack.c.h.b16 %v844
        %v965 = vunpack.c.l.b16 %v845
        %v966 = vunpack.c.h.b16 %v845
        %v967 = vunpack.c.l.b16 %v846
        %v968 = vunpack.c.h.b16 %v846
        %v969 = vunpack.c.l.b16 %v847
        %v970 = vunpack.c.h.b16 %v847
        %v971 = vunpack.c.l.b16 %v848
        %v972 = vunpack.c.h.b16 %v848
        %v973 = vunpack.c.l.b16 %v849
        %v974 = vunpack.c.h.b16 %v849
        %v975 = vunpack.c.l.b16 %v850
        %v976 = vunpack.c.h.b16 %v850
        %v977 = vunpack.c.l.b16 %v851
        %v978 = vunpack.c.h.b16 %v851
        %v979 = vunpack.c.l.b16 %v852
        %v980 = vunpack.c.h.b16 %v852
        %v981 = vpack.c.b16 %v919, %v917
        %v982 = vpack.c.b16 %v920, %v918
        %v983 = vpack.c.b16 %v923, %v921
        %v984 = vpack.c.b16 %v924, %v922
        %v985 = vpack.c.b16 %v927, %v925
        %v986 = vpack.c.b16 %v928, %v926
        %v987 = vpack.c.b16 %v931, %v929
        %v988 = vpack.c.b16 %v932, %v930
        %v989 = vpack.c.b16 %v935, %v933
        %v990 = vpack.c.b16 %v936, %v934
        %v991 = vpack.c.b16 %v939, %v937
        %v992 = vpack.c.b16 %v940, %v938
        %v993 = vpack.c.b16 %v943, %v941
        %v994 = vpack.c.b16 %v944, %v942
        %v995 = vpack.c.b16 %v947, %v945
        %v996 = vpack.c.b16 %v948, %v946
        %v997 = vpack.c.b16 %v951, %v949
        %v998 = vpack.c.b16 %v952, %v950
        %v999 = vpack.c.b16 %v955, %v953
        %v1000 = vpack.c.b16 %v956, %v954
        %v1001 = vpack.c.b16 %v959, %v957
        %v1002 = vpack.c.b16 %v960, %v958
        %v1003 = vpack.c.b16 %v963, %v961
        %v1004 = vpack.c.b16 %v964, %v962
        %v1005 = vpack.c.b16 %v967, %v965
        %v1006 = vpack.c.b16 %v968, %v966
        %v1007 = vpack.c.b16 %v971, %v969
        %v1008 = vpack.c.b16 %v972, %v970
        %v1009 = vpack.c.b16 %v975, %v973
        %v1010 = vpack.c.b16 %v976, %v974
        %v1011 = vpack.c.b16 %v979, %v977
        %v1012 = vpack.c.b16 %v980, %v978
        %v1077 = vunpack.c.l.b16 %v853
        %v1078 = vunpack.c.l.b16 %v854
        %v1079 = vunpack.c.l.b16 %v855
        %v1080 = vunpack.c.l.b16 %v856
        %v1081 = vunpack.c.l.b16 %v857
        %v1082 = vunpack.c.l.b16 %v858
        %v1083 = vunpack.c.l.b16 %v859
        %v1084 = vunpack.c.l.b16 %v860
        %v1085 = vunpack.c.l.b16 %v861
        %v1086 = vunpack.c.l.b16 %v862
        %v1087 = vunpack.c.l.b16 %v863
        %v1088 = vunpack.c.l.b16 %v864
        %v1089 = vunpack.c.l.b16 %v865
        %v1090 = vunpack.c.l.b16 %v866
        %v1091 = vunpack.c.l.b16 %v867
        %v1092 = vunpack.c.l.b16 %v868
        %v1093 = vunpack.c.l.b16 %v869
        %v1094 = vunpack.c.l.b16 %v870
        %v1095 = vunpack.c.l.b16 %v871
        %v1096 = vunpack.c.l.b16 %v872
        %v1097 = vunpack.c.l.b16 %v873
        %v1098 = vunpack.c.l.b16 %v874
        %v1099 = vunpack.c.l.b16 %v875
        %v1100 = vunpack.c.l.b16 %v876
        %v1101 = vunpack.c.l.b16 %v877
        %v1102 = vunpack.c.l.b16 %v878
        %v1103 = vunpack.c.l.b16 %v879
        %v1104 = vunpack.c.l.b16 %v880
        %v1105 = vunpack.c.l.b16 %v881
        %v1106 = vunpack.c.l.b16 %v882
        %v1107 = vunpack.c.l.b16 %v883
        %v1108 = vunpack.c.l.b16 %v884
        %v1109 = vpack.c.b16 %v1078, %v1077
        %v1110 = vpack.c.b16 %v1080, %v1079
        %v1111 = vpack.c.b16 %v1082, %v1081
        %v1112 = vpack.c.b16 %v1084, %v1083
        %v1113 = vpack.c.b16 %v1086, %v1085
        %v1114 = vpack.c.b16 %v1088, %v1087
        %v1115 = vpack.c.b16 %v1090, %v1089
        %v1116 = vpack.c.b16 %v1092, %v1091
        %v1117 = vpack.c.b16 %v1094, %v1093
        %v1118 = vpack.c.b16 %v1096, %v1095
        %v1119 = vpack.c.b16 %v1098, %v1097
        %v1120 = vpack.c.b16 %v1100, %v1099
        %v1121 = vpack.c.b16 %v1102, %v1101
        %v1122 = vpack.c.b16 %v1104, %v1103
        %v1123 = vpack.c.b16 %v1106, %v1105
        %v1124 = vpack.c.b16 %v1108, %v1107
        %1141 = vmatprep.subr.bf16.mxu0 0
        %1142 = vmatpush1.bf16.msra.mxu0 %v1109
        %1143 = vmatprep.subr.bf16.mxu0 0
        %1144 = vmatpush1.bf16.msra.mxu0 %v1110
        %1145 = vmatprep.subr.bf16.mxu0 0
        %1146 = vmatpush1.bf16.msra.mxu0 %v1111
        %1147 = vmatprep.subr.bf16.mxu0 0
        %1148 = vmatpush1.bf16.msra.mxu0 %v1112
        %1149 = vmatprep.subr.bf16.mxu0 0
        %1150 = vmatpush1.bf16.msra.mxu0 %v1113
        %1151 = vmatprep.subr.bf16.mxu0 0
        %1152 = vmatpush1.bf16.msra.mxu0 %v1114
        %1153 = vmatprep.subr.bf16.mxu0 0
        %1154 = vmatpush1.bf16.msra.mxu0 %v1115
        %1155 = vmatprep.subr.bf16.mxu0 0
        %1156 = vmatpush1.bf16.msra.mxu0 %v1116
        %1157 = vmatprep.subr.bf16.mxu0 0
        %1158 = vmatpush1.bf16.msra.mxu0 %v1117
        %1159 = vmatprep.subr.bf16.mxu0 0
        %1160 = vmatpush1.bf16.msra.mxu0 %v1118
        %1161 = vmatprep.subr.bf16.mxu0 0
        %1162 = vmatpush1.bf16.msra.mxu0 %v1119
        %1163 = vmatprep.subr.bf16.mxu0 0
        %1164 = vmatpush1.bf16.msra.mxu0 %v1120
        %1165 = vmatprep.subr.bf16.mxu0 0
        %1166 = vmatpush1.bf16.msra.mxu0 %v1121
        %1167 = vmatprep.subr.bf16.mxu0 0
        %1168 = vmatpush1.bf16.msra.mxu0 %v1122
        %1169 = vmatprep.subr.bf16.mxu0 0
        %1170 = vmatpush1.bf16.msra.mxu0 %v1123
        %1171 = vmatprep.subr.bf16.mxu0 0
        %1172 = vmatpush1.bf16.msra.mxu0 %v1124
        %1173 = vmatprep.mubr.bf16.mxu0 %v982
        %1174 = vmatmul.mubr.bf16.gmra.mrb[0].mxu0 %v981
        %v1175 = vpop.f32.mrb[0].mxu0
        %v1176 = vadd.f32 0.0, %v1175
        %v1177 = vpop.f32.mrb[0].mxu0
        %v1178 = vpop.f32.mrb[0].mxu0
        %v1179 = vadd.f32 0.0, %v1178
        %v1180 = vpop.f32.mrb[0].mxu0
        %1181 = vmatprep.mubr.bf16.mxu0 %v984
        %1182 = vmatmul.mubr.bf16.gmra.mrb[0].mxu0 %v983
        %v1183 = vpop.f32.mrb[0].mxu0
        %v1184 = vadd.f32 0.0, %v1183
        %v1185 = vpop.f32.mrb[0].mxu0
        %v1186 = vpop.f32.mrb[0].mxu0
        %v1187 = vadd.f32 0.0, %v1186
        %v1188 = vpop.f32.mrb[0].mxu0
        %1189 = vmatprep.mubr.bf16.mxu0 %v986
        %1190 = vmatmul.mubr.bf16.gmra.mrb[0].mxu0 %v985
        %v1191 = vpop.f32.mrb[0].mxu0
        %v1192 = vadd.f32 0.0, %v1191
        %v1193 = vpop.f32.mrb[0].mxu0
        %v1194 = vpop.f32.mrb[0].mxu0
        %v1195 = vadd.f32 0.0, %v1194
        %v1196 = vpop.f32.mrb[0].mxu0
        %1197 = vmatprep.mubr.bf16.mxu0 %v988
        %1198 = vmatmul.mubr.bf16.gmra.mrb[0].mxu0 %v987
        %v1199 = vpop.f32.mrb[0].mxu0
        %v1200 = vadd.f32 0.0, %v1199
        %v1201 = vpop.f32.mrb[0].mxu0
        %v1202 = vpop.f32.mrb[0].mxu0
        %v1203 = vadd.f32 0.0, %v1202
        %v1204 = vpop.f32.mrb[0].mxu0
        %1205 = vmatprep.mubr.bf16.mxu0 %v990
        %1206 = vmatmul.mubr.bf16.gmra.mrb[0].mxu0 %v989
        %v1207 = vpop.f32.mrb[0].mxu0
        %v1208 = vadd.f32 0.0, %v1207
        %v1209 = vpop.f32.mrb[0].mxu0
        %v1210 = vpop.f32.mrb[0].mxu0
        %v1211 = vadd.f32 0.0, %v1210
        %v1212 = vpop.f32.mrb[0].mxu0
        %1213 = vmatprep.mubr.bf16.mxu0 %v992
        %1214 = vmatmul.mubr.bf16.gmra.mrb[0].mxu0 %v991
        %v1215 = vpop.f32.mrb[0].mxu0
        %v1216 = vadd.f32 0.0, %v1215
        %v1217 = vpop.f32.mrb[0].mxu0
        %v1218 = vpop.f32.mrb[0].mxu0
        %v1219 = vadd.f32 0.0, %v1218
        %v1220 = vpop.f32.mrb[0].mxu0
        %1221 = vmatprep.mubr.bf16.mxu0 %v994
        %1222 = vmatmul.mubr.bf16.gmra.mrb[0].mxu0 %v993
        %v1223 = vpop.f32.mrb[0].mxu0
        %v1224 = vadd.f32 0.0, %v1223
        %v1225 = vpop.f32.mrb[0].mxu0
        %v1226 = vpop.f32.mrb[0].mxu0
        %v1227 = vadd.f32 0.0, %v1226
        %v1228 = vpop.f32.mrb[0].mxu0
        %1229 = vmatprep.mubr.bf16.mxu0 %v996
        %1230 = vmatmul.mubr.bf16.gmra.mrb[0].mxu0 %v995
        %v1231 = vpop.f32.mrb[0].mxu0
        %v1232 = vadd.f32 0.0, %v1231
        %v1233 = vpop.f32.mrb[0].mxu0
        %v1234 = vpop.f32.mrb[0].mxu0
        %v1235 = vadd.f32 0.0, %v1234
        %v1236 = vpop.f32.mrb[0].mxu0
        %1237 = vmatprep.mubr.bf16.mxu0 %v998
        %1238 = vmatmul.mubr.bf16.gmra.mrb[0].mxu0 %v997
        %v1239 = vpop.f32.mrb[0].mxu0
        %v1240 = vadd.f32 0.0, %v1239
        %v1241 = vpop.f32.mrb[0].mxu0
        %v1242 = vpop.f32.mrb[0].mxu0
        %v1243 = vadd.f32 0.0, %v1242
        %v1244 = vpop.f32.mrb[0].mxu0
        %1245 = vmatprep.mubr.bf16.mxu0 %v1000
        %1246 = vmatmul.mubr.bf16.gmra.mrb[0].mxu0 %v999
        %v1247 = vpop.f32.mrb[0].mxu0
        %v1248 = vadd.f32 0.0, %v1247
        %v1249 = vpop.f32.mrb[0].mxu0
        %v1250 = vpop.f32.mrb[0].mxu0
        %v1251 = vadd.f32 0.0, %v1250
        %v1252 = vpop.f32.mrb[0].mxu0
        %1253 = vmatprep.mubr.bf16.mxu0 %v1002
        %1254 = vmatmul.mubr.bf16.gmra.mrb[0].mxu0 %v1001
        %v1255 = vpop.f32.mrb[0].mxu0
        %v1256 = vadd.f32 0.0, %v1255
        %v1257 = vpop.f32.mrb[0].mxu0
        %v1258 = vpop.f32.mrb[0].mxu0
        %v1259 = vadd.f32 0.0, %v1258
        %v1260 = vpop.f32.mrb[0].mxu0
        %1261 = vmatprep.mubr.bf16.mxu0 %v1004
        %1262 = vmatmul.mubr.bf16.gmra.mrb[0].mxu0 %v1003
        %v1263 = vpop.f32.mrb[0].mxu0
        %v1264 = vadd.f32 0.0, %v1263
        %v1265 = vpop.f32.mrb[0].mxu0
        %v1266 = vpop.f32.mrb[0].mxu0
        %v1267 = vadd.f32 0.0, %v1266
        %v1268 = vpop.f32.mrb[0].mxu0
        %1269 = vmatprep.mubr.bf16.mxu0 %v1006
        %1270 = vmatmul.mubr.bf16.gmra.mrb[0].mxu0 %v1005
        %v1271 = vpop.f32.mrb[0].mxu0
        %v1272 = vadd.f32 0.0, %v1271
        %v1273 = vpop.f32.mrb[0].mxu0
        %v1274 = vpop.f32.mrb[0].mxu0
        %v1275 = vadd.f32 0.0, %v1274
        %v1276 = vpop.f32.mrb[0].mxu0
        %1277 = vmatprep.mubr.bf16.mxu0 %v1008
        %1278 = vmatmul.mubr.bf16.gmra.mrb[0].mxu0 %v1007
        %v1279 = vpop.f32.mrb[0].mxu0
        %v1280 = vadd.f32 0.0, %v1279
        %v1281 = vpop.f32.mrb[0].mxu0
        %v1282 = vpop.f32.mrb[0].mxu0
        %v1283 = vadd.f32 0.0, %v1282
        %v1284 = vpop.f32.mrb[0].mxu0
        %1285 = vmatprep.mubr.bf16.mxu0 %v1010
        %1286 = vmatmul.mubr.bf16.gmra.mrb[0].mxu0 %v1009
        %v1287 = vpop.f32.mrb[0].mxu0
        %v1288 = vadd.f32 0.0, %v1287
        %v1289 = vpop.f32.mrb[0].mxu0
        %v1290 = vpop.f32.mrb[0].mxu0
        %v1291 = vadd.f32 0.0, %v1290
        %v1292 = vpop.f32.mrb[0].mxu0
        %1293 = vmatprep.mubr.bf16.mxu0 %v1012
        %1294 = vmatmul.mubr.bf16.gmra.mrb[0].mxu0 %v1011
        %v1295 = vpop.f32.mrb[0].mxu0
        %v1296 = vadd.f32 0.0, %v1295
        %v1297 = vpop.f32.mrb[0].mxu0
        %v1298 = vpop.f32.mrb[0].mxu0
        %v1299 = vadd.f32 0.0, %v1298
        %v1300 = vpop.f32.mrb[0].mxu0
        %1301 = vdwg.mxu0
        %v1302 = vadd.f32 %v789, %v1176
        %v1303 = vadd.f32 %v790, %v1179
        %v1304 = vadd.f32 %v791, %v1184
        %v1305 = vadd.f32 %v792, %v1187
        %v1306 = vadd.f32 %v793, %v1192
        %v1307 = vadd.f32 %v794, %v1195
        %v1308 = vadd.f32 %v795, %v1200
        %v1309 = vadd.f32 %v796, %v1203
        %v1310 = vadd.f32 %v797, %v1208
        %v1311 = vadd.f32 %v798, %v1211
        %v1312 = vadd.f32 %v799, %v1216
        %v1313 = vadd.f32 %v800, %v1219
        %v1314 = vadd.f32 %v801, %v1224
        %v1315 = vadd.f32 %v802, %v1227
        %v1316 = vadd.f32 %v803, %v1232
        %v1317 = vadd.f32 %v804, %v1235
        %v1318 = vadd.f32 %v805, %v1240
        %v1319 = vadd.f32 %v806, %v1243
        %v1320 = vadd.f32 %v807, %v1248
        %v1321 = vadd.f32 %v808, %v1251
        %v1322 = vadd.f32 %v809, %v1256
        %v1323 = vadd.f32 %v810, %v1259
        %v1324 = vadd.f32 %v811, %v1264
        %v1325 = vadd.f32 %v812, %v1267
        %v1326 = vadd.f32 %v813, %v1272
        %v1327 = vadd.f32 %v814, %v1275
        %v1328 = vadd.f32 %v815, %v1280
        %v1329 = vadd.f32 %v816, %v1283
        %v1330 = vadd.f32 %v817, %v1288
        %v1331 = vadd.f32 %v818, %v1291
        %v1332 = vadd.f32 %v819, %v1296
        %v1333 = vadd.f32 %v820, %v1299
        %1334 = vst [vmem:[#allocation2] sm:$0xff] %v1302
        %1335 = vst [vmem:[#allocation2 + $0x8] sm:$0xff] %v1303
        %1336 = vst [vmem:[#allocation2 + $0x10] sm:$0xff] %v1304
        %1337 = vst [vmem:[#allocation2 + $0x18] sm:$0xff] %v1305
        %1338 = vst [vmem:[#allocation2 + $0x20] sm:$0xff] %v1306
        %1339 = vst [vmem:[#allocation2 + $0x28] sm:$0xff] %v1307
        %1340 = vst [vmem:[#allocation2 + $0x30] sm:$0xff] %v1308
        %1341 = vst [vmem:[#allocation2 + $0x38] sm:$0xff] %v1309
        %1342 = vst [vmem:[#allocation2 + $0x40] sm:$0xff] %v1310
        %1343 = vst [vmem:[#allocation2 + $0x48] sm:$0xff] %v1311
        %1344 = vst [vmem:[#allocation2 + $0x50] sm:$0xff] %v1312
        %1345 = vst [vmem:[#allocation2 + $0x58] sm:$0xff] %v1313
        %1346 = vst [vmem:[#allocation2 + $0x60] sm:$0xff] %v1314
        %1347 = vst [vmem:[#allocation2 + $0x68] sm:$0xff] %v1315
        %1348 = vst [vmem:[#allocation2 + $0x70] sm:$0xff] %v1316
        %1349 = vst [vmem:[#allocation2 + $0x78] sm:$0xff] %v1317
        %1350 = vst [vmem:[#allocation2 + $0x80] sm:$0xff] %v1318
        %1351 = vst [vmem:[#allocation2 + $0x88] sm:$0xff] %v1319
        %1352 = vst [vmem:[#allocation2 + $0x90] sm:$0xff] %v1320
        %1353 = vst [vmem:[#allocation2 + $0x98] sm:$0xff] %v1321
        %1354 = vst [vmem:[#allocation2 + $0xa0] sm:$0xff] %v1322
        %1355 = vst [vmem:[#allocation2 + $0xa8] sm:$0xff] %v1323
        %1356 = vst [vmem:[#allocation2 + $0xb0] sm:$0xff] %v1324
        %1357 = vst [vmem:[#allocation2 + $0xb8] sm:$0xff] %v1325
        %1358 = vst [vmem:[#allocation2 + $0xc0] sm:$0xff] %v1326
        %1359 = vst [vmem:[#allocation2 + $0xc8] sm:$0xff] %v1327
        %1360 = vst [vmem:[#allocation2 + $0xd0] sm:$0xff] %v1328
        %1361 = vst [vmem:[#allocation2 + $0xd8] sm:$0xff] %v1329
        %1362 = vst [vmem:[#allocation2 + $0xe0] sm:$0xff] %v1330
        %1363 = vst [vmem:[#allocation2 + $0xe8] sm:$0xff] %v1331
        %1364 = vst [vmem:[#allocation2 + $0xf0] sm:$0xff] %v1332
        %1365 = vst [vmem:[#allocation2 + $0xf8] sm:$0xff] %v1333
        %p1366 = scmp.eq.s32.totalorder %s23, 1
        // Predicated region
        $region161: #{encoder_forward_padded.11} parent=143 // pred_check
          %p1367 = pneg %p1366
        $region162: #{encoder_forward_padded.11} parent=143 // pred_check_branch
          %1369 = sbr.rel (%p1367) target = $region164
        $region163: #{encoder_forward_padded.11} parent=143 // pred_region
          %v1370 = vld [vmem:[#allocation2] sm:$0xff]
          %v1371 = vld [vmem:[#allocation2 + $0x8] sm:$0xff]
          %v1372 = vld [vmem:[#allocation2 + $0x10] sm:$0xff]
          %v1373 = vld [vmem:[#allocation2 + $0x18] sm:$0xff]
          %v1374 = vld [vmem:[#allocation2 + $0x20] sm:$0xff]
          %v1375 = vld [vmem:[#allocation2 + $0x28] sm:$0xff]
          %v1376 = vld [vmem:[#allocation2 + $0x30] sm:$0xff]
          %v1377 = vld [vmem:[#allocation2 + $0x38] sm:$0xff]
          %v1378 = vld [vmem:[#allocation2 + $0x40] sm:$0xff]
          %v1379 = vld [vmem:[#allocation2 + $0x48] sm:$0xff]
          %v1380 = vld [vmem:[#allocation2 + $0x50] sm:$0xff]
          %v1381 = vld [vmem:[#allocation2 + $0x58] sm:$0xff]
          %v1382 = vld [vmem:[#allocation2 + $0x60] sm:$0xff]
          %v1383 = vld [vmem:[#allocation2 + $0x68] sm:$0xff]
          %v1384 = vld [vmem:[#allocation2 + $0x70] sm:$0xff]
          %v1385 = vld [vmem:[#allocation2 + $0x78] sm:$0xff]
          %v1386 = vld [vmem:[#allocation2 + $0x80] sm:$0xff]
          %v1387 = vld [vmem:[#allocation2 + $0x88] sm:$0xff]
          %v1388 = vld [vmem:[#allocation2 + $0x90] sm:$0xff]
          %v1389 = vld [vmem:[#allocation2 + $0x98] sm:$0xff]
          %v1390 = vld [vmem:[#allocation2 + $0xa0] sm:$0xff]
          %v1391 = vld [vmem:[#allocation2 + $0xa8] sm:$0xff]
          %v1392 = vld [vmem:[#allocation2 + $0xb0] sm:$0xff]
          %v1393 = vld [vmem:[#allocation2 + $0xb8] sm:$0xff]
          %v1394 = vld [vmem:[#allocation2 + $0xc0] sm:$0xff]
          %v1395 = vld [vmem:[#allocation2 + $0xc8] sm:$0xff]
          %v1396 = vld [vmem:[#allocation2 + $0xd0] sm:$0xff]
          %v1397 = vld [vmem:[#allocation2 + $0xd8] sm:$0xff]
          %v1398 = vld [vmem:[#allocation2 + $0xe0] sm:$0xff]
          %v1399 = vld [vmem:[#allocation2 + $0xe8] sm:$0xff]
          %v1400 = vld [vmem:[#allocation2 + $0xf0] sm:$0xff]
          %v1401 = vld [vmem:[#allocation2 + $0xf8] sm:$0xff]
          %v1402 = vld [vmem:[%s716] sm:$0xf]
          %v1403 = vld [vmem:[%s716 + $0x4] sm:$0xf]
          %v1404 = vld [vmem:[%s716 + $0x8] sm:$0xf]
          %v1405 = vld [vmem:[%s716 + $0xc] sm:$0xf]
          %v1406 = vld [vmem:[%s716 + $0x10] sm:$0xf]
          %v1407 = vld [vmem:[%s716 + $0x14] sm:$0xf]
          %v1408 = vld [vmem:[%s716 + $0x18] sm:$0xf]
          %v1409 = vld [vmem:[%s716 + $0x1c] sm:$0xf]
          %v1410 = vld [vmem:[%s716 + $0x20] sm:$0xf]
          %v1411 = vld [vmem:[%s716 + $0x24] sm:$0xf]
          %v1412 = vld [vmem:[%s716 + $0x28] sm:$0xf]
          %v1413 = vld [vmem:[%s716 + $0x2c] sm:$0xf]
          %v1414 = vld [vmem:[%s716 + $0x30] sm:$0xf]
          %v1415 = vld [vmem:[%s716 + $0x34] sm:$0xf]
          %v1416 = vld [vmem:[%s716 + $0x38] sm:$0xf]
          %v1417 = vld [vmem:[%s716 + $0x3c] sm:$0xf]
          %v1418 = vld [vmem:[%s716 + $0x40] sm:$0xf]
          %v1419 = vld [vmem:[%s716 + $0x44] sm:$0xf]
          %v1420 = vld [vmem:[%s716 + $0x48] sm:$0xf]
          %v1421 = vld [vmem:[%s716 + $0x4c] sm:$0xf]
          %v1422 = vld [vmem:[%s716 + $0x50] sm:$0xf]
          %v1423 = vld [vmem:[%s716 + $0x54] sm:$0xf]
          %v1424 = vld [vmem:[%s716 + $0x58] sm:$0xf]
          %v1425 = vld [vmem:[%s716 + $0x5c] sm:$0xf]
          %v1426 = vld [vmem:[%s716 + $0x60] sm:$0xf]
          %v1427 = vld [vmem:[%s716 + $0x64] sm:$0xf]
          %v1428 = vld [vmem:[%s716 + $0x68] sm:$0xf]
          %v1429 = vld [vmem:[%s716 + $0x6c] sm:$0xf]
          %v1430 = vld [vmem:[%s716 + $0x70] sm:$0xf]
          %v1431 = vld [vmem:[%s716 + $0x74] sm:$0xf]
          %v1432 = vld [vmem:[%s716 + $0x78] sm:$0xf]
          %v1433 = vld [vmem:[%s716 + $0x7c] sm:$0xf]
          %v1434 = vunpack.c.l.bf16 %v1402
          %v1435 = vunpack.c.l.bf16 %v1403
          %v1436 = vunpack.c.l.bf16 %v1404
          %v1437 = vunpack.c.l.bf16 %v1405
          %v1438 = vunpack.c.l.bf16 %v1406
          %v1439 = vunpack.c.l.bf16 %v1407
          %v1440 = vunpack.c.l.bf16 %v1408
          %v1441 = vunpack.c.l.bf16 %v1409
          %v1442 = vunpack.c.l.bf16 %v1410
          %v1443 = vunpack.c.l.bf16 %v1411
          %v1444 = vunpack.c.l.bf16 %v1412
          %v1445 = vunpack.c.l.bf16 %v1413
          %v1446 = vunpack.c.l.bf16 %v1414
          %v1447 = vunpack.c.l.bf16 %v1415
          %v1448 = vunpack.c.l.bf16 %v1416
          %v1449 = vunpack.c.l.bf16 %v1417
          %v1450 = vunpack.c.l.bf16 %v1418
          %v1451 = vunpack.c.l.bf16 %v1419
          %v1452 = vunpack.c.l.bf16 %v1420
          %v1453 = vunpack.c.l.bf16 %v1421
          %v1454 = vunpack.c.l.bf16 %v1422
          %v1455 = vunpack.c.l.bf16 %v1423
          %v1456 = vunpack.c.l.bf16 %v1424
          %v1457 = vunpack.c.l.bf16 %v1425
          %v1458 = vunpack.c.l.bf16 %v1426
          %v1459 = vunpack.c.l.bf16 %v1427
          %v1460 = vunpack.c.l.bf16 %v1428
          %v1461 = vunpack.c.l.bf16 %v1429
          %v1462 = vunpack.c.l.bf16 %v1430
          %v1463 = vunpack.c.l.bf16 %v1431
          %v1464 = vunpack.c.l.bf16 %v1432
          %v1465 = vunpack.c.l.bf16 %v1433
          %v1466 = vadd.f32 %v1370, %v1434
          %v1467 = vadd.f32 %v1371, %v1435
          %v1468 = vadd.f32 %v1372, %v1436
          %v1469 = vadd.f32 %v1373, %v1437
          %v1470 = vadd.f32 %v1374, %v1438
          %v1471 = vadd.f32 %v1375, %v1439
          %v1472 = vadd.f32 %v1376, %v1440
          %v1473 = vadd.f32 %v1377, %v1441
          %v1474 = vadd.f32 %v1378, %v1442
          %v1475 = vadd.f32 %v1379, %v1443
          %v1476 = vadd.f32 %v1380, %v1444
          %v1477 = vadd.f32 %v1381, %v1445
          %v1478 = vadd.f32 %v1382, %v1446
          %v1479 = vadd.f32 %v1383, %v1447
          %v1480 = vadd.f32 %v1384, %v1448
          %v1481 = vadd.f32 %v1385, %v1449
          %v1482 = vadd.f32 %v1386, %v1450
          %v1483 = vadd.f32 %v1387, %v1451
          %v1484 = vadd.f32 %v1388, %v1452
          %v1485 = vadd.f32 %v1389, %v1453
          %v1486 = vadd.f32 %v1390, %v1454
          %v1487 = vadd.f32 %v1391, %v1455
          %v1488 = vadd.f32 %v1392, %v1456
          %v1489 = vadd.f32 %v1393, %v1457
          %v1490 = vadd.f32 %v1394, %v1458
          %v1491 = vadd.f32 %v1395, %v1459
          %v1492 = vadd.f32 %v1396, %v1460
          %v1493 = vadd.f32 %v1397, %v1461
          %v1494 = vadd.f32 %v1398, %v1462
          %v1495 = vadd.f32 %v1399, %v1463
          %v1496 = vadd.f32 %v1400, %v1464
          %v1497 = vadd.f32 %v1401, %v1465
          %v1498 = vld [vmem:[%s3] sm:$0x1]
          %v1500 = vlaneseq
          %v1501 = vshrl.u32 %v1500, 7
          %v1502 = vsub.s32 0, %v1501
          %v1503 = vrot.slane %v1498, %v1502
          %v1505 = vadd.f32 %v1466, %v1503
          %v1506 = vadd.f32 %v1467, %v1503
          %v1507 = vadd.f32 %v1468, %v1503
          %v1508 = vadd.f32 %v1469, %v1503
          %v1509 = vadd.f32 %v1470, %v1503
          %v1510 = vadd.f32 %v1471, %v1503
          %v1511 = vadd.f32 %v1472, %v1503
          %v1512 = vadd.f32 %v1473, %v1503
          %v1513 = vadd.f32 %v1474, %v1503
          %v1514 = vadd.f32 %v1475, %v1503
          %v1515 = vadd.f32 %v1476, %v1503
          %v1516 = vadd.f32 %v1477, %v1503
          %v1517 = vadd.f32 %v1478, %v1503
          %v1518 = vadd.f32 %v1479, %v1503
          %v1519 = vadd.f32 %v1480, %v1503
          %v1520 = vadd.f32 %v1481, %v1503
          %v1521 = vadd.f32 %v1482, %v1503
          %v1522 = vadd.f32 %v1483, %v1503
          %v1523 = vadd.f32 %v1484, %v1503
          %v1524 = vadd.f32 %v1485, %v1503
          %v1525 = vadd.f32 %v1486, %v1503
          %v1526 = vadd.f32 %v1487, %v1503
          %v1527 = vadd.f32 %v1488, %v1503
          %v1528 = vadd.f32 %v1489, %v1503
          %v1529 = vadd.f32 %v1490, %v1503
          %v1530 = vadd.f32 %v1491, %v1503
          %v1531 = vadd.f32 %v1492, %v1503
          %v1532 = vadd.f32 %v1493, %v1503
          %v1533 = vadd.f32 %v1494, %v1503
          %v1534 = vadd.f32 %v1495, %v1503
          %v1535 = vadd.f32 %v1496, %v1503
          %v1536 = vadd.f32 %v1497, %v1503
          %1537 = vst [vmem:[%s746] sm:$0xff] %v1505
          %1538 = vst [vmem:[%s746 + $0x8] sm:$0xff] %v1506
          %1539 = vst [vmem:[%s746 + $0x10] sm:$0xff] %v1507
          %1540 = vst [vmem:[%s746 + $0x18] sm:$0xff] %v1508
          %1541 = vst [vmem:[%s746 + $0x20] sm:$0xff] %v1509
          %1542 = vst [vmem:[%s746 + $0x28] sm:$0xff] %v1510
          %1543 = vst [vmem:[%s746 + $0x30] sm:$0xff] %v1511
          %1544 = vst [vmem:[%s746 + $0x38] sm:$0xff] %v1512
          %1545 = vst [vmem:[%s746 + $0x40] sm:$0xff] %v1513
          %1546 = vst [vmem:[%s746 + $0x48] sm:$0xff] %v1514
          %1547 = vst [vmem:[%s746 + $0x50] sm:$0xff] %v1515
          %1548 = vst [vmem:[%s746 + $0x58] sm:$0xff] %v1516
          %1549 = vst [vmem:[%s746 + $0x60] sm:$0xff] %v1517
          %1550 = vst [vmem:[%s746 + $0x68] sm:$0xff] %v1518
          %1551 = vst [vmem:[%s746 + $0x70] sm:$0xff] %v1519
          %1552 = vst [vmem:[%s746 + $0x78] sm:$0xff] %v1520
          %1553 = vst [vmem:[%s746 + $0x80] sm:$0xff] %v1521
          %1554 = vst [vmem:[%s746 + $0x88] sm:$0xff] %v1522
          %1555 = vst [vmem:[%s746 + $0x90] sm:$0xff] %v1523
          %1556 = vst [vmem:[%s746 + $0x98] sm:$0xff] %v1524
          %1557 = vst [vmem:[%s746 + $0xa0] sm:$0xff] %v1525
          %1558 = vst [vmem:[%s746 + $0xa8] sm:$0xff] %v1526
          %1559 = vst [vmem:[%s746 + $0xb0] sm:$0xff] %v1527
          %1560 = vst [vmem:[%s746 + $0xb8] sm:$0xff] %v1528
          %1561 = vst [vmem:[%s746 + $0xc0] sm:$0xff] %v1529
          %1562 = vst [vmem:[%s746 + $0xc8] sm:$0xff] %v1530
          %1563 = vst [vmem:[%s746 + $0xd0] sm:$0xff] %v1531
          %1564 = vst [vmem:[%s746 + $0xd8] sm:$0xff] %v1532
          %1565 = vst [vmem:[%s746 + $0xe0] sm:$0xff] %v1533
          %1566 = vst [vmem:[%s746 + $0xe8] sm:$0xff] %v1534
          %1567 = vst [vmem:[%s746 + $0xf0] sm:$0xff] %v1535
          %1568 = vst [vmem:[%s746 + $0xf8] sm:$0xff] %v1536
        $region164: #{encoder_forward_padded.11} parent=143 // pred_fallthru
          _
        %s1569 = sand.u32 %s139, 1
        %s1570 = scalar_lea.sflag [#allocation7], %s1569
        %s1571 = sand.u32 %s139, 1
        %s1572 = smul.addr %s1571, 256
        %s1573 = scalar_lea.vmem [#allocation6], %s1572
        // Predicated region
        $region165: #{encoder_forward_padded.11} parent=143 // pred_check
          %p1574 = pneg %p149
        $region166: #{encoder_forward_padded.11} parent=143 // pred_check_branch
          %1576 = sbr.rel (%p1574) target = $region168
        $region167: #{encoder_forward_padded.11} parent=143 // pred_region
          %s1577 = smul.u32 32, %s22
          %s1579 = ssub.s32 4096, 4096
          %1580 = vsyncadd %s1570, %s1579
          %s1581 = smul.addr %s1577, 128
          %s1582 = scalar_lea.hbm %s4, %s1581
          %s1583 = sshll.u32 %s1573, 4
          %s1584 = int_to_ptr.vmem [resolvable:$true] %s1583
          %1589 = dma.vmem_to_hbm [thread:$0]  %s1584, 4096, %s1582, %s1570, 128, 128, 8
        $region168: #{encoder_forward_padded.11} parent=143 // pred_fallthru
          _
      $region144: #{encoder_forward_padded.11} parent=5 // pred_fallthru
        _
      %p1590 = scmp.le.s32.totalorder 2, %s13
      // Predicated region
      $region169: #{encoder_forward_padded.11} parent=5 // pred_check
        %p1591 = pneg %p1590
      $region170: #{encoder_forward_padded.11} parent=5 // pred_check_branch
        %1593 = sbr.rel (%p1591) target = $region172
      $region171: #{encoder_forward_padded.11} parent=5 // pred_region
        %s1594 = ssub.s32 %s13, 2
        // Predicated region
        $region173: #{encoder_forward_padded.11} parent=171 // pred_check
          %p1595 = pneg %p155
        $region174: #{encoder_forward_padded.11} parent=171 // pred_check_branch
          %1597 = sbr.rel (%p1595) target = $region176
        $region175: #{encoder_forward_padded.11} parent=171 // pred_region
          %s1598 = sand.u32 %s140, 1
          %s1599 = scalar_lea.sflag [#allocation7], %s1598
          %s1600 = sand.u32 %s140, 1
          %s1601 = smul.addr %s1600, 256
          %s1602 = scalar_lea.vmem [#allocation6], %s1601
          %1603 = dma.done %s1599, 4096
        $region176: #{encoder_forward_padded.11} parent=171 // pred_fallthru
          _
      $region172: #{encoder_forward_padded.11} parent=5 // pred_fallthru
        _
    $region6: #{encoder_forward_padded.11} parent=1 // loop_footer
      %s17 = sadd.s32 1, %s13
    $region7: #{encoder_forward_padded.11} parent=1 // loop_footer_branch
      %12 = sbr.rel target = $region3
    $region8: #{encoder_forward_padded.11} parent=1 // loop_exit
      _
    %1604 = vsyncpa [#allocation7], 1
    %s1605 = scalar_lea.sflag [#allocation7], 1
    %1606 = vsyncpa %s1605, 1

</llo_original>
